<compile_context>
chip_gen: v7x
topology: tpu7x:2x2x1
jax: 0.10.0
libtpu: 0.0.40
codegen_flags: <defaults>
</compile_context>

<pallas_src>
import math
import functools

import jax
import jax.numpy as jnp
from jax import lax
from jax.experimental import pallas as pl
from jax.experimental.pallas import tpu as pltpu


NEG_INF = -1e30


def _round_up(n, m):
    return (n + m - 1) // m * m


def _gelu_tanh(x):
    # tanh-form GELU (EUP tanh); matches jax.nn.gelu(approximate=True).
    # TODO(synk): PyTorch nn.GELU() defaults to the exact erf form; tanh form differs by <~3e-3.
    c = math.sqrt(2.0 / math.pi)
    return 0.5 * x * (1.0 + jnp.tanh(c * (x + 0.044715 * x * x * x)))


# ---------------------------------------------------------------------------
# Pallas kernel: one grid step == TB batch elements, flattened to TBL = TB*Lp rows.
# Fuses: head-padded fused QKV projection, folded-batch multi-head masked attention,
#        hoisted output projection, LayerNorm, Linear -> GELU -> Linear (lane-dense output).
# ---------------------------------------------------------------------------
def scot_kernel(nheads, HP,
                x_ref, ck_ref, bd_ref,
                wqkv_ref, bqkv_ref, wo_ref, bo_ref,
                lng_ref, lnb_ref, w1_ref, b1_ref, w2t_ref, b2_ref,
                o_ref,
                qkv_scr, heads_scr):
    TBL, D = x_ref.shape

    # ---- fused QKV projection (bf16 MXU, f32 accumulate) into a bf16 VMEM scratch.
    # Column layout per head h: [Q_h | K_h | V_h], each padded to HP=128 lanes (pads are
    # exactly zero), so every per-head slice below is a 128-lane-aligned static view.
    qkv = jnp.dot(x_ref[...], wqkv_ref[...], preferred_element_type=jnp.float32)
    qkv_scr[...] = (qkv + bqkv_ref[...]).astype(jnp.bfloat16)

    # ---- additive mask for the folded-batch [TBL, TBL] score matrix.
    # bd_ref: static block-diag(earlier-slate) matrix (also kills cross-element attention);
    # ck_ref: per-key clicked flags (zero item & padded batch rows have flag 1 at col 0).
    bias = jnp.where(bd_ref[...] * ck_ref[0] > 0.5, 0.0, NEG_INF)        # [TBL, TBL] f32

    # ---- multi-head attention: one QK^T / PV matmul pair per head over the whole slab.
    for h in range(nheads):
        c0 = h * 3 * HP
        qh = qkv_scr[:, c0:c0 + HP]                   # bf16 [TBL, HP] (scale pre-folded)
        kh = qkv_scr[:, c0 + HP:c0 + 2 * HP]
        vh = qkv_scr[:, c0 + 2 * HP:c0 + 3 * HP]
        s = lax.dot_general(qh, kh, (((1,), (1,)), ((), ())),
                            preferred_element_type=jnp.float32) + bias   # [TBL, TBL]
        s = s - jnp.max(s, axis=-1, keepdims=True)
        p = jnp.exp(s)
        p = p * pl.reciprocal(jnp.sum(p, axis=-1, keepdims=True), approx=True)
        oh = jnp.dot(p.astype(jnp.bfloat16), vh,
                     preferred_element_type=jnp.float32)                 # [TBL, HP]
        heads_scr[:, h * HP:(h + 1) * HP] = oh.astype(jnp.bfloat16)

    # ---- single (hoisted) output projection over all heads.
    feat = jnp.dot(heads_scr[...], wo_ref[...],
                   preferred_element_type=jnp.float32) + bo_ref[...]     # [TBL, D] f32

    # ---- LayerNorm (row 0 / padding results dropped in the wrapper).
    mu = jnp.mean(feat, axis=-1, keepdims=True)
    var = jnp.mean(jnp.square(feat - mu), axis=-1, keepdims=True)
    hn = (feat - mu) * lax.rsqrt(var + 1e-5) * lng_ref[...] + lnb_ref[...]

    # ---- FFN: Linear -> GELU(tanh, EUP) -> Linear, final [D -> 1] done transposed so the
    #      output stays lane-dense: [1, TBL] with TBL a multiple of 128.
    h1 = jnp.dot(hn.astype(jnp.bfloat16), w1_ref[...],
                 preferred_element_type=jnp.float32) + b1_ref[...]
    h1 = _gelu_tanh(h1)
    out = lax.dot_general(w2t_ref[...], h1.astype(jnp.bfloat16), (((1,), (1,)), ((), ())),
                          preferred_element_type=jnp.float32) + b2_ref[...]
    o_ref[0] = out


def scot_pallas(x_flat_bf, clicked_g, bd_mat, prep, nheads, HP):
    G, _, TBL = clicked_g.shape
    D = x_flat_bf.shape[1]
    C3 = 3 * nheads * HP

    kernel = functools.partial(scot_kernel, nheads, HP)
    args = (x_flat_bf, clicked_g, bd_mat,
            prep['wqkv'], prep['bqkv'], prep['wo'], prep['bo'],
            prep['ln_g'], prep['ln_b'], prep['w1'], prep['b1'],
            prep['w2t'], prep['b2'])

    def build(single_buffer_weights):
        def inv(shape):
            idx = lambda g, _s=shape: (0,) * len(_s)
            if single_buffer_weights:
                # grid-invariant operand: one VMEM buffer suffices (block index never changes)
                return pl.BlockSpec(shape, idx, pipeline_mode=pl.Buffered(1))
            return pl.BlockSpec(shape, idx)

        return pl.pallas_call(
            kernel,
            out_shape=jax.ShapeDtypeStruct((G, 1, TBL), jnp.float32),
            grid=(G,),
            in_specs=[
                pl.BlockSpec((TBL, D), lambda g: (g, 0)),        # x (bf16), flattened [G*TBL, D]
                pl.BlockSpec((1, 1, TBL), lambda g: (g, 0, 0)),  # clicked flags (f32 0/1)
                inv((TBL, TBL)),                                 # static block-diag earlier-slate
                inv((D, C3)), inv((1, C3)),                      # Wqkv (bf16, head-padded), bqkv
                inv((nheads * HP, D)), inv((1, D)),              # Wo (bf16, head-padded), bo
                inv((1, D)), inv((1, D)),                        # LayerNorm gamma, beta
                inv((D, D)), inv((1, D)),                        # W1 (bf16), b1
                inv((1, D)), inv((1, 1)),                        # W2^T (bf16), b2
            ],
            out_specs=pl.BlockSpec((1, 1, TBL), lambda g: (g, 0, 0)),
            scratch_shapes=[pltpu.VMEM((TBL, C3), jnp.bfloat16),          # qkv scratch
                            pltpu.VMEM((TBL, nheads * HP), jnp.bfloat16)],  # per-head outputs
            compiler_params=pltpu.CompilerParams(
                dimension_semantics=("parallel",),
                vmem_limit_bytes=32 * 1024 * 1024),
        )

    try:
        return build(True)(*args)
    except Exception:
        # pl.Buffered(1) unsupported on this jax build -> fall back to default buffering.
        return build(False)(*args)


# ---------------------------------------------------------------------------
# Plain-JAX glue: embeddings, zero-item prepend, padding, compact mask inputs, weight prep.
# ---------------------------------------------------------------------------
def prepare_params(params, nheads):
    f32, bf = jnp.float32, jnp.bfloat16
    D = params['wq'].shape[0]
    assert D % nheads == 0
    hd = D // nheads
    HP = _round_up(hd, 128)                       # 128-lane aligned per-head block
    scale = 1.0 / math.sqrt(hd)                   # attention scale folded into Wq / bq

    def per_head_w(w):                            # [D, D] -> [D, nheads, HP] (zero-padded)
        return jnp.pad(w.reshape(D, nheads, hd), ((0, 0), (0, 0), (0, HP - hd)))

    def per_head_b(b):                            # [1, D] -> [1, nheads, HP]
        return jnp.pad(b.reshape(1, nheads, hd), ((0, 0), (0, 0), (0, HP - hd)))

    wq, wk, wv = per_head_w(params['wq'] * scale), per_head_w(params['wk']), per_head_w(params['wv'])
    bq, bk, bv = per_head_b(params['bq'] * scale), per_head_b(params['bk']), per_head_b(params['bv'])
    # column layout: per head h -> [Q_h(HP) | K_h(HP) | V_h(HP)]
    wqkv = jnp.stack([wq, wk, wv], axis=2).reshape(D, nheads * 3 * HP)
    bqkv = jnp.stack([bq, bk, bv], axis=2).reshape(1, nheads * 3 * HP)

    # Wo rows padded to the same per-head HP layout (matches heads scratch columns).
    wo = params['wo'].reshape(nheads, hd, D)
    wo = jnp.pad(wo, ((0, 0), (0, HP - hd), (0, 0))).reshape(nheads * HP, D)

    prep = dict(
        wqkv=wqkv.astype(bf), bqkv=bqkv.astype(f32),
        wo=wo.astype(bf), bo=params['bo'].astype(f32),
        ln_g=params['ln_g'].astype(f32), ln_b=params['ln_b'].astype(f32),
        w1=params['w1'].astype(bf), b1=params['b1'].astype(f32),
        w2t=params['w2'].T.astype(bf), b2=params['b2'].astype(f32),
    )
    return HP, prep


def scot_inputs(params, batch):
    """Embedding lookup, zero-item prepend, pad to Lp, compact mask inputs."""
    item_idx = batch['item_indexes']       # [B, S, K] int32
    user_idx = batch['user_indexes']       # [B]       int32
    responses = batch['responses']         # [B, S, K]

    item_embs = params['item_emb'][item_idx]        # [B, S, K, E]
    user_embs = params['user_emb'][user_idx]        # [B, E]
    B, S, K, E = item_embs.shape
    D = 2 * E
    L = S * K + 1
    Lp = _round_up(L, 16)

    # stack_embeddings + add_zero_item
    u = jnp.broadcast_to(user_embs[:, None, None, :], (B, S, K, E))
    x = jnp.concatenate([item_embs, u], axis=-1).reshape(B, S * K, D)
    x = jnp.concatenate([jnp.zeros((B, 1, D), x.dtype), x], axis=1)          # [B, L, D]
    x = jnp.pad(x, ((0, 0), (0, Lp - L), (0, 0)))                            # [B, Lp, D]

    # clicked flag per key position; zero item (pos 0) counts as clicked, padding does not
    clicked = jnp.concatenate(
        [jnp.ones((B, 1), jnp.float32),
         (responses.reshape(B, S * K) > 0).astype(jnp.float32)], axis=1)
    clicked = jnp.pad(clicked, ((0, 0), (0, Lp - L)))                        # [B, Lp]

    # static slate number per position; e_mat[i, j] = 1 iff slate(j) < slate(i); e_mat[0,0]=1
    # so every query row (incl. the zero item) can always attend to key 0.
    pos = jnp.arange(Lp)
    slate = jnp.where(pos == 0, 0, jnp.where(pos < L, (pos - 1) // K + 1, S + 1))
    e_mat = (slate[None, :] < slate[:, None]).astype(jnp.float32)
    e_mat = e_mat.at[0, 0].set(1.0)
    return x, clicked, e_mat, (B, S, K, L, Lp, D)


def scot_forward(params, batch, nheads=2, lane_target=128):
    x, clicked, e_mat, (B, S, K, L, Lp, D) = scot_inputs(params, batch)

    # TB*Lp must be a multiple of 128 lanes (v5e MXU / lane-dense output target; 256 buys a
    # little more on v6e/v7x at the cost of extra batch padding).  G = Bp/TB >= 2 keeps both
    # v7x TensorCores busy via the "parallel" grid axis.
    TB = lane_target // math.gcd(Lp, lane_target)
    Bp = _round_up(B, TB)
    G = Bp // TB
    TBL = TB * Lp

    if Bp != B:
        x = jnp.pad(x, ((0, Bp - B), (0, 0), (0, 0)))
        pad_ck = jnp.zeros((Bp - B, Lp), jnp.float32).at[:, 0].set(1.0)
        clicked = jnp.concatenate([clicked, pad_ck], axis=0)

    HP, prep = prepare_params(params, nheads)
    x_flat = x.reshape(Bp * Lp, D).astype(jnp.bfloat16)
    clicked_g = clicked.reshape(G, 1, TBL)
    bd_mat = jnp.kron(jnp.eye(TB, dtype=jnp.float32), e_mat)     # [TBL, TBL], grid-invariant

    out = scot_pallas(x_flat, clicked_g, bd_mat, prep, nheads, HP)   # [G, 1, TBL]
    out = out.reshape(Bp, Lp)[:B, 1:L]                               # drop zero item & padding
    return out.reshape(B, S, K)


# ---------------------------------------------------------------------------
# Pure-JAX reference mirroring the kernel math (same bf16 casts, f32 accumulation,
# scale folded into Wq, tanh GELU).  Exercises the unpadded / per-element formulation.
# ---------------------------------------------------------------------------
def scot_reference(params, x_f32, clicked, e_mat, nheads):
    f32, bf = jnp.float32, jnp.bfloat16
    B, Lp, D = x_f32.shape
    hd = D // nheads
    scale = 1.0 / math.sqrt(hd)
    x = x_f32.astype(bf)

    def proj(w, b):
        return jnp.einsum('bld,de->ble', x, w.astype(bf), preferred_element_type=f32) + b[0]

    q = proj(params['wq'] * scale, params['bq'] * scale)
    k = proj(params['wk'], params['bk'])
    v = proj(params['wv'], params['bv'])
    split = lambda t: t.reshape(B, Lp, nheads, hd).astype(bf)
    qh, kh, vh = split(q), split(k), split(v)

    bias = jnp.where(clicked[:, None, :] * e_mat[None] > 0.5, 0.0, NEG_INF)   # [B, Lp, Lp]
    s = jnp.einsum('blhd,bmhd->bhlm', qh, kh, preferred_element_type=f32) + bias[:, None]
    p = jax.nn.softmax(s, axis=-1)
    o = jnp.einsum('bhlm,bmhd->blhd', p.astype(bf), vh, preferred_element_type=f32)

    wo3 = params['wo'].astype(bf).reshape(nheads, hd, D)
    feat = jnp.einsum('blhd,hde->ble', o.astype(bf), wo3,
                      preferred_element_type=f32) + params['bo'][0]
    mu = feat.mean(-1, keepdims=True)
    var = ((feat - mu) ** 2).mean(-1, keepdims=True)
    hn = (feat - mu) * lax.rsqrt(var + 1e-5) * params['ln_g'][0] + params['ln_b'][0]
    h1 = jnp.einsum('ble,ef->blf', hn.astype(bf), params['w1'].astype(bf),
                    preferred_element_type=f32) + params['b1'][0]
    h1 = jax.nn.gelu(h1, approximate=True)
    out = jnp.einsum('blf,f->bl', h1.astype(bf), params['w2'].astype(bf)[:, 0],
                     preferred_element_type=f32) + params['b2'][0, 0]
    return out                                                   # [B, Lp]


def init_params(key, n_items, n_users, E):
    D = 2 * E
    ks = jax.random.split(key, 16)
    nrm = lambda k, shape, sc: (sc * jax.random.normal(k, shape)).astype(jnp.float32)
    return dict(
        item_emb=nrm(ks[0], (n_items, E), 1.0),
        user_emb=nrm(ks[1], (n_users, E), 1.0),
        wq=nrm(ks[2], (D, D), 1.0 / math.sqrt(D)),
        wk=nrm(ks[3], (D, D), 1.0 / math.sqrt(D)),
        wv=nrm(ks[4], (D, D), 1.0 / math.sqrt(D)),
        bq=nrm(ks[5], (1, D), 0.02),
        bk=nrm(ks[6], (1, D), 0.02),
        bv=nrm(ks[7], (1, D), 0.02),
        wo=nrm(ks[8], (D, D), 1.0 / math.sqrt(D)),
        bo=nrm(ks[9], (1, D), 0.02),
        ln_g=jnp.ones((1, D), jnp.float32),
        ln_b=jnp.zeros((1, D), jnp.float32),
        w1=nrm(ks[10], (D, D), 1.0 / math.sqrt(D)),
        b1=nrm(ks[11], (1, D), 0.02),
        w2=nrm(ks[12], (D, 1), 1.0 / math.sqrt(D)),
        b2=nrm(ks[13], (1, 1), 0.02),
    )


if __name__ == "__main__":
    key = jax.random.PRNGKey(0)
    # B=5 -> Bp=8, TB=4, TBL=128, grid G=2 (exercises batch padding + multi-step grid).
    B, S, K, E = 5, 4, 4, 16          # batch, session_length, slate_size, embedding_dim
    NHEADS = 2
    n_items, n_users = 50, 10

    kp, ki, ku, kr = jax.random.split(key, 4)
    params = init_params(kp, n_items, n_users, E)
    batch = dict(
        item_indexes=jax.random.randint(ki, (B, S, K), 0, n_items),
        user_indexes=jax.random.randint(ku, (B,), 0, n_users),
        responses=jax.random.bernoulli(kr, 0.5, (B, S, K)).astype(jnp.int32),
    )

    out = jax.block_until_ready(scot_forward(params, batch, nheads=NHEADS))
    assert out.shape == (B, S, K)
    assert bool(jnp.all(jnp.isfinite(out)))

    # --- correctness: mirrored pure-JAX reference (same bf16 casts / f32 accumulation)
    x, clicked, e_mat, (B_, S_, K_, L, Lp, D) = scot_inputs(params, batch)
    # mask invariants required so every query row has at least one unmasked key:
    assert bool(jnp.all(clicked[:, 0] == 1.0)) and float(e_mat[0, 0]) == 1.0
    ref = scot_reference(params, x, clicked, e_mat, NHEADS)[:, 1:L].reshape(B, S, K)
    assert bool(jnp.allclose(out, ref, rtol=1e-2, atol=1e-2)), (
        f"max abs err = {float(jnp.max(jnp.abs(out - ref)))}")

    # --- sanity check: compact mask encoding == direct clicked/earlier-slate construction
    slateno = jnp.concatenate(
        [jnp.zeros((B, 1), jnp.int32),
         jnp.broadcast_to(jnp.arange(S, dtype=jnp.int32)[None, :, None],
                          (B, S, K)).reshape(B, S * K) + 1], axis=1)
    clicked_b = jnp.concatenate(
        [jnp.ones((B, 1), bool), batch['responses'].reshape(B, S * K) > 0], axis=1)
    allowed_direct = (clicked_b[:, None, :] &
                      (slateno[:, None, :] < slateno[:, :, None])).at[:, :, 0].set(True)
    allowed_compact = (clicked[:, None, :L] * e_mat[None, :L, :L]) > 0.5
    assert bool(jnp.all(allowed_direct == allowed_compact))

    print("KERNEL_OK")
</pallas_src>

<mosaic_0001>
module attributes {stable_mosaic.version = 11 : i64} {
  func.func @scot_kernel(%arg0: i32, %arg1: memref<128x32xbf16, #tpu.memory_space<vmem>>, %arg2: memref<1x1x128xf32, #tpu.memory_space<vmem>>, %arg3: memref<128x128xf32, #tpu.memory_space<vmem>>, %arg4: memref<32x768xbf16, #tpu.memory_space<vmem>>, %arg5: memref<1x768xf32, #tpu.memory_space<vmem>>, %arg6: memref<256x32xbf16, #tpu.memory_space<vmem>>, %arg7: memref<1x32xf32, #tpu.memory_space<vmem>>, %arg8: memref<1x32xf32, #tpu.memory_space<vmem>>, %arg9: memref<1x32xf32, #tpu.memory_space<vmem>>, %arg10: memref<32x32xbf16, #tpu.memory_space<vmem>>, %arg11: memref<1x32xf32, #tpu.memory_space<vmem>>, %arg12: memref<1x32xbf16, #tpu.memory_space<vmem>>, %arg13: memref<1x1xf32, #tpu.memory_space<vmem>>, %arg14: memref<1x1x128xf32, #tpu.memory_space<vmem>>, %arg15: memref<128x768xbf16, #tpu.memory_space<vmem>>, %arg16: memref<128x256xbf16, #tpu.memory_space<vmem>>) attributes {dimension_semantics = [#tpu.dimension_semantics<parallel>], iteration_bounds = array<i64: 2>, scalar_prefetch = 0 : i64, scratch_operands = 2 : i64, tpu.core_type = #tpu.core_type<tc>, window_params = [{transform_indices = @transform_0, window_bounds = array<i64: 128, 32>}, {transform_indices = @transform_1, window_bounds = array<i64: 1, 1, 128>}, {pipeline_mode = #tpu.pipeline_mode<synchronous>, transform_indices = @transform_2, window_bounds = array<i64: 128, 128>}, {pipeline_mode = #tpu.pipeline_mode<synchronous>, transform_indices = @transform_3, window_bounds = array<i64: 32, 768>}, {pipeline_mode = #tpu.pipeline_mode<synchronous>, transform_indices = @transform_4, window_bounds = array<i64: 1, 768>}, {pipeline_mode = #tpu.pipeline_mode<synchronous>, transform_indices = @transform_5, window_bounds = array<i64: 256, 32>}, {pipeline_mode = #tpu.pipeline_mode<synchronous>, transform_indices = @transform_6, window_bounds = array<i64: 1, 32>}, {pipeline_mode = #tpu.pipeline_mode<synchronous>, transform_indices = @transform_7, window_bounds = array<i64: 1, 32>}, {pipeline_mode = #tpu.pipeline_mode<synchronous>, transform_indices = @transform_8, window_bounds = array<i64: 1, 32>}, {pipeline_mode = #tpu.pipeline_mode<synchronous>, transform_indices = @transform_9, window_bounds = array<i64: 32, 32>}, {pipeline_mode = #tpu.pipeline_mode<synchronous>, transform_indices = @transform_10, window_bounds = array<i64: 1, 32>}, {pipeline_mode = #tpu.pipeline_mode<synchronous>, transform_indices = @transform_11, window_bounds = array<i64: 1, 32>}, {pipeline_mode = #tpu.pipeline_mode<synchronous>, transform_indices = @transform_12, window_bounds = array<i64: 1, 1>}, {transform_indices = @transform_13, window_bounds = array<i64: 1, 1, 128>}]} {
    %c0 = arith.constant 0 : index
    %c0_0 = arith.constant 0 : index
    %0 = vector.load %arg1[%c0, %c0_0] : memref<128x32xbf16, #tpu.memory_space<vmem>>, vector<128x32xbf16>
    %c0_1 = arith.constant 0 : index
    %c0_2 = arith.constant 0 : index
    %1 = vector.load %arg4[%c0_1, %c0_2] : memref<32x768xbf16, #tpu.memory_space<vmem>>, vector<32x768xbf16>
    %cst = arith.constant dense<0.000000e+00> : vector<128x768xf32>
    %2 = tpu.matmul %0, %1, %cst {dimension_numbers = #tpu.dot_dimension_numbers<[1], [0], [0], [1], [0, 0, 1, 1], [], []>} : vector<128x32xbf16>, vector<32x768xbf16>, vector<128x768xf32> -> vector<128x768xf32>
    %c0_3 = arith.constant 0 : index
    %c0_4 = arith.constant 0 : index
    %3 = vector.load %arg5[%c0_3, %c0_4] : memref<1x768xf32, #tpu.memory_space<vmem>>, vector<1x768xf32>
    %4 = vector.broadcast %3 : vector<1x768xf32> to vector<128x768xf32>
    %5 = arith.addf %2, %4 : vector<128x768xf32>
    %6 = arith.truncf %5 : vector<128x768xf32> to vector<128x768xbf16>
    %c0_5 = arith.constant 0 : index
    %c0_6 = arith.constant 0 : index
    %7 = vector.load %arg15[%c0_5, %c0_6] : memref<128x768xbf16, #tpu.memory_space<vmem>>, vector<128x768xbf16>
    tpu.vector_store %arg15[%c0_5, %c0_6], %6 {strides = array<i32>} : memref<128x768xbf16, #tpu.memory_space<vmem>>, vector<128x768xbf16>,
    %c0_7 = arith.constant 0 : index
    %c0_8 = arith.constant 0 : index
    %8 = vector.load %arg3[%c0_7, %c0_8] : memref<128x128xf32, #tpu.memory_space<vmem>>, vector<128x128xf32>
    %c0_9 = arith.constant 0 : index
    %c0_10 = arith.constant 0 : index
    %c0_11 = arith.constant 0 : index
    %9 = vector.load %arg2[%c0_9, %c0_10, %c0_11] : memref<1x1x128xf32, #tpu.memory_space<vmem>>, vector<1x1x128xf32>
    %10 = vector.shape_cast %9 : vector<1x1x128xf32> to vector<1x128xf32>
    %11 = vector.broadcast %10 : vector<1x128xf32> to vector<128x128xf32>
    %12 = arith.mulf %8, %11 : vector<128x128xf32>
    %cst_12 = arith.constant 5.000000e-01 : f32
    %13 = vector.broadcast %cst_12 : f32 to vector<128x128xf32>
    %14 = arith.cmpf ogt, %12, %13 : vector<128x128xf32>
    %cst_13 = arith.constant 0.000000e+00 : f32
    %cst_14 = arith.constant -1.000000e+30 : f32
    %15 = vector.broadcast %cst_13 : f32 to vector<128x128xf32>
    %16 = vector.broadcast %cst_14 : f32 to vector<128x128xf32>
    %17 = arith.select %14, %15, %16 : vector<128x128xi1>, vector<128x128xf32>
    %c0_15 = arith.constant 0 : index
    %c0_16 = arith.constant 0 : index
    %18 = vector.load %arg15[%c0_15, %c0_16] : memref<128x768xbf16, #tpu.memory_space<vmem>>, vector<128x128xbf16>
    %c0_17 = arith.constant 0 : index
    %c128 = arith.constant 128 : index
    %19 = vector.load %arg15[%c0_17, %c128] : memref<128x768xbf16, #tpu.memory_space<vmem>>, vector<128x128xbf16>
    %c0_18 = arith.constant 0 : index
    %c256 = arith.constant 256 : index
    %20 = vector.load %arg15[%c0_18, %c256] : memref<128x768xbf16, #tpu.memory_space<vmem>>, vector<128x128xbf16>
    %cst_19 = arith.constant dense<0.000000e+00> : vector<128x128xf32>
    %21 = tpu.matmul %18, %19, %cst_19 {dimension_numbers = #tpu.dot_dimension_numbers<[1], [1], [0], [0], [0, 0, 1, 0], [], []>} : vector<128x128xbf16>, vector<128x128xbf16>, vector<128x128xf32> -> vector<128x128xf32>
    %22 = arith.addf %21, %17 : vector<128x128xf32>
    %cst_20 = arith.constant dense<0xFF800000> : vector<128xf32>
    %23 = vector.multi_reduction <maximumf>, %22, %cst_20 [1] : vector<128x128xf32> to vector<128xf32>
    %24 = vector.shape_cast %23 : vector<128xf32> to vector<128x1xf32>
    %25 = vector.broadcast %24 : vector<128x1xf32> to vector<128x128xf32>
    %26 = arith.subf %22, %25 : vector<128x128xf32>
    %27 = math.exp %26 : vector<128x128xf32>
    %cst_21 = arith.constant dense<0.000000e+00> : vector<128xf32>
    %28 = vector.multi_reduction <add>, %27, %cst_21 [1] : vector<128x128xf32> to vector<128xf32>
    %29 = vector.shape_cast %28 : vector<128xf32> to vector<128x1xf32>
    %30 = tpu.reciprocal %29 {approx = true} : vector<128x1xf32> -> vector<128x1xf32>
    %31 = vector.broadcast %30 : vector<128x1xf32> to vector<128x128xf32>
    %32 = arith.mulf %27, %31 : vector<128x128xf32>
    %33 = arith.truncf %32 : vector<128x128xf32> to vector<128x128xbf16>
    %cst_22 = arith.constant dense<0.000000e+00> : vector<128x128xf32>
    %34 = tpu.matmul %33, %20, %cst_22 {dimension_numbers = #tpu.dot_dimension_numbers<[1], [0], [0], [1], [0, 0, 1, 1], [], []>} : vector<128x128xbf16>, vector<128x128xbf16>, vector<128x128xf32> -> vector<128x128xf32>
    %35 = arith.truncf %34 : vector<128x128xf32> to vector<128x128xbf16>
    %c0_23 = arith.constant 0 : index
    %c0_24 = arith.constant 0 : index
    %36 = vector.load %arg16[%c0_23, %c0_24] : memref<128x256xbf16, #tpu.memory_space<vmem>>, vector<128x128xbf16>
    tpu.vector_store %arg16[%c0_23, %c0_24], %35 {strides = array<i32>} : memref<128x256xbf16, #tpu.memory_space<vmem>>, vector<128x128xbf16>,
    %c0_25 = arith.constant 0 : index
    %c384 = arith.constant 384 : index
    %37 = vector.load %arg15[%c0_25, %c384] : memref<128x768xbf16, #tpu.memory_space<vmem>>, vector<128x128xbf16>
    %c0_26 = arith.constant 0 : index
    %c512 = arith.constant 512 : index
    %38 = vector.load %arg15[%c0_26, %c512] : memref<128x768xbf16, #tpu.memory_space<vmem>>, vector<128x128xbf16>
    %c0_27 = arith.constant 0 : index
    %c640 = arith.constant 640 : index
    %39 = vector.load %arg15[%c0_27, %c640] : memref<128x768xbf16, #tpu.memory_space<vmem>>, vector<128x128xbf16>
    %cst_28 = arith.constant dense<0.000000e+00> : vector<128x128xf32>
    %40 = tpu.matmul %37, %38, %cst_28 {dimension_numbers = #tpu.dot_dimension_numbers<[1], [1], [0], [0], [0, 0, 1, 0], [], []>} : vector<128x128xbf16>, vector<128x128xbf16>, vector<128x128xf32> -> vector<128x128xf32>
    %41 = arith.addf %40, %17 : vector<128x128xf32>
    %cst_29 = arith.constant dense<0xFF800000> : vector<128xf32>
    %42 = vector.multi_reduction <maximumf>, %41, %cst_29 [1] : vector<128x128xf32> to vector<128xf32>
    %43 = vector.shape_cast %42 : vector<128xf32> to vector<128x1xf32>
    %44 = vector.broadcast %43 : vector<128x1xf32> to vector<128x128xf32>
    %45 = arith.subf %41, %44 : vector<128x128xf32>
    %46 = math.exp %45 : vector<128x128xf32>
    %cst_30 = arith.constant dense<0.000000e+00> : vector<128xf32>
    %47 = vector.multi_reduction <add>, %46, %cst_30 [1] : vector<128x128xf32> to vector<128xf32>
    %48 = vector.shape_cast %47 : vector<128xf32> to vector<128x1xf32>
    %49 = tpu.reciprocal %48 {approx = true} : vector<128x1xf32> -> vector<128x1xf32>
    %50 = vector.broadcast %49 : vector<128x1xf32> to vector<128x128xf32>
    %51 = arith.mulf %46, %50 : vector<128x128xf32>
    %52 = arith.truncf %51 : vector<128x128xf32> to vector<128x128xbf16>
    %cst_31 = arith.constant dense<0.000000e+00> : vector<128x128xf32>
    %53 = tpu.matmul %52, %39, %cst_31 {dimension_numbers = #tpu.dot_dimension_numbers<[1], [0], [0], [1], [0, 0, 1, 1], [], []>} : vector<128x128xbf16>, vector<128x128xbf16>, vector<128x128xf32> -> vector<128x128xf32>
    %54 = arith.truncf %53 : vector<128x128xf32> to vector<128x128xbf16>
    %c0_32 = arith.constant 0 : index
    %c128_33 = arith.constant 128 : index
    %55 = vector.load %arg16[%c0_32, %c128_33] : memref<128x256xbf16, #tpu.memory_space<vmem>>, vector<128x128xbf16>
    tpu.vector_store %arg16[%c0_32, %c128_33], %54 {strides = array<i32>} : memref<128x256xbf16, #tpu.memory_space<vmem>>, vector<128x128xbf16>,
    %c0_34 = arith.constant 0 : index
    %c0_35 = arith.constant 0 : index
    %56 = vector.load %arg16[%c0_34, %c0_35] : memref<128x256xbf16, #tpu.memory_space<vmem>>, vector<128x256xbf16>
    %c0_36 = arith.constant 0 : index
    %c0_37 = arith.constant 0 : index
    %57 = vector.load %arg6[%c0_36, %c0_37] : memref<256x32xbf16, #tpu.memory_space<vmem>>, vector<256x32xbf16>
    %cst_38 = arith.constant dense<0.000000e+00> : vector<128x32xf32>
    %58 = tpu.matmul %56, %57, %cst_38 {dimension_numbers = #tpu.dot_dimension_numbers<[1], [0], [0], [1], [0, 0, 1, 1], [], []>} : vector<128x256xbf16>, vector<256x32xbf16>, vector<128x32xf32> -> vector<128x32xf32>
    %c0_39 = arith.constant 0 : index
    %c0_40 = arith.constant 0 : index
    %59 = vector.load %arg7[%c0_39, %c0_40] : memref<1x32xf32, #tpu.memory_space<vmem>>, vector<1x32xf32>
    %60 = vector.broadcast %59 : vector<1x32xf32> to vector<128x32xf32>
    %61 = arith.addf %58, %60 : vector<128x32xf32>
    %cst_41 = arith.constant dense<0.000000e+00> : vector<128xf32>
    %62 = vector.multi_reduction <add>, %61, %cst_41 [1] : vector<128x32xf32> to vector<128xf32>
    %63 = vector.shape_cast %62 : vector<128xf32> to vector<128x1xf32>
    %cst_42 = arith.constant 3.200000e+01 : f32
    %64 = vector.broadcast %cst_42 : f32 to vector<128x1xf32>
    %65 = arith.divf %63, %64 : vector<128x1xf32>
    %66 = vector.broadcast %65 : vector<128x1xf32> to vector<128x32xf32>
    %67 = arith.subf %61, %66 : vector<128x32xf32>
    %68 = arith.mulf %67, %67 : vector<128x32xf32>
    %cst_43 = arith.constant dense<0.000000e+00> : vector<128xf32>
    %69 = vector.multi_reduction <add>, %68, %cst_43 [1] : vector<128x32xf32> to vector<128xf32>
    %70 = vector.shape_cast %69 : vector<128xf32> to vector<128x1xf32>
    %cst_44 = arith.constant 3.200000e+01 : f32
    %71 = vector.broadcast %cst_44 : f32 to vector<128x1xf32>
    %72 = arith.divf %70, %71 : vector<128x1xf32>
    %73 = vector.broadcast %65 : vector<128x1xf32> to vector<128x32xf32>
    %74 = arith.subf %61, %73 : vector<128x32xf32>
    %cst_45 = arith.constant 9.99999974E-6 : f32
    %75 = vector.broadcast %cst_45 : f32 to vector<128x1xf32>
    %76 = arith.addf %72, %75 : vector<128x1xf32>
    %77 = math.rsqrt %76 : vector<128x1xf32>
    %78 = vector.broadcast %77 : vector<128x1xf32> to vector<128x32xf32>
    %79 = arith.mulf %74, %78 : vector<128x32xf32>
    %c0_46 = arith.constant 0 : index
    %c0_47 = arith.constant 0 : index
    %80 = vector.load %arg8[%c0_46, %c0_47] : memref<1x32xf32, #tpu.memory_space<vmem>>, vector<1x32xf32>
    %81 = vector.broadcast %80 : vector<1x32xf32> to vector<128x32xf32>
    %82 = arith.mulf %79, %81 : vector<128x32xf32>
    %c0_48 = arith.constant 0 : index
    %c0_49 = arith.constant 0 : index
    %83 = vector.load %arg9[%c0_48, %c0_49] : memref<1x32xf32, #tpu.memory_space<vmem>>, vector<1x32xf32>
    %84 = vector.broadcast %83 : vector<1x32xf32> to vector<128x32xf32>
    %85 = arith.addf %82, %84 : vector<128x32xf32>
    %86 = arith.truncf %85 : vector<128x32xf32> to vector<128x32xbf16>
    %c0_50 = arith.constant 0 : index
    %c0_51 = arith.constant 0 : index
    %87 = vector.load %arg10[%c0_50, %c0_51] : memref<32x32xbf16, #tpu.memory_space<vmem>>, vector<32x32xbf16>
    %cst_52 = arith.constant dense<0.000000e+00> : vector<128x32xf32>
    %88 = tpu.matmul %86, %87, %cst_52 {dimension_numbers = #tpu.dot_dimension_numbers<[1], [0], [0], [1], [0, 0, 1, 1], [], []>} : vector<128x32xbf16>, vector<32x32xbf16>, vector<128x32xf32> -> vector<128x32xf32>
    %c0_53 = arith.constant 0 : index
    %c0_54 = arith.constant 0 : index
    %89 = vector.load %arg11[%c0_53, %c0_54] : memref<1x32xf32, #tpu.memory_space<vmem>>, vector<1x32xf32>
    %90 = vector.broadcast %89 : vector<1x32xf32> to vector<128x32xf32>
    %91 = arith.addf %88, %90 : vector<128x32xf32>
    %cst_55 = arith.constant 5.000000e-01 : f32
    %92 = vector.broadcast %cst_55 : f32 to vector<128x32xf32>
    %93 = arith.mulf %92, %91 : vector<128x32xf32>
    %cst_56 = arith.constant 4.471500e-02 : f32
    %94 = vector.broadcast %cst_56 : f32 to vector<128x32xf32>
    %95 = arith.mulf %94, %91 : vector<128x32xf32>
    %96 = arith.mulf %95, %91 : vector<128x32xf32>
    %97 = arith.mulf %96, %91 : vector<128x32xf32>
    %98 = arith.addf %91, %97 : vector<128x32xf32>
    %cst_57 = arith.constant 0.797884583 : f32
    %99 = vector.broadcast %cst_57 : f32 to vector<128x32xf32>
    %100 = arith.mulf %99, %98 : vector<128x32xf32>
    %101 = math.tanh %100 : vector<128x32xf32>
    %cst_58 = arith.constant 1.000000e+00 : f32
    %102 = vector.broadcast %cst_58 : f32 to vector<128x32xf32>
    %103 = arith.addf %102, %101 : vector<128x32xf32>
    %104 = arith.mulf %93, %103 : vector<128x32xf32>
    %c0_59 = arith.constant 0 : index
    %c0_60 = arith.constant 0 : index
    %105 = vector.load %arg12[%c0_59, %c0_60] : memref<1x32xbf16, #tpu.memory_space<vmem>>, vector<1x32xbf16>
    %106 = arith.truncf %104 : vector<128x32xf32> to vector<128x32xbf16>
    %cst_61 = arith.constant dense<0.000000e+00> : vector<1x128xf32>
    %107 = tpu.matmul %105, %106, %cst_61 {dimension_numbers = #tpu.dot_dimension_numbers<[1], [1], [0], [0], [0, 0, 1, 0], [], []>} : vector<1x32xbf16>, vector<128x32xbf16>, vector<1x128xf32> -> vector<1x128xf32>
    %c0_62 = arith.constant 0 : index
    %c0_63 = arith.constant 0 : index
    %108 = vector.load %arg13[%c0_62, %c0_63] : memref<1x1xf32, #tpu.memory_space<vmem>>, vector<1x1xf32>
    %109 = vector.broadcast %108 : vector<1x1xf32> to vector<1x128xf32>
    %110 = arith.addf %107, %109 : vector<1x128xf32>
    %c0_64 = arith.constant 0 : index
    %c0_65 = arith.constant 0 : index
    %c0_66 = arith.constant 0 : index
    %111 = vector.load %arg14[%c0_64, %c0_65, %c0_66] : memref<1x1x128xf32, #tpu.memory_space<vmem>>, vector<1x1x128xf32>
    %112 = vector.shape_cast %111 : vector<1x1x128xf32> to vector<1x128xf32>
    %113 = vector.shape_cast %110 : vector<1x128xf32> to vector<1x1x128xf32>
    tpu.vector_store %arg14[%c0_64, %c0_65, %c0_66], %113 {strides = array<i32>} : memref<1x1x128xf32, #tpu.memory_space<vmem>>, vector<1x1x128xf32>,
    return
  }
  func.func @transform_0(%arg0: i32) -> (i32, i32) {
    %c0_i32 = arith.constant 0 : i32
    %c0_i32_0 = arith.constant 0 : i32
    return %arg0, %c0_i32 : i32, i32
  }
  func.func @transform_1(%arg0: i32) -> (i32, i32, i32) {
    %c0_i32 = arith.constant 0 : i32
    %c0_i32_0 = arith.constant 0 : i32
    %c0_i32_1 = arith.constant 0 : i32
    return %arg0, %c0_i32, %c0_i32_0 : i32, i32, i32
  }
  func.func @transform_2(%arg0: i32) -> (i32, i32) {
    %c0_i32 = arith.constant 0 : i32
    %c0_i32_0 = arith.constant 0 : i32
    %c0_i32_1 = arith.constant 0 : i32
    return %c0_i32, %c0_i32_0 : i32, i32
  }
  func.func @transform_3(%arg0: i32) -> (i32, i32) {
    %c0_i32 = arith.constant 0 : i32
    %c0_i32_0 = arith.constant 0 : i32
    %c0_i32_1 = arith.constant 0 : i32
    return %c0_i32, %c0_i32_0 : i32, i32
  }
  func.func @transform_4(%arg0: i32) -> (i32, i32) {
    %c0_i32 = arith.constant 0 : i32
    %c0_i32_0 = arith.constant 0 : i32
    %c0_i32_1 = arith.constant 0 : i32
    return %c0_i32, %c0_i32_0 : i32, i32
  }
  func.func @transform_5(%arg0: i32) -> (i32, i32) {
    %c0_i32 = arith.constant 0 : i32
    %c0_i32_0 = arith.constant 0 : i32
    %c0_i32_1 = arith.constant 0 : i32
    return %c0_i32, %c0_i32_0 : i32, i32
  }
  func.func @transform_6(%arg0: i32) -> (i32, i32) {
    %c0_i32 = arith.constant 0 : i32
    %c0_i32_0 = arith.constant 0 : i32
    %c0_i32_1 = arith.constant 0 : i32
    return %c0_i32, %c0_i32_0 : i32, i32
  }
  func.func @transform_7(%arg0: i32) -> (i32, i32) {
    %c0_i32 = arith.constant 0 : i32
    %c0_i32_0 = arith.constant 0 : i32
    %c0_i32_1 = arith.constant 0 : i32
    return %c0_i32, %c0_i32_0 : i32, i32
  }
  func.func @transform_8(%arg0: i32) -> (i32, i32) {
    %c0_i32 = arith.constant 0 : i32
    %c0_i32_0 = arith.constant 0 : i32
    %c0_i32_1 = arith.constant 0 : i32
    return %c0_i32, %c0_i32_0 : i32, i32
  }
  func.func @transform_9(%arg0: i32) -> (i32, i32) {
    %c0_i32 = arith.constant 0 : i32
    %c0_i32_0 = arith.constant 0 : i32
    %c0_i32_1 = arith.constant 0 : i32
    return %c0_i32, %c0_i32_0 : i32, i32
  }
  func.func @transform_10(%arg0: i32) -> (i32, i32) {
    %c0_i32 = arith.constant 0 : i32
    %c0_i32_0 = arith.constant 0 : i32
    %c0_i32_1 = arith.constant 0 : i32
    return %c0_i32, %c0_i32_0 : i32, i32
  }
  func.func @transform_11(%arg0: i32) -> (i32, i32) {
    %c0_i32 = arith.constant 0 : i32
    %c0_i32_0 = arith.constant 0 : i32
    %c0_i32_1 = arith.constant 0 : i32
    return %c0_i32, %c0_i32_0 : i32, i32
  }
  func.func @transform_12(%arg0: i32) -> (i32, i32) {
    %c0_i32 = arith.constant 0 : i32
    %c0_i32_0 = arith.constant 0 : i32
    %c0_i32_1 = arith.constant 0 : i32
    return %c0_i32, %c0_i32_0 : i32, i32
  }
  func.func @transform_13(%arg0: i32) -> (i32, i32, i32) {
    %c0_i32 = arith.constant 0 : i32
    %c0_i32_0 = arith.constant 0 : i32
    %c0_i32_1 = arith.constant 0 : i32
    return %arg0, %c0_i32, %c0_i32_0 : i32, i32, i32
  }
}

module attributes {stable_mosaic.version = 11 : i64} {
  func.func @scot_kernel(%arg0: i32, %arg1: memref<128x32xbf16, #tpu.memory_space<vmem>>, %arg2: memref<1x1x128xf32, #tpu.memory_space<vmem>>, %arg3: memref<128x128xf32, #tpu.memory_space<vmem>>, %arg4: memref<32x768xbf16, #tpu.memory_space<vmem>>, %arg5: memref<1x768xf32, #tpu.memory_space<vmem>>, %arg6: memref<256x32xbf16, #tpu.memory_space<vmem>>, %arg7: memref<1x32xf32, #tpu.memory_space<vmem>>, %arg8: memref<1x32xf32, #tpu.memory_space<vmem>>, %arg9: memref<1x32xf32, #tpu.memory_space<vmem>>, %arg10: memref<32x32xbf16, #tpu.memory_space<vmem>>, %arg11: memref<1x32xf32, #tpu.memory_space<vmem>>, %arg12: memref<1x32xbf16, #tpu.memory_space<vmem>>, %arg13: memref<1x1xf32, #tpu.memory_space<vmem>>, %arg14: memref<1x1x128xf32, #tpu.memory_space<vmem>>, %arg15: memref<128x768xbf16, #tpu.memory_space<vmem>>, %arg16: memref<128x256xbf16, #tpu.memory_space<vmem>>) attributes {dimension_semantics = [#tpu.dimension_semantics<parallel>], iteration_bounds = array<i64: 2>, scalar_prefetch = 0 : i64, scratch_operands = 2 : i64, tpu.core_type = #tpu.core_type<tc>, window_params = [{transform_indices = @transform_0, window_bounds = array<i64: 128, 32>}, {transform_indices = @transform_1, window_bounds = array<i64: 1, 1, 128>}, {pipeline_mode = #tpu.pipeline_mode<synchronous>, transform_indices = @transform_2, window_bounds = array<i64: 128, 128>}, {pipeline_mode = #tpu.pipeline_mode<synchronous>, transform_indices = @transform_3, window_bounds = array<i64: 32, 768>}, {pipeline_mode = #tpu.pipeline_mode<synchronous>, transform_indices = @transform_4, window_bounds = array<i64: 1, 768>}, {pipeline_mode = #tpu.pipeline_mode<synchronous>, transform_indices = @transform_5, window_bounds = array<i64: 256, 32>}, {pipeline_mode = #tpu.pipeline_mode<synchronous>, transform_indices = @transform_6, window_bounds = array<i64: 1, 32>}, {pipeline_mode = #tpu.pipeline_mode<synchronous>, transform_indices = @transform_7, window_bounds = array<i64: 1, 32>}, {pipeline_mode = #tpu.pipeline_mode<synchronous>, transform_indices = @transform_8, window_bounds = array<i64: 1, 32>}, {pipeline_mode = #tpu.pipeline_mode<synchronous>, transform_indices = @transform_9, window_bounds = array<i64: 32, 32>}, {pipeline_mode = #tpu.pipeline_mode<synchronous>, transform_indices = @transform_10, window_bounds = array<i64: 1, 32>}, {pipeline_mode = #tpu.pipeline_mode<synchronous>, transform_indices = @transform_11, window_bounds = array<i64: 1, 32>}, {pipeline_mode = #tpu.pipeline_mode<synchronous>, transform_indices = @transform_12, window_bounds = array<i64: 1, 1>}, {transform_indices = @transform_13, window_bounds = array<i64: 1, 1, 128>}]} {
    %c0 = arith.constant 0 : index
    %c0_0 = arith.constant 0 : index
    %0 = vector.load %arg1[%c0, %c0_0] : memref<128x32xbf16, #tpu.memory_space<vmem>>, vector<128x32xbf16>
    %c0_1 = arith.constant 0 : index
    %c0_2 = arith.constant 0 : index
    %1 = vector.load %arg4[%c0_1, %c0_2] : memref<32x768xbf16, #tpu.memory_space<vmem>>, vector<32x768xbf16>
    %cst = arith.constant dense<0.000000e+00> : vector<128x768xf32>
    %2 = tpu.matmul %0, %1, %cst {dimension_numbers = #tpu.dot_dimension_numbers<[1], [0], [0], [1], [0, 0, 1, 1], [], []>} : vector<128x32xbf16>, vector<32x768xbf16>, vector<128x768xf32> -> vector<128x768xf32>
    %c0_3 = arith.constant 0 : index
    %c0_4 = arith.constant 0 : index
    %3 = vector.load %arg5[%c0_3, %c0_4] : memref<1x768xf32, #tpu.memory_space<vmem>>, vector<1x768xf32>
    %4 = vector.broadcast %3 : vector<1x768xf32> to vector<128x768xf32>
    %5 = arith.addf %2, %4 : vector<128x768xf32>
    %6 = arith.truncf %5 : vector<128x768xf32> to vector<128x768xbf16>
    %c0_5 = arith.constant 0 : index
    %c0_6 = arith.constant 0 : index
    %7 = vector.load %arg15[%c0_5, %c0_6] : memref<128x768xbf16, #tpu.memory_space<vmem>>, vector<128x768xbf16>
    tpu.vector_store %arg15[%c0_5, %c0_6], %6 {strides = array<i32>} : memref<128x768xbf16, #tpu.memory_space<vmem>>, vector<128x768xbf16>,
    %c0_7 = arith.constant 0 : index
    %c0_8 = arith.constant 0 : index
    %8 = vector.load %arg3[%c0_7, %c0_8] : memref<128x128xf32, #tpu.memory_space<vmem>>, vector<128x128xf32>
    %c0_9 = arith.constant 0 : index
    %c0_10 = arith.constant 0 : index
    %c0_11 = arith.constant 0 : index
    %9 = vector.load %arg2[%c0_9, %c0_10, %c0_11] : memref<1x1x128xf32, #tpu.memory_space<vmem>>, vector<1x1x128xf32>
    %10 = vector.shape_cast %9 : vector<1x1x128xf32> to vector<1x128xf32>
    %11 = vector.broadcast %10 : vector<1x128xf32> to vector<128x128xf32>
    %12 = arith.mulf %8, %11 : vector<128x128xf32>
    %cst_12 = arith.constant 5.000000e-01 : f32
    %13 = vector.broadcast %cst_12 : f32 to vector<128x128xf32>
    %14 = arith.cmpf ogt, %12, %13 : vector<128x128xf32>
    %cst_13 = arith.constant 0.000000e+00 : f32
    %cst_14 = arith.constant -1.000000e+30 : f32
    %15 = vector.broadcast %cst_13 : f32 to vector<128x128xf32>
    %16 = vector.broadcast %cst_14 : f32 to vector<128x128xf32>
    %17 = arith.select %14, %15, %16 : vector<128x128xi1>, vector<128x128xf32>
    %c0_15 = arith.constant 0 : index
    %c0_16 = arith.constant 0 : index
    %18 = vector.load %arg15[%c0_15, %c0_16] : memref<128x768xbf16, #tpu.memory_space<vmem>>, vector<128x128xbf16>
    %c0_17 = arith.constant 0 : index
    %c128 = arith.constant 128 : index
    %19 = vector.load %arg15[%c0_17, %c128] : memref<128x768xbf16, #tpu.memory_space<vmem>>, vector<128x128xbf16>
    %c0_18 = arith.constant 0 : index
    %c256 = arith.constant 256 : index
    %20 = vector.load %arg15[%c0_18, %c256] : memref<128x768xbf16, #tpu.memory_space<vmem>>, vector<128x128xbf16>
    %cst_19 = arith.constant dense<0.000000e+00> : vector<128x128xf32>
    %21 = tpu.matmul %18, %19, %cst_19 {dimension_numbers = #tpu.dot_dimension_numbers<[1], [1], [0], [0], [0, 0, 1, 0], [], []>} : vector<128x128xbf16>, vector<128x128xbf16>, vector<128x128xf32> -> vector<128x128xf32>
    %22 = arith.addf %21, %17 : vector<128x128xf32>
    %cst_20 = arith.constant dense<0xFF800000> : vector<128xf32>
    %23 = vector.multi_reduction <maximumf>, %22, %cst_20 [1] : vector<128x128xf32> to vector<128xf32>
    %24 = vector.shape_cast %23 : vector<128xf32> to vector<128x1xf32>
    %25 = vector.broadcast %24 : vector<128x1xf32> to vector<128x128xf32>
    %26 = arith.subf %22, %25 : vector<128x128xf32>
    %27 = math.exp %26 : vector<128x128xf32>
    %cst_21 = arith.constant dense<0.000000e+00> : vector<128xf32>
    %28 = vector.multi_reduction <add>, %27, %cst_21 [1] : vector<128x128xf32> to vector<128xf32>
    %29 = vector.shape_cast %28 : vector<128xf32> to vector<128x1xf32>
    %30 = tpu.reciprocal %29 {approx = true} : vector<128x1xf32> -> vector<128x1xf32>
    %31 = vector.broadcast %30 : vector<128x1xf32> to vector<128x128xf32>
    %32 = arith.mulf %27, %31 : vector<128x128xf32>
    %33 = arith.truncf %32 : vector<128x128xf32> to vector<128x128xbf16>
    %cst_22 = arith.constant dense<0.000000e+00> : vector<128x128xf32>
    %34 = tpu.matmul %33, %20, %cst_22 {dimension_numbers = #tpu.dot_dimension_numbers<[1], [0], [0], [1], [0, 0, 1, 1], [], []>} : vector<128x128xbf16>, vector<128x128xbf16>, vector<128x128xf32> -> vector<128x128xf32>
    %35 = arith.truncf %34 : vector<128x128xf32> to vector<128x128xbf16>
    %c0_23 = arith.constant 0 : index
    %c0_24 = arith.constant 0 : index
    %36 = vector.load %arg16[%c0_23, %c0_24] : memref<128x256xbf16, #tpu.memory_space<vmem>>, vector<128x128xbf16>
    tpu.vector_store %arg16[%c0_23, %c0_24], %35 {strides = array<i32>} : memref<128x256xbf16, #tpu.memory_space<vmem>>, vector<128x128xbf16>,
    %c0_25 = arith.constant 0 : index
    %c384 = arith.constant 384 : index
    %37 = vector.load %arg15[%c0_25, %c384] : memref<128x768xbf16, #tpu.memory_space<vmem>>, vector<128x128xbf16>
    %c0_26 = arith.constant 0 : index
    %c512 = arith.constant 512 : index
    %38 = vector.load %arg15[%c0_26, %c512] : memref<128x768xbf16, #tpu.memory_space<vmem>>, vector<128x128xbf16>
    %c0_27 = arith.constant 0 : index
    %c640 = arith.constant 640 : index
    %39 = vector.load %arg15[%c0_27, %c640] : memref<128x768xbf16, #tpu.memory_space<vmem>>, vector<128x128xbf16>
    %cst_28 = arith.constant dense<0.000000e+00> : vector<128x128xf32>
    %40 = tpu.matmul %37, %38, %cst_28 {dimension_numbers = #tpu.dot_dimension_numbers<[1], [1], [0], [0], [0, 0, 1, 0], [], []>} : vector<128x128xbf16>, vector<128x128xbf16>, vector<128x128xf32> -> vector<128x128xf32>
    %41 = arith.addf %40, %17 : vector<128x128xf32>
    %cst_29 = arith.constant dense<0xFF800000> : vector<128xf32>
    %42 = vector.multi_reduction <maximumf>, %41, %cst_29 [1] : vector<128x128xf32> to vector<128xf32>
    %43 = vector.shape_cast %42 : vector<128xf32> to vector<128x1xf32>
    %44 = vector.broadcast %43 : vector<128x1xf32> to vector<128x128xf32>
    %45 = arith.subf %41, %44 : vector<128x128xf32>
    %46 = math.exp %45 : vector<128x128xf32>
    %cst_30 = arith.constant dense<0.000000e+00> : vector<128xf32>
    %47 = vector.multi_reduction <add>, %46, %cst_30 [1] : vector<128x128xf32> to vector<128xf32>
    %48 = vector.shape_cast %47 : vector<128xf32> to vector<128x1xf32>
    %49 = tpu.reciprocal %48 {approx = true} : vector<128x1xf32> -> vector<128x1xf32>
    %50 = vector.broadcast %49 : vector<128x1xf32> to vector<128x128xf32>
    %51 = arith.mulf %46, %50 : vector<128x128xf32>
    %52 = arith.truncf %51 : vector<128x128xf32> to vector<128x128xbf16>
    %cst_31 = arith.constant dense<0.000000e+00> : vector<128x128xf32>
    %53 = tpu.matmul %52, %39, %cst_31 {dimension_numbers = #tpu.dot_dimension_numbers<[1], [0], [0], [1], [0, 0, 1, 1], [], []>} : vector<128x128xbf16>, vector<128x128xbf16>, vector<128x128xf32> -> vector<128x128xf32>
    %54 = arith.truncf %53 : vector<128x128xf32> to vector<128x128xbf16>
    %c0_32 = arith.constant 0 : index
    %c128_33 = arith.constant 128 : index
    %55 = vector.load %arg16[%c0_32, %c128_33] : memref<128x256xbf16, #tpu.memory_space<vmem>>, vector<128x128xbf16>
    tpu.vector_store %arg16[%c0_32, %c128_33], %54 {strides = array<i32>} : memref<128x256xbf16, #tpu.memory_space<vmem>>, vector<128x128xbf16>,
    %c0_34 = arith.constant 0 : index
    %c0_35 = arith.constant 0 : index
    %56 = vector.load %arg16[%c0_34, %c0_35] : memref<128x256xbf16, #tpu.memory_space<vmem>>, vector<128x256xbf16>
    %c0_36 = arith.constant 0 : index
    %c0_37 = arith.constant 0 : index
    %57 = vector.load %arg6[%c0_36, %c0_37] : memref<256x32xbf16, #tpu.memory_space<vmem>>, vector<256x32xbf16>
    %cst_38 = arith.constant dense<0.000000e+00> : vector<128x32xf32>
    %58 = tpu.matmul %56, %57, %cst_38 {dimension_numbers = #tpu.dot_dimension_numbers<[1], [0], [0], [1], [0, 0, 1, 1], [], []>} : vector<128x256xbf16>, vector<256x32xbf16>, vector<128x32xf32> -> vector<128x32xf32>
    %c0_39 = arith.constant 0 : index
    %c0_40 = arith.constant 0 : index
    %59 = vector.load %arg7[%c0_39, %c0_40] : memref<1x32xf32, #tpu.memory_space<vmem>>, vector<1x32xf32>
    %60 = vector.broadcast %59 : vector<1x32xf32> to vector<128x32xf32>
    %61 = arith.addf %58, %60 : vector<128x32xf32>
    %cst_41 = arith.constant dense<0.000000e+00> : vector<128xf32>
    %62 = vector.multi_reduction <add>, %61, %cst_41 [1] : vector<128x32xf32> to vector<128xf32>
    %63 = vector.shape_cast %62 : vector<128xf32> to vector<128x1xf32>
    %cst_42 = arith.constant 3.200000e+01 : f32
    %64 = vector.broadcast %cst_42 : f32 to vector<128x1xf32>
    %65 = arith.divf %63, %64 : vector<128x1xf32>
    %66 = vector.broadcast %65 : vector<128x1xf32> to vector<128x32xf32>
    %67 = arith.subf %61, %66 : vector<128x32xf32>
    %68 = arith.mulf %67, %67 : vector<128x32xf32>
    %cst_43 = arith.constant dense<0.000000e+00> : vector<128xf32>
    %69 = vector.multi_reduction <add>, %68, %cst_43 [1] : vector<128x32xf32> to vector<128xf32>
    %70 = vector.shape_cast %69 : vector<128xf32> to vector<128x1xf32>
    %cst_44 = arith.constant 3.200000e+01 : f32
    %71 = vector.broadcast %cst_44 : f32 to vector<128x1xf32>
    %72 = arith.divf %70, %71 : vector<128x1xf32>
    %73 = vector.broadcast %65 : vector<128x1xf32> to vector<128x32xf32>
    %74 = arith.subf %61, %73 : vector<128x32xf32>
    %cst_45 = arith.constant 9.99999974E-6 : f32
    %75 = vector.broadcast %cst_45 : f32 to vector<128x1xf32>
    %76 = arith.addf %72, %75 : vector<128x1xf32>
    %77 = math.rsqrt %76 : vector<128x1xf32>
    %78 = vector.broadcast %77 : vector<128x1xf32> to vector<128x32xf32>
    %79 = arith.mulf %74, %78 : vector<128x32xf32>
    %c0_46 = arith.constant 0 : index
    %c0_47 = arith.constant 0 : index
    %80 = vector.load %arg8[%c0_46, %c0_47] : memref<1x32xf32, #tpu.memory_space<vmem>>, vector<1x32xf32>
    %81 = vector.broadcast %80 : vector<1x32xf32> to vector<128x32xf32>
    %82 = arith.mulf %79, %81 : vector<128x32xf32>
    %c0_48 = arith.constant 0 : index
    %c0_49 = arith.constant 0 : index
    %83 = vector.load %arg9[%c0_48, %c0_49] : memref<1x32xf32, #tpu.memory_space<vmem>>, vector<1x32xf32>
    %84 = vector.broadcast %83 : vector<1x32xf32> to vector<128x32xf32>
    %85 = arith.addf %82, %84 : vector<128x32xf32>
    %86 = arith.truncf %85 : vector<128x32xf32> to vector<128x32xbf16>
    %c0_50 = arith.constant 0 : index
    %c0_51 = arith.constant 0 : index
    %87 = vector.load %arg10[%c0_50, %c0_51] : memref<32x32xbf16, #tpu.memory_space<vmem>>, vector<32x32xbf16>
    %cst_52 = arith.constant dense<0.000000e+00> : vector<128x32xf32>
    %88 = tpu.matmul %86, %87, %cst_52 {dimension_numbers = #tpu.dot_dimension_numbers<[1], [0], [0], [1], [0, 0, 1, 1], [], []>} : vector<128x32xbf16>, vector<32x32xbf16>, vector<128x32xf32> -> vector<128x32xf32>
    %c0_53 = arith.constant 0 : index
    %c0_54 = arith.constant 0 : index
    %89 = vector.load %arg11[%c0_53, %c0_54] : memref<1x32xf32, #tpu.memory_space<vmem>>, vector<1x32xf32>
    %90 = vector.broadcast %89 : vector<1x32xf32> to vector<128x32xf32>
    %91 = arith.addf %88, %90 : vector<128x32xf32>
    %cst_55 = arith.constant 5.000000e-01 : f32
    %92 = vector.broadcast %cst_55 : f32 to vector<128x32xf32>
    %93 = arith.mulf %92, %91 : vector<128x32xf32>
    %cst_56 = arith.constant 4.471500e-02 : f32
    %94 = vector.broadcast %cst_56 : f32 to vector<128x32xf32>
    %95 = arith.mulf %94, %91 : vector<128x32xf32>
    %96 = arith.mulf %95, %91 : vector<128x32xf32>
    %97 = arith.mulf %96, %91 : vector<128x32xf32>
    %98 = arith.addf %91, %97 : vector<128x32xf32>
    %cst_57 = arith.constant 0.797884583 : f32
    %99 = vector.broadcast %cst_57 : f32 to vector<128x32xf32>
    %100 = arith.mulf %99, %98 : vector<128x32xf32>
    %101 = math.tanh %100 : vector<128x32xf32>
    %cst_58 = arith.constant 1.000000e+00 : f32
    %102 = vector.broadcast %cst_58 : f32 to vector<128x32xf32>
    %103 = arith.addf %102, %101 : vector<128x32xf32>
    %104 = arith.mulf %93, %103 : vector<128x32xf32>
    %c0_59 = arith.constant 0 : index
    %c0_60 = arith.constant 0 : index
    %105 = vector.load %arg12[%c0_59, %c0_60] : memref<1x32xbf16, #tpu.memory_space<vmem>>, vector<1x32xbf16>
    %106 = arith.truncf %104 : vector<128x32xf32> to vector<128x32xbf16>
    %cst_61 = arith.constant dense<0.000000e+00> : vector<1x128xf32>
    %107 = tpu.matmul %105, %106, %cst_61 {dimension_numbers = #tpu.dot_dimension_numbers<[1], [1], [0], [0], [0, 0, 1, 0], [], []>} : vector<1x32xbf16>, vector<128x32xbf16>, vector<1x128xf32> -> vector<1x128xf32>
    %c0_62 = arith.constant 0 : index
    %c0_63 = arith.constant 0 : index
    %108 = vector.load %arg13[%c0_62, %c0_63] : memref<1x1xf32, #tpu.memory_space<vmem>>, vector<1x1xf32>
    %109 = vector.broadcast %108 : vector<1x1xf32> to vector<1x128xf32>
    %110 = arith.addf %107, %109 : vector<1x128xf32>
    %c0_64 = arith.constant 0 : index
    %c0_65 = arith.constant 0 : index
    %c0_66 = arith.constant 0 : index
    %111 = vector.load %arg14[%c0_64, %c0_65, %c0_66] : memref<1x1x128xf32, #tpu.memory_space<vmem>>, vector<1x1x128xf32>
    %112 = vector.shape_cast %111 : vector<1x1x128xf32> to vector<1x128xf32>
    %113 = vector.shape_cast %110 : vector<1x128xf32> to vector<1x1x128xf32>
    tpu.vector_store %arg14[%c0_64, %c0_65, %c0_66], %113 {strides = array<i32>} : memref<1x1x128xf32, #tpu.memory_space<vmem>>, vector<1x1x128xf32>,
    return
  }
  func.func @transform_0(%arg0: i32) -> (i32, i32) {
    %c0_i32 = arith.constant 0 : i32
    %c0_i32_0 = arith.constant 0 : i32
    return %arg0, %c0_i32 : i32, i32
  }
  func.func @transform_1(%arg0: i32) -> (i32, i32, i32) {
    %c0_i32 = arith.constant 0 : i32
    %c0_i32_0 = arith.constant 0 : i32
    %c0_i32_1 = arith.constant 0 : i32
    return %arg0, %c0_i32, %c0_i32_0 : i32, i32, i32
  }
  func.func @transform_2(%arg0: i32) -> (i32, i32) {
    %c0_i32 = arith.constant 0 : i32
    %c0_i32_0 = arith.constant 0 : i32
    %c0_i32_1 = arith.constant 0 : i32
    return %c0_i32, %c0_i32_0 : i32, i32
  }
  func.func @transform_3(%arg0: i32) -> (i32, i32) {
    %c0_i32 = arith.constant 0 : i32
    %c0_i32_0 = arith.constant 0 : i32
    %c0_i32_1 = arith.constant 0 : i32
    return %c0_i32, %c0_i32_0 : i32, i32
  }
  func.func @transform_4(%arg0: i32) -> (i32, i32) {
    %c0_i32 = arith.constant 0 : i32
    %c0_i32_0 = arith.constant 0 : i32
    %c0_i32_1 = arith.constant 0 : i32
    return %c0_i32, %c0_i32_0 : i32, i32
  }
  func.func @transform_5(%arg0: i32) -> (i32, i32) {
    %c0_i32 = arith.constant 0 : i32
    %c0_i32_0 = arith.constant 0 : i32
    %c0_i32_1 = arith.constant 0 : i32
    return %c0_i32, %c0_i32_0 : i32, i32
  }
  func.func @transform_6(%arg0: i32) -> (i32, i32) {
    %c0_i32 = arith.constant 0 : i32
    %c0_i32_0 = arith.constant 0 : i32
    %c0_i32_1 = arith.constant 0 : i32
    return %c0_i32, %c0_i32_0 : i32, i32
  }
  func.func @transform_7(%arg0: i32) -> (i32, i32) {
    %c0_i32 = arith.constant 0 : i32
    %c0_i32_0 = arith.constant 0 : i32
    %c0_i32_1 = arith.constant 0 : i32
    return %c0_i32, %c0_i32_0 : i32, i32
  }
  func.func @transform_8(%arg0: i32) -> (i32, i32) {
    %c0_i32 = arith.constant 0 : i32
    %c0_i32_0 = arith.constant 0 : i32
    %c0_i32_1 = arith.constant 0 : i32
    return %c0_i32, %c0_i32_0 : i32, i32
  }
  func.func @transform_9(%arg0: i32) -> (i32, i32) {
    %c0_i32 = arith.constant 0 : i32
    %c0_i32_0 = arith.constant 0 : i32
    %c0_i32_1 = arith.constant 0 : i32
    return %c0_i32, %c0_i32_0 : i32, i32
  }
  func.func @transform_10(%arg0: i32) -> (i32, i32) {
    %c0_i32 = arith.constant 0 : i32
    %c0_i32_0 = arith.constant 0 : i32
    %c0_i32_1 = arith.constant 0 : i32
    return %c0_i32, %c0_i32_0 : i32, i32
  }
  func.func @transform_11(%arg0: i32) -> (i32, i32) {
    %c0_i32 = arith.constant 0 : i32
    %c0_i32_0 = arith.constant 0 : i32
    %c0_i32_1 = arith.constant 0 : i32
    return %c0_i32, %c0_i32_0 : i32, i32
  }
  func.func @transform_12(%arg0: i32) -> (i32, i32) {
    %c0_i32 = arith.constant 0 : i32
    %c0_i32_0 = arith.constant 0 : i32
    %c0_i32_1 = arith.constant 0 : i32
    return %c0_i32, %c0_i32_0 : i32, i32
  }
  func.func @transform_13(%arg0: i32) -> (i32, i32, i32) {
    %c0_i32 = arith.constant 0 : i32
    %c0_i32_0 = arith.constant 0 : i32
    %c0_i32_1 = arith.constant 0 : i32
    return %arg0, %c0_i32, %c0_i32_0 : i32, i32, i32
  }
}

</mosaic_0001>

<llo_original>
// kernel: tpu_custom_call.1
$region0: #{tpu_custom_call.1}
  #allocation0 [shape = 'u32[]', space=smem, size = 0x4, offset = 0x4, fixed_abs, tag = 'smem constant byte address 0x4 - core index']
  #allocation1 [shape = 'u32[144,128]{1,0:T(1,128)}', space=vmem, size = 0x12000, scoped, tag = 'internal scratch']
  #allocation2 [shape = 'bf16[128,768]{1,0:T(16,128)(2,1)}', space=vmem, size = 0x30000, scoped, tag = 'scratch operand']
  #allocation3 [shape = 'bf16[128,256]{1,0:T(16,128)(2,1)}', space=vmem, size = 0x10000, scoped, tag = 'scratch operand']
  #allocation4 [shape = 'f32[1,1]{1,0:T(1,128)S(1)}', space=vmem, size = 0x200, scoped, tag = 'scoped memory for tpu_custom_call.1']
  %s0 = inlined_call_operand.vmem [shape: bf16[256,32], index: 0, kind: input, shape index: {}]
  %s1 = inlined_call_operand.vmem [shape: f32[2,1,128], index: 1, kind: input, shape index: {}]
  %s2 = inlined_call_operand.vmem [shape: f32[128,128], index: 2, kind: input, shape index: {}]
  %s3 = inlined_call_operand.vmem [shape: bf16[32,768], index: 3, kind: input, shape index: {}]
  %s4 = inlined_call_operand.vmem [shape: f32[1,768], index: 4, kind: input, shape index: {}]
  %s5 = inlined_call_operand.vmem [shape: bf16[256,32], index: 5, kind: input, shape index: {}]
  %s6 = inlined_call_operand.vmem [shape: f32[1,32], index: 6, kind: input, shape index: {}]
  %s7 = inlined_call_operand.vmem [shape: f32[1,32], index: 7, kind: input, shape index: {}]
  %s8 = inlined_call_operand.vmem [shape: f32[1,32], index: 8, kind: input, shape index: {}]
  %s9 = inlined_call_operand.vmem [shape: bf16[32,32], index: 9, kind: input, shape index: {}]
  %s10 = inlined_call_operand.vmem [shape: f32[1,32], index: 10, kind: input, shape index: {}]
  %s11 = inlined_call_operand.vmem [shape: bf16[1,32], index: 11, kind: input, shape index: {}]
  %s12 = inlined_call_operand.<no memory space> [shape: f32[1,1], index: 12, kind: input, shape index: {}]
  %s13 = inlined_call_operand.hbm [shape: f32[2,1,128], index: 13, kind: output, shape index: {}]
  %s14 = sld [smem:[#allocation0]]
  $region85: #{tpu_custom_call.1} parent=0
    _
  %s16 = ssub.s32 1, %s14
  %s17 = scalar_select 0, %s16, %s14
  %v18 = vstv %s12
  %19 = vst [vmem:[#allocation4] sm:$0x1] %v18
  $region1: #{tpu_custom_call.1} parent=0
    #allocation5 [shape = 'u8[1024]{0}', space=vmem, size = 0x400, scoped, tag = 'output window, operand 0']
    #allocation6 [shape = 's32[2]{0}', space=sflag, size = 0x8, scoped, tag = 'scoped memory for tpu_custom_call.1']
    %20 = vsyncpa [#allocation6], 0
    %s21 = scalar_lea.sflag [#allocation6], 1
    %22 = vsyncpa %s21, 0
    loop: start=0, step=1, limit=4
    $region2: #{tpu_custom_call.1} parent=1 // loop_pre_header
      _
    $region3: #{tpu_custom_call.1} parent=1 // loop_header
      %s24 = sphi 0, %s28
      %p25 = scmp.ge.s32.totalorder %s24, 4
      %s34 = sphi 0, %s36
      %s37 = sphi 0, %s34
      %s38 = sphi 0, %s37
      %s54 = sphi 0, %s38
      %s60 = sphi 0, %s62
      %s63 = sphi 0, %s60
      %s64 = sphi 0, %s63
      %s80 = sphi 0, %s64
      %s84 = sphi 0, %s84
      %s86 = sphi 0, %s84
      %s87 = sphi 0, %s86
      %s101 = sphi 0, %s87
      %s105 = sphi 0, %s105
      %s107 = sphi 0, %s105
      %s108 = sphi 0, %s107
      %s122 = sphi 0, %s108
      %s126 = sphi 0, %s126
      %s128 = sphi 0, %s126
      %s129 = sphi 0, %s128
      %s143 = sphi 0, %s129
      %s147 = sphi 0, %s147
      %s149 = sphi 0, %s147
      %s150 = sphi 0, %s149
      %s164 = sphi 0, %s150
      %s168 = sphi 0, %s168
      %s170 = sphi 0, %s168
      %s171 = sphi 0, %s170
      %s185 = sphi 0, %s171
      %s189 = sphi 0, %s189
      %s191 = sphi 0, %s189
      %s192 = sphi 0, %s191
      %s206 = sphi 0, %s192
      %s210 = sphi 0, %s210
      %s212 = sphi 0, %s210
      %s213 = sphi 0, %s212
      %s227 = sphi 0, %s213
      %s231 = sphi 0, %s231
      %s233 = sphi 0, %s231
      %s234 = sphi 0, %s233
      %s248 = sphi 0, %s234
      %s252 = sphi 0, %s252
      %s254 = sphi 0, %s252
      %s255 = sphi 0, %s254
      %s269 = sphi 0, %s255
      %s273 = sphi 0, %s273
      %s275 = sphi 0, %s273
      %s276 = sphi 0, %s275
      %s290 = sphi 0, %s276
      %s294 = sphi 0, %s294
      %s296 = sphi 0, %s294
      %s297 = sphi 0, %s296
      %s311 = sphi 0, %s297
      %s317 = sphi 0, %s319
      %s320 = sphi 0, %s317
      %s321 = sphi 0, %s320
      %s337 = sphi 0, %s321
    $region4: #{tpu_custom_call.1} parent=1 // loop_header_branch
      %27 = sbr.rel (%p25) target = $region8
    $region5: #{tpu_custom_call.1} parent=1 // loop_body
      %s29 = ssub.s32 %s24, 1
      %s30 = ssub.s32 %s24, 2
      %s31 = sadd.s32 %s24, 1
      %s32 = ssub.s32 %s24, %s31
      %p33 = scmp.eq.s32.totalorder %s32, 0
      %s35 = sadd.s32 %s34, 1
      %s36 = scalar_select %p33, %s34, %s35
      %p39 = pneg %p33
      %p40 = scmp.eq.s32.totalorder %s24, 1
      %p41 = por %p39, %p40
      %p42 = scmp.ne.s32.totalorder %s34, %s37
      %p43 = scmp.eq.s32.totalorder %s24, 0
      %p44 = por %p42, %p43
      %p45 = scmp.ne.s32.totalorder %s34, %s37
      %p46 = scmp.eq.s32.totalorder %s29, 1
      %p47 = por %p45, %p46
      %p48 = scmp.ne.s32.totalorder %s37, %s38
      %p49 = scmp.eq.s32.totalorder %s29, 0
      %p50 = por %p48, %p49
      %p51 = scmp.ne.s32.totalorder %s37, %s38
      %p52 = scmp.eq.s32.totalorder %s30, 1
      %p53 = por %p51, %p52
      %p55 = scmp.ne.s32.totalorder %s38, %s54
      %p56 = scmp.eq.s32.totalorder %s30, 0
      %p57 = por %p55, %p56
      %s58 = ssub.s32 %s24, %s31
      %p59 = scmp.eq.s32.totalorder %s58, 0
      %s61 = sadd.s32 %s60, 1
      %s62 = scalar_select %p59, %s60, %s61
      %p65 = pneg %p59
      %p66 = scmp.eq.s32.totalorder %s24, 1
      %p67 = por %p65, %p66
      %p68 = scmp.ne.s32.totalorder %s60, %s63
      %p69 = scmp.eq.s32.totalorder %s24, 0
      %p70 = por %p68, %p69
      %p71 = scmp.ne.s32.totalorder %s60, %s63
      %p72 = scmp.eq.s32.totalorder %s29, 1
      %p73 = por %p71, %p72
      %p74 = scmp.ne.s32.totalorder %s63, %s64
      %p75 = scmp.eq.s32.totalorder %s29, 0
      %p76 = por %p74, %p75
      %p77 = scmp.ne.s32.totalorder %s63, %s64
      %p78 = scmp.eq.s32.totalorder %s30, 1
      %p79 = por %p77, %p78
      %p81 = scmp.ne.s32.totalorder %s64, %s80
      %p82 = scmp.eq.s32.totalorder %s30, 0
      %p83 = por %p81, %p82
      %s85 = sadd.s32 %s84, 1
      %p88 = scmp.eq.s32.totalorder %s24, 1
      %p89 = scmp.ne.s32.totalorder %s84, %s86
      %p90 = scmp.eq.s32.totalorder %s24, 0
      %p91 = por %p89, %p90
      %p92 = scmp.ne.s32.totalorder %s84, %s86
      %p93 = scmp.eq.s32.totalorder %s29, 1
      %p94 = por %p92, %p93
      %p95 = scmp.ne.s32.totalorder %s86, %s87
      %p96 = scmp.eq.s32.totalorder %s29, 0
      %p97 = por %p95, %p96
      %p98 = scmp.ne.s32.totalorder %s86, %s87
      %p99 = scmp.eq.s32.totalorder %s30, 1
      %p100 = por %p98, %p99
      %p102 = scmp.ne.s32.totalorder %s87, %s101
      %p103 = scmp.eq.s32.totalorder %s30, 0
      %p104 = por %p102, %p103
      %s106 = sadd.s32 %s105, 1
      %p109 = scmp.eq.s32.totalorder %s24, 1
      %p110 = scmp.ne.s32.totalorder %s105, %s107
      %p111 = scmp.eq.s32.totalorder %s24, 0
      %p112 = por %p110, %p111
      %p113 = scmp.ne.s32.totalorder %s105, %s107
      %p114 = scmp.eq.s32.totalorder %s29, 1
      %p115 = por %p113, %p114
      %p116 = scmp.ne.s32.totalorder %s107, %s108
      %p117 = scmp.eq.s32.totalorder %s29, 0
      %p118 = por %p116, %p117
      %p119 = scmp.ne.s32.totalorder %s107, %s108
      %p120 = scmp.eq.s32.totalorder %s30, 1
      %p121 = por %p119, %p120
      %p123 = scmp.ne.s32.totalorder %s108, %s122
      %p124 = scmp.eq.s32.totalorder %s30, 0
      %p125 = por %p123, %p124
      %s127 = sadd.s32 %s126, 1
      %p130 = scmp.eq.s32.totalorder %s24, 1
      %p131 = scmp.ne.s32.totalorder %s126, %s128
      %p132 = scmp.eq.s32.totalorder %s24, 0
      %p133 = por %p131, %p132
      %p134 = scmp.ne.s32.totalorder %s126, %s128
      %p135 = scmp.eq.s32.totalorder %s29, 1
      %p136 = por %p134, %p135
      %p137 = scmp.ne.s32.totalorder %s128, %s129
      %p138 = scmp.eq.s32.totalorder %s29, 0
      %p139 = por %p137, %p138
      %p140 = scmp.ne.s32.totalorder %s128, %s129
      %p141 = scmp.eq.s32.totalorder %s30, 1
      %p142 = por %p140, %p141
      %p144 = scmp.ne.s32.totalorder %s129, %s143
      %p145 = scmp.eq.s32.totalorder %s30, 0
      %p146 = por %p144, %p145
      %s148 = sadd.s32 %s147, 1
      %p151 = scmp.eq.s32.totalorder %s24, 1
      %p152 = scmp.ne.s32.totalorder %s147, %s149
      %p153 = scmp.eq.s32.totalorder %s24, 0
      %p154 = por %p152, %p153
      %p155 = scmp.ne.s32.totalorder %s147, %s149
      %p156 = scmp.eq.s32.totalorder %s29, 1
      %p157 = por %p155, %p156
      %p158 = scmp.ne.s32.totalorder %s149, %s150
      %p159 = scmp.eq.s32.totalorder %s29, 0
      %p160 = por %p158, %p159
      %p161 = scmp.ne.s32.totalorder %s149, %s150
      %p162 = scmp.eq.s32.totalorder %s30, 1
      %p163 = por %p161, %p162
      %p165 = scmp.ne.s32.totalorder %s150, %s164
      %p166 = scmp.eq.s32.totalorder %s30, 0
      %p167 = por %p165, %p166
      %s169 = sadd.s32 %s168, 1
      %p172 = scmp.eq.s32.totalorder %s24, 1
      %p173 = scmp.ne.s32.totalorder %s168, %s170
      %p174 = scmp.eq.s32.totalorder %s24, 0
      %p175 = por %p173, %p174
      %p176 = scmp.ne.s32.totalorder %s168, %s170
      %p177 = scmp.eq.s32.totalorder %s29, 1
      %p178 = por %p176, %p177
      %p179 = scmp.ne.s32.totalorder %s170, %s171
      %p180 = scmp.eq.s32.totalorder %s29, 0
      %p181 = por %p179, %p180
      %p182 = scmp.ne.s32.totalorder %s170, %s171
      %p183 = scmp.eq.s32.totalorder %s30, 1
      %p184 = por %p182, %p183
      %p186 = scmp.ne.s32.totalorder %s171, %s185
      %p187 = scmp.eq.s32.totalorder %s30, 0
      %p188 = por %p186, %p187
      %s190 = sadd.s32 %s189, 1
      %p193 = scmp.eq.s32.totalorder %s24, 1
      %p194 = scmp.ne.s32.totalorder %s189, %s191
      %p195 = scmp.eq.s32.totalorder %s24, 0
      %p196 = por %p194, %p195
      %p197 = scmp.ne.s32.totalorder %s189, %s191
      %p198 = scmp.eq.s32.totalorder %s29, 1
      %p199 = por %p197, %p198
      %p200 = scmp.ne.s32.totalorder %s191, %s192
      %p201 = scmp.eq.s32.totalorder %s29, 0
      %p202 = por %p200, %p201
      %p203 = scmp.ne.s32.totalorder %s191, %s192
      %p204 = scmp.eq.s32.totalorder %s30, 1
      %p205 = por %p203, %p204
      %p207 = scmp.ne.s32.totalorder %s192, %s206
      %p208 = scmp.eq.s32.totalorder %s30, 0
      %p209 = por %p207, %p208
      %s211 = sadd.s32 %s210, 1
      %p214 = scmp.eq.s32.totalorder %s24, 1
      %p215 = scmp.ne.s32.totalorder %s210, %s212
      %p216 = scmp.eq.s32.totalorder %s24, 0
      %p217 = por %p215, %p216
      %p218 = scmp.ne.s32.totalorder %s210, %s212
      %p219 = scmp.eq.s32.totalorder %s29, 1
      %p220 = por %p218, %p219
      %p221 = scmp.ne.s32.totalorder %s212, %s213
      %p222 = scmp.eq.s32.totalorder %s29, 0
      %p223 = por %p221, %p222
      %p224 = scmp.ne.s32.totalorder %s212, %s213
      %p225 = scmp.eq.s32.totalorder %s30, 1
      %p226 = por %p224, %p225
      %p228 = scmp.ne.s32.totalorder %s213, %s227
      %p229 = scmp.eq.s32.totalorder %s30, 0
      %p230 = por %p228, %p229
      %s232 = sadd.s32 %s231, 1
      %p235 = scmp.eq.s32.totalorder %s24, 1
      %p236 = scmp.ne.s32.totalorder %s231, %s233
      %p237 = scmp.eq.s32.totalorder %s24, 0
      %p238 = por %p236, %p237
      %p239 = scmp.ne.s32.totalorder %s231, %s233
      %p240 = scmp.eq.s32.totalorder %s29, 1
      %p241 = por %p239, %p240
      %p242 = scmp.ne.s32.totalorder %s233, %s234
      %p243 = scmp.eq.s32.totalorder %s29, 0
      %p244 = por %p242, %p243
      %p245 = scmp.ne.s32.totalorder %s233, %s234
      %p246 = scmp.eq.s32.totalorder %s30, 1
      %p247 = por %p245, %p246
      %p249 = scmp.ne.s32.totalorder %s234, %s248
      %p250 = scmp.eq.s32.totalorder %s30, 0
      %p251 = por %p249, %p250
      %s253 = sadd.s32 %s252, 1
      %p256 = scmp.eq.s32.totalorder %s24, 1
      %p257 = scmp.ne.s32.totalorder %s252, %s254
      %p258 = scmp.eq.s32.totalorder %s24, 0
      %p259 = por %p257, %p258
      %p260 = scmp.ne.s32.totalorder %s252, %s254
      %p261 = scmp.eq.s32.totalorder %s29, 1
      %p262 = por %p260, %p261
      %p263 = scmp.ne.s32.totalorder %s254, %s255
      %p264 = scmp.eq.s32.totalorder %s29, 0
      %p265 = por %p263, %p264
      %p266 = scmp.ne.s32.totalorder %s254, %s255
      %p267 = scmp.eq.s32.totalorder %s30, 1
      %p268 = por %p266, %p267
      %p270 = scmp.ne.s32.totalorder %s255, %s269
      %p271 = scmp.eq.s32.totalorder %s30, 0
      %p272 = por %p270, %p271
      %s274 = sadd.s32 %s273, 1
      %p277 = scmp.eq.s32.totalorder %s24, 1
      %p278 = scmp.ne.s32.totalorder %s273, %s275
      %p279 = scmp.eq.s32.totalorder %s24, 0
      %p280 = por %p278, %p279
      %p281 = scmp.ne.s32.totalorder %s273, %s275
      %p282 = scmp.eq.s32.totalorder %s29, 1
      %p283 = por %p281, %p282
      %p284 = scmp.ne.s32.totalorder %s275, %s276
      %p285 = scmp.eq.s32.totalorder %s29, 0
      %p286 = por %p284, %p285
      %p287 = scmp.ne.s32.totalorder %s275, %s276
      %p288 = scmp.eq.s32.totalorder %s30, 1
      %p289 = por %p287, %p288
      %p291 = scmp.ne.s32.totalorder %s276, %s290
      %p292 = scmp.eq.s32.totalorder %s30, 0
      %p293 = por %p291, %p292
      %s295 = sadd.s32 %s294, 1
      %p298 = scmp.eq.s32.totalorder %s24, 1
      %p299 = scmp.ne.s32.totalorder %s294, %s296
      %p300 = scmp.eq.s32.totalorder %s24, 0
      %p301 = por %p299, %p300
      %p302 = scmp.ne.s32.totalorder %s294, %s296
      %p303 = scmp.eq.s32.totalorder %s29, 1
      %p304 = por %p302, %p303
      %p305 = scmp.ne.s32.totalorder %s296, %s297
      %p306 = scmp.eq.s32.totalorder %s29, 0
      %p307 = por %p305, %p306
      %p308 = scmp.ne.s32.totalorder %s296, %s297
      %p309 = scmp.eq.s32.totalorder %s30, 1
      %p310 = por %p308, %p309
      %p312 = scmp.ne.s32.totalorder %s297, %s311
      %p313 = scmp.eq.s32.totalorder %s30, 0
      %p314 = por %p312, %p313
      %s315 = ssub.s32 %s24, %s31
      %p316 = scmp.eq.s32.totalorder %s315, 0
      %s318 = sadd.s32 %s317, 1
      %s319 = scalar_select %p316, %s317, %s318
      %p322 = pneg %p316
      %p323 = scmp.eq.s32.totalorder %s24, 1
      %p324 = por %p322, %p323
      %p325 = scmp.ne.s32.totalorder %s317, %s320
      %p326 = scmp.eq.s32.totalorder %s24, 0
      %p327 = por %p325, %p326
      %p328 = scmp.ne.s32.totalorder %s317, %s320
      %p329 = scmp.eq.s32.totalorder %s29, 1
      %p330 = por %p328, %p329
      %p331 = scmp.ne.s32.totalorder %s320, %s321
      %p332 = scmp.eq.s32.totalorder %s29, 0
      %p333 = por %p331, %p332
      %p334 = scmp.ne.s32.totalorder %s320, %s321
      %p335 = scmp.eq.s32.totalorder %s30, 1
      %p336 = por %p334, %p335
      %p338 = scmp.ne.s32.totalorder %s321, %s337
      %p339 = scmp.eq.s32.totalorder %s30, 0
      %p340 = por %p338, %p339
      %p341 = scmp.le.s32.totalorder 1, %s24
      %p342 = scmp.lt.s32.totalorder %s24, 3
      %p343 = pnand %p341, %p342
      %p344 = pneg %p343
      // Predicated region
      $region9: #{tpu_custom_call.1} parent=5 // pred_check
        _
      $region10: #{tpu_custom_call.1} parent=5 // pred_check_branch
        %346 = sbr.rel (%p343) target = $region12
      $region11: #{tpu_custom_call.1} parent=5 // pred_region
        %s347 = ssub.s32 %s24, 1
        // Predicated region
        $region13: #{tpu_custom_call.1} parent=11 // pred_check
          %p348 = pneg %p97
        $region14: #{tpu_custom_call.1} parent=11 // pred_check_branch
          %350 = sbr.rel (%p348) target = $region16
        $region15: #{tpu_custom_call.1} parent=11 // pred_region
          _
        $region16: #{tpu_custom_call.1} parent=11 // pred_fallthru
          _
        // Predicated region
        $region17: #{tpu_custom_call.1} parent=11 // pred_check
          %p351 = pneg %p118
        $region18: #{tpu_custom_call.1} parent=11 // pred_check_branch
          %353 = sbr.rel (%p351) target = $region20
        $region19: #{tpu_custom_call.1} parent=11 // pred_region
          _
        $region20: #{tpu_custom_call.1} parent=11 // pred_fallthru
          _
        // Predicated region
        $region21: #{tpu_custom_call.1} parent=11 // pred_check
          %p354 = pneg %p139
        $region22: #{tpu_custom_call.1} parent=11 // pred_check_branch
          %356 = sbr.rel (%p354) target = $region24
        $region23: #{tpu_custom_call.1} parent=11 // pred_region
          _
        $region24: #{tpu_custom_call.1} parent=11 // pred_fallthru
          _
        // Predicated region
        $region25: #{tpu_custom_call.1} parent=11 // pred_check
          %p357 = pneg %p160
        $region26: #{tpu_custom_call.1} parent=11 // pred_check_branch
          %359 = sbr.rel (%p357) target = $region28
        $region27: #{tpu_custom_call.1} parent=11 // pred_region
          _
        $region28: #{tpu_custom_call.1} parent=11 // pred_fallthru
          _
        // Predicated region
        $region29: #{tpu_custom_call.1} parent=11 // pred_check
          %p360 = pneg %p181
        $region30: #{tpu_custom_call.1} parent=11 // pred_check_branch
          %362 = sbr.rel (%p360) target = $region32
        $region31: #{tpu_custom_call.1} parent=11 // pred_region
          _
        $region32: #{tpu_custom_call.1} parent=11 // pred_fallthru
          _
        // Predicated region
        $region33: #{tpu_custom_call.1} parent=11 // pred_check
          %p363 = pneg %p202
        $region34: #{tpu_custom_call.1} parent=11 // pred_check_branch
          %365 = sbr.rel (%p363) target = $region36
        $region35: #{tpu_custom_call.1} parent=11 // pred_region
          _
        $region36: #{tpu_custom_call.1} parent=11 // pred_fallthru
          _
        // Predicated region
        $region37: #{tpu_custom_call.1} parent=11 // pred_check
          %p366 = pneg %p223
        $region38: #{tpu_custom_call.1} parent=11 // pred_check_branch
          %368 = sbr.rel (%p366) target = $region40
        $region39: #{tpu_custom_call.1} parent=11 // pred_region
          _
        $region40: #{tpu_custom_call.1} parent=11 // pred_fallthru
          _
        // Predicated region
        $region41: #{tpu_custom_call.1} parent=11 // pred_check
          %p369 = pneg %p244
        $region42: #{tpu_custom_call.1} parent=11 // pred_check_branch
          %371 = sbr.rel (%p369) target = $region44
        $region43: #{tpu_custom_call.1} parent=11 // pred_region
          _
        $region44: #{tpu_custom_call.1} parent=11 // pred_fallthru
          _
        // Predicated region
        $region45: #{tpu_custom_call.1} parent=11 // pred_check
          %p372 = pneg %p265
        $region46: #{tpu_custom_call.1} parent=11 // pred_check_branch
          %374 = sbr.rel (%p372) target = $region48
        $region47: #{tpu_custom_call.1} parent=11 // pred_region
          _
        $region48: #{tpu_custom_call.1} parent=11 // pred_fallthru
          _
        // Predicated region
        $region49: #{tpu_custom_call.1} parent=11 // pred_check
          %p375 = pneg %p286
        $region50: #{tpu_custom_call.1} parent=11 // pred_check_branch
          %377 = sbr.rel (%p375) target = $region52
        $region51: #{tpu_custom_call.1} parent=11 // pred_region
          _
        $region52: #{tpu_custom_call.1} parent=11 // pred_fallthru
          _
        // Predicated region
        $region53: #{tpu_custom_call.1} parent=11 // pred_check
          %p378 = pneg %p307
        $region54: #{tpu_custom_call.1} parent=11 // pred_check_branch
          %380 = sbr.rel (%p378) target = $region56
        $region55: #{tpu_custom_call.1} parent=11 // pred_region
          _
        $region56: #{tpu_custom_call.1} parent=11 // pred_fallthru
          _
      $region12: #{tpu_custom_call.1} parent=5 // pred_fallthru
        _
      %p381 = scmp.lt.s32.totalorder %s24, 2
      // Predicated region
      $region57: #{tpu_custom_call.1} parent=5 // pred_check
        %p382 = pneg %p381
      $region58: #{tpu_custom_call.1} parent=5 // pred_check_branch
        %384 = sbr.rel (%p382) target = $region60
      $region59: #{tpu_custom_call.1} parent=5 // pred_region
        // Predicated region
        $region61: #{tpu_custom_call.1} parent=59 // pred_check
          %p385 = pneg %p44
        $region62: #{tpu_custom_call.1} parent=59 // pred_check_branch
          %387 = sbr.rel (%p385) target = $region64
        $region63: #{tpu_custom_call.1} parent=59 // pred_region
          %s388 = smul.u32 16, %s24
          %p389 = scmp.lt.s32.totalorder %s388, 31
          %s390 = scalar_select %p389, %s388, 31
          %s391 = smul.addr %s390, 4
          %s392 = scalar_lea.vmem %s0, %s391
          %s393 = smul.u32 16, %s24
        $region64: #{tpu_custom_call.1} parent=59 // pred_fallthru
          _
        // Predicated region
        $region65: #{tpu_custom_call.1} parent=59 // pred_check
          %p394 = pneg %p70
        $region66: #{tpu_custom_call.1} parent=59 // pred_check_branch
          %396 = sbr.rel (%p394) target = $region68
        $region67: #{tpu_custom_call.1} parent=59 // pred_region
          %p397 = scmp.lt.s32.totalorder %s24, 1
          %s398 = scalar_select %p397, %s24, 1
          %s399 = scalar_lea.vmem %s1, %s398
        $region68: #{tpu_custom_call.1} parent=59 // pred_fallthru
          _
      $region60: #{tpu_custom_call.1} parent=5 // pred_fallthru
        _
      %p400 = scmp.le.s32.totalorder 1, %s24
      %p401 = scmp.lt.s32.totalorder %s24, 3
      %p402 = pnand %p400, %p401
      %p403 = pneg %p402
      // Predicated region
      $region69: #{tpu_custom_call.1} parent=5 // pred_check
        _
      $region70: #{tpu_custom_call.1} parent=5 // pred_check_branch
        %405 = sbr.rel (%p402) target = $region72
      $region71: #{tpu_custom_call.1} parent=5 // pred_region
        %s406 = ssub.s32 %s24, 1
        %s407 = smul.u32 16, %s29
        %p408 = scmp.lt.s32.totalorder %s407, 31
        %s409 = scalar_select %p408, %s407, 31
        %s410 = smul.addr %s409, 4
        %s411 = scalar_lea.vmem %s0, %s410
        %p412 = pneg %p50
        %p413 = pneg %p47
        %p414 = scmp.lt.s32.totalorder %s29, 1
        %s415 = scalar_select %p414, %s29, 1
        %s416 = scalar_lea.vmem %s1, %s415
        %p417 = pneg %p76
        %p418 = pneg %p73
        %p419 = pneg %p97
        %p420 = pneg %p94
        %p421 = pneg %p118
        %p422 = pneg %p115
        %p423 = pneg %p139
        %p424 = pneg %p136
        %p425 = pneg %p160
        %p426 = pneg %p157
        %p427 = pneg %p181
        %p428 = pneg %p178
        %p429 = pneg %p202
        %p430 = pneg %p199
        %p431 = pneg %p223
        %p432 = pneg %p220
        %p433 = pneg %p244
        %p434 = pneg %p241
        %p435 = pneg %p265
        %p436 = pneg %p262
        %p437 = pneg %p286
        %p438 = pneg %p283
        %p439 = pneg %p307
        %p440 = pneg %p304
        %p441 = pneg %p333
        %p442 = pneg %p330
        %s443 = sand.u32 %s320, 1
        %s444 = scalar_lea.sflag [#allocation6], %s443
        %s445 = sand.u32 %s320, 1
        %s446 = scalar_lea.vmem [#allocation5], %s445
        %s447 = smul.u32 16, %s29
        %p448 = scmp.lt.s32.totalorder %s447, 31
        %s449 = scalar_select %p448, %s447, 31
        %s450 = smul.addr %s449, 4
        %s451 = scalar_lea.vmem %s0, %s450
        %s452 = smul.u32 16, %s29
        %p453 = scmp.lt.s32.totalorder %s29, 1
        %s454 = scalar_select %p453, %s29, 1
        %s455 = scalar_lea.vmem %s1, %s454
        %v457 = vld [vmem:[%s451] sm:$0xf]
        %v458 = vld [vmem:[%s451 + $0x4] sm:$0xf]
        %v459 = vld [vmem:[%s451 + $0x8] sm:$0xf]
        %v460 = vld [vmem:[%s451 + $0xc] sm:$0xf]
        %v461 = vld [vmem:[%s451 + $0x10] sm:$0xf]
        %v462 = vld [vmem:[%s451 + $0x14] sm:$0xf]
        %v463 = vld [vmem:[%s451 + $0x18] sm:$0xf]
        %v464 = vld [vmem:[%s451 + $0x1c] sm:$0xf]
        %v465 = vld [vmem:[%s451 + $0x20] sm:$0xf]
        %v466 = vld [vmem:[%s451 + $0x24] sm:$0xf]
        %v467 = vld [vmem:[%s451 + $0x28] sm:$0xf]
        %v468 = vld [vmem:[%s451 + $0x2c] sm:$0xf]
        %v469 = vld [vmem:[%s451 + $0x30] sm:$0xf]
        %v470 = vld [vmem:[%s451 + $0x34] sm:$0xf]
        %v471 = vld [vmem:[%s451 + $0x38] sm:$0xf]
        %v472 = vld [vmem:[%s451 + $0x3c] sm:$0xf]
        %v473 = vld [vmem:[%s3] sm:$0xff]
        %v474 = vld [vmem:[%s3 + $0x8] sm:$0xff]
        %v475 = vld [vmem:[%s3 + $0x10] sm:$0xff]
        %v476 = vld [vmem:[%s3 + $0x18] sm:$0xff]
        %v477 = vld [vmem:[%s3 + $0x20] sm:$0xff]
        %v478 = vld [vmem:[%s3 + $0x28] sm:$0xff]
        %v479 = vld [vmem:[%s3 + $0x30] sm:$0xff]
        %v480 = vld [vmem:[%s3 + $0x38] sm:$0xff]
        %v481 = vld [vmem:[%s3 + $0x40] sm:$0xff]
        %v482 = vld [vmem:[%s3 + $0x48] sm:$0xff]
        %v483 = vld [vmem:[%s3 + $0x50] sm:$0xff]
        %v484 = vld [vmem:[%s3 + $0x58] sm:$0xff]
        %v485 = vld [vmem:[%s4] sm:$0x3f]
        %v487 = vlaneseq
        %v488 = vshrl.u32 %v487, 7
        %v489 = vsub.s32 0, %v488
        %v490 = vrot.slane %v485, %v489
        %v491 = vlaneseq
        %v492 = vshrl.u32 %v491, 7
        %v493 = vsub.s32 1, %v492
        %v494 = vrot.slane %v485, %v493
        %v495 = vlaneseq
        %v496 = vshrl.u32 %v495, 7
        %v497 = vsub.s32 2, %v496
        %v498 = vrot.slane %v485, %v497
        %v499 = vlaneseq
        %v500 = vshrl.u32 %v499, 7
        %v501 = vsub.s32 3, %v500
        %v502 = vrot.slane %v485, %v501
        %v503 = vlaneseq
        %v504 = vshrl.u32 %v503, 7
        %v505 = vsub.s32 4, %v504
        %v506 = vrot.slane %v485, %v505
        %v507 = vlaneseq
        %v508 = vshrl.u32 %v507, 7
        %v509 = vsub.s32 5, %v508
        %v510 = vrot.slane %v485, %v509
        %v533 = vunpack.c.l.b16 %v457
        %v534 = vunpack.c.l.b16 %v458
        %v535 = vunpack.c.l.b16 %v459
        %v536 = vunpack.c.l.b16 %v460
        %v537 = vunpack.c.l.b16 %v461
        %v538 = vunpack.c.l.b16 %v462
        %v539 = vunpack.c.l.b16 %v463
        %v540 = vunpack.c.l.b16 %v464
        %v541 = vunpack.c.l.b16 %v465
        %v542 = vunpack.c.l.b16 %v466
        %v543 = vunpack.c.l.b16 %v467
        %v544 = vunpack.c.l.b16 %v468
        %v545 = vunpack.c.l.b16 %v469
        %v546 = vunpack.c.l.b16 %v470
        %v547 = vunpack.c.l.b16 %v471
        %v548 = vunpack.c.l.b16 %v472
        %v549 = vpack.c.b16 %v534, %v533
        %v550 = vpack.c.b16 %v536, %v535
        %v551 = vpack.c.b16 %v538, %v537
        %v552 = vpack.c.b16 %v540, %v539
        %v553 = vpack.c.b16 %v542, %v541
        %v554 = vpack.c.b16 %v544, %v543
        %v555 = vpack.c.b16 %v546, %v545
        %v556 = vpack.c.b16 %v548, %v547
        %v569 = vunpack.c.l.b16 %v473
        %v570 = vunpack.c.h.b16 %v473
        %v571 = vunpack.c.l.b16 %v474
        %v572 = vunpack.c.h.b16 %v474
        %v573 = vunpack.c.l.b16 %v475
        %v574 = vunpack.c.h.b16 %v475
        %v575 = vunpack.c.l.b16 %v476
        %v576 = vunpack.c.h.b16 %v476
        %v577 = vunpack.c.l.b16 %v477
        %v578 = vunpack.c.h.b16 %v477
        %v579 = vunpack.c.l.b16 %v478
        %v580 = vunpack.c.h.b16 %v478
        %v581 = vunpack.c.l.b16 %v479
        %v582 = vunpack.c.h.b16 %v479
        %v583 = vunpack.c.l.b16 %v480
        %v584 = vunpack.c.h.b16 %v480
        %v585 = vunpack.c.l.b16 %v481
        %v586 = vunpack.c.h.b16 %v481
        %v587 = vunpack.c.l.b16 %v482
        %v588 = vunpack.c.h.b16 %v482
        %v589 = vunpack.c.l.b16 %v483
        %v590 = vunpack.c.h.b16 %v483
        %v591 = vunpack.c.l.b16 %v484
        %v592 = vunpack.c.h.b16 %v484
        %v593 = vpack.c.b16 %v575, %v569
        %v594 = vpack.c.b16 %v576, %v570
        %v595 = vpack.c.b16 %v577, %v571
        %v596 = vpack.c.b16 %v578, %v572
        %v597 = vpack.c.b16 %v579, %v573
        %v598 = vpack.c.b16 %v580, %v574
        %v599 = vpack.c.b16 %v587, %v581
        %v600 = vpack.c.b16 %v588, %v582
        %v601 = vpack.c.b16 %v589, %v583
        %v602 = vpack.c.b16 %v590, %v584
        %v603 = vpack.c.b16 %v591, %v585
        %v604 = vpack.c.b16 %v592, %v586
        %vm617 = vcmask 261120
        %v619 = vsel %vm617, %v549, 0
        %v622 = vsel %vm617, %v550, 0
        %v625 = vsel %vm617, %v551, 0
        %v628 = vsel %vm617, %v552, 0
        %v631 = vsel %vm617, %v553, 0
        %v634 = vsel %vm617, %v554, 0
        %v637 = vsel %vm617, %v555, 0
        %v640 = vsel %vm617, %v556, 0
        %642 = vmatprep.subr.bf16.mxu0 %v594
        %643 = vmatpush1.bf16.msra.mxu0 %v593
        %644 = vmatprep.subr.bf16.mxu0 %v600
        %645 = vmatpush1.bf16.msra.mxu0 %v599
        %646 = vmatprep.subr.bf16.mxu0 0
        %647 = vmatpush1.bf16.msra.mxu0 0
        %648 = vmatprep.subr.bf16.mxu0 0
        %649 = vmatpush1.bf16.msra.mxu0 0
        %650 = vmatprep.subr.bf16.mxu0 0
        %651 = vmatpush1.bf16.msra.mxu0 0
        %652 = vmatprep.subr.bf16.mxu0 0
        %653 = vmatpush1.bf16.msra.mxu0 0
        %654 = vmatprep.subr.bf16.mxu0 0
        %655 = vmatpush1.bf16.msra.mxu0 0
        %656 = vmatprep.subr.bf16.mxu0 0
        %657 = vmatpush1.bf16.msra.mxu0 0
        %658 = vmatprep.subr.bf16.mxu0 0
        %659 = vmatpush1.bf16.msra.mxu0 0
        %660 = vmatprep.subr.bf16.mxu0 0
        %661 = vmatpush1.bf16.msra.mxu0 0
        %662 = vmatprep.subr.bf16.mxu0 0
        %663 = vmatpush1.bf16.msra.mxu0 0
        %664 = vmatprep.subr.bf16.mxu0 0
        %665 = vmatpush1.bf16.msra.mxu0 0
        %666 = vmatprep.subr.bf16.mxu0 0
        %667 = vmatpush1.bf16.msra.mxu0 0
        %668 = vmatprep.subr.bf16.mxu0 0
        %669 = vmatpush1.bf16.msra.mxu0 0
        %670 = vmatprep.subr.bf16.mxu0 0
        %671 = vmatpush1.bf16.msra.mxu0 0
        %672 = vmatprep.subr.bf16.mxu0 0
        %673 = vmatpush1.bf16.msra.mxu0 0
        %674 = vmatprep.mubr.bf16.mxu0 0
        %675 = vmatmul.mubr.bf16.gmra.mrb[0].mxu0 %v619
        %v676 = vpop.f32.mrb[0].mxu0
        %v677 = vadd.f32 %v490, %v676
        %v678 = vpop.f32.mrb[0].mxu0
        %v679 = vadd.f32 %v494, %v678
        %v680 = vpop.f32.mrb[0].mxu0
        %v681 = vadd.f32 %v490, %v680
        %v682 = vpop.f32.mrb[0].mxu0
        %v683 = vadd.f32 %v494, %v682
        %684 = vmatprep.mubr.bf16.mxu0 0
        %685 = vmatmul.mubr.bf16.gmra.mrb[0].mxu0 %v622
        %v686 = vpop.f32.mrb[0].mxu0
        %v687 = vadd.f32 %v490, %v686
        %v688 = vpop.f32.mrb[0].mxu0
        %v689 = vadd.f32 %v494, %v688
        %v690 = vpop.f32.mrb[0].mxu0
        %v691 = vadd.f32 %v490, %v690
        %v692 = vpop.f32.mrb[0].mxu0
        %v693 = vadd.f32 %v494, %v692
        %694 = vmatprep.mubr.bf16.mxu0 0
        %695 = vmatmul.mubr.bf16.gmra.mrb[0].mxu0 %v625
        %v696 = vpop.f32.mrb[0].mxu0
        %v697 = vadd.f32 %v490, %v696
        %v698 = vpop.f32.mrb[0].mxu0
        %v699 = vadd.f32 %v494, %v698
        %v700 = vpop.f32.mrb[0].mxu0
        %v701 = vadd.f32 %v490, %v700
        %v702 = vpop.f32.mrb[0].mxu0
        %v703 = vadd.f32 %v494, %v702
        %704 = vmatprep.mubr.bf16.mxu0 0
        %705 = vmatmul.mubr.bf16.gmra.mrb[0].mxu0 %v628
        %v706 = vpop.f32.mrb[0].mxu0
        %v707 = vadd.f32 %v490, %v706
        %v708 = vpop.f32.mrb[0].mxu0
        %v709 = vadd.f32 %v494, %v708
        %v710 = vpop.f32.mrb[0].mxu0
        %v711 = vadd.f32 %v490, %v710
        %v712 = vpop.f32.mrb[0].mxu0
        %v713 = vadd.f32 %v494, %v712
        %714 = vmatprep.mubr.bf16.mxu0 0
        %715 = vmatmul.mubr.bf16.gmra.mrb[0].mxu0 %v631
        %v716 = vpop.f32.mrb[0].mxu0
        %v717 = vadd.f32 %v490, %v716
        %v718 = vpop.f32.mrb[0].mxu0
        %v719 = vadd.f32 %v494, %v718
        %v720 = vpop.f32.mrb[0].mxu0
        %v721 = vadd.f32 %v490, %v720
        %v722 = vpop.f32.mrb[0].mxu0
        %v723 = vadd.f32 %v494, %v722
        %724 = vmatprep.mubr.bf16.mxu0 0
        %725 = vmatmul.mubr.bf16.gmra.mrb[0].mxu0 %v634
        %v726 = vpop.f32.mrb[0].mxu0
        %v727 = vadd.f32 %v490, %v726
        %v728 = vpop.f32.mrb[0].mxu0
        %v729 = vadd.f32 %v494, %v728
        %v730 = vpop.f32.mrb[0].mxu0
        %v731 = vadd.f32 %v490, %v730
        %v732 = vpop.f32.mrb[0].mxu0
        %v733 = vadd.f32 %v494, %v732
        %734 = vmatprep.mubr.bf16.mxu0 0
        %735 = vmatmul.mubr.bf16.gmra.mrb[0].mxu0 %v637
        %v736 = vpop.f32.mrb[0].mxu0
        %v737 = vadd.f32 %v490, %v736
        %v738 = vpop.f32.mrb[0].mxu0
        %v739 = vadd.f32 %v494, %v738
        %v740 = vpop.f32.mrb[0].mxu0
        %v741 = vadd.f32 %v490, %v740
        %v742 = vpop.f32.mrb[0].mxu0
        %v743 = vadd.f32 %v494, %v742
        %744 = vmatprep.mubr.bf16.mxu0 0
        %745 = vmatmul.mubr.bf16.gmra.mrb[0].mxu0 %v640
        %v746 = vpop.f32.mrb[0].mxu0
        %v747 = vadd.f32 %v490, %v746
        %v748 = vpop.f32.mrb[0].mxu0
        %v749 = vadd.f32 %v494, %v748
        %v750 = vpop.f32.mrb[0].mxu0
        %v751 = vadd.f32 %v490, %v750
        %v752 = vpop.f32.mrb[0].mxu0
        %v753 = vadd.f32 %v494, %v752
        %754 = vdwg.mxu0
        %755 = vmatprep.subr.bf16.mxu0 %v596
        %756 = vmatpush1.bf16.msra.mxu0 %v595
        %757 = vmatprep.subr.bf16.mxu0 %v602
        %758 = vmatpush1.bf16.msra.mxu0 %v601
        %759 = vmatprep.subr.bf16.mxu0 0
        %760 = vmatpush1.bf16.msra.mxu0 0
        %761 = vmatprep.subr.bf16.mxu0 0
        %762 = vmatpush1.bf16.msra.mxu0 0
        %763 = vmatprep.subr.bf16.mxu0 0
        %764 = vmatpush1.bf16.msra.mxu0 0
        %765 = vmatprep.subr.bf16.mxu0 0
        %766 = vmatpush1.bf16.msra.mxu0 0
        %767 = vmatprep.subr.bf16.mxu0 0
        %768 = vmatpush1.bf16.msra.mxu0 0
        %769 = vmatprep.subr.bf16.mxu0 0
        %770 = vmatpush1.bf16.msra.mxu0 0
        %771 = vmatprep.subr.bf16.mxu0 0
        %772 = vmatpush1.bf16.msra.mxu0 0
        %773 = vmatprep.subr.bf16.mxu0 0
        %774 = vmatpush1.bf16.msra.mxu0 0
        %775 = vmatprep.subr.bf16.mxu0 0
        %776 = vmatpush1.bf16.msra.mxu0 0
        %777 = vmatprep.subr.bf16.mxu0 0
        %778 = vmatpush1.bf16.msra.mxu0 0
        %779 = vmatprep.subr.bf16.mxu0 0
        %780 = vmatpush1.bf16.msra.mxu0 0
        %781 = vmatprep.subr.bf16.mxu0 0
        %782 = vmatpush1.bf16.msra.mxu0 0
        %783 = vmatprep.subr.bf16.mxu0 0
        %784 = vmatpush1.bf16.msra.mxu0 0
        %785 = vmatprep.subr.bf16.mxu0 0
        %786 = vmatpush1.bf16.msra.mxu0 0
        %787 = vmatprep.mubr.bf16.mxu0 0
        %788 = vmatmul.mubr.bf16.gmra.mrb[0].mxu0 %v619
        %v789 = vpop.f32.mrb[0].mxu0
        %v790 = vadd.f32 %v498, %v789
        %v791 = vpop.f32.mrb[0].mxu0
        %v792 = vadd.f32 %v502, %v791
        %v793 = vpop.f32.mrb[0].mxu0
        %v794 = vadd.f32 %v498, %v793
        %v795 = vpop.f32.mrb[0].mxu0
        %v796 = vadd.f32 %v502, %v795
        %797 = vmatprep.mubr.bf16.mxu0 0
        %798 = vmatmul.mubr.bf16.gmra.mrb[0].mxu0 %v622
        %v799 = vpop.f32.mrb[0].mxu0
        %v800 = vadd.f32 %v498, %v799
        %v801 = vpop.f32.mrb[0].mxu0
        %v802 = vadd.f32 %v502, %v801
        %v803 = vpop.f32.mrb[0].mxu0
        %v804 = vadd.f32 %v498, %v803
        %v805 = vpop.f32.mrb[0].mxu0
        %v806 = vadd.f32 %v502, %v805
        %807 = vmatprep.mubr.bf16.mxu0 0
        %808 = vmatmul.mubr.bf16.gmra.mrb[0].mxu0 %v625
        %v809 = vpop.f32.mrb[0].mxu0
        %v810 = vadd.f32 %v498, %v809
        %v811 = vpop.f32.mrb[0].mxu0
        %v812 = vadd.f32 %v502, %v811
        %v813 = vpop.f32.mrb[0].mxu0
        %v814 = vadd.f32 %v498, %v813
        %v815 = vpop.f32.mrb[0].mxu0
        %v816 = vadd.f32 %v502, %v815
        %817 = vmatprep.mubr.bf16.mxu0 0
        %818 = vmatmul.mubr.bf16.gmra.mrb[0].mxu0 %v628
        %v819 = vpop.f32.mrb[0].mxu0
        %v820 = vadd.f32 %v498, %v819
        %v821 = vpop.f32.mrb[0].mxu0
        %v822 = vadd.f32 %v502, %v821
        %v823 = vpop.f32.mrb[0].mxu0
        %v824 = vadd.f32 %v498, %v823
        %v825 = vpop.f32.mrb[0].mxu0
        %v826 = vadd.f32 %v502, %v825
        %827 = vmatprep.mubr.bf16.mxu0 0
        %828 = vmatmul.mubr.bf16.gmra.mrb[0].mxu0 %v631
        %v829 = vpop.f32.mrb[0].mxu0
        %v830 = vadd.f32 %v498, %v829
        %v831 = vpop.f32.mrb[0].mxu0
        %v832 = vadd.f32 %v502, %v831
        %v833 = vpop.f32.mrb[0].mxu0
        %v834 = vadd.f32 %v498, %v833
        %v835 = vpop.f32.mrb[0].mxu0
        %v836 = vadd.f32 %v502, %v835
        %837 = vmatprep.mubr.bf16.mxu0 0
        %838 = vmatmul.mubr.bf16.gmra.mrb[0].mxu0 %v634
        %v839 = vpop.f32.mrb[0].mxu0
        %v840 = vadd.f32 %v498, %v839
        %v841 = vpop.f32.mrb[0].mxu0
        %v842 = vadd.f32 %v502, %v841
        %v843 = vpop.f32.mrb[0].mxu0
        %v844 = vadd.f32 %v498, %v843
        %v845 = vpop.f32.mrb[0].mxu0
        %v846 = vadd.f32 %v502, %v845
        %847 = vmatprep.mubr.bf16.mxu0 0
        %848 = vmatmul.mubr.bf16.gmra.mrb[0].mxu0 %v637
        %v849 = vpop.f32.mrb[0].mxu0
        %v850 = vadd.f32 %v498, %v849
        %v851 = vpop.f32.mrb[0].mxu0
        %v852 = vadd.f32 %v502, %v851
        %v853 = vpop.f32.mrb[0].mxu0
        %v854 = vadd.f32 %v498, %v853
        %v855 = vpop.f32.mrb[0].mxu0
        %v856 = vadd.f32 %v502, %v855
        %857 = vmatprep.mubr.bf16.mxu0 0
        %858 = vmatmul.mubr.bf16.gmra.mrb[0].mxu0 %v640
        %v859 = vpop.f32.mrb[0].mxu0
        %v860 = vadd.f32 %v498, %v859
        %v861 = vpop.f32.mrb[0].mxu0
        %v862 = vadd.f32 %v502, %v861
        %v863 = vpop.f32.mrb[0].mxu0
        %v864 = vadd.f32 %v498, %v863
        %v865 = vpop.f32.mrb[0].mxu0
        %v866 = vadd.f32 %v502, %v865
        %867 = vdwg.mxu0
        %868 = vmatprep.subr.bf16.mxu0 %v598
        %869 = vmatpush1.bf16.msra.mxu0 %v597
        %870 = vmatprep.subr.bf16.mxu0 %v604
        %871 = vmatpush1.bf16.msra.mxu0 %v603
        %872 = vmatprep.subr.bf16.mxu0 0
        %873 = vmatpush1.bf16.msra.mxu0 0
        %874 = vmatprep.subr.bf16.mxu0 0
        %875 = vmatpush1.bf16.msra.mxu0 0
        %876 = vmatprep.subr.bf16.mxu0 0
        %877 = vmatpush1.bf16.msra.mxu0 0
        %878 = vmatprep.subr.bf16.mxu0 0
        %879 = vmatpush1.bf16.msra.mxu0 0
        %880 = vmatprep.subr.bf16.mxu0 0
        %881 = vmatpush1.bf16.msra.mxu0 0
        %882 = vmatprep.subr.bf16.mxu0 0
        %883 = vmatpush1.bf16.msra.mxu0 0
        %884 = vmatprep.subr.bf16.mxu0 0
        %885 = vmatpush1.bf16.msra.mxu0 0
        %886 = vmatprep.subr.bf16.mxu0 0
        %887 = vmatpush1.bf16.msra.mxu0 0
        %888 = vmatprep.subr.bf16.mxu0 0
        %889 = vmatpush1.bf16.msra.mxu0 0
        %890 = vmatprep.subr.bf16.mxu0 0
        %891 = vmatpush1.bf16.msra.mxu0 0
        %892 = vmatprep.subr.bf16.mxu0 0
        %893 = vmatpush1.bf16.msra.mxu0 0
        %894 = vmatprep.subr.bf16.mxu0 0
        %895 = vmatpush1.bf16.msra.mxu0 0
        %896 = vmatprep.subr.bf16.mxu0 0
        %897 = vmatpush1.bf16.msra.mxu0 0
        %898 = vmatprep.subr.bf16.mxu0 0
        %899 = vmatpush1.bf16.msra.mxu0 0
        %900 = vmatprep.mubr.bf16.mxu0 0
        %901 = vmatmul.mubr.bf16.gmra.mrb[0].mxu0 %v619
        %v902 = vpop.f32.mrb[0].mxu0
        %v903 = vadd.f32 %v506, %v902
        %v904 = vpop.f32.mrb[0].mxu0
        %v905 = vadd.f32 %v510, %v904
        %v906 = vpop.f32.mrb[0].mxu0
        %v907 = vadd.f32 %v506, %v906
        %v908 = vpop.f32.mrb[0].mxu0
        %v909 = vadd.f32 %v510, %v908
        %910 = vmatprep.mubr.bf16.mxu0 0
        %911 = vmatmul.mubr.bf16.gmra.mrb[0].mxu0 %v622
        %v912 = vpop.f32.mrb[0].mxu0
        %v913 = vadd.f32 %v506, %v912
        %v914 = vpop.f32.mrb[0].mxu0
        %v915 = vadd.f32 %v510, %v914
        %v916 = vpop.f32.mrb[0].mxu0
        %v917 = vadd.f32 %v506, %v916
        %v918 = vpop.f32.mrb[0].mxu0
        %v919 = vadd.f32 %v510, %v918
        %920 = vmatprep.mubr.bf16.mxu0 0
        %921 = vmatmul.mubr.bf16.gmra.mrb[0].mxu0 %v625
        %v922 = vpop.f32.mrb[0].mxu0
        %v923 = vadd.f32 %v506, %v922
        %v924 = vpop.f32.mrb[0].mxu0
        %v925 = vadd.f32 %v510, %v924
        %v926 = vpop.f32.mrb[0].mxu0
        %v927 = vadd.f32 %v506, %v926
        %v928 = vpop.f32.mrb[0].mxu0
        %v929 = vadd.f32 %v510, %v928
        %930 = vmatprep.mubr.bf16.mxu0 0
        %931 = vmatmul.mubr.bf16.gmra.mrb[0].mxu0 %v628
        %v932 = vpop.f32.mrb[0].mxu0
        %v933 = vadd.f32 %v506, %v932
        %v934 = vpop.f32.mrb[0].mxu0
        %v935 = vadd.f32 %v510, %v934
        %v936 = vpop.f32.mrb[0].mxu0
        %v937 = vadd.f32 %v506, %v936
        %v938 = vpop.f32.mrb[0].mxu0
        %v939 = vadd.f32 %v510, %v938
        %940 = vmatprep.mubr.bf16.mxu0 0
        %941 = vmatmul.mubr.bf16.gmra.mrb[0].mxu0 %v631
        %v942 = vpop.f32.mrb[0].mxu0
        %v943 = vadd.f32 %v506, %v942
        %v944 = vpop.f32.mrb[0].mxu0
        %v945 = vadd.f32 %v510, %v944
        %v946 = vpop.f32.mrb[0].mxu0
        %v947 = vadd.f32 %v506, %v946
        %v948 = vpop.f32.mrb[0].mxu0
        %v949 = vadd.f32 %v510, %v948
        %950 = vmatprep.mubr.bf16.mxu0 0
        %951 = vmatmul.mubr.bf16.gmra.mrb[0].mxu0 %v634
        %v952 = vpop.f32.mrb[0].mxu0
        %v953 = vadd.f32 %v506, %v952
        %v954 = vpop.f32.mrb[0].mxu0
        %v955 = vadd.f32 %v510, %v954
        %v956 = vpop.f32.mrb[0].mxu0
        %v957 = vadd.f32 %v506, %v956
        %v958 = vpop.f32.mrb[0].mxu0
        %v959 = vadd.f32 %v510, %v958
        %960 = vmatprep.mubr.bf16.mxu0 0
        %961 = vmatmul.mubr.bf16.gmra.mrb[0].mxu0 %v637
        %v962 = vpop.f32.mrb[0].mxu0
        %v963 = vadd.f32 %v506, %v962
        %v964 = vpop.f32.mrb[0].mxu0
        %v965 = vadd.f32 %v510, %v964
        %v966 = vpop.f32.mrb[0].mxu0
        %v967 = vadd.f32 %v506, %v966
        %v968 = vpop.f32.mrb[0].mxu0
        %v969 = vadd.f32 %v510, %v968
        %970 = vmatprep.mubr.bf16.mxu0 0
        %971 = vmatmul.mubr.bf16.gmra.mrb[0].mxu0 %v640
        %v972 = vpop.f32.mrb[0].mxu0
        %v973 = vadd.f32 %v506, %v972
        %v974 = vpop.f32.mrb[0].mxu0
        %v975 = vadd.f32 %v510, %v974
        %v976 = vpop.f32.mrb[0].mxu0
        %v977 = vadd.f32 %v506, %v976
        %v978 = vpop.f32.mrb[0].mxu0
        %v979 = vadd.f32 %v510, %v978
        %980 = vdwg.mxu0
        %v981 = vpack.c.bf16 %v681, %v677
        %v982 = vpack.c.bf16 %v683, %v679
        %v983 = vpack.c.bf16 %v794, %v790
        %v984 = vpack.c.bf16 %v796, %v792
        %v985 = vpack.c.bf16 %v907, %v903
        %v986 = vpack.c.bf16 %v909, %v905
        %v987 = vpack.c.bf16 %v691, %v687
        %v988 = vpack.c.bf16 %v693, %v689
        %v989 = vpack.c.bf16 %v804, %v800
        %v990 = vpack.c.bf16 %v806, %v802
        %v991 = vpack.c.bf16 %v917, %v913
        %v992 = vpack.c.bf16 %v919, %v915
        %v993 = vpack.c.bf16 %v701, %v697
        %v994 = vpack.c.bf16 %v703, %v699
        %v995 = vpack.c.bf16 %v814, %v810
        %v996 = vpack.c.bf16 %v816, %v812
        %v997 = vpack.c.bf16 %v927, %v923
        %v998 = vpack.c.bf16 %v929, %v925
        %v999 = vpack.c.bf16 %v711, %v707
        %v1000 = vpack.c.bf16 %v713, %v709
        %v1001 = vpack.c.bf16 %v824, %v820
        %v1002 = vpack.c.bf16 %v826, %v822
        %v1003 = vpack.c.bf16 %v937, %v933
        %v1004 = vpack.c.bf16 %v939, %v935
        %v1005 = vpack.c.bf16 %v721, %v717
        %v1006 = vpack.c.bf16 %v723, %v719
        %v1007 = vpack.c.bf16 %v834, %v830
        %v1008 = vpack.c.bf16 %v836, %v832
        %v1009 = vpack.c.bf16 %v947, %v943
        %v1010 = vpack.c.bf16 %v949, %v945
        %v1011 = vpack.c.bf16 %v731, %v727
        %v1012 = vpack.c.bf16 %v733, %v729
        %v1013 = vpack.c.bf16 %v844, %v840
        %v1014 = vpack.c.bf16 %v846, %v842
        %v1015 = vpack.c.bf16 %v957, %v953
        %v1016 = vpack.c.bf16 %v959, %v955
        %v1017 = vpack.c.bf16 %v741, %v737
        %v1018 = vpack.c.bf16 %v743, %v739
        %v1019 = vpack.c.bf16 %v854, %v850
        %v1020 = vpack.c.bf16 %v856, %v852
        %v1021 = vpack.c.bf16 %v967, %v963
        %v1022 = vpack.c.bf16 %v969, %v965
        %v1023 = vpack.c.bf16 %v751, %v747
        %v1024 = vpack.c.bf16 %v753, %v749
        %v1025 = vpack.c.bf16 %v864, %v860
        %v1026 = vpack.c.bf16 %v866, %v862
        %v1027 = vpack.c.bf16 %v977, %v973
        %v1028 = vpack.c.bf16 %v979, %v975
        %1029 = vst [vmem:[#allocation2] sm:$0xff] %v981
        %1030 = vst [vmem:[#allocation2 + $0x8] sm:$0xff] %v982
        %1031 = vst [vmem:[#allocation2 + $0x10] sm:$0xff] %v983
        %1032 = vst [vmem:[#allocation2 + $0x18] sm:$0xff] %v984
        %1033 = vst [vmem:[#allocation2 + $0x20] sm:$0xff] %v985
        %1034 = vst [vmem:[#allocation2 + $0x28] sm:$0xff] %v986
        %1035 = vst [vmem:[#allocation2 + $0x30] sm:$0xff] %v987
        %1036 = vst [vmem:[#allocation2 + $0x38] sm:$0xff] %v988
        %1037 = vst [vmem:[#allocation2 + $0x40] sm:$0xff] %v989
        %1038 = vst [vmem:[#allocation2 + $0x48] sm:$0xff] %v990
        %1039 = vst [vmem:[#allocation2 + $0x50] sm:$0xff] %v991
        %1040 = vst [vmem:[#allocation2 + $0x58] sm:$0xff] %v992
        %1041 = vst [vmem:[#allocation2 + $0x60] sm:$0xff] %v993
        %1042 = vst [vmem:[#allocation2 + $0x68] sm:$0xff] %v994
        %1043 = vst [vmem:[#allocation2 + $0x70] sm:$0xff] %v995
        %1044 = vst [vmem:[#allocation2 + $0x78] sm:$0xff] %v996
        %1045 = vst [vmem:[#allocation2 + $0x80] sm:$0xff] %v997
        %1046 = vst [vmem:[#allocation2 + $0x88] sm:$0xff] %v998
        %1047 = vst [vmem:[#allocation2 + $0x90] sm:$0xff] %v999
        %1048 = vst [vmem:[#allocation2 + $0x98] sm:$0xff] %v1000
        %1049 = vst [vmem:[#allocation2 + $0xa0] sm:$0xff] %v1001
        %1050 = vst [vmem:[#allocation2 + $0xa8] sm:$0xff] %v1002
        %1051 = vst [vmem:[#allocation2 + $0xb0] sm:$0xff] %v1003
        %1052 = vst [vmem:[#allocation2 + $0xb8] sm:$0xff] %v1004
        %1053 = vst [vmem:[#allocation2 + $0xc0] sm:$0xff] %v1005
        %1054 = vst [vmem:[#allocation2 + $0xc8] sm:$0xff] %v1006
        %1055 = vst [vmem:[#allocation2 + $0xd0] sm:$0xff] %v1007
        %1056 = vst [vmem:[#allocation2 + $0xd8] sm:$0xff] %v1008
        %1057 = vst [vmem:[#allocation2 + $0xe0] sm:$0xff] %v1009
        %1058 = vst [vmem:[#allocation2 + $0xe8] sm:$0xff] %v1010
        %1059 = vst [vmem:[#allocation2 + $0xf0] sm:$0xff] %v1011
        %1060 = vst [vmem:[#allocation2 + $0xf8] sm:$0xff] %v1012
        %1061 = vst [vmem:[#allocation2 + $0x100] sm:$0xff] %v1013
        %1062 = vst [vmem:[#allocation2 + $0x108] sm:$0xff] %v1014
        %1063 = vst [vmem:[#allocation2 + $0x110] sm:$0xff] %v1015
        %1064 = vst [vmem:[#allocation2 + $0x118] sm:$0xff] %v1016
        %1065 = vst [vmem:[#allocation2 + $0x120] sm:$0xff] %v1017
        %1066 = vst [vmem:[#allocation2 + $0x128] sm:$0xff] %v1018
        %1067 = vst [vmem:[#allocation2 + $0x130] sm:$0xff] %v1019
        %1068 = vst [vmem:[#allocation2 + $0x138] sm:$0xff] %v1020
        %1069 = vst [vmem:[#allocation2 + $0x140] sm:$0xff] %v1021
        %1070 = vst [vmem:[#allocation2 + $0x148] sm:$0xff] %v1022
        %1071 = vst [vmem:[#allocation2 + $0x150] sm:$0xff] %v1023
        %1072 = vst [vmem:[#allocation2 + $0x158] sm:$0xff] %v1024
        %1073 = vst [vmem:[#allocation2 + $0x160] sm:$0xff] %v1025
        %1074 = vst [vmem:[#allocation2 + $0x168] sm:$0xff] %v1026
        %1075 = vst [vmem:[#allocation2 + $0x170] sm:$0xff] %v1027
        %1076 = vst [vmem:[#allocation2 + $0x178] sm:$0xff] %v1028
        %v1077 = vld [vmem:[%s2] sm:$0xff]
        %v1078 = vld [vmem:[%s2 + $0x8] sm:$0xff]
        %v1079 = vld [vmem:[%s2 + $0x10] sm:$0xff]
        %v1080 = vld [vmem:[%s2 + $0x18] sm:$0xff]
        %v1081 = vld [vmem:[%s2 + $0x20] sm:$0xff]
        %v1082 = vld [vmem:[%s2 + $0x28] sm:$0xff]
        %v1083 = vld [vmem:[%s2 + $0x30] sm:$0xff]
        %v1084 = vld [vmem:[%s2 + $0x38] sm:$0xff]
        %v1085 = vld [vmem:[%s2 + $0x40] sm:$0xff]
        %v1086 = vld [vmem:[%s2 + $0x48] sm:$0xff]
        %v1087 = vld [vmem:[%s2 + $0x50] sm:$0xff]
        %v1088 = vld [vmem:[%s2 + $0x58] sm:$0xff]
        %v1089 = vld [vmem:[%s2 + $0x60] sm:$0xff]
        %v1090 = vld [vmem:[%s2 + $0x68] sm:$0xff]
        %v1091 = vld [vmem:[%s2 + $0x70] sm:$0xff]
        %v1092 = vld [vmem:[%s2 + $0x78] sm:$0xff]
        %v1093 = vld [vmem:[%s455] sm:$0x1]
        %v1095 = vlaneseq
        %v1096 = vshrl.u32 %v1095, 7
        %v1097 = vsub.s32 0, %v1096
        %v1098 = vrot.slane %v1093, %v1097
        %v1100 = vmul.f32 %v1077, %v1098
        %v1101 = vmul.f32 %v1078, %v1098
        %v1102 = vmul.f32 %v1079, %v1098
        %v1103 = vmul.f32 %v1080, %v1098
        %v1104 = vmul.f32 %v1081, %v1098
        %v1105 = vmul.f32 %v1082, %v1098
        %v1106 = vmul.f32 %v1083, %v1098
        %v1107 = vmul.f32 %v1084, %v1098
        %v1108 = vmul.f32 %v1085, %v1098
        %v1109 = vmul.f32 %v1086, %v1098
        %v1110 = vmul.f32 %v1087, %v1098
        %v1111 = vmul.f32 %v1088, %v1098
        %v1112 = vmul.f32 %v1089, %v1098
        %v1113 = vmul.f32 %v1090, %v1098
        %v1114 = vmul.f32 %v1091, %v1098
        %v1115 = vmul.f32 %v1092, %v1098
        %vm1116 = vcmp.gt.f32.partialorder %v1100, 0.5
        %vm1117 = vcmp.gt.f32.partialorder %v1101, 0.5
        %vm1118 = vcmp.gt.f32.partialorder %v1102, 0.5
        %vm1119 = vcmp.gt.f32.partialorder %v1103, 0.5
        %vm1120 = vcmp.gt.f32.partialorder %v1104, 0.5
        %vm1121 = vcmp.gt.f32.partialorder %v1105, 0.5
        %vm1122 = vcmp.gt.f32.partialorder %v1106, 0.5
        %vm1123 = vcmp.gt.f32.partialorder %v1107, 0.5
        %vm1124 = vcmp.gt.f32.partialorder %v1108, 0.5
        %vm1125 = vcmp.gt.f32.partialorder %v1109, 0.5
        %vm1126 = vcmp.gt.f32.partialorder %v1110, 0.5
        %vm1127 = vcmp.gt.f32.partialorder %v1111, 0.5
        %vm1128 = vcmp.gt.f32.partialorder %v1112, 0.5
        %vm1129 = vcmp.gt.f32.partialorder %v1113, 0.5
        %vm1130 = vcmp.gt.f32.partialorder %v1114, 0.5
        %vm1131 = vcmp.gt.f32.partialorder %v1115, 0.5
        %v1132 = vsel %vm1116, 0.0, -1e+30
        %v1133 = vsel %vm1117, 0.0, -1e+30
        %v1134 = vsel %vm1118, 0.0, -1e+30
        %v1135 = vsel %vm1119, 0.0, -1e+30
        %v1136 = vsel %vm1120, 0.0, -1e+30
        %v1137 = vsel %vm1121, 0.0, -1e+30
        %v1138 = vsel %vm1122, 0.0, -1e+30
        %v1139 = vsel %vm1123, 0.0, -1e+30
        %v1140 = vsel %vm1124, 0.0, -1e+30
        %v1141 = vsel %vm1125, 0.0, -1e+30
        %v1142 = vsel %vm1126, 0.0, -1e+30
        %v1143 = vsel %vm1127, 0.0, -1e+30
        %v1144 = vsel %vm1128, 0.0, -1e+30
        %v1145 = vsel %vm1129, 0.0, -1e+30
        %v1146 = vsel %vm1130, 0.0, -1e+30
        %v1147 = vsel %vm1131, 0.0, -1e+30
        %v1148 = vld [vmem:[#allocation2] sm:$0xff]
        %v1149 = vld [vmem:[#allocation2 + $0x30] sm:$0xff]
        %v1150 = vld [vmem:[#allocation2 + $0x60] sm:$0xff]
        %v1151 = vld [vmem:[#allocation2 + $0x90] sm:$0xff]
        %v1152 = vld [vmem:[#allocation2 + $0xc0] sm:$0xff]
        %v1153 = vld [vmem:[#allocation2 + $0xf0] sm:$0xff]
        %v1154 = vld [vmem:[#allocation2 + $0x120] sm:$0xff]
        %v1155 = vld [vmem:[#allocation2 + $0x150] sm:$0xff]
        %v1156 = vld [vmem:[#allocation2 + $0x8] sm:$0xff]
        %v1157 = vld [vmem:[#allocation2 + $0x38] sm:$0xff]
        %v1158 = vld [vmem:[#allocation2 + $0x68] sm:$0xff]
        %v1159 = vld [vmem:[#allocation2 + $0x98] sm:$0xff]
        %v1160 = vld [vmem:[#allocation2 + $0xc8] sm:$0xff]
        %v1161 = vld [vmem:[#allocation2 + $0xf8] sm:$0xff]
        %v1162 = vld [vmem:[#allocation2 + $0x128] sm:$0xff]
        %v1163 = vld [vmem:[#allocation2 + $0x158] sm:$0xff]
        %v1164 = vld [vmem:[#allocation2 + $0x10] sm:$0xff]
        %v1165 = vld [vmem:[#allocation2 + $0x40] sm:$0xff]
        %v1166 = vld [vmem:[#allocation2 + $0x70] sm:$0xff]
        %v1167 = vld [vmem:[#allocation2 + $0xa0] sm:$0xff]
        %v1168 = vld [vmem:[#allocation2 + $0xd0] sm:$0xff]
        %v1169 = vld [vmem:[#allocation2 + $0x100] sm:$0xff]
        %v1170 = vld [vmem:[#allocation2 + $0x130] sm:$0xff]
        %v1171 = vld [vmem:[#allocation2 + $0x160] sm:$0xff]
        %1172 = vmatprep.subr.bf16.mxu0 0
        %1173 = vmatpush1.bf16.xpose.msra.mxu0 %v1156
        %1174 = vmatprep.subr.bf16.mxu0 0
        %1175 = vmatpush1.bf16.xpose.msra.mxu0 %v1157
        %1176 = vmatprep.subr.bf16.mxu0 0
        %1177 = vmatpush1.bf16.xpose.msra.mxu0 %v1158
        %1178 = vmatprep.subr.bf16.mxu0 0
        %1179 = vmatpush1.bf16.xpose.msra.mxu0 %v1159
        %1180 = vmatprep.subr.bf16.mxu0 0
        %1181 = vmatpush1.bf16.xpose.msra.mxu0 %v1160
        %1182 = vmatprep.subr.bf16.mxu0 0
        %1183 = vmatpush1.bf16.xpose.msra.mxu0 %v1161
        %1184 = vmatprep.subr.bf16.mxu0 0
        %1185 = vmatpush1.bf16.xpose.msra.mxu0 %v1162
        %1186 = vmatprep.subr.bf16.mxu0 0
        %1187 = vmatpush1.bf16.xpose.msra.mxu0 %v1163
        %1188 = vmatprep.subr.bf16.mxu0 0
        %1189 = vmatpush1.bf16.xpose.msra.mxu0 0
        %1190 = vmatprep.subr.bf16.mxu0 0
        %1191 = vmatpush1.bf16.xpose.msra.mxu0 0
        %1192 = vmatprep.subr.bf16.mxu0 0
        %1193 = vmatpush1.bf16.xpose.msra.mxu0 0
        %1194 = vmatprep.subr.bf16.mxu0 0
        %1195 = vmatpush1.bf16.xpose.msra.mxu0 0
        %1196 = vmatprep.subr.bf16.mxu0 0
        %1197 = vmatpush1.bf16.xpose.msra.mxu0 0
        %1198 = vmatprep.subr.bf16.mxu0 0
        %1199 = vmatpush1.bf16.xpose.msra.mxu0 0
        %1200 = vmatprep.subr.bf16.mxu0 0
        %1201 = vmatpush1.bf16.xpose.msra.mxu0 0
        %1202 = vmatprep.subr.bf16.mxu0 0
        %1203 = vmatpush1.bf16.xpose.msra.mxu0 0
        %1204 = vmatprep.mubr.bf16.mxu0 0
        %1205 = vmatmul.mubr.bf16.gmra.mrb[0].mxu0 %v1148
        %v1206 = vpop.f32.mrb[0].mxu0
        %v1207 = vadd.f32 %v1132, %v1206
        %v1208 = vpop.f32.mrb[0].mxu0
        %v1209 = vpop.f32.mrb[0].mxu0
        %v1210 = vadd.f32 %v1133, %v1209
        %v1211 = vpop.f32.mrb[0].mxu0
        %1212 = vmatprep.mubr.bf16.mxu0 0
        %1213 = vmatmul.mubr.bf16.gmra.mrb[0].mxu0 %v1149
        %v1214 = vpop.f32.mrb[0].mxu0
        %v1215 = vadd.f32 %v1134, %v1214
        %v1216 = vpop.f32.mrb[0].mxu0
        %v1217 = vpop.f32.mrb[0].mxu0
        %v1218 = vadd.f32 %v1135, %v1217
        %v1219 = vpop.f32.mrb[0].mxu0
        %1220 = vmatprep.mubr.bf16.mxu0 0
        %1221 = vmatmul.mubr.bf16.gmra.mrb[0].mxu0 %v1150
        %v1222 = vpop.f32.mrb[0].mxu0
        %v1223 = vadd.f32 %v1136, %v1222
        %v1224 = vpop.f32.mrb[0].mxu0
        %v1225 = vpop.f32.mrb[0].mxu0
        %v1226 = vadd.f32 %v1137, %v1225
        %v1227 = vpop.f32.mrb[0].mxu0
        %1228 = vmatprep.mubr.bf16.mxu0 0
        %1229 = vmatmul.mubr.bf16.gmra.mrb[0].mxu0 %v1151
        %v1230 = vpop.f32.mrb[0].mxu0
        %v1231 = vadd.f32 %v1138, %v1230
        %v1232 = vpop.f32.mrb[0].mxu0
        %v1233 = vpop.f32.mrb[0].mxu0
        %v1234 = vadd.f32 %v1139, %v1233
        %v1235 = vpop.f32.mrb[0].mxu0
        %1236 = vmatprep.mubr.bf16.mxu0 0
        %1237 = vmatmul.mubr.bf16.gmra.mrb[0].mxu0 %v1152
        %v1238 = vpop.f32.mrb[0].mxu0
        %v1239 = vadd.f32 %v1140, %v1238
        %v1240 = vpop.f32.mrb[0].mxu0
        %v1241 = vpop.f32.mrb[0].mxu0
        %v1242 = vadd.f32 %v1141, %v1241
        %v1243 = vpop.f32.mrb[0].mxu0
        %1244 = vmatprep.mubr.bf16.mxu0 0
        %1245 = vmatmul.mubr.bf16.gmra.mrb[0].mxu0 %v1153
        %v1246 = vpop.f32.mrb[0].mxu0
        %v1247 = vadd.f32 %v1142, %v1246
        %v1248 = vpop.f32.mrb[0].mxu0
        %v1249 = vpop.f32.mrb[0].mxu0
        %v1250 = vadd.f32 %v1143, %v1249
        %v1251 = vpop.f32.mrb[0].mxu0
        %1252 = vmatprep.mubr.bf16.mxu0 0
        %1253 = vmatmul.mubr.bf16.gmra.mrb[0].mxu0 %v1154
        %v1254 = vpop.f32.mrb[0].mxu0
        %v1255 = vadd.f32 %v1144, %v1254
        %v1256 = vpop.f32.mrb[0].mxu0
        %v1257 = vpop.f32.mrb[0].mxu0
        %v1258 = vadd.f32 %v1145, %v1257
        %v1259 = vpop.f32.mrb[0].mxu0
        %1260 = vmatprep.mubr.bf16.mxu0 0
        %1261 = vmatmul.mubr.bf16.gmra.mrb[0].mxu0 %v1155
        %v1262 = vpop.f32.mrb[0].mxu0
        %v1263 = vadd.f32 %v1146, %v1262
        %v1264 = vpop.f32.mrb[0].mxu0
        %v1265 = vpop.f32.mrb[0].mxu0
        %v1266 = vadd.f32 %v1147, %v1265
        %v1267 = vpop.f32.mrb[0].mxu0
        %1268 = vdwg.mxu0
        %1269 = vmax.xlane.f32.xlu0 %v1207
        %v1270 = vpop.xlane.xlu0 %1269
        %1271 = vmax.xlane.f32.xlu0 %v1210
        %v1272 = vpop.xlane.xlu0 %1271
        %1273 = vmax.xlane.f32.xlu0 %v1215
        %v1274 = vpop.xlane.xlu0 %1273
        %1275 = vmax.xlane.f32.xlu0 %v1218
        %v1276 = vpop.xlane.xlu0 %1275
        %1277 = vmax.xlane.f32.xlu0 %v1223
        %v1278 = vpop.xlane.xlu0 %1277
        %1279 = vmax.xlane.f32.xlu0 %v1226
        %v1280 = vpop.xlane.xlu0 %1279
        %1281 = vmax.xlane.f32.xlu0 %v1231
        %v1282 = vpop.xlane.xlu0 %1281
        %1283 = vmax.xlane.f32.xlu0 %v1234
        %v1284 = vpop.xlane.xlu0 %1283
        %1285 = vmax.xlane.f32.xlu0 %v1239
        %v1286 = vpop.xlane.xlu0 %1285
        %1287 = vmax.xlane.f32.xlu0 %v1242
        %v1288 = vpop.xlane.xlu0 %1287
        %1289 = vmax.xlane.f32.xlu0 %v1247
        %v1290 = vpop.xlane.xlu0 %1289
        %1291 = vmax.xlane.f32.xlu0 %v1250
        %v1292 = vpop.xlane.xlu0 %1291
        %1293 = vmax.xlane.f32.xlu0 %v1255
        %v1294 = vpop.xlane.xlu0 %1293
        %1295 = vmax.xlane.f32.xlu0 %v1258
        %v1296 = vpop.xlane.xlu0 %1295
        %1297 = vmax.xlane.f32.xlu0 %v1263
        %v1298 = vpop.xlane.xlu0 %1297
        %1299 = vmax.xlane.f32.xlu0 %v1266
        %v1300 = vpop.xlane.xlu0 %1299
        %v1301 = vsub.f32 %v1207, %v1270
        %v1302 = vsub.f32 %v1210, %v1272
        %v1303 = vsub.f32 %v1215, %v1274
        %v1304 = vsub.f32 %v1218, %v1276
        %v1305 = vsub.f32 %v1223, %v1278
        %v1306 = vsub.f32 %v1226, %v1280
        %v1307 = vsub.f32 %v1231, %v1282
        %v1308 = vsub.f32 %v1234, %v1284
        %v1309 = vsub.f32 %v1239, %v1286
        %v1310 = vsub.f32 %v1242, %v1288
        %v1311 = vsub.f32 %v1247, %v1290
        %v1312 = vsub.f32 %v1250, %v1292
        %v1313 = vsub.f32 %v1255, %v1294
        %v1314 = vsub.f32 %v1258, %v1296
        %v1315 = vsub.f32 %v1263, %v1298
        %v1316 = vsub.f32 %v1266, %v1300
        %v1317 = vmul.f32 %v1301, 1.442695
        %v1318 = vpow.pop %v1317
        %v1319 = vmul.f32 %v1302, 1.442695
        %v1320 = vpow.pop %v1319
        %v1321 = vmul.f32 %v1303, 1.442695
        %v1322 = vpow.pop %v1321
        %v1323 = vmul.f32 %v1304, 1.442695
        %v1324 = vpow.pop %v1323
        %v1325 = vmul.f32 %v1305, 1.442695
        %v1326 = vpow.pop %v1325
        %v1327 = vmul.f32 %v1306, 1.442695
        %v1328 = vpow.pop %v1327
        %v1329 = vmul.f32 %v1307, 1.442695
        %v1330 = vpow.pop %v1329
        %v1331 = vmul.f32 %v1308, 1.442695
        %v1332 = vpow.pop %v1331
        %v1333 = vmul.f32 %v1309, 1.442695
        %v1334 = vpow.pop %v1333
        %v1335 = vmul.f32 %v1310, 1.442695
        %v1336 = vpow.pop %v1335
        %v1337 = vmul.f32 %v1311, 1.442695
        %v1338 = vpow.pop %v1337
        %v1339 = vmul.f32 %v1312, 1.442695
        %v1340 = vpow.pop %v1339
        %v1341 = vmul.f32 %v1313, 1.442695
        %v1342 = vpow.pop %v1341
        %v1343 = vmul.f32 %v1314, 1.442695
        %v1344 = vpow.pop %v1343
        %v1345 = vmul.f32 %v1315, 1.442695
        %v1346 = vpow.pop %v1345
        %v1347 = vmul.f32 %v1316, 1.442695
        %v1348 = vpow.pop %v1347
        %1349 = vadd.xlane.f32.xlu0 %v1318
        %v1350 = vpop.xlane.xlu0 %1349
        %1351 = vadd.xlane.f32.xlu0 %v1320
        %v1352 = vpop.xlane.xlu0 %1351
        %1353 = vadd.xlane.f32.xlu0 %v1322
        %v1354 = vpop.xlane.xlu0 %1353
        %1355 = vadd.xlane.f32.xlu0 %v1324
        %v1356 = vpop.xlane.xlu0 %1355
        %1357 = vadd.xlane.f32.xlu0 %v1326
        %v1358 = vpop.xlane.xlu0 %1357
        %1359 = vadd.xlane.f32.xlu0 %v1328
        %v1360 = vpop.xlane.xlu0 %1359
        %1361 = vadd.xlane.f32.xlu0 %v1330
        %v1362 = vpop.xlane.xlu0 %1361
        %1363 = vadd.xlane.f32.xlu0 %v1332
        %v1364 = vpop.xlane.xlu0 %1363
        %1365 = vadd.xlane.f32.xlu0 %v1334
        %v1366 = vpop.xlane.xlu0 %1365
        %1367 = vadd.xlane.f32.xlu0 %v1336
        %v1368 = vpop.xlane.xlu0 %1367
        %1369 = vadd.xlane.f32.xlu0 %v1338
        %v1370 = vpop.xlane.xlu0 %1369
        %1371 = vadd.xlane.f32.xlu0 %v1340
        %v1372 = vpop.xlane.xlu0 %1371
        %1373 = vadd.xlane.f32.xlu0 %v1342
        %v1374 = vpop.xlane.xlu0 %1373
        %1375 = vadd.xlane.f32.xlu0 %v1344
        %v1376 = vpop.xlane.xlu0 %1375
        %1377 = vadd.xlane.f32.xlu0 %v1346
        %v1378 = vpop.xlane.xlu0 %1377
        %1379 = vadd.xlane.f32.xlu0 %v1348
        %v1380 = vpop.xlane.xlu0 %1379
        %v1381 = vrcp.pop %v1350
        %v1382 = vrcp.pop %v1352
        %v1383 = vrcp.pop %v1354
        %v1384 = vrcp.pop %v1356
        %v1385 = vrcp.pop %v1358
        %v1386 = vrcp.pop %v1360
        %v1387 = vrcp.pop %v1362
        %v1388 = vrcp.pop %v1364
        %v1389 = vrcp.pop %v1366
        %v1390 = vrcp.pop %v1368
        %v1391 = vrcp.pop %v1370
        %v1392 = vrcp.pop %v1372
        %v1393 = vrcp.pop %v1374
        %v1394 = vrcp.pop %v1376
        %v1395 = vrcp.pop %v1378
        %v1396 = vrcp.pop %v1380
        %v1397 = vmul.f32 %v1318, %v1381
        %v1398 = vmul.f32 %v1320, %v1382
        %v1399 = vmul.f32 %v1322, %v1383
        %v1400 = vmul.f32 %v1324, %v1384
        %v1401 = vmul.f32 %v1326, %v1385
        %v1402 = vmul.f32 %v1328, %v1386
        %v1403 = vmul.f32 %v1330, %v1387
        %v1404 = vmul.f32 %v1332, %v1388
        %v1405 = vmul.f32 %v1334, %v1389
        %v1406 = vmul.f32 %v1336, %v1390
        %v1407 = vmul.f32 %v1338, %v1391
        %v1408 = vmul.f32 %v1340, %v1392
        %v1409 = vmul.f32 %v1342, %v1393
        %v1410 = vmul.f32 %v1344, %v1394
        %v1411 = vmul.f32 %v1346, %v1395
        %v1412 = vmul.f32 %v1348, %v1396
        %v1413 = vpack.c.bf16 %v1398, %v1397
        %v1414 = vpack.c.bf16 %v1400, %v1399
        %v1415 = vpack.c.bf16 %v1402, %v1401
        %v1416 = vpack.c.bf16 %v1404, %v1403
        %v1417 = vpack.c.bf16 %v1406, %v1405
        %v1418 = vpack.c.bf16 %v1408, %v1407
        %v1419 = vpack.c.bf16 %v1410, %v1409
        %v1420 = vpack.c.bf16 %v1412, %v1411
        %1421 = vmatprep.subr.bf16.mxu0 0
        %1422 = vmatpush1.bf16.msra.mxu0 %v1164
        %1423 = vmatprep.subr.bf16.mxu0 0
        %1424 = vmatpush1.bf16.msra.mxu0 %v1165
        %1425 = vmatprep.subr.bf16.mxu0 0
        %1426 = vmatpush1.bf16.msra.mxu0 %v1166
        %1427 = vmatprep.subr.bf16.mxu0 0
        %1428 = vmatpush1.bf16.msra.mxu0 %v1167
        %1429 = vmatprep.subr.bf16.mxu0 0
        %1430 = vmatpush1.bf16.msra.mxu0 %v1168
        %1431 = vmatprep.subr.bf16.mxu0 0
        %1432 = vmatpush1.bf16.msra.mxu0 %v1169
        %1433 = vmatprep.subr.bf16.mxu0 0
        %1434 = vmatpush1.bf16.msra.mxu0 %v1170
        %1435 = vmatprep.subr.bf16.mxu0 0
        %1436 = vmatpush1.bf16.msra.mxu0 %v1171
        %1437 = vmatprep.subr.bf16.mxu0 0
        %1438 = vmatpush1.bf16.msra.mxu0 0
        %1439 = vmatprep.subr.bf16.mxu0 0
        %1440 = vmatpush1.bf16.msra.mxu0 0
        %1441 = vmatprep.subr.bf16.mxu0 0
        %1442 = vmatpush1.bf16.msra.mxu0 0
        %1443 = vmatprep.subr.bf16.mxu0 0
        %1444 = vmatpush1.bf16.msra.mxu0 0
        %1445 = vmatprep.subr.bf16.mxu0 0
        %1446 = vmatpush1.bf16.msra.mxu0 0
        %1447 = vmatprep.subr.bf16.mxu0 0
        %1448 = vmatpush1.bf16.msra.mxu0 0
        %1449 = vmatprep.subr.bf16.mxu0 0
        %1450 = vmatpush1.bf16.msra.mxu0 0
        %1451 = vmatprep.subr.bf16.mxu0 0
        %1452 = vmatpush1.bf16.msra.mxu0 0
        %1453 = vmatprep.mubr.bf16.mxu0 0
        %1454 = vmatmul.mubr.bf16.gmra.mrb[0].mxu0 %v1413
        %v1455 = vpop.f32.mrb[0].mxu0
        %v1456 = vadd.f32 0.0, %v1455
        %v1457 = vpop.f32.mrb[0].mxu0
        %v1458 = vpop.f32.mrb[0].mxu0
        %v1459 = vadd.f32 0.0, %v1458
        %v1460 = vpop.f32.mrb[0].mxu0
        %1461 = vmatprep.mubr.bf16.mxu0 0
        %1462 = vmatmul.mubr.bf16.gmra.mrb[0].mxu0 %v1414
        %v1463 = vpop.f32.mrb[0].mxu0
        %v1464 = vadd.f32 0.0, %v1463
        %v1465 = vpop.f32.mrb[0].mxu0
        %v1466 = vpop.f32.mrb[0].mxu0
        %v1467 = vadd.f32 0.0, %v1466
        %v1468 = vpop.f32.mrb[0].mxu0
        %1469 = vmatprep.mubr.bf16.mxu0 0
        %1470 = vmatmul.mubr.bf16.gmra.mrb[0].mxu0 %v1415
        %v1471 = vpop.f32.mrb[0].mxu0
        %v1472 = vadd.f32 0.0, %v1471
        %v1473 = vpop.f32.mrb[0].mxu0
        %v1474 = vpop.f32.mrb[0].mxu0
        %v1475 = vadd.f32 0.0, %v1474
        %v1476 = vpop.f32.mrb[0].mxu0
        %1477 = vmatprep.mubr.bf16.mxu0 0
        %1478 = vmatmul.mubr.bf16.gmra.mrb[0].mxu0 %v1416
        %v1479 = vpop.f32.mrb[0].mxu0
        %v1480 = vadd.f32 0.0, %v1479
        %v1481 = vpop.f32.mrb[0].mxu0
        %v1482 = vpop.f32.mrb[0].mxu0
        %v1483 = vadd.f32 0.0, %v1482
        %v1484 = vpop.f32.mrb[0].mxu0
        %1485 = vmatprep.mubr.bf16.mxu0 0
        %1486 = vmatmul.mubr.bf16.gmra.mrb[0].mxu0 %v1417
        %v1487 = vpop.f32.mrb[0].mxu0
        %v1488 = vadd.f32 0.0, %v1487
        %v1489 = vpop.f32.mrb[0].mxu0
        %v1490 = vpop.f32.mrb[0].mxu0
        %v1491 = vadd.f32 0.0, %v1490
        %v1492 = vpop.f32.mrb[0].mxu0
        %1493 = vmatprep.mubr.bf16.mxu0 0
        %1494 = vmatmul.mubr.bf16.gmra.mrb[0].mxu0 %v1418
        %v1495 = vpop.f32.mrb[0].mxu0
        %v1496 = vadd.f32 0.0, %v1495
        %v1497 = vpop.f32.mrb[0].mxu0
        %v1498 = vpop.f32.mrb[0].mxu0
        %v1499 = vadd.f32 0.0, %v1498
        %v1500 = vpop.f32.mrb[0].mxu0
        %1501 = vmatprep.mubr.bf16.mxu0 0
        %1502 = vmatmul.mubr.bf16.gmra.mrb[0].mxu0 %v1419
        %v1503 = vpop.f32.mrb[0].mxu0
        %v1504 = vadd.f32 0.0, %v1503
        %v1505 = vpop.f32.mrb[0].mxu0
        %v1506 = vpop.f32.mrb[0].mxu0
        %v1507 = vadd.f32 0.0, %v1506
        %v1508 = vpop.f32.mrb[0].mxu0
        %1509 = vmatprep.mubr.bf16.mxu0 0
        %1510 = vmatmul.mubr.bf16.gmra.mrb[0].mxu0 %v1420
        %v1511 = vpop.f32.mrb[0].mxu0
        %v1512 = vadd.f32 0.0, %v1511
        %v1513 = vpop.f32.mrb[0].mxu0
        %v1514 = vpop.f32.mrb[0].mxu0
        %v1515 = vadd.f32 0.0, %v1514
        %v1516 = vpop.f32.mrb[0].mxu0
        %1517 = vdwg.mxu0
        %v1518 = vpack.c.bf16 %v1459, %v1456
        %v1519 = vpack.c.bf16 %v1467, %v1464
        %v1520 = vpack.c.bf16 %v1475, %v1472
        %v1521 = vpack.c.bf16 %v1483, %v1480
        %v1522 = vpack.c.bf16 %v1491, %v1488
        %v1523 = vpack.c.bf16 %v1499, %v1496
        %v1524 = vpack.c.bf16 %v1507, %v1504
        %v1525 = vpack.c.bf16 %v1515, %v1512
        %1526 = vst [vmem:[#allocation3] sm:$0xff] %v1518
        %1527 = vst [vmem:[#allocation3 + $0x10] sm:$0xff] %v1519
        %1528 = vst [vmem:[#allocation3 + $0x20] sm:$0xff] %v1520
        %1529 = vst [vmem:[#allocation3 + $0x30] sm:$0xff] %v1521
        %1530 = vst [vmem:[#allocation3 + $0x40] sm:$0xff] %v1522
        %1531 = vst [vmem:[#allocation3 + $0x50] sm:$0xff] %v1523
        %1532 = vst [vmem:[#allocation3 + $0x60] sm:$0xff] %v1524
        %1533 = vst [vmem:[#allocation3 + $0x70] sm:$0xff] %v1525
        %v1534 = vld [vmem:[#allocation2 + $0x18] sm:$0xff]
        %v1535 = vld [vmem:[#allocation2 + $0x48] sm:$0xff]
        %v1536 = vld [vmem:[#allocation2 + $0x78] sm:$0xff]
        %v1537 = vld [vmem:[#allocation2 + $0xa8] sm:$0xff]
        %v1538 = vld [vmem:[#allocation2 + $0xd8] sm:$0xff]
        %v1539 = vld [vmem:[#allocation2 + $0x108] sm:$0xff]
        %v1540 = vld [vmem:[#allocation2 + $0x138] sm:$0xff]
        %v1541 = vld [vmem:[#allocation2 + $0x168] sm:$0xff]
        %v1542 = vld [vmem:[#allocation2 + $0x20] sm:$0xff]
        %v1543 = vld [vmem:[#allocation2 + $0x50] sm:$0xff]
        %v1544 = vld [vmem:[#allocation2 + $0x80] sm:$0xff]
        %v1545 = vld [vmem:[#allocation2 + $0xb0] sm:$0xff]
        %v1546 = vld [vmem:[#allocation2 + $0xe0] sm:$0xff]
        %v1547 = vld [vmem:[#allocation2 + $0x110] sm:$0xff]
        %v1548 = vld [vmem:[#allocation2 + $0x140] sm:$0xff]
        %v1549 = vld [vmem:[#allocation2 + $0x170] sm:$0xff]
        %v1550 = vld [vmem:[#allocation2 + $0x28] sm:$0xff]
        %v1551 = vld [vmem:[#allocation2 + $0x58] sm:$0xff]
        %v1552 = vld [vmem:[#allocation2 + $0x88] sm:$0xff]
        %v1553 = vld [vmem:[#allocation2 + $0xb8] sm:$0xff]
        %v1554 = vld [vmem:[#allocation2 + $0xe8] sm:$0xff]
        %v1555 = vld [vmem:[#allocation2 + $0x118] sm:$0xff]
        %v1556 = vld [vmem:[#allocation2 + $0x148] sm:$0xff]
        %v1557 = vld [vmem:[#allocation2 + $0x178] sm:$0xff]
        %1558 = vmatprep.subr.bf16.mxu0 0
        %1559 = vmatpush1.bf16.xpose.msra.mxu0 %v1542
        %1560 = vmatprep.subr.bf16.mxu0 0
        %1561 = vmatpush1.bf16.xpose.msra.mxu0 %v1543
        %1562 = vmatprep.subr.bf16.mxu0 0
        %1563 = vmatpush1.bf16.xpose.msra.mxu0 %v1544
        %1564 = vmatprep.subr.bf16.mxu0 0
        %1565 = vmatpush1.bf16.xpose.msra.mxu0 %v1545
        %1566 = vmatprep.subr.bf16.mxu0 0
        %1567 = vmatpush1.bf16.xpose.msra.mxu0 %v1546
        %1568 = vmatprep.subr.bf16.mxu0 0
        %1569 = vmatpush1.bf16.xpose.msra.mxu0 %v1547
        %1570 = vmatprep.subr.bf16.mxu0 0
        %1571 = vmatpush1.bf16.xpose.msra.mxu0 %v1548
        %1572 = vmatprep.subr.bf16.mxu0 0
        %1573 = vmatpush1.bf16.xpose.msra.mxu0 %v1549
        %1574 = vmatprep.subr.bf16.mxu0 0
        %1575 = vmatpush1.bf16.xpose.msra.mxu0 0
        %1576 = vmatprep.subr.bf16.mxu0 0
        %1577 = vmatpush1.bf16.xpose.msra.mxu0 0
        %1578 = vmatprep.subr.bf16.mxu0 0
        %1579 = vmatpush1.bf16.xpose.msra.mxu0 0
        %1580 = vmatprep.subr.bf16.mxu0 0
        %1581 = vmatpush1.bf16.xpose.msra.mxu0 0
        %1582 = vmatprep.subr.bf16.mxu0 0
        %1583 = vmatpush1.bf16.xpose.msra.mxu0 0
        %1584 = vmatprep.subr.bf16.mxu0 0
        %1585 = vmatpush1.bf16.xpose.msra.mxu0 0
        %1586 = vmatprep.subr.bf16.mxu0 0
        %1587 = vmatpush1.bf16.xpose.msra.mxu0 0
        %1588 = vmatprep.subr.bf16.mxu0 0
        %1589 = vmatpush1.bf16.xpose.msra.mxu0 0
        %1590 = vmatprep.mubr.bf16.mxu0 0
        %1591 = vmatmul.mubr.bf16.gmra.mrb[0].mxu0 %v1534
        %v1592 = vpop.f32.mrb[0].mxu0
        %v1593 = vadd.f32 %v1132, %v1592
        %v1594 = vpop.f32.mrb[0].mxu0
        %v1595 = vpop.f32.mrb[0].mxu0
        %v1596 = vadd.f32 %v1133, %v1595
        %v1597 = vpop.f32.mrb[0].mxu0
        %1598 = vmatprep.mubr.bf16.mxu0 0
        %1599 = vmatmul.mubr.bf16.gmra.mrb[0].mxu0 %v1535
        %v1600 = vpop.f32.mrb[0].mxu0
        %v1601 = vadd.f32 %v1134, %v1600
        %v1602 = vpop.f32.mrb[0].mxu0
        %v1603 = vpop.f32.mrb[0].mxu0
        %v1604 = vadd.f32 %v1135, %v1603
        %v1605 = vpop.f32.mrb[0].mxu0
        %1606 = vmatprep.mubr.bf16.mxu0 0
        %1607 = vmatmul.mubr.bf16.gmra.mrb[0].mxu0 %v1536
        %v1608 = vpop.f32.mrb[0].mxu0
        %v1609 = vadd.f32 %v1136, %v1608
        %v1610 = vpop.f32.mrb[0].mxu0
        %v1611 = vpop.f32.mrb[0].mxu0
        %v1612 = vadd.f32 %v1137, %v1611
        %v1613 = vpop.f32.mrb[0].mxu0
        %1614 = vmatprep.mubr.bf16.mxu0 0
        %1615 = vmatmul.mubr.bf16.gmra.mrb[0].mxu0 %v1537
        %v1616 = vpop.f32.mrb[0].mxu0
        %v1617 = vadd.f32 %v1138, %v1616
        %v1618 = vpop.f32.mrb[0].mxu0
        %v1619 = vpop.f32.mrb[0].mxu0
        %v1620 = vadd.f32 %v1139, %v1619
        %v1621 = vpop.f32.mrb[0].mxu0
        %1622 = vmatprep.mubr.bf16.mxu0 0
        %1623 = vmatmul.mubr.bf16.gmra.mrb[0].mxu0 %v1538
        %v1624 = vpop.f32.mrb[0].mxu0
        %v1625 = vadd.f32 %v1140, %v1624
        %v1626 = vpop.f32.mrb[0].mxu0
        %v1627 = vpop.f32.mrb[0].mxu0
        %v1628 = vadd.f32 %v1141, %v1627
        %v1629 = vpop.f32.mrb[0].mxu0
        %1630 = vmatprep.mubr.bf16.mxu0 0
        %1631 = vmatmul.mubr.bf16.gmra.mrb[0].mxu0 %v1539
        %v1632 = vpop.f32.mrb[0].mxu0
        %v1633 = vadd.f32 %v1142, %v1632
        %v1634 = vpop.f32.mrb[0].mxu0
        %v1635 = vpop.f32.mrb[0].mxu0
        %v1636 = vadd.f32 %v1143, %v1635
        %v1637 = vpop.f32.mrb[0].mxu0
        %1638 = vmatprep.mubr.bf16.mxu0 0
        %1639 = vmatmul.mubr.bf16.gmra.mrb[0].mxu0 %v1540
        %v1640 = vpop.f32.mrb[0].mxu0
        %v1641 = vadd.f32 %v1144, %v1640
        %v1642 = vpop.f32.mrb[0].mxu0
        %v1643 = vpop.f32.mrb[0].mxu0
        %v1644 = vadd.f32 %v1145, %v1643
        %v1645 = vpop.f32.mrb[0].mxu0
        %1646 = vmatprep.mubr.bf16.mxu0 0
        %1647 = vmatmul.mubr.bf16.gmra.mrb[0].mxu0 %v1541
        %v1648 = vpop.f32.mrb[0].mxu0
        %v1649 = vadd.f32 %v1146, %v1648
        %v1650 = vpop.f32.mrb[0].mxu0
        %v1651 = vpop.f32.mrb[0].mxu0
        %v1652 = vadd.f32 %v1147, %v1651
        %v1653 = vpop.f32.mrb[0].mxu0
        %1654 = vdwg.mxu0
        %1655 = vmax.xlane.f32.xlu0 %v1593
        %v1656 = vpop.xlane.xlu0 %1655
        %1657 = vmax.xlane.f32.xlu0 %v1596
        %v1658 = vpop.xlane.xlu0 %1657
        %1659 = vmax.xlane.f32.xlu0 %v1601
        %v1660 = vpop.xlane.xlu0 %1659
        %1661 = vmax.xlane.f32.xlu0 %v1604
        %v1662 = vpop.xlane.xlu0 %1661
        %1663 = vmax.xlane.f32.xlu0 %v1609
        %v1664 = vpop.xlane.xlu0 %1663
        %1665 = vmax.xlane.f32.xlu0 %v1612
        %v1666 = vpop.xlane.xlu0 %1665
        %1667 = vmax.xlane.f32.xlu0 %v1617
        %v1668 = vpop.xlane.xlu0 %1667
        %1669 = vmax.xlane.f32.xlu0 %v1620
        %v1670 = vpop.xlane.xlu0 %1669
        %1671 = vmax.xlane.f32.xlu0 %v1625
        %v1672 = vpop.xlane.xlu0 %1671
        %1673 = vmax.xlane.f32.xlu0 %v1628
        %v1674 = vpop.xlane.xlu0 %1673
        %1675 = vmax.xlane.f32.xlu0 %v1633
        %v1676 = vpop.xlane.xlu0 %1675
        %1677 = vmax.xlane.f32.xlu0 %v1636
        %v1678 = vpop.xlane.xlu0 %1677
        %1679 = vmax.xlane.f32.xlu0 %v1641
        %v1680 = vpop.xlane.xlu0 %1679
        %1681 = vmax.xlane.f32.xlu0 %v1644
        %v1682 = vpop.xlane.xlu0 %1681
        %1683 = vmax.xlane.f32.xlu0 %v1649
        %v1684 = vpop.xlane.xlu0 %1683
        %1685 = vmax.xlane.f32.xlu0 %v1652
        %v1686 = vpop.xlane.xlu0 %1685
        %v1687 = vsub.f32 %v1593, %v1656
        %v1688 = vsub.f32 %v1596, %v1658
        %v1689 = vsub.f32 %v1601, %v1660
        %v1690 = vsub.f32 %v1604, %v1662
        %v1691 = vsub.f32 %v1609, %v1664
        %v1692 = vsub.f32 %v1612, %v1666
        %v1693 = vsub.f32 %v1617, %v1668
        %v1694 = vsub.f32 %v1620, %v1670
        %v1695 = vsub.f32 %v1625, %v1672
        %v1696 = vsub.f32 %v1628, %v1674
        %v1697 = vsub.f32 %v1633, %v1676
        %v1698 = vsub.f32 %v1636, %v1678
        %v1699 = vsub.f32 %v1641, %v1680
        %v1700 = vsub.f32 %v1644, %v1682
        %v1701 = vsub.f32 %v1649, %v1684
        %v1702 = vsub.f32 %v1652, %v1686
        %v1703 = vmul.f32 %v1687, 1.442695
        %v1704 = vpow.pop %v1703
        %v1705 = vmul.f32 %v1688, 1.442695
        %v1706 = vpow.pop %v1705
        %v1707 = vmul.f32 %v1689, 1.442695
        %v1708 = vpow.pop %v1707
        %v1709 = vmul.f32 %v1690, 1.442695
        %v1710 = vpow.pop %v1709
        %v1711 = vmul.f32 %v1691, 1.442695
        %v1712 = vpow.pop %v1711
        %v1713 = vmul.f32 %v1692, 1.442695
        %v1714 = vpow.pop %v1713
        %v1715 = vmul.f32 %v1693, 1.442695
        %v1716 = vpow.pop %v1715
        %v1717 = vmul.f32 %v1694, 1.442695
        %v1718 = vpow.pop %v1717
        %v1719 = vmul.f32 %v1695, 1.442695
        %v1720 = vpow.pop %v1719
        %v1721 = vmul.f32 %v1696, 1.442695
        %v1722 = vpow.pop %v1721
        %v1723 = vmul.f32 %v1697, 1.442695
        %v1724 = vpow.pop %v1723
        %v1725 = vmul.f32 %v1698, 1.442695
        %v1726 = vpow.pop %v1725
        %v1727 = vmul.f32 %v1699, 1.442695
        %v1728 = vpow.pop %v1727
        %v1729 = vmul.f32 %v1700, 1.442695
        %v1730 = vpow.pop %v1729
        %v1731 = vmul.f32 %v1701, 1.442695
        %v1732 = vpow.pop %v1731
        %v1733 = vmul.f32 %v1702, 1.442695
        %v1734 = vpow.pop %v1733
        %1735 = vadd.xlane.f32.xlu0 %v1704
        %v1736 = vpop.xlane.xlu0 %1735
        %1737 = vadd.xlane.f32.xlu0 %v1706
        %v1738 = vpop.xlane.xlu0 %1737
        %1739 = vadd.xlane.f32.xlu0 %v1708
        %v1740 = vpop.xlane.xlu0 %1739
        %1741 = vadd.xlane.f32.xlu0 %v1710
        %v1742 = vpop.xlane.xlu0 %1741
        %1743 = vadd.xlane.f32.xlu0 %v1712
        %v1744 = vpop.xlane.xlu0 %1743
        %1745 = vadd.xlane.f32.xlu0 %v1714
        %v1746 = vpop.xlane.xlu0 %1745
        %1747 = vadd.xlane.f32.xlu0 %v1716
        %v1748 = vpop.xlane.xlu0 %1747
        %1749 = vadd.xlane.f32.xlu0 %v1718
        %v1750 = vpop.xlane.xlu0 %1749
        %1751 = vadd.xlane.f32.xlu0 %v1720
        %v1752 = vpop.xlane.xlu0 %1751
        %1753 = vadd.xlane.f32.xlu0 %v1722
        %v1754 = vpop.xlane.xlu0 %1753
        %1755 = vadd.xlane.f32.xlu0 %v1724
        %v1756 = vpop.xlane.xlu0 %1755
        %1757 = vadd.xlane.f32.xlu0 %v1726
        %v1758 = vpop.xlane.xlu0 %1757
        %1759 = vadd.xlane.f32.xlu0 %v1728
        %v1760 = vpop.xlane.xlu0 %1759
        %1761 = vadd.xlane.f32.xlu0 %v1730
        %v1762 = vpop.xlane.xlu0 %1761
        %1763 = vadd.xlane.f32.xlu0 %v1732
        %v1764 = vpop.xlane.xlu0 %1763
        %1765 = vadd.xlane.f32.xlu0 %v1734
        %v1766 = vpop.xlane.xlu0 %1765
        %v1767 = vrcp.pop %v1736
        %v1768 = vrcp.pop %v1738
        %v1769 = vrcp.pop %v1740
        %v1770 = vrcp.pop %v1742
        %v1771 = vrcp.pop %v1744
        %v1772 = vrcp.pop %v1746
        %v1773 = vrcp.pop %v1748
        %v1774 = vrcp.pop %v1750
        %v1775 = vrcp.pop %v1752
        %v1776 = vrcp.pop %v1754
        %v1777 = vrcp.pop %v1756
        %v1778 = vrcp.pop %v1758
        %v1779 = vrcp.pop %v1760
        %v1780 = vrcp.pop %v1762
        %v1781 = vrcp.pop %v1764
        %v1782 = vrcp.pop %v1766
        %v1783 = vmul.f32 %v1704, %v1767
        %v1784 = vmul.f32 %v1706, %v1768
        %v1785 = vmul.f32 %v1708, %v1769
        %v1786 = vmul.f32 %v1710, %v1770
        %v1787 = vmul.f32 %v1712, %v1771
        %v1788 = vmul.f32 %v1714, %v1772
        %v1789 = vmul.f32 %v1716, %v1773
        %v1790 = vmul.f32 %v1718, %v1774
        %v1791 = vmul.f32 %v1720, %v1775
        %v1792 = vmul.f32 %v1722, %v1776
        %v1793 = vmul.f32 %v1724, %v1777
        %v1794 = vmul.f32 %v1726, %v1778
        %v1795 = vmul.f32 %v1728, %v1779
        %v1796 = vmul.f32 %v1730, %v1780
        %v1797 = vmul.f32 %v1732, %v1781
        %v1798 = vmul.f32 %v1734, %v1782
        %v1799 = vpack.c.bf16 %v1784, %v1783
        %v1800 = vpack.c.bf16 %v1786, %v1785
        %v1801 = vpack.c.bf16 %v1788, %v1787
        %v1802 = vpack.c.bf16 %v1790, %v1789
        %v1803 = vpack.c.bf16 %v1792, %v1791
        %v1804 = vpack.c.bf16 %v1794, %v1793
        %v1805 = vpack.c.bf16 %v1796, %v1795
        %v1806 = vpack.c.bf16 %v1798, %v1797
        %1807 = vmatprep.subr.bf16.mxu0 0
        %1808 = vmatpush1.bf16.msra.mxu0 %v1550
        %1809 = vmatprep.subr.bf16.mxu0 0
        %1810 = vmatpush1.bf16.msra.mxu0 %v1551
        %1811 = vmatprep.subr.bf16.mxu0 0
        %1812 = vmatpush1.bf16.msra.mxu0 %v1552
        %1813 = vmatprep.subr.bf16.mxu0 0
        %1814 = vmatpush1.bf16.msra.mxu0 %v1553
        %1815 = vmatprep.subr.bf16.mxu0 0
        %1816 = vmatpush1.bf16.msra.mxu0 %v1554
        %1817 = vmatprep.subr.bf16.mxu0 0
        %1818 = vmatpush1.bf16.msra.mxu0 %v1555
        %1819 = vmatprep.subr.bf16.mxu0 0
        %1820 = vmatpush1.bf16.msra.mxu0 %v1556
        %1821 = vmatprep.subr.bf16.mxu0 0
        %1822 = vmatpush1.bf16.msra.mxu0 %v1557
        %1823 = vmatprep.subr.bf16.mxu0 0
        %1824 = vmatpush1.bf16.msra.mxu0 0
        %1825 = vmatprep.subr.bf16.mxu0 0
        %1826 = vmatpush1.bf16.msra.mxu0 0
        %1827 = vmatprep.subr.bf16.mxu0 0
        %1828 = vmatpush1.bf16.msra.mxu0 0
        %1829 = vmatprep.subr.bf16.mxu0 0
        %1830 = vmatpush1.bf16.msra.mxu0 0
        %1831 = vmatprep.subr.bf16.mxu0 0
        %1832 = vmatpush1.bf16.msra.mxu0 0
        %1833 = vmatprep.subr.bf16.mxu0 0
        %1834 = vmatpush1.bf16.msra.mxu0 0
        %1835 = vmatprep.subr.bf16.mxu0 0
        %1836 = vmatpush1.bf16.msra.mxu0 0
        %1837 = vmatprep.subr.bf16.mxu0 0
        %1838 = vmatpush1.bf16.msra.mxu0 0
        %1839 = vmatprep.mubr.bf16.mxu0 0
        %1840 = vmatmul.mubr.bf16.gmra.mrb[0].mxu0 %v1799
        %v1841 = vpop.f32.mrb[0].mxu0
        %v1842 = vadd.f32 0.0, %v1841
        %v1843 = vpop.f32.mrb[0].mxu0
        %v1844 = vpop.f32.mrb[0].mxu0
        %v1845 = vadd.f32 0.0, %v1844
        %v1846 = vpop.f32.mrb[0].mxu0
        %1847 = vmatprep.mubr.bf16.mxu0 0
        %1848 = vmatmul.mubr.bf16.gmra.mrb[0].mxu0 %v1800
        %v1849 = vpop.f32.mrb[0].mxu0
        %v1850 = vadd.f32 0.0, %v1849
        %v1851 = vpop.f32.mrb[0].mxu0
        %v1852 = vpop.f32.mrb[0].mxu0
        %v1853 = vadd.f32 0.0, %v1852
        %v1854 = vpop.f32.mrb[0].mxu0
        %1855 = vmatprep.mubr.bf16.mxu0 0
        %1856 = vmatmul.mubr.bf16.gmra.mrb[0].mxu0 %v1801
        %v1857 = vpop.f32.mrb[0].mxu0
        %v1858 = vadd.f32 0.0, %v1857
        %v1859 = vpop.f32.mrb[0].mxu0
        %v1860 = vpop.f32.mrb[0].mxu0
        %v1861 = vadd.f32 0.0, %v1860
        %v1862 = vpop.f32.mrb[0].mxu0
        %1863 = vmatprep.mubr.bf16.mxu0 0
        %1864 = vmatmul.mubr.bf16.gmra.mrb[0].mxu0 %v1802
        %v1865 = vpop.f32.mrb[0].mxu0
        %v1866 = vadd.f32 0.0, %v1865
        %v1867 = vpop.f32.mrb[0].mxu0
        %v1868 = vpop.f32.mrb[0].mxu0
        %v1869 = vadd.f32 0.0, %v1868
        %v1870 = vpop.f32.mrb[0].mxu0
        %1871 = vmatprep.mubr.bf16.mxu0 0
        %1872 = vmatmul.mubr.bf16.gmra.mrb[0].mxu0 %v1803
        %v1873 = vpop.f32.mrb[0].mxu0
        %v1874 = vadd.f32 0.0, %v1873
        %v1875 = vpop.f32.mrb[0].mxu0
        %v1876 = vpop.f32.mrb[0].mxu0
        %v1877 = vadd.f32 0.0, %v1876
        %v1878 = vpop.f32.mrb[0].mxu0
        %1879 = vmatprep.mubr.bf16.mxu0 0
        %1880 = vmatmul.mubr.bf16.gmra.mrb[0].mxu0 %v1804
        %v1881 = vpop.f32.mrb[0].mxu0
        %v1882 = vadd.f32 0.0, %v1881
        %v1883 = vpop.f32.mrb[0].mxu0
        %v1884 = vpop.f32.mrb[0].mxu0
        %v1885 = vadd.f32 0.0, %v1884
        %v1886 = vpop.f32.mrb[0].mxu0
        %1887 = vmatprep.mubr.bf16.mxu0 0
        %1888 = vmatmul.mubr.bf16.gmra.mrb[0].mxu0 %v1805
        %v1889 = vpop.f32.mrb[0].mxu0
        %v1890 = vadd.f32 0.0, %v1889
        %v1891 = vpop.f32.mrb[0].mxu0
        %v1892 = vpop.f32.mrb[0].mxu0
        %v1893 = vadd.f32 0.0, %v1892
        %v1894 = vpop.f32.mrb[0].mxu0
        %1895 = vmatprep.mubr.bf16.mxu0 0
        %1896 = vmatmul.mubr.bf16.gmra.mrb[0].mxu0 %v1806
        %v1897 = vpop.f32.mrb[0].mxu0
        %v1898 = vadd.f32 0.0, %v1897
        %v1899 = vpop.f32.mrb[0].mxu0
        %v1900 = vpop.f32.mrb[0].mxu0
        %v1901 = vadd.f32 0.0, %v1900
        %v1902 = vpop.f32.mrb[0].mxu0
        %1903 = vdwg.mxu0
        %v1904 = vpack.c.bf16 %v1845, %v1842
        %v1905 = vpack.c.bf16 %v1853, %v1850
        %v1906 = vpack.c.bf16 %v1861, %v1858
        %v1907 = vpack.c.bf16 %v1869, %v1866
        %v1908 = vpack.c.bf16 %v1877, %v1874
        %v1909 = vpack.c.bf16 %v1885, %v1882
        %v1910 = vpack.c.bf16 %v1893, %v1890
        %v1911 = vpack.c.bf16 %v1901, %v1898
        %1912 = vst [vmem:[#allocation3 + $0x8] sm:$0xff] %v1904
        %1913 = vst [vmem:[#allocation3 + $0x18] sm:$0xff] %v1905
        %1914 = vst [vmem:[#allocation3 + $0x28] sm:$0xff] %v1906
        %1915 = vst [vmem:[#allocation3 + $0x38] sm:$0xff] %v1907
        %1916 = vst [vmem:[#allocation3 + $0x48] sm:$0xff] %v1908
        %1917 = vst [vmem:[#allocation3 + $0x58] sm:$0xff] %v1909
        %1918 = vst [vmem:[#allocation3 + $0x68] sm:$0xff] %v1910
        %1919 = vst [vmem:[#allocation3 + $0x78] sm:$0xff] %v1911
        %v1920 = vld [vmem:[#allocation3] sm:$0xff]
        %v1921 = vld [vmem:[#allocation3 + $0x8] sm:$0xff]
        %v1922 = vld [vmem:[#allocation3 + $0x10] sm:$0xff]
        %v1923 = vld [vmem:[#allocation3 + $0x18] sm:$0xff]
        %v1924 = vld [vmem:[#allocation3 + $0x20] sm:$0xff]
        %v1925 = vld [vmem:[#allocation3 + $0x28] sm:$0xff]
        %v1926 = vld [vmem:[#allocation3 + $0x30] sm:$0xff]
        %v1927 = vld [vmem:[#allocation3 + $0x38] sm:$0xff]
        %v1928 = vld [vmem:[#allocation3 + $0x40] sm:$0xff]
        %v1929 = vld [vmem:[#allocation3 + $0x48] sm:$0xff]
        %v1930 = vld [vmem:[#allocation3 + $0x50] sm:$0xff]
        %v1931 = vld [vmem:[#allocation3 + $0x58] sm:$0xff]
        %v1932 = vld [vmem:[#allocation3 + $0x60] sm:$0xff]
        %v1933 = vld [vmem:[#allocation3 + $0x68] sm:$0xff]
        %v1934 = vld [vmem:[#allocation3 + $0x70] sm:$0xff]
        %v1935 = vld [vmem:[#allocation3 + $0x78] sm:$0xff]
        %v1936 = vld [vmem:[%s5] sm:$0xf]
        %v1937 = vld [vmem:[%s5 + $0x4] sm:$0xf]
        %v1938 = vld [vmem:[%s5 + $0x8] sm:$0xf]
        %v1939 = vld [vmem:[%s5 + $0xc] sm:$0xf]
        %v1940 = vld [vmem:[%s5 + $0x10] sm:$0xf]
        %v1941 = vld [vmem:[%s5 + $0x14] sm:$0xf]
        %v1942 = vld [vmem:[%s5 + $0x18] sm:$0xf]
        %v1943 = vld [vmem:[%s5 + $0x1c] sm:$0xf]
        %v1944 = vld [vmem:[%s5 + $0x20] sm:$0xf]
        %v1945 = vld [vmem:[%s5 + $0x24] sm:$0xf]
        %v1946 = vld [vmem:[%s5 + $0x28] sm:$0xf]
        %v1947 = vld [vmem:[%s5 + $0x2c] sm:$0xf]
        %v1948 = vld [vmem:[%s5 + $0x30] sm:$0xf]
        %v1949 = vld [vmem:[%s5 + $0x34] sm:$0xf]
        %v1950 = vld [vmem:[%s5 + $0x38] sm:$0xf]
        %v1951 = vld [vmem:[%s5 + $0x3c] sm:$0xf]
        %v1952 = vld [vmem:[%s5 + $0x40] sm:$0xf]
        %v1953 = vld [vmem:[%s5 + $0x44] sm:$0xf]
        %v1954 = vld [vmem:[%s5 + $0x48] sm:$0xf]
        %v1955 = vld [vmem:[%s5 + $0x4c] sm:$0xf]
        %v1956 = vld [vmem:[%s5 + $0x50] sm:$0xf]
        %v1957 = vld [vmem:[%s5 + $0x54] sm:$0xf]
        %v1958 = vld [vmem:[%s5 + $0x58] sm:$0xf]
        %v1959 = vld [vmem:[%s5 + $0x5c] sm:$0xf]
        %v1960 = vld [vmem:[%s5 + $0x60] sm:$0xf]
        %v1961 = vld [vmem:[%s5 + $0x64] sm:$0xf]
        %v1962 = vld [vmem:[%s5 + $0x68] sm:$0xf]
        %v1963 = vld [vmem:[%s5 + $0x6c] sm:$0xf]
        %v1964 = vld [vmem:[%s5 + $0x70] sm:$0xf]
        %v1965 = vld [vmem:[%s5 + $0x74] sm:$0xf]
        %v1966 = vld [vmem:[%s5 + $0x78] sm:$0xf]
        %v1967 = vld [vmem:[%s5 + $0x7c] sm:$0xf]
        %v1968 = vld [vmem:[%s6] sm:$0x1]
        %v1970 = vlaneseq
        %v1971 = vshrl.u32 %v1970, 7
        %v1972 = vsub.s32 0, %v1971
        %v1973 = vrot.slane %v1968, %v1972
        %v2007 = vunpack.c.l.b16 %v1936
        %v2008 = vunpack.c.l.b16 %v1937
        %v2009 = vunpack.c.l.b16 %v1938
        %v2010 = vunpack.c.l.b16 %v1939
        %v2011 = vunpack.c.l.b16 %v1940
        %v2012 = vunpack.c.l.b16 %v1941
        %v2013 = vunpack.c.l.b16 %v1942
        %v2014 = vunpack.c.l.b16 %v1943
        %v2015 = vunpack.c.l.b16 %v1944
        %v2016 = vunpack.c.l.b16 %v1945
        %v2017 = vunpack.c.l.b16 %v1946
        %v2018 = vunpack.c.l.b16 %v1947
        %v2019 = vunpack.c.l.b16 %v1948
        %v2020 = vunpack.c.l.b16 %v1949
        %v2021 = vunpack.c.l.b16 %v1950
        %v2022 = vunpack.c.l.b16 %v1951
        %v2023 = vunpack.c.l.b16 %v1952
        %v2024 = vunpack.c.l.b16 %v1953
        %v2025 = vunpack.c.l.b16 %v1954
        %v2026 = vunpack.c.l.b16 %v1955
        %v2027 = vunpack.c.l.b16 %v1956
        %v2028 = vunpack.c.l.b16 %v1957
        %v2029 = vunpack.c.l.b16 %v1958
        %v2030 = vunpack.c.l.b16 %v1959
        %v2031 = vunpack.c.l.b16 %v1960
        %v2032 = vunpack.c.l.b16 %v1961
        %v2033 = vunpack.c.l.b16 %v1962
        %v2034 = vunpack.c.l.b16 %v1963
        %v2035 = vunpack.c.l.b16 %v1964
        %v2036 = vunpack.c.l.b16 %v1965
        %v2037 = vunpack.c.l.b16 %v1966
        %v2038 = vunpack.c.l.b16 %v1967
        %v2039 = vpack.c.b16 %v2008, %v2007
        %v2040 = vpack.c.b16 %v2010, %v2009
        %v2041 = vpack.c.b16 %v2012, %v2011
        %v2042 = vpack.c.b16 %v2014, %v2013
        %v2043 = vpack.c.b16 %v2016, %v2015
        %v2044 = vpack.c.b16 %v2018, %v2017
        %v2045 = vpack.c.b16 %v2020, %v2019
        %v2046 = vpack.c.b16 %v2022, %v2021
        %v2047 = vpack.c.b16 %v2024, %v2023
        %v2048 = vpack.c.b16 %v2026, %v2025
        %v2049 = vpack.c.b16 %v2028, %v2027
        %v2050 = vpack.c.b16 %v2030, %v2029
        %v2051 = vpack.c.b16 %v2032, %v2031
        %v2052 = vpack.c.b16 %v2034, %v2033
        %v2053 = vpack.c.b16 %v2036, %v2035
        %v2054 = vpack.c.b16 %v2038, %v2037
        %2071 = vmatprep.subr.bf16.mxu0 0
        %2072 = vmatpush1.bf16.msra.mxu0 %v2039
        %2073 = vmatprep.subr.bf16.mxu0 0
        %2074 = vmatpush1.bf16.msra.mxu0 %v2040
        %2075 = vmatprep.subr.bf16.mxu0 0
        %2076 = vmatpush1.bf16.msra.mxu0 %v2041
        %2077 = vmatprep.subr.bf16.mxu0 0
        %2078 = vmatpush1.bf16.msra.mxu0 %v2042
        %2079 = vmatprep.subr.bf16.mxu0 0
        %2080 = vmatpush1.bf16.msra.mxu0 %v2043
        %2081 = vmatprep.subr.bf16.mxu0 0
        %2082 = vmatpush1.bf16.msra.mxu0 %v2044
        %2083 = vmatprep.subr.bf16.mxu0 0
        %2084 = vmatpush1.bf16.msra.mxu0 %v2045
        %2085 = vmatprep.subr.bf16.mxu0 0
        %2086 = vmatpush1.bf16.msra.mxu0 %v2046
        %2087 = vmatprep.subr.bf16.mxu0 0
        %2088 = vmatpush1.bf16.msra.mxu0 %v2047
        %2089 = vmatprep.subr.bf16.mxu0 0
        %2090 = vmatpush1.bf16.msra.mxu0 %v2048
        %2091 = vmatprep.subr.bf16.mxu0 0
        %2092 = vmatpush1.bf16.msra.mxu0 %v2049
        %2093 = vmatprep.subr.bf16.mxu0 0
        %2094 = vmatpush1.bf16.msra.mxu0 %v2050
        %2095 = vmatprep.subr.bf16.mxu0 0
        %2096 = vmatpush1.bf16.msra.mxu0 %v2051
        %2097 = vmatprep.subr.bf16.mxu0 0
        %2098 = vmatpush1.bf16.msra.mxu0 %v2052
        %2099 = vmatprep.subr.bf16.mxu0 0
        %2100 = vmatpush1.bf16.msra.mxu0 %v2053
        %2101 = vmatprep.subr.bf16.mxu0 0
        %2102 = vmatpush1.bf16.msra.mxu0 %v2054
        %2103 = vmatprep.mubr.bf16.mxu0 %v1921
        %2104 = vmatmul.mubr.bf16.gmra.mrb[0].mxu0 %v1920
        %v2105 = vpop.f32.mrb[0].mxu0
        %v2106 = vadd.f32 %v1973, %v2105
        %v2107 = vpop.f32.mrb[0].mxu0
        %v2108 = vpop.f32.mrb[0].mxu0
        %v2109 = vadd.f32 %v1973, %v2108
        %v2110 = vpop.f32.mrb[0].mxu0
        %2111 = vmatprep.mubr.bf16.mxu0 %v1923
        %2112 = vmatmul.mubr.bf16.gmra.mrb[0].mxu0 %v1922
        %v2113 = vpop.f32.mrb[0].mxu0
        %v2114 = vadd.f32 %v1973, %v2113
        %v2115 = vpop.f32.mrb[0].mxu0
        %v2116 = vpop.f32.mrb[0].mxu0
        %v2117 = vadd.f32 %v1973, %v2116
        %v2118 = vpop.f32.mrb[0].mxu0
        %2119 = vmatprep.mubr.bf16.mxu0 %v1925
        %2120 = vmatmul.mubr.bf16.gmra.mrb[0].mxu0 %v1924
        %v2121 = vpop.f32.mrb[0].mxu0
        %v2122 = vadd.f32 %v1973, %v2121
        %v2123 = vpop.f32.mrb[0].mxu0
        %v2124 = vpop.f32.mrb[0].mxu0
        %v2125 = vadd.f32 %v1973, %v2124
        %v2126 = vpop.f32.mrb[0].mxu0
        %2127 = vmatprep.mubr.bf16.mxu0 %v1927
        %2128 = vmatmul.mubr.bf16.gmra.mrb[0].mxu0 %v1926
        %v2129 = vpop.f32.mrb[0].mxu0
        %v2130 = vadd.f32 %v1973, %v2129
        %v2131 = vpop.f32.mrb[0].mxu0
        %v2132 = vpop.f32.mrb[0].mxu0
        %v2133 = vadd.f32 %v1973, %v2132
        %v2134 = vpop.f32.mrb[0].mxu0
        %2135 = vmatprep.mubr.bf16.mxu0 %v1929
        %2136 = vmatmul.mubr.bf16.gmra.mrb[0].mxu0 %v1928
        %v2137 = vpop.f32.mrb[0].mxu0
        %v2138 = vadd.f32 %v1973, %v2137
        %v2139 = vpop.f32.mrb[0].mxu0
        %v2140 = vpop.f32.mrb[0].mxu0
        %v2141 = vadd.f32 %v1973, %v2140
        %v2142 = vpop.f32.mrb[0].mxu0
        %2143 = vmatprep.mubr.bf16.mxu0 %v1931
        %2144 = vmatmul.mubr.bf16.gmra.mrb[0].mxu0 %v1930
        %v2145 = vpop.f32.mrb[0].mxu0
        %v2146 = vadd.f32 %v1973, %v2145
        %v2147 = vpop.f32.mrb[0].mxu0
        %v2148 = vpop.f32.mrb[0].mxu0
        %v2149 = vadd.f32 %v1973, %v2148
        %v2150 = vpop.f32.mrb[0].mxu0
        %2151 = vmatprep.mubr.bf16.mxu0 %v1933
        %2152 = vmatmul.mubr.bf16.gmra.mrb[0].mxu0 %v1932
        %v2153 = vpop.f32.mrb[0].mxu0
        %v2154 = vadd.f32 %v1973, %v2153
        %v2155 = vpop.f32.mrb[0].mxu0
        %v2156 = vpop.f32.mrb[0].mxu0
        %v2157 = vadd.f32 %v1973, %v2156
        %v2158 = vpop.f32.mrb[0].mxu0
        %2159 = vmatprep.mubr.bf16.mxu0 %v1935
        %2160 = vmatmul.mubr.bf16.gmra.mrb[0].mxu0 %v1934
        %v2161 = vpop.f32.mrb[0].mxu0
        %v2162 = vadd.f32 %v1973, %v2161
        %v2163 = vpop.f32.mrb[0].mxu0
        %v2164 = vpop.f32.mrb[0].mxu0
        %v2165 = vadd.f32 %v1973, %v2164
        %v2166 = vpop.f32.mrb[0].mxu0
        %2167 = vdwg.mxu0
        %v2168 = vsel %vm617, %v2106, 0.0
        %2169 = vadd.xlane.f32.xlu0 %v2168
        %v2170 = vpop.xlane.xlu0 %2169
        %v2171 = vsel %vm617, %v2109, 0.0
        %2172 = vadd.xlane.f32.xlu0 %v2171
        %v2173 = vpop.xlane.xlu0 %2172
        %v2174 = vsel %vm617, %v2114, 0.0
        %2175 = vadd.xlane.f32.xlu0 %v2174
        %v2176 = vpop.xlane.xlu0 %2175
        %v2177 = vsel %vm617, %v2117, 0.0
        %2178 = vadd.xlane.f32.xlu0 %v2177
        %v2179 = vpop.xlane.xlu0 %2178
        %v2180 = vsel %vm617, %v2122, 0.0
        %2181 = vadd.xlane.f32.xlu0 %v2180
        %v2182 = vpop.xlane.xlu0 %2181
        %v2183 = vsel %vm617, %v2125, 0.0
        %2184 = vadd.xlane.f32.xlu0 %v2183
        %v2185 = vpop.xlane.xlu0 %2184
        %v2186 = vsel %vm617, %v2130, 0.0
        %2187 = vadd.xlane.f32.xlu0 %v2186
        %v2188 = vpop.xlane.xlu0 %2187
        %v2189 = vsel %vm617, %v2133, 0.0
        %2190 = vadd.xlane.f32.xlu0 %v2189
        %v2191 = vpop.xlane.xlu0 %2190
        %v2192 = vsel %vm617, %v2138, 0.0
        %2193 = vadd.xlane.f32.xlu0 %v2192
        %v2194 = vpop.xlane.xlu0 %2193
        %v2195 = vsel %vm617, %v2141, 0.0
        %2196 = vadd.xlane.f32.xlu0 %v2195
        %v2197 = vpop.xlane.xlu0 %2196
        %v2198 = vsel %vm617, %v2146, 0.0
        %2199 = vadd.xlane.f32.xlu0 %v2198
        %v2200 = vpop.xlane.xlu0 %2199
        %v2201 = vsel %vm617, %v2149, 0.0
        %2202 = vadd.xlane.f32.xlu0 %v2201
        %v2203 = vpop.xlane.xlu0 %2202
        %v2204 = vsel %vm617, %v2154, 0.0
        %2205 = vadd.xlane.f32.xlu0 %v2204
        %v2206 = vpop.xlane.xlu0 %2205
        %v2207 = vsel %vm617, %v2157, 0.0
        %2208 = vadd.xlane.f32.xlu0 %v2207
        %v2209 = vpop.xlane.xlu0 %2208
        %v2210 = vsel %vm617, %v2162, 0.0
        %2211 = vadd.xlane.f32.xlu0 %v2210
        %v2212 = vpop.xlane.xlu0 %2211
        %v2213 = vsel %vm617, %v2165, 0.0
        %2214 = vadd.xlane.f32.xlu0 %v2213
        %v2215 = vpop.xlane.xlu0 %2214
        %v2216 = vrcp.pop 32.0
        %v2217 = vmul.f32 %v2170, %v2216
        %v2218 = vmul.f32 %v2173, %v2216
        %v2219 = vmul.f32 %v2176, %v2216
        %v2220 = vmul.f32 %v2179, %v2216
        %v2221 = vmul.f32 %v2182, %v2216
        %v2222 = vmul.f32 %v2185, %v2216
        %v2223 = vmul.f32 %v2188, %v2216
        %v2224 = vmul.f32 %v2191, %v2216
        %v2225 = vmul.f32 %v2194, %v2216
        %v2226 = vmul.f32 %v2197, %v2216
        %v2227 = vmul.f32 %v2200, %v2216
        %v2228 = vmul.f32 %v2203, %v2216
        %v2229 = vmul.f32 %v2206, %v2216
        %v2230 = vmul.f32 %v2209, %v2216
        %v2231 = vmul.f32 %v2212, %v2216
        %v2232 = vmul.f32 %v2215, %v2216
        %v2233 = vsub.f32 %v2106, %v2217
        %v2234 = vsub.f32 %v2109, %v2218
        %v2235 = vsub.f32 %v2114, %v2219
        %v2236 = vsub.f32 %v2117, %v2220
        %v2237 = vsub.f32 %v2122, %v2221
        %v2238 = vsub.f32 %v2125, %v2222
        %v2239 = vsub.f32 %v2130, %v2223
        %v2240 = vsub.f32 %v2133, %v2224
        %v2241 = vsub.f32 %v2138, %v2225
        %v2242 = vsub.f32 %v2141, %v2226
        %v2243 = vsub.f32 %v2146, %v2227
        %v2244 = vsub.f32 %v2149, %v2228
        %v2245 = vsub.f32 %v2154, %v2229
        %v2246 = vsub.f32 %v2157, %v2230
        %v2247 = vsub.f32 %v2162, %v2231
        %v2248 = vsub.f32 %v2165, %v2232
        %v2249 = vmul.f32 %v2233, %v2233
        %v2250 = vmul.f32 %v2234, %v2234
        %v2251 = vmul.f32 %v2235, %v2235
        %v2252 = vmul.f32 %v2236, %v2236
        %v2253 = vmul.f32 %v2237, %v2237
        %v2254 = vmul.f32 %v2238, %v2238
        %v2255 = vmul.f32 %v2239, %v2239
        %v2256 = vmul.f32 %v2240, %v2240
        %v2257 = vmul.f32 %v2241, %v2241
        %v2258 = vmul.f32 %v2242, %v2242
        %v2259 = vmul.f32 %v2243, %v2243
        %v2260 = vmul.f32 %v2244, %v2244
        %v2261 = vmul.f32 %v2245, %v2245
        %v2262 = vmul.f32 %v2246, %v2246
        %v2263 = vmul.f32 %v2247, %v2247
        %v2264 = vmul.f32 %v2248, %v2248
        %v2265 = vsel %vm617, %v2249, 0.0
        %2266 = vadd.xlane.f32.xlu0 %v2265
        %v2267 = vpop.xlane.xlu0 %2266
        %v2268 = vsel %vm617, %v2250, 0.0
        %2269 = vadd.xlane.f32.xlu0 %v2268
        %v2270 = vpop.xlane.xlu0 %2269
        %v2271 = vsel %vm617, %v2251, 0.0
        %2272 = vadd.xlane.f32.xlu0 %v2271
        %v2273 = vpop.xlane.xlu0 %2272
        %v2274 = vsel %vm617, %v2252, 0.0
        %2275 = vadd.xlane.f32.xlu0 %v2274
        %v2276 = vpop.xlane.xlu0 %2275
        %v2277 = vsel %vm617, %v2253, 0.0
        %2278 = vadd.xlane.f32.xlu0 %v2277
        %v2279 = vpop.xlane.xlu0 %2278
        %v2280 = vsel %vm617, %v2254, 0.0
        %2281 = vadd.xlane.f32.xlu0 %v2280
        %v2282 = vpop.xlane.xlu0 %2281
        %v2283 = vsel %vm617, %v2255, 0.0
        %2284 = vadd.xlane.f32.xlu0 %v2283
        %v2285 = vpop.xlane.xlu0 %2284
        %v2286 = vsel %vm617, %v2256, 0.0
        %2287 = vadd.xlane.f32.xlu0 %v2286
        %v2288 = vpop.xlane.xlu0 %2287
        %v2289 = vsel %vm617, %v2257, 0.0
        %2290 = vadd.xlane.f32.xlu0 %v2289
        %v2291 = vpop.xlane.xlu0 %2290
        %v2292 = vsel %vm617, %v2258, 0.0
        %2293 = vadd.xlane.f32.xlu0 %v2292
        %v2294 = vpop.xlane.xlu0 %2293
        %v2295 = vsel %vm617, %v2259, 0.0
        %2296 = vadd.xlane.f32.xlu0 %v2295
        %v2297 = vpop.xlane.xlu0 %2296
        %v2298 = vsel %vm617, %v2260, 0.0
        %2299 = vadd.xlane.f32.xlu0 %v2298
        %v2300 = vpop.xlane.xlu0 %2299
        %v2301 = vsel %vm617, %v2261, 0.0
        %2302 = vadd.xlane.f32.xlu0 %v2301
        %v2303 = vpop.xlane.xlu0 %2302
        %v2304 = vsel %vm617, %v2262, 0.0
        %2305 = vadd.xlane.f32.xlu0 %v2304
        %v2306 = vpop.xlane.xlu0 %2305
        %v2307 = vsel %vm617, %v2263, 0.0
        %2308 = vadd.xlane.f32.xlu0 %v2307
        %v2309 = vpop.xlane.xlu0 %2308
        %v2310 = vsel %vm617, %v2264, 0.0
        %2311 = vadd.xlane.f32.xlu0 %v2310
        %v2312 = vpop.xlane.xlu0 %2311
        %v2313 = vmul.f32 %v2267, %v2216
        %v2314 = vmul.f32 %v2270, %v2216
        %v2315 = vmul.f32 %v2273, %v2216
        %v2316 = vmul.f32 %v2276, %v2216
        %v2317 = vmul.f32 %v2279, %v2216
        %v2318 = vmul.f32 %v2282, %v2216
        %v2319 = vmul.f32 %v2285, %v2216
        %v2320 = vmul.f32 %v2288, %v2216
        %v2321 = vmul.f32 %v2291, %v2216
        %v2322 = vmul.f32 %v2294, %v2216
        %v2323 = vmul.f32 %v2297, %v2216
        %v2324 = vmul.f32 %v2300, %v2216
        %v2325 = vmul.f32 %v2303, %v2216
        %v2326 = vmul.f32 %v2306, %v2216
        %v2327 = vmul.f32 %v2309, %v2216
        %v2328 = vmul.f32 %v2312, %v2216
        %v2329 = vadd.f32 %v2313, 1e-05
        %v2330 = vadd.f32 %v2314, 1e-05
        %v2331 = vadd.f32 %v2315, 1e-05
        %v2332 = vadd.f32 %v2316, 1e-05
        %v2333 = vadd.f32 %v2317, 1e-05
        %v2334 = vadd.f32 %v2318, 1e-05
        %v2335 = vadd.f32 %v2319, 1e-05
        %v2336 = vadd.f32 %v2320, 1e-05
        %v2337 = vadd.f32 %v2321, 1e-05
        %v2338 = vadd.f32 %v2322, 1e-05
        %v2339 = vadd.f32 %v2323, 1e-05
        %v2340 = vadd.f32 %v2324, 1e-05
        %v2341 = vadd.f32 %v2325, 1e-05
        %v2342 = vadd.f32 %v2326, 1e-05
        %v2343 = vadd.f32 %v2327, 1e-05
        %v2344 = vadd.f32 %v2328, 1e-05
        %v2345 = vrsqrt.pop %v2329
        %v2346 = vrsqrt.pop %v2330
        %v2347 = vrsqrt.pop %v2331
        %v2348 = vrsqrt.pop %v2332
        %v2349 = vrsqrt.pop %v2333
        %v2350 = vrsqrt.pop %v2334
        %v2351 = vrsqrt.pop %v2335
        %v2352 = vrsqrt.pop %v2336
        %v2353 = vrsqrt.pop %v2337
        %v2354 = vrsqrt.pop %v2338
        %v2355 = vrsqrt.pop %v2339
        %v2356 = vrsqrt.pop %v2340
        %v2357 = vrsqrt.pop %v2341
        %v2358 = vrsqrt.pop %v2342
        %v2359 = vrsqrt.pop %v2343
        %v2360 = vrsqrt.pop %v2344
        %v2361 = vmul.f32 %v2233, %v2345
        %v2362 = vmul.f32 %v2234, %v2346
        %v2363 = vmul.f32 %v2235, %v2347
        %v2364 = vmul.f32 %v2236, %v2348
        %v2365 = vmul.f32 %v2237, %v2349
        %v2366 = vmul.f32 %v2238, %v2350
        %v2367 = vmul.f32 %v2239, %v2351
        %v2368 = vmul.f32 %v2240, %v2352
        %v2369 = vmul.f32 %v2241, %v2353
        %v2370 = vmul.f32 %v2242, %v2354
        %v2371 = vmul.f32 %v2243, %v2355
        %v2372 = vmul.f32 %v2244, %v2356
        %v2373 = vmul.f32 %v2245, %v2357
        %v2374 = vmul.f32 %v2246, %v2358
        %v2375 = vmul.f32 %v2247, %v2359
        %v2376 = vmul.f32 %v2248, %v2360
        %v2377 = vld [vmem:[%s7] sm:$0x1]
        %v2379 = vlaneseq
        %v2380 = vshrl.u32 %v2379, 7
        %v2381 = vsub.s32 0, %v2380
        %v2382 = vrot.slane %v2377, %v2381
        %v2384 = vmul.f32 %v2361, %v2382
        %v2385 = vmul.f32 %v2362, %v2382
        %v2386 = vmul.f32 %v2363, %v2382
        %v2387 = vmul.f32 %v2364, %v2382
        %v2388 = vmul.f32 %v2365, %v2382
        %v2389 = vmul.f32 %v2366, %v2382
        %v2390 = vmul.f32 %v2367, %v2382
        %v2391 = vmul.f32 %v2368, %v2382
        %v2392 = vmul.f32 %v2369, %v2382
        %v2393 = vmul.f32 %v2370, %v2382
        %v2394 = vmul.f32 %v2371, %v2382
        %v2395 = vmul.f32 %v2372, %v2382
        %v2396 = vmul.f32 %v2373, %v2382
        %v2397 = vmul.f32 %v2374, %v2382
        %v2398 = vmul.f32 %v2375, %v2382
        %v2399 = vmul.f32 %v2376, %v2382
        %v2400 = vld [vmem:[%s8] sm:$0x1]
        %v2402 = vlaneseq
        %v2403 = vshrl.u32 %v2402, 7
        %v2404 = vsub.s32 0, %v2403
        %v2405 = vrot.slane %v2400, %v2404
        %v2407 = vadd.f32 %v2384, %v2405
        %v2408 = vadd.f32 %v2385, %v2405
        %v2409 = vadd.f32 %v2386, %v2405
        %v2410 = vadd.f32 %v2387, %v2405
        %v2411 = vadd.f32 %v2388, %v2405
        %v2412 = vadd.f32 %v2389, %v2405
        %v2413 = vadd.f32 %v2390, %v2405
        %v2414 = vadd.f32 %v2391, %v2405
        %v2415 = vadd.f32 %v2392, %v2405
        %v2416 = vadd.f32 %v2393, %v2405
        %v2417 = vadd.f32 %v2394, %v2405
        %v2418 = vadd.f32 %v2395, %v2405
        %v2419 = vadd.f32 %v2396, %v2405
        %v2420 = vadd.f32 %v2397, %v2405
        %v2421 = vadd.f32 %v2398, %v2405
        %v2422 = vadd.f32 %v2399, %v2405
        %v2423 = vpack.c.bf16 %v2408, %v2407
        %v2424 = vpack.c.bf16 %v2410, %v2409
        %v2425 = vpack.c.bf16 %v2412, %v2411
        %v2426 = vpack.c.bf16 %v2414, %v2413
        %v2427 = vpack.c.bf16 %v2416, %v2415
        %v2428 = vpack.c.bf16 %v2418, %v2417
        %v2429 = vpack.c.bf16 %v2420, %v2419
        %v2430 = vpack.c.bf16 %v2422, %v2421
        %v2431 = vld [vmem:[%s9] sm:$0xf]
        %v2432 = vld [vmem:[%s9 + $0x4] sm:$0xf]
        %v2433 = vld [vmem:[%s9 + $0x8] sm:$0xf]
        %v2434 = vld [vmem:[%s9 + $0xc] sm:$0xf]
        %v2435 = vld [vmem:[%s10] sm:$0x1]
        %v2437 = vlaneseq
        %v2438 = vshrl.u32 %v2437, 7
        %v2439 = vsub.s32 0, %v2438
        %v2440 = vrot.slane %v2435, %v2439
        %v2446 = vunpack.c.l.b16 %v2431
        %v2447 = vunpack.c.l.b16 %v2432
        %v2448 = vunpack.c.l.b16 %v2433
        %v2449 = vunpack.c.l.b16 %v2434
        %v2450 = vpack.c.b16 %v2447, %v2446
        %v2451 = vpack.c.b16 %v2449, %v2448
        %v2455 = vsel %vm617, %v2423, 0
        %v2458 = vsel %vm617, %v2424, 0
        %v2461 = vsel %vm617, %v2425, 0
        %v2464 = vsel %vm617, %v2426, 0
        %v2467 = vsel %vm617, %v2427, 0
        %v2470 = vsel %vm617, %v2428, 0
        %v2473 = vsel %vm617, %v2429, 0
        %v2476 = vsel %vm617, %v2430, 0
        %2478 = vmatprep.subr.bf16.mxu0 0
        %2479 = vmatpush1.bf16.msra.mxu0 %v2450
        %2480 = vmatprep.subr.bf16.mxu0 0
        %2481 = vmatpush1.bf16.msra.mxu0 %v2451
        %2482 = vmatprep.subr.bf16.mxu0 0
        %2483 = vmatpush1.bf16.msra.mxu0 0
        %2484 = vmatprep.subr.bf16.mxu0 0
        %2485 = vmatpush1.bf16.msra.mxu0 0
        %2486 = vmatprep.subr.bf16.mxu0 0
        %2487 = vmatpush1.bf16.msra.mxu0 0
        %2488 = vmatprep.subr.bf16.mxu0 0
        %2489 = vmatpush1.bf16.msra.mxu0 0
        %2490 = vmatprep.subr.bf16.mxu0 0
        %2491 = vmatpush1.bf16.msra.mxu0 0
        %2492 = vmatprep.subr.bf16.mxu0 0
        %2493 = vmatpush1.bf16.msra.mxu0 0
        %2494 = vmatprep.subr.bf16.mxu0 0
        %2495 = vmatpush1.bf16.msra.mxu0 0
        %2496 = vmatprep.subr.bf16.mxu0 0
        %2497 = vmatpush1.bf16.msra.mxu0 0
        %2498 = vmatprep.subr.bf16.mxu0 0
        %2499 = vmatpush1.bf16.msra.mxu0 0
        %2500 = vmatprep.subr.bf16.mxu0 0
        %2501 = vmatpush1.bf16.msra.mxu0 0
        %2502 = vmatprep.subr.bf16.mxu0 0
        %2503 = vmatpush1.bf16.msra.mxu0 0
        %2504 = vmatprep.subr.bf16.mxu0 0
        %2505 = vmatpush1.bf16.msra.mxu0 0
        %2506 = vmatprep.subr.bf16.mxu0 0
        %2507 = vmatpush1.bf16.msra.mxu0 0
        %2508 = vmatprep.subr.bf16.mxu0 0
        %2509 = vmatpush1.bf16.msra.mxu0 0
        %2510 = vmatprep.mubr.bf16.mxu0 0
        %2511 = vmatmul.mubr.bf16.gmra.mrb[0].mxu0 %v2455
        %v2512 = vpop.f32.mrb[0].mxu0
        %v2513 = vadd.f32 %v2440, %v2512
        %v2514 = vpop.f32.mrb[0].mxu0
        %v2515 = vpop.f32.mrb[0].mxu0
        %v2516 = vadd.f32 %v2440, %v2515
        %v2517 = vpop.f32.mrb[0].mxu0
        %2518 = vmatprep.mubr.bf16.mxu0 0
        %2519 = vmatmul.mubr.bf16.gmra.mrb[0].mxu0 %v2458
        %v2520 = vpop.f32.mrb[0].mxu0
        %v2521 = vadd.f32 %v2440, %v2520
        %v2522 = vpop.f32.mrb[0].mxu0
        %v2523 = vpop.f32.mrb[0].mxu0
        %v2524 = vadd.f32 %v2440, %v2523
        %v2525 = vpop.f32.mrb[0].mxu0
        %2526 = vmatprep.mubr.bf16.mxu0 0
        %2527 = vmatmul.mubr.bf16.gmra.mrb[0].mxu0 %v2461
        %v2528 = vpop.f32.mrb[0].mxu0
        %v2529 = vadd.f32 %v2440, %v2528
        %v2530 = vpop.f32.mrb[0].mxu0
        %v2531 = vpop.f32.mrb[0].mxu0
        %v2532 = vadd.f32 %v2440, %v2531
        %v2533 = vpop.f32.mrb[0].mxu0
        %2534 = vmatprep.mubr.bf16.mxu0 0
        %2535 = vmatmul.mubr.bf16.gmra.mrb[0].mxu0 %v2464
        %v2536 = vpop.f32.mrb[0].mxu0
        %v2537 = vadd.f32 %v2440, %v2536
        %v2538 = vpop.f32.mrb[0].mxu0
        %v2539 = vpop.f32.mrb[0].mxu0
        %v2540 = vadd.f32 %v2440, %v2539
        %v2541 = vpop.f32.mrb[0].mxu0
        %2542 = vmatprep.mubr.bf16.mxu0 0
        %2543 = vmatmul.mubr.bf16.gmra.mrb[0].mxu0 %v2467
        %v2544 = vpop.f32.mrb[0].mxu0
        %v2545 = vadd.f32 %v2440, %v2544
        %v2546 = vpop.f32.mrb[0].mxu0
        %v2547 = vpop.f32.mrb[0].mxu0
        %v2548 = vadd.f32 %v2440, %v2547
        %v2549 = vpop.f32.mrb[0].mxu0
        %2550 = vmatprep.mubr.bf16.mxu0 0
        %2551 = vmatmul.mubr.bf16.gmra.mrb[0].mxu0 %v2470
        %v2552 = vpop.f32.mrb[0].mxu0
        %v2553 = vadd.f32 %v2440, %v2552
        %v2554 = vpop.f32.mrb[0].mxu0
        %v2555 = vpop.f32.mrb[0].mxu0
        %v2556 = vadd.f32 %v2440, %v2555
        %v2557 = vpop.f32.mrb[0].mxu0
        %2558 = vmatprep.mubr.bf16.mxu0 0
        %2559 = vmatmul.mubr.bf16.gmra.mrb[0].mxu0 %v2473
        %v2560 = vpop.f32.mrb[0].mxu0
        %v2561 = vadd.f32 %v2440, %v2560
        %v2562 = vpop.f32.mrb[0].mxu0
        %v2563 = vpop.f32.mrb[0].mxu0
        %v2564 = vadd.f32 %v2440, %v2563
        %v2565 = vpop.f32.mrb[0].mxu0
        %2566 = vmatprep.mubr.bf16.mxu0 0
        %2567 = vmatmul.mubr.bf16.gmra.mrb[0].mxu0 %v2476
        %v2568 = vpop.f32.mrb[0].mxu0
        %v2569 = vadd.f32 %v2440, %v2568
        %v2570 = vpop.f32.mrb[0].mxu0
        %v2571 = vpop.f32.mrb[0].mxu0
        %v2572 = vadd.f32 %v2440, %v2571
        %v2573 = vpop.f32.mrb[0].mxu0
        %2574 = vdwg.mxu0
        %v2575 = vmul.f32 %v2513, 0.5
        %v2576 = vmul.f32 %v2516, 0.5
        %v2577 = vmul.f32 %v2521, 0.5
        %v2578 = vmul.f32 %v2524, 0.5
        %v2579 = vmul.f32 %v2529, 0.5
        %v2580 = vmul.f32 %v2532, 0.5
        %v2581 = vmul.f32 %v2537, 0.5
        %v2582 = vmul.f32 %v2540, 0.5
        %v2583 = vmul.f32 %v2545, 0.5
        %v2584 = vmul.f32 %v2548, 0.5
        %v2585 = vmul.f32 %v2553, 0.5
        %v2586 = vmul.f32 %v2556, 0.5
        %v2587 = vmul.f32 %v2561, 0.5
        %v2588 = vmul.f32 %v2564, 0.5
        %v2589 = vmul.f32 %v2569, 0.5
        %v2590 = vmul.f32 %v2572, 0.5
        %v2591 = vmul.f32 %v2513, 0.044715
        %v2592 = vmul.f32 %v2516, 0.044715
        %v2593 = vmul.f32 %v2521, 0.044715
        %v2594 = vmul.f32 %v2524, 0.044715
        %v2595 = vmul.f32 %v2529, 0.044715
        %v2596 = vmul.f32 %v2532, 0.044715
        %v2597 = vmul.f32 %v2537, 0.044715
        %v2598 = vmul.f32 %v2540, 0.044715
        %v2599 = vmul.f32 %v2545, 0.044715
        %v2600 = vmul.f32 %v2548, 0.044715
        %v2601 = vmul.f32 %v2553, 0.044715
        %v2602 = vmul.f32 %v2556, 0.044715
        %v2603 = vmul.f32 %v2561, 0.044715
        %v2604 = vmul.f32 %v2564, 0.044715
        %v2605 = vmul.f32 %v2569, 0.044715
        %v2606 = vmul.f32 %v2572, 0.044715
        %v2607 = vmul.f32 %v2591, %v2513
        %v2608 = vmul.f32 %v2592, %v2516
        %v2609 = vmul.f32 %v2593, %v2521
        %v2610 = vmul.f32 %v2594, %v2524
        %v2611 = vmul.f32 %v2595, %v2529
        %v2612 = vmul.f32 %v2596, %v2532
        %v2613 = vmul.f32 %v2597, %v2537
        %v2614 = vmul.f32 %v2598, %v2540
        %v2615 = vmul.f32 %v2599, %v2545
        %v2616 = vmul.f32 %v2600, %v2548
        %v2617 = vmul.f32 %v2601, %v2553
        %v2618 = vmul.f32 %v2602, %v2556
        %v2619 = vmul.f32 %v2603, %v2561
        %v2620 = vmul.f32 %v2604, %v2564
        %v2621 = vmul.f32 %v2605, %v2569
        %v2622 = vmul.f32 %v2606, %v2572
        %v2623 = vmul.f32 %v2607, %v2513
        %v2624 = vmul.f32 %v2608, %v2516
        %v2625 = vmul.f32 %v2609, %v2521
        %v2626 = vmul.f32 %v2610, %v2524
        %v2627 = vmul.f32 %v2611, %v2529
        %v2628 = vmul.f32 %v2612, %v2532
        %v2629 = vmul.f32 %v2613, %v2537
        %v2630 = vmul.f32 %v2614, %v2540
        %v2631 = vmul.f32 %v2615, %v2545
        %v2632 = vmul.f32 %v2616, %v2548
        %v2633 = vmul.f32 %v2617, %v2553
        %v2634 = vmul.f32 %v2618, %v2556
        %v2635 = vmul.f32 %v2619, %v2561
        %v2636 = vmul.f32 %v2620, %v2564
        %v2637 = vmul.f32 %v2621, %v2569
        %v2638 = vmul.f32 %v2622, %v2572
        %v2639 = vadd.f32 %v2513, %v2623
        %v2640 = vadd.f32 %v2516, %v2624
        %v2641 = vadd.f32 %v2521, %v2625
        %v2642 = vadd.f32 %v2524, %v2626
        %v2643 = vadd.f32 %v2529, %v2627
        %v2644 = vadd.f32 %v2532, %v2628
        %v2645 = vadd.f32 %v2537, %v2629
        %v2646 = vadd.f32 %v2540, %v2630
        %v2647 = vadd.f32 %v2545, %v2631
        %v2648 = vadd.f32 %v2548, %v2632
        %v2649 = vadd.f32 %v2553, %v2633
        %v2650 = vadd.f32 %v2556, %v2634
        %v2651 = vadd.f32 %v2561, %v2635
        %v2652 = vadd.f32 %v2564, %v2636
        %v2653 = vadd.f32 %v2569, %v2637
        %v2654 = vadd.f32 %v2572, %v2638
        %v2655 = vmul.f32 %v2639, 0.7978846
        %v2656 = vmul.f32 %v2640, 0.7978846
        %v2657 = vmul.f32 %v2641, 0.7978846
        %v2658 = vmul.f32 %v2642, 0.7978846
        %v2659 = vmul.f32 %v2643, 0.7978846
        %v2660 = vmul.f32 %v2644, 0.7978846
        %v2661 = vmul.f32 %v2645, 0.7978846
        %v2662 = vmul.f32 %v2646, 0.7978846
        %v2663 = vmul.f32 %v2647, 0.7978846
        %v2664 = vmul.f32 %v2648, 0.7978846
        %v2665 = vmul.f32 %v2649, 0.7978846
        %v2666 = vmul.f32 %v2650, 0.7978846
        %v2667 = vmul.f32 %v2651, 0.7978846
        %v2668 = vmul.f32 %v2652, 0.7978846
        %v2669 = vmul.f32 %v2653, 0.7978846
        %v2670 = vmul.f32 %v2654, 0.7978846
        %v2671 = vtanh.pop %v2655
        %v2672 = vtanh.pop %v2656
        %v2673 = vtanh.pop %v2657
        %v2674 = vtanh.pop %v2658
        %v2675 = vtanh.pop %v2659
        %v2676 = vtanh.pop %v2660
        %v2677 = vtanh.pop %v2661
        %v2678 = vtanh.pop %v2662
        %v2679 = vtanh.pop %v2663
        %v2680 = vtanh.pop %v2664
        %v2681 = vtanh.pop %v2665
        %v2682 = vtanh.pop %v2666
        %v2683 = vtanh.pop %v2667
        %v2684 = vtanh.pop %v2668
        %v2685 = vtanh.pop %v2669
        %v2686 = vtanh.pop %v2670
        %v2687 = vadd.f32 %v2671, 1.0
        %v2688 = vadd.f32 %v2672, 1.0
        %v2689 = vadd.f32 %v2673, 1.0
        %v2690 = vadd.f32 %v2674, 1.0
        %v2691 = vadd.f32 %v2675, 1.0
        %v2692 = vadd.f32 %v2676, 1.0
        %v2693 = vadd.f32 %v2677, 1.0
        %v2694 = vadd.f32 %v2678, 1.0
        %v2695 = vadd.f32 %v2679, 1.0
        %v2696 = vadd.f32 %v2680, 1.0
        %v2697 = vadd.f32 %v2681, 1.0
        %v2698 = vadd.f32 %v2682, 1.0
        %v2699 = vadd.f32 %v2683, 1.0
        %v2700 = vadd.f32 %v2684, 1.0
        %v2701 = vadd.f32 %v2685, 1.0
        %v2702 = vadd.f32 %v2686, 1.0
        %v2703 = vmul.f32 %v2575, %v2687
        %v2704 = vmul.f32 %v2576, %v2688
        %v2705 = vmul.f32 %v2577, %v2689
        %v2706 = vmul.f32 %v2578, %v2690
        %v2707 = vmul.f32 %v2579, %v2691
        %v2708 = vmul.f32 %v2580, %v2692
        %v2709 = vmul.f32 %v2581, %v2693
        %v2710 = vmul.f32 %v2582, %v2694
        %v2711 = vmul.f32 %v2583, %v2695
        %v2712 = vmul.f32 %v2584, %v2696
        %v2713 = vmul.f32 %v2585, %v2697
        %v2714 = vmul.f32 %v2586, %v2698
        %v2715 = vmul.f32 %v2587, %v2699
        %v2716 = vmul.f32 %v2588, %v2700
        %v2717 = vmul.f32 %v2589, %v2701
        %v2718 = vmul.f32 %v2590, %v2702
        %v2719 = vld [vmem:[%s11] sm:$0x1]
        %v2720 = vpack.c.bf16 %v2704, %v2703
        %v2721 = vpack.c.bf16 %v2706, %v2705
        %v2722 = vpack.c.bf16 %v2708, %v2707
        %v2723 = vpack.c.bf16 %v2710, %v2709
        %v2724 = vpack.c.bf16 %v2712, %v2711
        %v2725 = vpack.c.bf16 %v2714, %v2713
        %v2726 = vpack.c.bf16 %v2716, %v2715
        %v2727 = vpack.c.bf16 %v2718, %v2717
        %v2728 = vld [vmem:[#allocation4] sm:$0x1]
        %2730 = vset.pattern.permute.xlu0 0
        %2731 = vperm.xlu0 %2730, %v2728
        %v2732 = vpop.permute.xlu0 %2731
        %v2734 = vlaneseq
        %v2735 = vshrl.u32 %v2734, 7
        %v2736 = vsub.s32 0, %v2735
        %v2737 = vrot.slane %v2732, %v2736
        %v2739 = vsel %vm617, %v2719, 0
        %v2742 = vsel %vm617, %v2720, 0
        %v2745 = vsel %vm617, %v2721, 0
        %v2748 = vsel %vm617, %v2722, 0
        %v2751 = vsel %vm617, %v2723, 0
        %v2754 = vsel %vm617, %v2724, 0
        %v2757 = vsel %vm617, %v2725, 0
        %v2760 = vsel %vm617, %v2726, 0
        %v2763 = vsel %vm617, %v2727, 0
        %2765 = vmatprep.subr.bf16.mxu0 0
        %2766 = vmatpush1.bf16.xpose.msra.mxu0 %v2742
        %2767 = vmatprep.subr.bf16.mxu0 0
        %2768 = vmatpush1.bf16.xpose.msra.mxu0 %v2745
        %2769 = vmatprep.subr.bf16.mxu0 0
        %2770 = vmatpush1.bf16.xpose.msra.mxu0 %v2748
        %2771 = vmatprep.subr.bf16.mxu0 0
        %2772 = vmatpush1.bf16.xpose.msra.mxu0 %v2751
        %2773 = vmatprep.subr.bf16.mxu0 0
        %2774 = vmatpush1.bf16.xpose.msra.mxu0 %v2754
        %2775 = vmatprep.subr.bf16.mxu0 0
        %2776 = vmatpush1.bf16.xpose.msra.mxu0 %v2757
        %2777 = vmatprep.subr.bf16.mxu0 0
        %2778 = vmatpush1.bf16.xpose.msra.mxu0 %v2760
        %2779 = vmatprep.subr.bf16.mxu0 0
        %2780 = vmatpush1.bf16.xpose.msra.mxu0 %v2763
        %2781 = vmatprep.subr.bf16.mxu0 0
        %2782 = vmatpush1.bf16.xpose.msra.mxu0 0
        %2783 = vmatprep.subr.bf16.mxu0 0
        %2784 = vmatpush1.bf16.xpose.msra.mxu0 0
        %2785 = vmatprep.subr.bf16.mxu0 0
        %2786 = vmatpush1.bf16.xpose.msra.mxu0 0
        %2787 = vmatprep.subr.bf16.mxu0 0
        %2788 = vmatpush1.bf16.xpose.msra.mxu0 0
        %2789 = vmatprep.subr.bf16.mxu0 0
        %2790 = vmatpush1.bf16.xpose.msra.mxu0 0
        %2791 = vmatprep.subr.bf16.mxu0 0
        %2792 = vmatpush1.bf16.xpose.msra.mxu0 0
        %2793 = vmatprep.subr.bf16.mxu0 0
        %2794 = vmatpush1.bf16.xpose.msra.mxu0 0
        %2795 = vmatprep.subr.bf16.mxu0 0
        %2796 = vmatpush1.bf16.xpose.msra.mxu0 0
        %2797 = vmatprep.mubr.bf16.mxu0 0
        %2798 = vmatmul.mubr.bf16.gmra.mrb[0].mxu0 %v2739
        %v2799 = vpop.f32.mrb[0].mxu0
        %v2800 = vadd.f32 %v2737, %v2799
        %v2801 = vpop.f32.mrb[0].mxu0
        %v2802 = vpop.f32.mrb[0].mxu0
        %v2803 = vpop.f32.mrb[0].mxu0
        %2804 = vdwg.mxu0
        %2805 = vst [vmem:[%s446] sm:$0x1] %v2800
        %s2806 = sand.u32 %s320, 1
        %s2807 = scalar_lea.sflag [#allocation6], %s2806
        %s2808 = sand.u32 %s320, 1
        %s2809 = scalar_lea.vmem [#allocation5], %s2808
        // Predicated region
        $region73: #{tpu_custom_call.1} parent=71 // pred_check
          %p2810 = pneg %p330
        $region74: #{tpu_custom_call.1} parent=71 // pred_check_branch
          %2812 = sbr.rel (%p2810) target = $region76
        $region75: #{tpu_custom_call.1} parent=71 // pred_region
          %s2814 = ssub.s32 16, 16
          %2815 = vsyncadd %s2807, %s2814
          %s2816 = smul.addr %s29, 16
          %s2817 = scalar_lea.hbm %s13, %s2816
          %s2819 = sshll.u32 %s2809, 4
          %s2820 = int_to_ptr.vmem [resolvable:$true] %s2819
          %2822 = dma.vmem_to_hbm [thread:$0]  %s2820, 16, %s2817, %s2807
        $region76: #{tpu_custom_call.1} parent=71 // pred_fallthru
          _
      $region72: #{tpu_custom_call.1} parent=5 // pred_fallthru
        _
      %p2823 = scmp.le.s32.totalorder 2, %s24
      // Predicated region
      $region77: #{tpu_custom_call.1} parent=5 // pred_check
        %p2824 = pneg %p2823
      $region78: #{tpu_custom_call.1} parent=5 // pred_check_branch
        %2826 = sbr.rel (%p2824) target = $region80
      $region79: #{tpu_custom_call.1} parent=5 // pred_region
        %s2827 = ssub.s32 %s24, 2
        // Predicated region
        $region81: #{tpu_custom_call.1} parent=79 // pred_check
          %p2828 = pneg %p336
        $region82: #{tpu_custom_call.1} parent=79 // pred_check_branch
          %2830 = sbr.rel (%p2828) target = $region84
        $region83: #{tpu_custom_call.1} parent=79 // pred_region
          %s2831 = sand.u32 %s321, 1
          %s2832 = scalar_lea.sflag [#allocation6], %s2831
          %s2833 = sand.u32 %s321, 1
          %s2834 = scalar_lea.vmem [#allocation5], %s2833
          %2835 = dma.done %s2832, 16
        $region84: #{tpu_custom_call.1} parent=79 // pred_fallthru
          _
      $region80: #{tpu_custom_call.1} parent=5 // pred_fallthru
        _
    $region6: #{tpu_custom_call.1} parent=1 // loop_footer
      %s28 = sadd.s32 1, %s24
    $region7: #{tpu_custom_call.1} parent=1 // loop_footer_branch
      %23 = sbr.rel target = $region3
    $region8: #{tpu_custom_call.1} parent=1 // loop_exit
      _
    %2836 = vsyncpa [#allocation6], 1
    %s2837 = scalar_lea.sflag [#allocation6], 1
    %2838 = vsyncpa %s2837, 1

// kernel: tpu_custom_call.1
$region0: #{tpu_custom_call.1}
  #allocation0 [shape = 'u32[]', space=smem, size = 0x4, offset = 0x4, fixed_abs, tag = 'smem constant byte address 0x4 - core index']
  #allocation1 [shape = 'u32[144,128]{1,0:T(1,128)}', space=vmem, size = 0x12000, scoped, tag = 'internal scratch']
  #allocation2 [shape = 'bf16[128,768]{1,0:T(16,128)(2,1)}', space=vmem, size = 0x30000, scoped, tag = 'scratch operand']
  #allocation3 [shape = 'bf16[128,256]{1,0:T(16,128)(2,1)}', space=vmem, size = 0x10000, scoped, tag = 'scratch operand']
  #allocation4 [shape = 'f32[1,1]{1,0:T(1,128)S(1)}', space=vmem, size = 0x200, scoped, tag = 'scoped memory for tpu_custom_call.1']
  %s0 = inlined_call_operand.vmem [shape: bf16[256,32], index: 0, kind: input, shape index: {}]
  %s1 = inlined_call_operand.vmem [shape: f32[2,1,128], index: 1, kind: input, shape index: {}]
  %s2 = inlined_call_operand.vmem [shape: f32[128,128], index: 2, kind: input, shape index: {}]
  %s3 = inlined_call_operand.vmem [shape: bf16[32,768], index: 3, kind: input, shape index: {}]
  %s4 = inlined_call_operand.vmem [shape: f32[1,768], index: 4, kind: input, shape index: {}]
  %s5 = inlined_call_operand.vmem [shape: bf16[256,32], index: 5, kind: input, shape index: {}]
  %s6 = inlined_call_operand.vmem [shape: f32[1,32], index: 6, kind: input, shape index: {}]
  %s7 = inlined_call_operand.vmem [shape: f32[1,32], index: 7, kind: input, shape index: {}]
  %s8 = inlined_call_operand.vmem [shape: f32[1,32], index: 8, kind: input, shape index: {}]
  %s9 = inlined_call_operand.vmem [shape: bf16[32,32], index: 9, kind: input, shape index: {}]
  %s10 = inlined_call_operand.vmem [shape: f32[1,32], index: 10, kind: input, shape index: {}]
  %s11 = inlined_call_operand.vmem [shape: bf16[1,32], index: 11, kind: input, shape index: {}]
  %s12 = inlined_call_operand.<no memory space> [shape: f32[1,1], index: 12, kind: input, shape index: {}]
  %s13 = inlined_call_operand.hbm [shape: f32[2,1,128], index: 13, kind: output, shape index: {}]
  %s14 = sld [smem:[#allocation0]]
  $region85: #{tpu_custom_call.1} parent=0
    _
  %s16 = ssub.s32 1, %s14
  %s17 = scalar_select 0, %s16, %s14
  %v18 = vstv %s12
  %19 = vst [vmem:[#allocation4] sm:$0x1] %v18
  $region1: #{tpu_custom_call.1} parent=0
    #allocation5 [shape = 'u8[1024]{0}', space=vmem, size = 0x400, scoped, tag = 'output window, operand 0']
    #allocation6 [shape = 's32[2]{0}', space=sflag, size = 0x8, scoped, tag = 'scoped memory for tpu_custom_call.1']
    %20 = vsyncpa [#allocation6], 0
    %s21 = scalar_lea.sflag [#allocation6], 1
    %22 = vsyncpa %s21, 0
    loop: start=0, step=1, limit=4
    $region2: #{tpu_custom_call.1} parent=1 // loop_pre_header
      _
    $region3: #{tpu_custom_call.1} parent=1 // loop_header
      %s24 = sphi 0, %s28
      %p25 = scmp.ge.s32.totalorder %s24, 4
      %s34 = sphi 0, %s36
      %s37 = sphi 0, %s34
      %s38 = sphi 0, %s37
      %s54 = sphi 0, %s38
      %s60 = sphi 0, %s62
      %s63 = sphi 0, %s60
      %s64 = sphi 0, %s63
      %s80 = sphi 0, %s64
      %s84 = sphi 0, %s84
      %s86 = sphi 0, %s84
      %s87 = sphi 0, %s86
      %s101 = sphi 0, %s87
      %s105 = sphi 0, %s105
      %s107 = sphi 0, %s105
      %s108 = sphi 0, %s107
      %s122 = sphi 0, %s108
      %s126 = sphi 0, %s126
      %s128 = sphi 0, %s126
      %s129 = sphi 0, %s128
      %s143 = sphi 0, %s129
      %s147 = sphi 0, %s147
      %s149 = sphi 0, %s147
      %s150 = sphi 0, %s149
      %s164 = sphi 0, %s150
      %s168 = sphi 0, %s168
      %s170 = sphi 0, %s168
      %s171 = sphi 0, %s170
      %s185 = sphi 0, %s171
      %s189 = sphi 0, %s189
      %s191 = sphi 0, %s189
      %s192 = sphi 0, %s191
      %s206 = sphi 0, %s192
      %s210 = sphi 0, %s210
      %s212 = sphi 0, %s210
      %s213 = sphi 0, %s212
      %s227 = sphi 0, %s213
      %s231 = sphi 0, %s231
      %s233 = sphi 0, %s231
      %s234 = sphi 0, %s233
      %s248 = sphi 0, %s234
      %s252 = sphi 0, %s252
      %s254 = sphi 0, %s252
      %s255 = sphi 0, %s254
      %s269 = sphi 0, %s255
      %s273 = sphi 0, %s273
      %s275 = sphi 0, %s273
      %s276 = sphi 0, %s275
      %s290 = sphi 0, %s276
      %s294 = sphi 0, %s294
      %s296 = sphi 0, %s294
      %s297 = sphi 0, %s296
      %s311 = sphi 0, %s297
      %s317 = sphi 0, %s319
      %s320 = sphi 0, %s317
      %s321 = sphi 0, %s320
      %s337 = sphi 0, %s321
    $region4: #{tpu_custom_call.1} parent=1 // loop_header_branch
      %27 = sbr.rel (%p25) target = $region8
    $region5: #{tpu_custom_call.1} parent=1 // loop_body
      %s29 = ssub.s32 %s24, 1
      %s30 = ssub.s32 %s24, 2
      %s31 = sadd.s32 %s24, 1
      %s32 = ssub.s32 %s24, %s31
      %p33 = scmp.eq.s32.totalorder %s32, 0
      %s35 = sadd.s32 %s34, 1
      %s36 = scalar_select %p33, %s34, %s35
      %p39 = pneg %p33
      %p40 = scmp.eq.s32.totalorder %s24, 1
      %p41 = por %p39, %p40
      %p42 = scmp.ne.s32.totalorder %s34, %s37
      %p43 = scmp.eq.s32.totalorder %s24, 0
      %p44 = por %p42, %p43
      %p45 = scmp.ne.s32.totalorder %s34, %s37
      %p46 = scmp.eq.s32.totalorder %s29, 1
      %p47 = por %p45, %p46
      %p48 = scmp.ne.s32.totalorder %s37, %s38
      %p49 = scmp.eq.s32.totalorder %s29, 0
      %p50 = por %p48, %p49
      %p51 = scmp.ne.s32.totalorder %s37, %s38
      %p52 = scmp.eq.s32.totalorder %s30, 1
      %p53 = por %p51, %p52
      %p55 = scmp.ne.s32.totalorder %s38, %s54
      %p56 = scmp.eq.s32.totalorder %s30, 0
      %p57 = por %p55, %p56
      %s58 = ssub.s32 %s24, %s31
      %p59 = scmp.eq.s32.totalorder %s58, 0
      %s61 = sadd.s32 %s60, 1
      %s62 = scalar_select %p59, %s60, %s61
      %p65 = pneg %p59
      %p66 = scmp.eq.s32.totalorder %s24, 1
      %p67 = por %p65, %p66
      %p68 = scmp.ne.s32.totalorder %s60, %s63
      %p69 = scmp.eq.s32.totalorder %s24, 0
      %p70 = por %p68, %p69
      %p71 = scmp.ne.s32.totalorder %s60, %s63
      %p72 = scmp.eq.s32.totalorder %s29, 1
      %p73 = por %p71, %p72
      %p74 = scmp.ne.s32.totalorder %s63, %s64
      %p75 = scmp.eq.s32.totalorder %s29, 0
      %p76 = por %p74, %p75
      %p77 = scmp.ne.s32.totalorder %s63, %s64
      %p78 = scmp.eq.s32.totalorder %s30, 1
      %p79 = por %p77, %p78
      %p81 = scmp.ne.s32.totalorder %s64, %s80
      %p82 = scmp.eq.s32.totalorder %s30, 0
      %p83 = por %p81, %p82
      %s85 = sadd.s32 %s84, 1
      %p88 = scmp.eq.s32.totalorder %s24, 1
      %p89 = scmp.ne.s32.totalorder %s84, %s86
      %p90 = scmp.eq.s32.totalorder %s24, 0
      %p91 = por %p89, %p90
      %p92 = scmp.ne.s32.totalorder %s84, %s86
      %p93 = scmp.eq.s32.totalorder %s29, 1
      %p94 = por %p92, %p93
      %p95 = scmp.ne.s32.totalorder %s86, %s87
      %p96 = scmp.eq.s32.totalorder %s29, 0
      %p97 = por %p95, %p96
      %p98 = scmp.ne.s32.totalorder %s86, %s87
      %p99 = scmp.eq.s32.totalorder %s30, 1
      %p100 = por %p98, %p99
      %p102 = scmp.ne.s32.totalorder %s87, %s101
      %p103 = scmp.eq.s32.totalorder %s30, 0
      %p104 = por %p102, %p103
      %s106 = sadd.s32 %s105, 1
      %p109 = scmp.eq.s32.totalorder %s24, 1
      %p110 = scmp.ne.s32.totalorder %s105, %s107
      %p111 = scmp.eq.s32.totalorder %s24, 0
      %p112 = por %p110, %p111
      %p113 = scmp.ne.s32.totalorder %s105, %s107
      %p114 = scmp.eq.s32.totalorder %s29, 1
      %p115 = por %p113, %p114
      %p116 = scmp.ne.s32.totalorder %s107, %s108
      %p117 = scmp.eq.s32.totalorder %s29, 0
      %p118 = por %p116, %p117
      %p119 = scmp.ne.s32.totalorder %s107, %s108
      %p120 = scmp.eq.s32.totalorder %s30, 1
      %p121 = por %p119, %p120
      %p123 = scmp.ne.s32.totalorder %s108, %s122
      %p124 = scmp.eq.s32.totalorder %s30, 0
      %p125 = por %p123, %p124
      %s127 = sadd.s32 %s126, 1
      %p130 = scmp.eq.s32.totalorder %s24, 1
      %p131 = scmp.ne.s32.totalorder %s126, %s128
      %p132 = scmp.eq.s32.totalorder %s24, 0
      %p133 = por %p131, %p132
      %p134 = scmp.ne.s32.totalorder %s126, %s128
      %p135 = scmp.eq.s32.totalorder %s29, 1
      %p136 = por %p134, %p135
      %p137 = scmp.ne.s32.totalorder %s128, %s129
      %p138 = scmp.eq.s32.totalorder %s29, 0
      %p139 = por %p137, %p138
      %p140 = scmp.ne.s32.totalorder %s128, %s129
      %p141 = scmp.eq.s32.totalorder %s30, 1
      %p142 = por %p140, %p141
      %p144 = scmp.ne.s32.totalorder %s129, %s143
      %p145 = scmp.eq.s32.totalorder %s30, 0
      %p146 = por %p144, %p145
      %s148 = sadd.s32 %s147, 1
      %p151 = scmp.eq.s32.totalorder %s24, 1
      %p152 = scmp.ne.s32.totalorder %s147, %s149
      %p153 = scmp.eq.s32.totalorder %s24, 0
      %p154 = por %p152, %p153
      %p155 = scmp.ne.s32.totalorder %s147, %s149
      %p156 = scmp.eq.s32.totalorder %s29, 1
      %p157 = por %p155, %p156
      %p158 = scmp.ne.s32.totalorder %s149, %s150
      %p159 = scmp.eq.s32.totalorder %s29, 0
      %p160 = por %p158, %p159
      %p161 = scmp.ne.s32.totalorder %s149, %s150
      %p162 = scmp.eq.s32.totalorder %s30, 1
      %p163 = por %p161, %p162
      %p165 = scmp.ne.s32.totalorder %s150, %s164
      %p166 = scmp.eq.s32.totalorder %s30, 0
      %p167 = por %p165, %p166
      %s169 = sadd.s32 %s168, 1
      %p172 = scmp.eq.s32.totalorder %s24, 1
      %p173 = scmp.ne.s32.totalorder %s168, %s170
      %p174 = scmp.eq.s32.totalorder %s24, 0
      %p175 = por %p173, %p174
      %p176 = scmp.ne.s32.totalorder %s168, %s170
      %p177 = scmp.eq.s32.totalorder %s29, 1
      %p178 = por %p176, %p177
      %p179 = scmp.ne.s32.totalorder %s170, %s171
      %p180 = scmp.eq.s32.totalorder %s29, 0
      %p181 = por %p179, %p180
      %p182 = scmp.ne.s32.totalorder %s170, %s171
      %p183 = scmp.eq.s32.totalorder %s30, 1
      %p184 = por %p182, %p183
      %p186 = scmp.ne.s32.totalorder %s171, %s185
      %p187 = scmp.eq.s32.totalorder %s30, 0
      %p188 = por %p186, %p187
      %s190 = sadd.s32 %s189, 1
      %p193 = scmp.eq.s32.totalorder %s24, 1
      %p194 = scmp.ne.s32.totalorder %s189, %s191
      %p195 = scmp.eq.s32.totalorder %s24, 0
      %p196 = por %p194, %p195
      %p197 = scmp.ne.s32.totalorder %s189, %s191
      %p198 = scmp.eq.s32.totalorder %s29, 1
      %p199 = por %p197, %p198
      %p200 = scmp.ne.s32.totalorder %s191, %s192
      %p201 = scmp.eq.s32.totalorder %s29, 0
      %p202 = por %p200, %p201
      %p203 = scmp.ne.s32.totalorder %s191, %s192
      %p204 = scmp.eq.s32.totalorder %s30, 1
      %p205 = por %p203, %p204
      %p207 = scmp.ne.s32.totalorder %s192, %s206
      %p208 = scmp.eq.s32.totalorder %s30, 0
      %p209 = por %p207, %p208
      %s211 = sadd.s32 %s210, 1
      %p214 = scmp.eq.s32.totalorder %s24, 1
      %p215 = scmp.ne.s32.totalorder %s210, %s212
      %p216 = scmp.eq.s32.totalorder %s24, 0
      %p217 = por %p215, %p216
      %p218 = scmp.ne.s32.totalorder %s210, %s212
      %p219 = scmp.eq.s32.totalorder %s29, 1
      %p220 = por %p218, %p219
      %p221 = scmp.ne.s32.totalorder %s212, %s213
      %p222 = scmp.eq.s32.totalorder %s29, 0
      %p223 = por %p221, %p222
      %p224 = scmp.ne.s32.totalorder %s212, %s213
      %p225 = scmp.eq.s32.totalorder %s30, 1
      %p226 = por %p224, %p225
      %p228 = scmp.ne.s32.totalorder %s213, %s227
      %p229 = scmp.eq.s32.totalorder %s30, 0
      %p230 = por %p228, %p229
      %s232 = sadd.s32 %s231, 1
      %p235 = scmp.eq.s32.totalorder %s24, 1
      %p236 = scmp.ne.s32.totalorder %s231, %s233
      %p237 = scmp.eq.s32.totalorder %s24, 0
      %p238 = por %p236, %p237
      %p239 = scmp.ne.s32.totalorder %s231, %s233
      %p240 = scmp.eq.s32.totalorder %s29, 1
      %p241 = por %p239, %p240
      %p242 = scmp.ne.s32.totalorder %s233, %s234
      %p243 = scmp.eq.s32.totalorder %s29, 0
      %p244 = por %p242, %p243
      %p245 = scmp.ne.s32.totalorder %s233, %s234
      %p246 = scmp.eq.s32.totalorder %s30, 1
      %p247 = por %p245, %p246
      %p249 = scmp.ne.s32.totalorder %s234, %s248
      %p250 = scmp.eq.s32.totalorder %s30, 0
      %p251 = por %p249, %p250
      %s253 = sadd.s32 %s252, 1
      %p256 = scmp.eq.s32.totalorder %s24, 1
      %p257 = scmp.ne.s32.totalorder %s252, %s254
      %p258 = scmp.eq.s32.totalorder %s24, 0
      %p259 = por %p257, %p258
      %p260 = scmp.ne.s32.totalorder %s252, %s254
      %p261 = scmp.eq.s32.totalorder %s29, 1
      %p262 = por %p260, %p261
      %p263 = scmp.ne.s32.totalorder %s254, %s255
      %p264 = scmp.eq.s32.totalorder %s29, 0
      %p265 = por %p263, %p264
      %p266 = scmp.ne.s32.totalorder %s254, %s255
      %p267 = scmp.eq.s32.totalorder %s30, 1
      %p268 = por %p266, %p267
      %p270 = scmp.ne.s32.totalorder %s255, %s269
      %p271 = scmp.eq.s32.totalorder %s30, 0
      %p272 = por %p270, %p271
      %s274 = sadd.s32 %s273, 1
      %p277 = scmp.eq.s32.totalorder %s24, 1
      %p278 = scmp.ne.s32.totalorder %s273, %s275
      %p279 = scmp.eq.s32.totalorder %s24, 0
      %p280 = por %p278, %p279
      %p281 = scmp.ne.s32.totalorder %s273, %s275
      %p282 = scmp.eq.s32.totalorder %s29, 1
      %p283 = por %p281, %p282
      %p284 = scmp.ne.s32.totalorder %s275, %s276
      %p285 = scmp.eq.s32.totalorder %s29, 0
      %p286 = por %p284, %p285
      %p287 = scmp.ne.s32.totalorder %s275, %s276
      %p288 = scmp.eq.s32.totalorder %s30, 1
      %p289 = por %p287, %p288
      %p291 = scmp.ne.s32.totalorder %s276, %s290
      %p292 = scmp.eq.s32.totalorder %s30, 0
      %p293 = por %p291, %p292
      %s295 = sadd.s32 %s294, 1
      %p298 = scmp.eq.s32.totalorder %s24, 1
      %p299 = scmp.ne.s32.totalorder %s294, %s296
      %p300 = scmp.eq.s32.totalorder %s24, 0
      %p301 = por %p299, %p300
      %p302 = scmp.ne.s32.totalorder %s294, %s296
      %p303 = scmp.eq.s32.totalorder %s29, 1
      %p304 = por %p302, %p303
      %p305 = scmp.ne.s32.totalorder %s296, %s297
      %p306 = scmp.eq.s32.totalorder %s29, 0
      %p307 = por %p305, %p306
      %p308 = scmp.ne.s32.totalorder %s296, %s297
      %p309 = scmp.eq.s32.totalorder %s30, 1
      %p310 = por %p308, %p309
      %p312 = scmp.ne.s32.totalorder %s297, %s311
      %p313 = scmp.eq.s32.totalorder %s30, 0
      %p314 = por %p312, %p313
      %s315 = ssub.s32 %s24, %s31
      %p316 = scmp.eq.s32.totalorder %s315, 0
      %s318 = sadd.s32 %s317, 1
      %s319 = scalar_select %p316, %s317, %s318
      %p322 = pneg %p316
      %p323 = scmp.eq.s32.totalorder %s24, 1
      %p324 = por %p322, %p323
      %p325 = scmp.ne.s32.totalorder %s317, %s320
      %p326 = scmp.eq.s32.totalorder %s24, 0
      %p327 = por %p325, %p326
      %p328 = scmp.ne.s32.totalorder %s317, %s320
      %p329 = scmp.eq.s32.totalorder %s29, 1
      %p330 = por %p328, %p329
      %p331 = scmp.ne.s32.totalorder %s320, %s321
      %p332 = scmp.eq.s32.totalorder %s29, 0
      %p333 = por %p331, %p332
      %p334 = scmp.ne.s32.totalorder %s320, %s321
      %p335 = scmp.eq.s32.totalorder %s30, 1
      %p336 = por %p334, %p335
      %p338 = scmp.ne.s32.totalorder %s321, %s337
      %p339 = scmp.eq.s32.totalorder %s30, 0
      %p340 = por %p338, %p339
      %p341 = scmp.le.s32.totalorder 1, %s24
      %p342 = scmp.lt.s32.totalorder %s24, 3
      %p343 = pnand %p341, %p342
      %p344 = pneg %p343
      // Predicated region
      $region9: #{tpu_custom_call.1} parent=5 // pred_check
        _
      $region10: #{tpu_custom_call.1} parent=5 // pred_check_branch
        %346 = sbr.rel (%p343) target = $region12
      $region11: #{tpu_custom_call.1} parent=5 // pred_region
        %s347 = ssub.s32 %s24, 1
        // Predicated region
        $region13: #{tpu_custom_call.1} parent=11 // pred_check
          %p348 = pneg %p97
        $region14: #{tpu_custom_call.1} parent=11 // pred_check_branch
          %350 = sbr.rel (%p348) target = $region16
        $region15: #{tpu_custom_call.1} parent=11 // pred_region
          _
        $region16: #{tpu_custom_call.1} parent=11 // pred_fallthru
          _
        // Predicated region
        $region17: #{tpu_custom_call.1} parent=11 // pred_check
          %p351 = pneg %p118
        $region18: #{tpu_custom_call.1} parent=11 // pred_check_branch
          %353 = sbr.rel (%p351) target = $region20
        $region19: #{tpu_custom_call.1} parent=11 // pred_region
          _
        $region20: #{tpu_custom_call.1} parent=11 // pred_fallthru
          _
        // Predicated region
        $region21: #{tpu_custom_call.1} parent=11 // pred_check
          %p354 = pneg %p139
        $region22: #{tpu_custom_call.1} parent=11 // pred_check_branch
          %356 = sbr.rel (%p354) target = $region24
        $region23: #{tpu_custom_call.1} parent=11 // pred_region
          _
        $region24: #{tpu_custom_call.1} parent=11 // pred_fallthru
          _
        // Predicated region
        $region25: #{tpu_custom_call.1} parent=11 // pred_check
          %p357 = pneg %p160
        $region26: #{tpu_custom_call.1} parent=11 // pred_check_branch
          %359 = sbr.rel (%p357) target = $region28
        $region27: #{tpu_custom_call.1} parent=11 // pred_region
          _
        $region28: #{tpu_custom_call.1} parent=11 // pred_fallthru
          _
        // Predicated region
        $region29: #{tpu_custom_call.1} parent=11 // pred_check
          %p360 = pneg %p181
        $region30: #{tpu_custom_call.1} parent=11 // pred_check_branch
          %362 = sbr.rel (%p360) target = $region32
        $region31: #{tpu_custom_call.1} parent=11 // pred_region
          _
        $region32: #{tpu_custom_call.1} parent=11 // pred_fallthru
          _
        // Predicated region
        $region33: #{tpu_custom_call.1} parent=11 // pred_check
          %p363 = pneg %p202
        $region34: #{tpu_custom_call.1} parent=11 // pred_check_branch
          %365 = sbr.rel (%p363) target = $region36
        $region35: #{tpu_custom_call.1} parent=11 // pred_region
          _
        $region36: #{tpu_custom_call.1} parent=11 // pred_fallthru
          _
        // Predicated region
        $region37: #{tpu_custom_call.1} parent=11 // pred_check
          %p366 = pneg %p223
        $region38: #{tpu_custom_call.1} parent=11 // pred_check_branch
          %368 = sbr.rel (%p366) target = $region40
        $region39: #{tpu_custom_call.1} parent=11 // pred_region
          _
        $region40: #{tpu_custom_call.1} parent=11 // pred_fallthru
          _
        // Predicated region
        $region41: #{tpu_custom_call.1} parent=11 // pred_check
          %p369 = pneg %p244
        $region42: #{tpu_custom_call.1} parent=11 // pred_check_branch
          %371 = sbr.rel (%p369) target = $region44
        $region43: #{tpu_custom_call.1} parent=11 // pred_region
          _
        $region44: #{tpu_custom_call.1} parent=11 // pred_fallthru
          _
        // Predicated region
        $region45: #{tpu_custom_call.1} parent=11 // pred_check
          %p372 = pneg %p265
        $region46: #{tpu_custom_call.1} parent=11 // pred_check_branch
          %374 = sbr.rel (%p372) target = $region48
        $region47: #{tpu_custom_call.1} parent=11 // pred_region
          _
        $region48: #{tpu_custom_call.1} parent=11 // pred_fallthru
          _
        // Predicated region
        $region49: #{tpu_custom_call.1} parent=11 // pred_check
          %p375 = pneg %p286
        $region50: #{tpu_custom_call.1} parent=11 // pred_check_branch
          %377 = sbr.rel (%p375) target = $region52
        $region51: #{tpu_custom_call.1} parent=11 // pred_region
          _
        $region52: #{tpu_custom_call.1} parent=11 // pred_fallthru
          _
        // Predicated region
        $region53: #{tpu_custom_call.1} parent=11 // pred_check
          %p378 = pneg %p307
        $region54: #{tpu_custom_call.1} parent=11 // pred_check_branch
          %380 = sbr.rel (%p378) target = $region56
        $region55: #{tpu_custom_call.1} parent=11 // pred_region
          _
        $region56: #{tpu_custom_call.1} parent=11 // pred_fallthru
          _
      $region12: #{tpu_custom_call.1} parent=5 // pred_fallthru
        _
      %p381 = scmp.lt.s32.totalorder %s24, 2
      // Predicated region
      $region57: #{tpu_custom_call.1} parent=5 // pred_check
        %p382 = pneg %p381
      $region58: #{tpu_custom_call.1} parent=5 // pred_check_branch
        %384 = sbr.rel (%p382) target = $region60
      $region59: #{tpu_custom_call.1} parent=5 // pred_region
        // Predicated region
        $region61: #{tpu_custom_call.1} parent=59 // pred_check
          %p385 = pneg %p44
        $region62: #{tpu_custom_call.1} parent=59 // pred_check_branch
          %387 = sbr.rel (%p385) target = $region64
        $region63: #{tpu_custom_call.1} parent=59 // pred_region
          %s388 = smul.u32 16, %s24
          %p389 = scmp.lt.s32.totalorder %s388, 31
          %s390 = scalar_select %p389, %s388, 31
          %s391 = smul.addr %s390, 4
          %s392 = scalar_lea.vmem %s0, %s391
          %s393 = smul.u32 16, %s24
        $region64: #{tpu_custom_call.1} parent=59 // pred_fallthru
          _
        // Predicated region
        $region65: #{tpu_custom_call.1} parent=59 // pred_check
          %p394 = pneg %p70
        $region66: #{tpu_custom_call.1} parent=59 // pred_check_branch
          %396 = sbr.rel (%p394) target = $region68
        $region67: #{tpu_custom_call.1} parent=59 // pred_region
          %p397 = scmp.lt.s32.totalorder %s24, 1
          %s398 = scalar_select %p397, %s24, 1
          %s399 = scalar_lea.vmem %s1, %s398
        $region68: #{tpu_custom_call.1} parent=59 // pred_fallthru
          _
      $region60: #{tpu_custom_call.1} parent=5 // pred_fallthru
        _
      %p400 = scmp.le.s32.totalorder 1, %s24
      %p401 = scmp.lt.s32.totalorder %s24, 3
      %p402 = pnand %p400, %p401
      %p403 = pneg %p402
      // Predicated region
      $region69: #{tpu_custom_call.1} parent=5 // pred_check
        _
      $region70: #{tpu_custom_call.1} parent=5 // pred_check_branch
        %405 = sbr.rel (%p402) target = $region72
      $region71: #{tpu_custom_call.1} parent=5 // pred_region
        %s406 = ssub.s32 %s24, 1
        %s407 = smul.u32 16, %s29
        %p408 = scmp.lt.s32.totalorder %s407, 31
        %s409 = scalar_select %p408, %s407, 31
        %s410 = smul.addr %s409, 4
        %s411 = scalar_lea.vmem %s0, %s410
        %p412 = pneg %p50
        %p413 = pneg %p47
        %p414 = scmp.lt.s32.totalorder %s29, 1
        %s415 = scalar_select %p414, %s29, 1
        %s416 = scalar_lea.vmem %s1, %s415
        %p417 = pneg %p76
        %p418 = pneg %p73
        %p419 = pneg %p97
        %p420 = pneg %p94
        %p421 = pneg %p118
        %p422 = pneg %p115
        %p423 = pneg %p139
        %p424 = pneg %p136
        %p425 = pneg %p160
        %p426 = pneg %p157
        %p427 = pneg %p181
        %p428 = pneg %p178
        %p429 = pneg %p202
        %p430 = pneg %p199
        %p431 = pneg %p223
        %p432 = pneg %p220
        %p433 = pneg %p244
        %p434 = pneg %p241
        %p435 = pneg %p265
        %p436 = pneg %p262
        %p437 = pneg %p286
        %p438 = pneg %p283
        %p439 = pneg %p307
        %p440 = pneg %p304
        %p441 = pneg %p333
        %p442 = pneg %p330
        %s443 = sand.u32 %s320, 1
        %s444 = scalar_lea.sflag [#allocation6], %s443
        %s445 = sand.u32 %s320, 1
        %s446 = scalar_lea.vmem [#allocation5], %s445
        %s447 = smul.u32 16, %s29
        %p448 = scmp.lt.s32.totalorder %s447, 31
        %s449 = scalar_select %p448, %s447, 31
        %s450 = smul.addr %s449, 4
        %s451 = scalar_lea.vmem %s0, %s450
        %s452 = smul.u32 16, %s29
        %p453 = scmp.lt.s32.totalorder %s29, 1
        %s454 = scalar_select %p453, %s29, 1
        %s455 = scalar_lea.vmem %s1, %s454
        %v457 = vld [vmem:[%s451] sm:$0xf]
        %v458 = vld [vmem:[%s451 + $0x4] sm:$0xf]
        %v459 = vld [vmem:[%s451 + $0x8] sm:$0xf]
        %v460 = vld [vmem:[%s451 + $0xc] sm:$0xf]
        %v461 = vld [vmem:[%s451 + $0x10] sm:$0xf]
        %v462 = vld [vmem:[%s451 + $0x14] sm:$0xf]
        %v463 = vld [vmem:[%s451 + $0x18] sm:$0xf]
        %v464 = vld [vmem:[%s451 + $0x1c] sm:$0xf]
        %v465 = vld [vmem:[%s451 + $0x20] sm:$0xf]
        %v466 = vld [vmem:[%s451 + $0x24] sm:$0xf]
        %v467 = vld [vmem:[%s451 + $0x28] sm:$0xf]
        %v468 = vld [vmem:[%s451 + $0x2c] sm:$0xf]
        %v469 = vld [vmem:[%s451 + $0x30] sm:$0xf]
        %v470 = vld [vmem:[%s451 + $0x34] sm:$0xf]
        %v471 = vld [vmem:[%s451 + $0x38] sm:$0xf]
        %v472 = vld [vmem:[%s451 + $0x3c] sm:$0xf]
        %v473 = vld [vmem:[%s3] sm:$0xff]
        %v474 = vld [vmem:[%s3 + $0x8] sm:$0xff]
        %v475 = vld [vmem:[%s3 + $0x10] sm:$0xff]
        %v476 = vld [vmem:[%s3 + $0x18] sm:$0xff]
        %v477 = vld [vmem:[%s3 + $0x20] sm:$0xff]
        %v478 = vld [vmem:[%s3 + $0x28] sm:$0xff]
        %v479 = vld [vmem:[%s3 + $0x30] sm:$0xff]
        %v480 = vld [vmem:[%s3 + $0x38] sm:$0xff]
        %v481 = vld [vmem:[%s3 + $0x40] sm:$0xff]
        %v482 = vld [vmem:[%s3 + $0x48] sm:$0xff]
        %v483 = vld [vmem:[%s3 + $0x50] sm:$0xff]
        %v484 = vld [vmem:[%s3 + $0x58] sm:$0xff]
        %v485 = vld [vmem:[%s4] sm:$0x3f]
        %v487 = vlaneseq
        %v488 = vshrl.u32 %v487, 7
        %v489 = vsub.s32 0, %v488
        %v490 = vrot.slane %v485, %v489
        %v491 = vlaneseq
        %v492 = vshrl.u32 %v491, 7
        %v493 = vsub.s32 1, %v492
        %v494 = vrot.slane %v485, %v493
        %v495 = vlaneseq
        %v496 = vshrl.u32 %v495, 7
        %v497 = vsub.s32 2, %v496
        %v498 = vrot.slane %v485, %v497
        %v499 = vlaneseq
        %v500 = vshrl.u32 %v499, 7
        %v501 = vsub.s32 3, %v500
        %v502 = vrot.slane %v485, %v501
        %v503 = vlaneseq
        %v504 = vshrl.u32 %v503, 7
        %v505 = vsub.s32 4, %v504
        %v506 = vrot.slane %v485, %v505
        %v507 = vlaneseq
        %v508 = vshrl.u32 %v507, 7
        %v509 = vsub.s32 5, %v508
        %v510 = vrot.slane %v485, %v509
        %v533 = vunpack.c.l.b16 %v457
        %v534 = vunpack.c.l.b16 %v458
        %v535 = vunpack.c.l.b16 %v459
        %v536 = vunpack.c.l.b16 %v460
        %v537 = vunpack.c.l.b16 %v461
        %v538 = vunpack.c.l.b16 %v462
        %v539 = vunpack.c.l.b16 %v463
        %v540 = vunpack.c.l.b16 %v464
        %v541 = vunpack.c.l.b16 %v465
        %v542 = vunpack.c.l.b16 %v466
        %v543 = vunpack.c.l.b16 %v467
        %v544 = vunpack.c.l.b16 %v468
        %v545 = vunpack.c.l.b16 %v469
        %v546 = vunpack.c.l.b16 %v470
        %v547 = vunpack.c.l.b16 %v471
        %v548 = vunpack.c.l.b16 %v472
        %v549 = vpack.c.b16 %v534, %v533
        %v550 = vpack.c.b16 %v536, %v535
        %v551 = vpack.c.b16 %v538, %v537
        %v552 = vpack.c.b16 %v540, %v539
        %v553 = vpack.c.b16 %v542, %v541
        %v554 = vpack.c.b16 %v544, %v543
        %v555 = vpack.c.b16 %v546, %v545
        %v556 = vpack.c.b16 %v548, %v547
        %v569 = vunpack.c.l.b16 %v473
        %v570 = vunpack.c.h.b16 %v473
        %v571 = vunpack.c.l.b16 %v474
        %v572 = vunpack.c.h.b16 %v474
        %v573 = vunpack.c.l.b16 %v475
        %v574 = vunpack.c.h.b16 %v475
        %v575 = vunpack.c.l.b16 %v476
        %v576 = vunpack.c.h.b16 %v476
        %v577 = vunpack.c.l.b16 %v477
        %v578 = vunpack.c.h.b16 %v477
        %v579 = vunpack.c.l.b16 %v478
        %v580 = vunpack.c.h.b16 %v478
        %v581 = vunpack.c.l.b16 %v479
        %v582 = vunpack.c.h.b16 %v479
        %v583 = vunpack.c.l.b16 %v480
        %v584 = vunpack.c.h.b16 %v480
        %v585 = vunpack.c.l.b16 %v481
        %v586 = vunpack.c.h.b16 %v481
        %v587 = vunpack.c.l.b16 %v482
        %v588 = vunpack.c.h.b16 %v482
        %v589 = vunpack.c.l.b16 %v483
        %v590 = vunpack.c.h.b16 %v483
        %v591 = vunpack.c.l.b16 %v484
        %v592 = vunpack.c.h.b16 %v484
        %v593 = vpack.c.b16 %v575, %v569
        %v594 = vpack.c.b16 %v576, %v570
        %v595 = vpack.c.b16 %v577, %v571
        %v596 = vpack.c.b16 %v578, %v572
        %v597 = vpack.c.b16 %v579, %v573
        %v598 = vpack.c.b16 %v580, %v574
        %v599 = vpack.c.b16 %v587, %v581
        %v600 = vpack.c.b16 %v588, %v582
        %v601 = vpack.c.b16 %v589, %v583
        %v602 = vpack.c.b16 %v590, %v584
        %v603 = vpack.c.b16 %v591, %v585
        %v604 = vpack.c.b16 %v592, %v586
        %vm617 = vcmask 261120
        %v619 = vsel %vm617, %v549, 0
        %v622 = vsel %vm617, %v550, 0
        %v625 = vsel %vm617, %v551, 0
        %v628 = vsel %vm617, %v552, 0
        %v631 = vsel %vm617, %v553, 0
        %v634 = vsel %vm617, %v554, 0
        %v637 = vsel %vm617, %v555, 0
        %v640 = vsel %vm617, %v556, 0
        %642 = vmatprep.subr.bf16.mxu0 %v594
        %643 = vmatpush1.bf16.msra.mxu0 %v593
        %644 = vmatprep.subr.bf16.mxu0 %v600
        %645 = vmatpush1.bf16.msra.mxu0 %v599
        %646 = vmatprep.subr.bf16.mxu0 0
        %647 = vmatpush1.bf16.msra.mxu0 0
        %648 = vmatprep.subr.bf16.mxu0 0
        %649 = vmatpush1.bf16.msra.mxu0 0
        %650 = vmatprep.subr.bf16.mxu0 0
        %651 = vmatpush1.bf16.msra.mxu0 0
        %652 = vmatprep.subr.bf16.mxu0 0
        %653 = vmatpush1.bf16.msra.mxu0 0
        %654 = vmatprep.subr.bf16.mxu0 0
        %655 = vmatpush1.bf16.msra.mxu0 0
        %656 = vmatprep.subr.bf16.mxu0 0
        %657 = vmatpush1.bf16.msra.mxu0 0
        %658 = vmatprep.subr.bf16.mxu0 0
        %659 = vmatpush1.bf16.msra.mxu0 0
        %660 = vmatprep.subr.bf16.mxu0 0
        %661 = vmatpush1.bf16.msra.mxu0 0
        %662 = vmatprep.subr.bf16.mxu0 0
        %663 = vmatpush1.bf16.msra.mxu0 0
        %664 = vmatprep.subr.bf16.mxu0 0
        %665 = vmatpush1.bf16.msra.mxu0 0
        %666 = vmatprep.subr.bf16.mxu0 0
        %667 = vmatpush1.bf16.msra.mxu0 0
        %668 = vmatprep.subr.bf16.mxu0 0
        %669 = vmatpush1.bf16.msra.mxu0 0
        %670 = vmatprep.subr.bf16.mxu0 0
        %671 = vmatpush1.bf16.msra.mxu0 0
        %672 = vmatprep.subr.bf16.mxu0 0
        %673 = vmatpush1.bf16.msra.mxu0 0
        %674 = vmatprep.mubr.bf16.mxu0 0
        %675 = vmatmul.mubr.bf16.gmra.mrb[0].mxu0 %v619
        %v676 = vpop.f32.mrb[0].mxu0
        %v677 = vadd.f32 %v490, %v676
        %v678 = vpop.f32.mrb[0].mxu0
        %v679 = vadd.f32 %v494, %v678
        %v680 = vpop.f32.mrb[0].mxu0
        %v681 = vadd.f32 %v490, %v680
        %v682 = vpop.f32.mrb[0].mxu0
        %v683 = vadd.f32 %v494, %v682
        %684 = vmatprep.mubr.bf16.mxu0 0
        %685 = vmatmul.mubr.bf16.gmra.mrb[0].mxu0 %v622
        %v686 = vpop.f32.mrb[0].mxu0
        %v687 = vadd.f32 %v490, %v686
        %v688 = vpop.f32.mrb[0].mxu0
        %v689 = vadd.f32 %v494, %v688
        %v690 = vpop.f32.mrb[0].mxu0
        %v691 = vadd.f32 %v490, %v690
        %v692 = vpop.f32.mrb[0].mxu0
        %v693 = vadd.f32 %v494, %v692
        %694 = vmatprep.mubr.bf16.mxu0 0
        %695 = vmatmul.mubr.bf16.gmra.mrb[0].mxu0 %v625
        %v696 = vpop.f32.mrb[0].mxu0
        %v697 = vadd.f32 %v490, %v696
        %v698 = vpop.f32.mrb[0].mxu0
        %v699 = vadd.f32 %v494, %v698
        %v700 = vpop.f32.mrb[0].mxu0
        %v701 = vadd.f32 %v490, %v700
        %v702 = vpop.f32.mrb[0].mxu0
        %v703 = vadd.f32 %v494, %v702
        %704 = vmatprep.mubr.bf16.mxu0 0
        %705 = vmatmul.mubr.bf16.gmra.mrb[0].mxu0 %v628
        %v706 = vpop.f32.mrb[0].mxu0
        %v707 = vadd.f32 %v490, %v706
        %v708 = vpop.f32.mrb[0].mxu0
        %v709 = vadd.f32 %v494, %v708
        %v710 = vpop.f32.mrb[0].mxu0
        %v711 = vadd.f32 %v490, %v710
        %v712 = vpop.f32.mrb[0].mxu0
        %v713 = vadd.f32 %v494, %v712
        %714 = vmatprep.mubr.bf16.mxu0 0
        %715 = vmatmul.mubr.bf16.gmra.mrb[0].mxu0 %v631
        %v716 = vpop.f32.mrb[0].mxu0
        %v717 = vadd.f32 %v490, %v716
        %v718 = vpop.f32.mrb[0].mxu0
        %v719 = vadd.f32 %v494, %v718
        %v720 = vpop.f32.mrb[0].mxu0
        %v721 = vadd.f32 %v490, %v720
        %v722 = vpop.f32.mrb[0].mxu0
        %v723 = vadd.f32 %v494, %v722
        %724 = vmatprep.mubr.bf16.mxu0 0
        %725 = vmatmul.mubr.bf16.gmra.mrb[0].mxu0 %v634
        %v726 = vpop.f32.mrb[0].mxu0
        %v727 = vadd.f32 %v490, %v726
        %v728 = vpop.f32.mrb[0].mxu0
        %v729 = vadd.f32 %v494, %v728
        %v730 = vpop.f32.mrb[0].mxu0
        %v731 = vadd.f32 %v490, %v730
        %v732 = vpop.f32.mrb[0].mxu0
        %v733 = vadd.f32 %v494, %v732
        %734 = vmatprep.mubr.bf16.mxu0 0
        %735 = vmatmul.mubr.bf16.gmra.mrb[0].mxu0 %v637
        %v736 = vpop.f32.mrb[0].mxu0
        %v737 = vadd.f32 %v490, %v736
        %v738 = vpop.f32.mrb[0].mxu0
        %v739 = vadd.f32 %v494, %v738
        %v740 = vpop.f32.mrb[0].mxu0
        %v741 = vadd.f32 %v490, %v740
        %v742 = vpop.f32.mrb[0].mxu0
        %v743 = vadd.f32 %v494, %v742
        %744 = vmatprep.mubr.bf16.mxu0 0
        %745 = vmatmul.mubr.bf16.gmra.mrb[0].mxu0 %v640
        %v746 = vpop.f32.mrb[0].mxu0
        %v747 = vadd.f32 %v490, %v746
        %v748 = vpop.f32.mrb[0].mxu0
        %v749 = vadd.f32 %v494, %v748
        %v750 = vpop.f32.mrb[0].mxu0
        %v751 = vadd.f32 %v490, %v750
        %v752 = vpop.f32.mrb[0].mxu0
        %v753 = vadd.f32 %v494, %v752
        %754 = vdwg.mxu0
        %755 = vmatprep.subr.bf16.mxu0 %v596
        %756 = vmatpush1.bf16.msra.mxu0 %v595
        %757 = vmatprep.subr.bf16.mxu0 %v602
        %758 = vmatpush1.bf16.msra.mxu0 %v601
        %759 = vmatprep.subr.bf16.mxu0 0
        %760 = vmatpush1.bf16.msra.mxu0 0
        %761 = vmatprep.subr.bf16.mxu0 0
        %762 = vmatpush1.bf16.msra.mxu0 0
        %763 = vmatprep.subr.bf16.mxu0 0
        %764 = vmatpush1.bf16.msra.mxu0 0
        %765 = vmatprep.subr.bf16.mxu0 0
        %766 = vmatpush1.bf16.msra.mxu0 0
        %767 = vmatprep.subr.bf16.mxu0 0
        %768 = vmatpush1.bf16.msra.mxu0 0
        %769 = vmatprep.subr.bf16.mxu0 0
        %770 = vmatpush1.bf16.msra.mxu0 0
        %771 = vmatprep.subr.bf16.mxu0 0
        %772 = vmatpush1.bf16.msra.mxu0 0
        %773 = vmatprep.subr.bf16.mxu0 0
        %774 = vmatpush1.bf16.msra.mxu0 0
        %775 = vmatprep.subr.bf16.mxu0 0
        %776 = vmatpush1.bf16.msra.mxu0 0
        %777 = vmatprep.subr.bf16.mxu0 0
        %778 = vmatpush1.bf16.msra.mxu0 0
        %779 = vmatprep.subr.bf16.mxu0 0
        %780 = vmatpush1.bf16.msra.mxu0 0
        %781 = vmatprep.subr.bf16.mxu0 0
        %782 = vmatpush1.bf16.msra.mxu0 0
        %783 = vmatprep.subr.bf16.mxu0 0
        %784 = vmatpush1.bf16.msra.mxu0 0
        %785 = vmatprep.subr.bf16.mxu0 0
        %786 = vmatpush1.bf16.msra.mxu0 0
        %787 = vmatprep.mubr.bf16.mxu0 0
        %788 = vmatmul.mubr.bf16.gmra.mrb[0].mxu0 %v619
        %v789 = vpop.f32.mrb[0].mxu0
        %v790 = vadd.f32 %v498, %v789
        %v791 = vpop.f32.mrb[0].mxu0
        %v792 = vadd.f32 %v502, %v791
        %v793 = vpop.f32.mrb[0].mxu0
        %v794 = vadd.f32 %v498, %v793
        %v795 = vpop.f32.mrb[0].mxu0
        %v796 = vadd.f32 %v502, %v795
        %797 = vmatprep.mubr.bf16.mxu0 0
        %798 = vmatmul.mubr.bf16.gmra.mrb[0].mxu0 %v622
        %v799 = vpop.f32.mrb[0].mxu0
        %v800 = vadd.f32 %v498, %v799
        %v801 = vpop.f32.mrb[0].mxu0
        %v802 = vadd.f32 %v502, %v801
        %v803 = vpop.f32.mrb[0].mxu0
        %v804 = vadd.f32 %v498, %v803
        %v805 = vpop.f32.mrb[0].mxu0
        %v806 = vadd.f32 %v502, %v805
        %807 = vmatprep.mubr.bf16.mxu0 0
        %808 = vmatmul.mubr.bf16.gmra.mrb[0].mxu0 %v625
        %v809 = vpop.f32.mrb[0].mxu0
        %v810 = vadd.f32 %v498, %v809
        %v811 = vpop.f32.mrb[0].mxu0
        %v812 = vadd.f32 %v502, %v811
        %v813 = vpop.f32.mrb[0].mxu0
        %v814 = vadd.f32 %v498, %v813
        %v815 = vpop.f32.mrb[0].mxu0
        %v816 = vadd.f32 %v502, %v815
        %817 = vmatprep.mubr.bf16.mxu0 0
        %818 = vmatmul.mubr.bf16.gmra.mrb[0].mxu0 %v628
        %v819 = vpop.f32.mrb[0].mxu0
        %v820 = vadd.f32 %v498, %v819
        %v821 = vpop.f32.mrb[0].mxu0
        %v822 = vadd.f32 %v502, %v821
        %v823 = vpop.f32.mrb[0].mxu0
        %v824 = vadd.f32 %v498, %v823
        %v825 = vpop.f32.mrb[0].mxu0
        %v826 = vadd.f32 %v502, %v825
        %827 = vmatprep.mubr.bf16.mxu0 0
        %828 = vmatmul.mubr.bf16.gmra.mrb[0].mxu0 %v631
        %v829 = vpop.f32.mrb[0].mxu0
        %v830 = vadd.f32 %v498, %v829
        %v831 = vpop.f32.mrb[0].mxu0
        %v832 = vadd.f32 %v502, %v831
        %v833 = vpop.f32.mrb[0].mxu0
        %v834 = vadd.f32 %v498, %v833
        %v835 = vpop.f32.mrb[0].mxu0
        %v836 = vadd.f32 %v502, %v835
        %837 = vmatprep.mubr.bf16.mxu0 0
        %838 = vmatmul.mubr.bf16.gmra.mrb[0].mxu0 %v634
        %v839 = vpop.f32.mrb[0].mxu0
        %v840 = vadd.f32 %v498, %v839
        %v841 = vpop.f32.mrb[0].mxu0
        %v842 = vadd.f32 %v502, %v841
        %v843 = vpop.f32.mrb[0].mxu0
        %v844 = vadd.f32 %v498, %v843
        %v845 = vpop.f32.mrb[0].mxu0
        %v846 = vadd.f32 %v502, %v845
        %847 = vmatprep.mubr.bf16.mxu0 0
        %848 = vmatmul.mubr.bf16.gmra.mrb[0].mxu0 %v637
        %v849 = vpop.f32.mrb[0].mxu0
        %v850 = vadd.f32 %v498, %v849
        %v851 = vpop.f32.mrb[0].mxu0
        %v852 = vadd.f32 %v502, %v851
        %v853 = vpop.f32.mrb[0].mxu0
        %v854 = vadd.f32 %v498, %v853
        %v855 = vpop.f32.mrb[0].mxu0
        %v856 = vadd.f32 %v502, %v855
        %857 = vmatprep.mubr.bf16.mxu0 0
        %858 = vmatmul.mubr.bf16.gmra.mrb[0].mxu0 %v640
        %v859 = vpop.f32.mrb[0].mxu0
        %v860 = vadd.f32 %v498, %v859
        %v861 = vpop.f32.mrb[0].mxu0
        %v862 = vadd.f32 %v502, %v861
        %v863 = vpop.f32.mrb[0].mxu0
        %v864 = vadd.f32 %v498, %v863
        %v865 = vpop.f32.mrb[0].mxu0
        %v866 = vadd.f32 %v502, %v865
        %867 = vdwg.mxu0
        %868 = vmatprep.subr.bf16.mxu0 %v598
        %869 = vmatpush1.bf16.msra.mxu0 %v597
        %870 = vmatprep.subr.bf16.mxu0 %v604
        %871 = vmatpush1.bf16.msra.mxu0 %v603
        %872 = vmatprep.subr.bf16.mxu0 0
        %873 = vmatpush1.bf16.msra.mxu0 0
        %874 = vmatprep.subr.bf16.mxu0 0
        %875 = vmatpush1.bf16.msra.mxu0 0
        %876 = vmatprep.subr.bf16.mxu0 0
        %877 = vmatpush1.bf16.msra.mxu0 0
        %878 = vmatprep.subr.bf16.mxu0 0
        %879 = vmatpush1.bf16.msra.mxu0 0
        %880 = vmatprep.subr.bf16.mxu0 0
        %881 = vmatpush1.bf16.msra.mxu0 0
        %882 = vmatprep.subr.bf16.mxu0 0
        %883 = vmatpush1.bf16.msra.mxu0 0
        %884 = vmatprep.subr.bf16.mxu0 0
        %885 = vmatpush1.bf16.msra.mxu0 0
        %886 = vmatprep.subr.bf16.mxu0 0
        %887 = vmatpush1.bf16.msra.mxu0 0
        %888 = vmatprep.subr.bf16.mxu0 0
        %889 = vmatpush1.bf16.msra.mxu0 0
        %890 = vmatprep.subr.bf16.mxu0 0
        %891 = vmatpush1.bf16.msra.mxu0 0
        %892 = vmatprep.subr.bf16.mxu0 0
        %893 = vmatpush1.bf16.msra.mxu0 0
        %894 = vmatprep.subr.bf16.mxu0 0
        %895 = vmatpush1.bf16.msra.mxu0 0
        %896 = vmatprep.subr.bf16.mxu0 0
        %897 = vmatpush1.bf16.msra.mxu0 0
        %898 = vmatprep.subr.bf16.mxu0 0
        %899 = vmatpush1.bf16.msra.mxu0 0
        %900 = vmatprep.mubr.bf16.mxu0 0
        %901 = vmatmul.mubr.bf16.gmra.mrb[0].mxu0 %v619
        %v902 = vpop.f32.mrb[0].mxu0
        %v903 = vadd.f32 %v506, %v902
        %v904 = vpop.f32.mrb[0].mxu0
        %v905 = vadd.f32 %v510, %v904
        %v906 = vpop.f32.mrb[0].mxu0
        %v907 = vadd.f32 %v506, %v906
        %v908 = vpop.f32.mrb[0].mxu0
        %v909 = vadd.f32 %v510, %v908
        %910 = vmatprep.mubr.bf16.mxu0 0
        %911 = vmatmul.mubr.bf16.gmra.mrb[0].mxu0 %v622
        %v912 = vpop.f32.mrb[0].mxu0
        %v913 = vadd.f32 %v506, %v912
        %v914 = vpop.f32.mrb[0].mxu0
        %v915 = vadd.f32 %v510, %v914
        %v916 = vpop.f32.mrb[0].mxu0
        %v917 = vadd.f32 %v506, %v916
        %v918 = vpop.f32.mrb[0].mxu0
        %v919 = vadd.f32 %v510, %v918
        %920 = vmatprep.mubr.bf16.mxu0 0
        %921 = vmatmul.mubr.bf16.gmra.mrb[0].mxu0 %v625
        %v922 = vpop.f32.mrb[0].mxu0
        %v923 = vadd.f32 %v506, %v922
        %v924 = vpop.f32.mrb[0].mxu0
        %v925 = vadd.f32 %v510, %v924
        %v926 = vpop.f32.mrb[0].mxu0
        %v927 = vadd.f32 %v506, %v926
        %v928 = vpop.f32.mrb[0].mxu0
        %v929 = vadd.f32 %v510, %v928
        %930 = vmatprep.mubr.bf16.mxu0 0
        %931 = vmatmul.mubr.bf16.gmra.mrb[0].mxu0 %v628
        %v932 = vpop.f32.mrb[0].mxu0
        %v933 = vadd.f32 %v506, %v932
        %v934 = vpop.f32.mrb[0].mxu0
        %v935 = vadd.f32 %v510, %v934
        %v936 = vpop.f32.mrb[0].mxu0
        %v937 = vadd.f32 %v506, %v936
        %v938 = vpop.f32.mrb[0].mxu0
        %v939 = vadd.f32 %v510, %v938
        %940 = vmatprep.mubr.bf16.mxu0 0
        %941 = vmatmul.mubr.bf16.gmra.mrb[0].mxu0 %v631
        %v942 = vpop.f32.mrb[0].mxu0
        %v943 = vadd.f32 %v506, %v942
        %v944 = vpop.f32.mrb[0].mxu0
        %v945 = vadd.f32 %v510, %v944
        %v946 = vpop.f32.mrb[0].mxu0
        %v947 = vadd.f32 %v506, %v946
        %v948 = vpop.f32.mrb[0].mxu0
        %v949 = vadd.f32 %v510, %v948
        %950 = vmatprep.mubr.bf16.mxu0 0
        %951 = vmatmul.mubr.bf16.gmra.mrb[0].mxu0 %v634
        %v952 = vpop.f32.mrb[0].mxu0
        %v953 = vadd.f32 %v506, %v952
        %v954 = vpop.f32.mrb[0].mxu0
        %v955 = vadd.f32 %v510, %v954
        %v956 = vpop.f32.mrb[0].mxu0
        %v957 = vadd.f32 %v506, %v956
        %v958 = vpop.f32.mrb[0].mxu0
        %v959 = vadd.f32 %v510, %v958
        %960 = vmatprep.mubr.bf16.mxu0 0
        %961 = vmatmul.mubr.bf16.gmra.mrb[0].mxu0 %v637
        %v962 = vpop.f32.mrb[0].mxu0
        %v963 = vadd.f32 %v506, %v962
        %v964 = vpop.f32.mrb[0].mxu0
        %v965 = vadd.f32 %v510, %v964
        %v966 = vpop.f32.mrb[0].mxu0
        %v967 = vadd.f32 %v506, %v966
        %v968 = vpop.f32.mrb[0].mxu0
        %v969 = vadd.f32 %v510, %v968
        %970 = vmatprep.mubr.bf16.mxu0 0
        %971 = vmatmul.mubr.bf16.gmra.mrb[0].mxu0 %v640
        %v972 = vpop.f32.mrb[0].mxu0
        %v973 = vadd.f32 %v506, %v972
        %v974 = vpop.f32.mrb[0].mxu0
        %v975 = vadd.f32 %v510, %v974
        %v976 = vpop.f32.mrb[0].mxu0
        %v977 = vadd.f32 %v506, %v976
        %v978 = vpop.f32.mrb[0].mxu0
        %v979 = vadd.f32 %v510, %v978
        %980 = vdwg.mxu0
        %v981 = vpack.c.bf16 %v681, %v677
        %v982 = vpack.c.bf16 %v683, %v679
        %v983 = vpack.c.bf16 %v794, %v790
        %v984 = vpack.c.bf16 %v796, %v792
        %v985 = vpack.c.bf16 %v907, %v903
        %v986 = vpack.c.bf16 %v909, %v905
        %v987 = vpack.c.bf16 %v691, %v687
        %v988 = vpack.c.bf16 %v693, %v689
        %v989 = vpack.c.bf16 %v804, %v800
        %v990 = vpack.c.bf16 %v806, %v802
        %v991 = vpack.c.bf16 %v917, %v913
        %v992 = vpack.c.bf16 %v919, %v915
        %v993 = vpack.c.bf16 %v701, %v697
        %v994 = vpack.c.bf16 %v703, %v699
        %v995 = vpack.c.bf16 %v814, %v810
        %v996 = vpack.c.bf16 %v816, %v812
        %v997 = vpack.c.bf16 %v927, %v923
        %v998 = vpack.c.bf16 %v929, %v925
        %v999 = vpack.c.bf16 %v711, %v707
        %v1000 = vpack.c.bf16 %v713, %v709
        %v1001 = vpack.c.bf16 %v824, %v820
        %v1002 = vpack.c.bf16 %v826, %v822
        %v1003 = vpack.c.bf16 %v937, %v933
        %v1004 = vpack.c.bf16 %v939, %v935
        %v1005 = vpack.c.bf16 %v721, %v717
        %v1006 = vpack.c.bf16 %v723, %v719
        %v1007 = vpack.c.bf16 %v834, %v830
        %v1008 = vpack.c.bf16 %v836, %v832
        %v1009 = vpack.c.bf16 %v947, %v943
        %v1010 = vpack.c.bf16 %v949, %v945
        %v1011 = vpack.c.bf16 %v731, %v727
        %v1012 = vpack.c.bf16 %v733, %v729
        %v1013 = vpack.c.bf16 %v844, %v840
        %v1014 = vpack.c.bf16 %v846, %v842
        %v1015 = vpack.c.bf16 %v957, %v953
        %v1016 = vpack.c.bf16 %v959, %v955
        %v1017 = vpack.c.bf16 %v741, %v737
        %v1018 = vpack.c.bf16 %v743, %v739
        %v1019 = vpack.c.bf16 %v854, %v850
        %v1020 = vpack.c.bf16 %v856, %v852
        %v1021 = vpack.c.bf16 %v967, %v963
        %v1022 = vpack.c.bf16 %v969, %v965
        %v1023 = vpack.c.bf16 %v751, %v747
        %v1024 = vpack.c.bf16 %v753, %v749
        %v1025 = vpack.c.bf16 %v864, %v860
        %v1026 = vpack.c.bf16 %v866, %v862
        %v1027 = vpack.c.bf16 %v977, %v973
        %v1028 = vpack.c.bf16 %v979, %v975
        %1029 = vst [vmem:[#allocation2] sm:$0xff] %v981
        %1030 = vst [vmem:[#allocation2 + $0x8] sm:$0xff] %v982
        %1031 = vst [vmem:[#allocation2 + $0x10] sm:$0xff] %v983
        %1032 = vst [vmem:[#allocation2 + $0x18] sm:$0xff] %v984
        %1033 = vst [vmem:[#allocation2 + $0x20] sm:$0xff] %v985
        %1034 = vst [vmem:[#allocation2 + $0x28] sm:$0xff] %v986
        %1035 = vst [vmem:[#allocation2 + $0x30] sm:$0xff] %v987
        %1036 = vst [vmem:[#allocation2 + $0x38] sm:$0xff] %v988
        %1037 = vst [vmem:[#allocation2 + $0x40] sm:$0xff] %v989
        %1038 = vst [vmem:[#allocation2 + $0x48] sm:$0xff] %v990
        %1039 = vst [vmem:[#allocation2 + $0x50] sm:$0xff] %v991
        %1040 = vst [vmem:[#allocation2 + $0x58] sm:$0xff] %v992
        %1041 = vst [vmem:[#allocation2 + $0x60] sm:$0xff] %v993
        %1042 = vst [vmem:[#allocation2 + $0x68] sm:$0xff] %v994
        %1043 = vst [vmem:[#allocation2 + $0x70] sm:$0xff] %v995
        %1044 = vst [vmem:[#allocation2 + $0x78] sm:$0xff] %v996
        %1045 = vst [vmem:[#allocation2 + $0x80] sm:$0xff] %v997
        %1046 = vst [vmem:[#allocation2 + $0x88] sm:$0xff] %v998
        %1047 = vst [vmem:[#allocation2 + $0x90] sm:$0xff] %v999
        %1048 = vst [vmem:[#allocation2 + $0x98] sm:$0xff] %v1000
        %1049 = vst [vmem:[#allocation2 + $0xa0] sm:$0xff] %v1001
        %1050 = vst [vmem:[#allocation2 + $0xa8] sm:$0xff] %v1002
        %1051 = vst [vmem:[#allocation2 + $0xb0] sm:$0xff] %v1003
        %1052 = vst [vmem:[#allocation2 + $0xb8] sm:$0xff] %v1004
        %1053 = vst [vmem:[#allocation2 + $0xc0] sm:$0xff] %v1005
        %1054 = vst [vmem:[#allocation2 + $0xc8] sm:$0xff] %v1006
        %1055 = vst [vmem:[#allocation2 + $0xd0] sm:$0xff] %v1007
        %1056 = vst [vmem:[#allocation2 + $0xd8] sm:$0xff] %v1008
        %1057 = vst [vmem:[#allocation2 + $0xe0] sm:$0xff] %v1009
        %1058 = vst [vmem:[#allocation2 + $0xe8] sm:$0xff] %v1010
        %1059 = vst [vmem:[#allocation2 + $0xf0] sm:$0xff] %v1011
        %1060 = vst [vmem:[#allocation2 + $0xf8] sm:$0xff] %v1012
        %1061 = vst [vmem:[#allocation2 + $0x100] sm:$0xff] %v1013
        %1062 = vst [vmem:[#allocation2 + $0x108] sm:$0xff] %v1014
        %1063 = vst [vmem:[#allocation2 + $0x110] sm:$0xff] %v1015
        %1064 = vst [vmem:[#allocation2 + $0x118] sm:$0xff] %v1016
        %1065 = vst [vmem:[#allocation2 + $0x120] sm:$0xff] %v1017
        %1066 = vst [vmem:[#allocation2 + $0x128] sm:$0xff] %v1018
        %1067 = vst [vmem:[#allocation2 + $0x130] sm:$0xff] %v1019
        %1068 = vst [vmem:[#allocation2 + $0x138] sm:$0xff] %v1020
        %1069 = vst [vmem:[#allocation2 + $0x140] sm:$0xff] %v1021
        %1070 = vst [vmem:[#allocation2 + $0x148] sm:$0xff] %v1022
        %1071 = vst [vmem:[#allocation2 + $0x150] sm:$0xff] %v1023
        %1072 = vst [vmem:[#allocation2 + $0x158] sm:$0xff] %v1024
        %1073 = vst [vmem:[#allocation2 + $0x160] sm:$0xff] %v1025
        %1074 = vst [vmem:[#allocation2 + $0x168] sm:$0xff] %v1026
        %1075 = vst [vmem:[#allocation2 + $0x170] sm:$0xff] %v1027
        %1076 = vst [vmem:[#allocation2 + $0x178] sm:$0xff] %v1028
        %v1077 = vld [vmem:[%s2] sm:$0xff]
        %v1078 = vld [vmem:[%s2 + $0x8] sm:$0xff]
        %v1079 = vld [vmem:[%s2 + $0x10] sm:$0xff]
        %v1080 = vld [vmem:[%s2 + $0x18] sm:$0xff]
        %v1081 = vld [vmem:[%s2 + $0x20] sm:$0xff]
        %v1082 = vld [vmem:[%s2 + $0x28] sm:$0xff]
        %v1083 = vld [vmem:[%s2 + $0x30] sm:$0xff]
        %v1084 = vld [vmem:[%s2 + $0x38] sm:$0xff]
        %v1085 = vld [vmem:[%s2 + $0x40] sm:$0xff]
        %v1086 = vld [vmem:[%s2 + $0x48] sm:$0xff]
        %v1087 = vld [vmem:[%s2 + $0x50] sm:$0xff]
        %v1088 = vld [vmem:[%s2 + $0x58] sm:$0xff]
        %v1089 = vld [vmem:[%s2 + $0x60] sm:$0xff]
        %v1090 = vld [vmem:[%s2 + $0x68] sm:$0xff]
        %v1091 = vld [vmem:[%s2 + $0x70] sm:$0xff]
        %v1092 = vld [vmem:[%s2 + $0x78] sm:$0xff]
        %v1093 = vld [vmem:[%s455] sm:$0x1]
        %v1095 = vlaneseq
        %v1096 = vshrl.u32 %v1095, 7
        %v1097 = vsub.s32 0, %v1096
        %v1098 = vrot.slane %v1093, %v1097
        %v1100 = vmul.f32 %v1077, %v1098
        %v1101 = vmul.f32 %v1078, %v1098
        %v1102 = vmul.f32 %v1079, %v1098
        %v1103 = vmul.f32 %v1080, %v1098
        %v1104 = vmul.f32 %v1081, %v1098
        %v1105 = vmul.f32 %v1082, %v1098
        %v1106 = vmul.f32 %v1083, %v1098
        %v1107 = vmul.f32 %v1084, %v1098
        %v1108 = vmul.f32 %v1085, %v1098
        %v1109 = vmul.f32 %v1086, %v1098
        %v1110 = vmul.f32 %v1087, %v1098
        %v1111 = vmul.f32 %v1088, %v1098
        %v1112 = vmul.f32 %v1089, %v1098
        %v1113 = vmul.f32 %v1090, %v1098
        %v1114 = vmul.f32 %v1091, %v1098
        %v1115 = vmul.f32 %v1092, %v1098
        %vm1116 = vcmp.gt.f32.partialorder %v1100, 0.5
        %vm1117 = vcmp.gt.f32.partialorder %v1101, 0.5
        %vm1118 = vcmp.gt.f32.partialorder %v1102, 0.5
        %vm1119 = vcmp.gt.f32.partialorder %v1103, 0.5
        %vm1120 = vcmp.gt.f32.partialorder %v1104, 0.5
        %vm1121 = vcmp.gt.f32.partialorder %v1105, 0.5
        %vm1122 = vcmp.gt.f32.partialorder %v1106, 0.5
        %vm1123 = vcmp.gt.f32.partialorder %v1107, 0.5
        %vm1124 = vcmp.gt.f32.partialorder %v1108, 0.5
        %vm1125 = vcmp.gt.f32.partialorder %v1109, 0.5
        %vm1126 = vcmp.gt.f32.partialorder %v1110, 0.5
        %vm1127 = vcmp.gt.f32.partialorder %v1111, 0.5
        %vm1128 = vcmp.gt.f32.partialorder %v1112, 0.5
        %vm1129 = vcmp.gt.f32.partialorder %v1113, 0.5
        %vm1130 = vcmp.gt.f32.partialorder %v1114, 0.5
        %vm1131 = vcmp.gt.f32.partialorder %v1115, 0.5
        %v1132 = vsel %vm1116, 0.0, -1e+30
        %v1133 = vsel %vm1117, 0.0, -1e+30
        %v1134 = vsel %vm1118, 0.0, -1e+30
        %v1135 = vsel %vm1119, 0.0, -1e+30
        %v1136 = vsel %vm1120, 0.0, -1e+30
        %v1137 = vsel %vm1121, 0.0, -1e+30
        %v1138 = vsel %vm1122, 0.0, -1e+30
        %v1139 = vsel %vm1123, 0.0, -1e+30
        %v1140 = vsel %vm1124, 0.0, -1e+30
        %v1141 = vsel %vm1125, 0.0, -1e+30
        %v1142 = vsel %vm1126, 0.0, -1e+30
        %v1143 = vsel %vm1127, 0.0, -1e+30
        %v1144 = vsel %vm1128, 0.0, -1e+30
        %v1145 = vsel %vm1129, 0.0, -1e+30
        %v1146 = vsel %vm1130, 0.0, -1e+30
        %v1147 = vsel %vm1131, 0.0, -1e+30
        %v1148 = vld [vmem:[#allocation2] sm:$0xff]
        %v1149 = vld [vmem:[#allocation2 + $0x30] sm:$0xff]
        %v1150 = vld [vmem:[#allocation2 + $0x60] sm:$0xff]
        %v1151 = vld [vmem:[#allocation2 + $0x90] sm:$0xff]
        %v1152 = vld [vmem:[#allocation2 + $0xc0] sm:$0xff]
        %v1153 = vld [vmem:[#allocation2 + $0xf0] sm:$0xff]
        %v1154 = vld [vmem:[#allocation2 + $0x120] sm:$0xff]
        %v1155 = vld [vmem:[#allocation2 + $0x150] sm:$0xff]
        %v1156 = vld [vmem:[#allocation2 + $0x8] sm:$0xff]
        %v1157 = vld [vmem:[#allocation2 + $0x38] sm:$0xff]
        %v1158 = vld [vmem:[#allocation2 + $0x68] sm:$0xff]
        %v1159 = vld [vmem:[#allocation2 + $0x98] sm:$0xff]
        %v1160 = vld [vmem:[#allocation2 + $0xc8] sm:$0xff]
        %v1161 = vld [vmem:[#allocation2 + $0xf8] sm:$0xff]
        %v1162 = vld [vmem:[#allocation2 + $0x128] sm:$0xff]
        %v1163 = vld [vmem:[#allocation2 + $0x158] sm:$0xff]
        %v1164 = vld [vmem:[#allocation2 + $0x10] sm:$0xff]
        %v1165 = vld [vmem:[#allocation2 + $0x40] sm:$0xff]
        %v1166 = vld [vmem:[#allocation2 + $0x70] sm:$0xff]
        %v1167 = vld [vmem:[#allocation2 + $0xa0] sm:$0xff]
        %v1168 = vld [vmem:[#allocation2 + $0xd0] sm:$0xff]
        %v1169 = vld [vmem:[#allocation2 + $0x100] sm:$0xff]
        %v1170 = vld [vmem:[#allocation2 + $0x130] sm:$0xff]
        %v1171 = vld [vmem:[#allocation2 + $0x160] sm:$0xff]
        %1172 = vmatprep.subr.bf16.mxu0 0
        %1173 = vmatpush1.bf16.xpose.msra.mxu0 %v1156
        %1174 = vmatprep.subr.bf16.mxu0 0
        %1175 = vmatpush1.bf16.xpose.msra.mxu0 %v1157
        %1176 = vmatprep.subr.bf16.mxu0 0
        %1177 = vmatpush1.bf16.xpose.msra.mxu0 %v1158
        %1178 = vmatprep.subr.bf16.mxu0 0
        %1179 = vmatpush1.bf16.xpose.msra.mxu0 %v1159
        %1180 = vmatprep.subr.bf16.mxu0 0
        %1181 = vmatpush1.bf16.xpose.msra.mxu0 %v1160
        %1182 = vmatprep.subr.bf16.mxu0 0
        %1183 = vmatpush1.bf16.xpose.msra.mxu0 %v1161
        %1184 = vmatprep.subr.bf16.mxu0 0
        %1185 = vmatpush1.bf16.xpose.msra.mxu0 %v1162
        %1186 = vmatprep.subr.bf16.mxu0 0
        %1187 = vmatpush1.bf16.xpose.msra.mxu0 %v1163
        %1188 = vmatprep.subr.bf16.mxu0 0
        %1189 = vmatpush1.bf16.xpose.msra.mxu0 0
        %1190 = vmatprep.subr.bf16.mxu0 0
        %1191 = vmatpush1.bf16.xpose.msra.mxu0 0
        %1192 = vmatprep.subr.bf16.mxu0 0
        %1193 = vmatpush1.bf16.xpose.msra.mxu0 0
        %1194 = vmatprep.subr.bf16.mxu0 0
        %1195 = vmatpush1.bf16.xpose.msra.mxu0 0
        %1196 = vmatprep.subr.bf16.mxu0 0
        %1197 = vmatpush1.bf16.xpose.msra.mxu0 0
        %1198 = vmatprep.subr.bf16.mxu0 0
        %1199 = vmatpush1.bf16.xpose.msra.mxu0 0
        %1200 = vmatprep.subr.bf16.mxu0 0
        %1201 = vmatpush1.bf16.xpose.msra.mxu0 0
        %1202 = vmatprep.subr.bf16.mxu0 0
        %1203 = vmatpush1.bf16.xpose.msra.mxu0 0
        %1204 = vmatprep.mubr.bf16.mxu0 0
        %1205 = vmatmul.mubr.bf16.gmra.mrb[0].mxu0 %v1148
        %v1206 = vpop.f32.mrb[0].mxu0
        %v1207 = vadd.f32 %v1132, %v1206
        %v1208 = vpop.f32.mrb[0].mxu0
        %v1209 = vpop.f32.mrb[0].mxu0
        %v1210 = vadd.f32 %v1133, %v1209
        %v1211 = vpop.f32.mrb[0].mxu0
        %1212 = vmatprep.mubr.bf16.mxu0 0
        %1213 = vmatmul.mubr.bf16.gmra.mrb[0].mxu0 %v1149
        %v1214 = vpop.f32.mrb[0].mxu0
        %v1215 = vadd.f32 %v1134, %v1214
        %v1216 = vpop.f32.mrb[0].mxu0
        %v1217 = vpop.f32.mrb[0].mxu0
        %v1218 = vadd.f32 %v1135, %v1217
        %v1219 = vpop.f32.mrb[0].mxu0
        %1220 = vmatprep.mubr.bf16.mxu0 0
        %1221 = vmatmul.mubr.bf16.gmra.mrb[0].mxu0 %v1150
        %v1222 = vpop.f32.mrb[0].mxu0
        %v1223 = vadd.f32 %v1136, %v1222
        %v1224 = vpop.f32.mrb[0].mxu0
        %v1225 = vpop.f32.mrb[0].mxu0
        %v1226 = vadd.f32 %v1137, %v1225
        %v1227 = vpop.f32.mrb[0].mxu0
        %1228 = vmatprep.mubr.bf16.mxu0 0
        %1229 = vmatmul.mubr.bf16.gmra.mrb[0].mxu0 %v1151
        %v1230 = vpop.f32.mrb[0].mxu0
        %v1231 = vadd.f32 %v1138, %v1230
        %v1232 = vpop.f32.mrb[0].mxu0
        %v1233 = vpop.f32.mrb[0].mxu0
        %v1234 = vadd.f32 %v1139, %v1233
        %v1235 = vpop.f32.mrb[0].mxu0
        %1236 = vmatprep.mubr.bf16.mxu0 0
        %1237 = vmatmul.mubr.bf16.gmra.mrb[0].mxu0 %v1152
        %v1238 = vpop.f32.mrb[0].mxu0
        %v1239 = vadd.f32 %v1140, %v1238
        %v1240 = vpop.f32.mrb[0].mxu0
        %v1241 = vpop.f32.mrb[0].mxu0
        %v1242 = vadd.f32 %v1141, %v1241
        %v1243 = vpop.f32.mrb[0].mxu0
        %1244 = vmatprep.mubr.bf16.mxu0 0
        %1245 = vmatmul.mubr.bf16.gmra.mrb[0].mxu0 %v1153
        %v1246 = vpop.f32.mrb[0].mxu0
        %v1247 = vadd.f32 %v1142, %v1246
        %v1248 = vpop.f32.mrb[0].mxu0
        %v1249 = vpop.f32.mrb[0].mxu0
        %v1250 = vadd.f32 %v1143, %v1249
        %v1251 = vpop.f32.mrb[0].mxu0
        %1252 = vmatprep.mubr.bf16.mxu0 0
        %1253 = vmatmul.mubr.bf16.gmra.mrb[0].mxu0 %v1154
        %v1254 = vpop.f32.mrb[0].mxu0
        %v1255 = vadd.f32 %v1144, %v1254
        %v1256 = vpop.f32.mrb[0].mxu0
        %v1257 = vpop.f32.mrb[0].mxu0
        %v1258 = vadd.f32 %v1145, %v1257
        %v1259 = vpop.f32.mrb[0].mxu0
        %1260 = vmatprep.mubr.bf16.mxu0 0
        %1261 = vmatmul.mubr.bf16.gmra.mrb[0].mxu0 %v1155
        %v1262 = vpop.f32.mrb[0].mxu0
        %v1263 = vadd.f32 %v1146, %v1262
        %v1264 = vpop.f32.mrb[0].mxu0
        %v1265 = vpop.f32.mrb[0].mxu0
        %v1266 = vadd.f32 %v1147, %v1265
        %v1267 = vpop.f32.mrb[0].mxu0
        %1268 = vdwg.mxu0
        %1269 = vmax.xlane.f32.xlu0 %v1207
        %v1270 = vpop.xlane.xlu0 %1269
        %1271 = vmax.xlane.f32.xlu0 %v1210
        %v1272 = vpop.xlane.xlu0 %1271
        %1273 = vmax.xlane.f32.xlu0 %v1215
        %v1274 = vpop.xlane.xlu0 %1273
        %1275 = vmax.xlane.f32.xlu0 %v1218
        %v1276 = vpop.xlane.xlu0 %1275
        %1277 = vmax.xlane.f32.xlu0 %v1223
        %v1278 = vpop.xlane.xlu0 %1277
        %1279 = vmax.xlane.f32.xlu0 %v1226
        %v1280 = vpop.xlane.xlu0 %1279
        %1281 = vmax.xlane.f32.xlu0 %v1231
        %v1282 = vpop.xlane.xlu0 %1281
        %1283 = vmax.xlane.f32.xlu0 %v1234
        %v1284 = vpop.xlane.xlu0 %1283
        %1285 = vmax.xlane.f32.xlu0 %v1239
        %v1286 = vpop.xlane.xlu0 %1285
        %1287 = vmax.xlane.f32.xlu0 %v1242
        %v1288 = vpop.xlane.xlu0 %1287
        %1289 = vmax.xlane.f32.xlu0 %v1247
        %v1290 = vpop.xlane.xlu0 %1289
        %1291 = vmax.xlane.f32.xlu0 %v1250
        %v1292 = vpop.xlane.xlu0 %1291
        %1293 = vmax.xlane.f32.xlu0 %v1255
        %v1294 = vpop.xlane.xlu0 %1293
        %1295 = vmax.xlane.f32.xlu0 %v1258
        %v1296 = vpop.xlane.xlu0 %1295
        %1297 = vmax.xlane.f32.xlu0 %v1263
        %v1298 = vpop.xlane.xlu0 %1297
        %1299 = vmax.xlane.f32.xlu0 %v1266
        %v1300 = vpop.xlane.xlu0 %1299
        %v1301 = vsub.f32 %v1207, %v1270
        %v1302 = vsub.f32 %v1210, %v1272
        %v1303 = vsub.f32 %v1215, %v1274
        %v1304 = vsub.f32 %v1218, %v1276
        %v1305 = vsub.f32 %v1223, %v1278
        %v1306 = vsub.f32 %v1226, %v1280
        %v1307 = vsub.f32 %v1231, %v1282
        %v1308 = vsub.f32 %v1234, %v1284
        %v1309 = vsub.f32 %v1239, %v1286
        %v1310 = vsub.f32 %v1242, %v1288
        %v1311 = vsub.f32 %v1247, %v1290
        %v1312 = vsub.f32 %v1250, %v1292
        %v1313 = vsub.f32 %v1255, %v1294
        %v1314 = vsub.f32 %v1258, %v1296
        %v1315 = vsub.f32 %v1263, %v1298
        %v1316 = vsub.f32 %v1266, %v1300
        %v1317 = vmul.f32 %v1301, 1.442695
        %v1318 = vpow.pop %v1317
        %v1319 = vmul.f32 %v1302, 1.442695
        %v1320 = vpow.pop %v1319
        %v1321 = vmul.f32 %v1303, 1.442695
        %v1322 = vpow.pop %v1321
        %v1323 = vmul.f32 %v1304, 1.442695
        %v1324 = vpow.pop %v1323
        %v1325 = vmul.f32 %v1305, 1.442695
        %v1326 = vpow.pop %v1325
        %v1327 = vmul.f32 %v1306, 1.442695
        %v1328 = vpow.pop %v1327
        %v1329 = vmul.f32 %v1307, 1.442695
        %v1330 = vpow.pop %v1329
        %v1331 = vmul.f32 %v1308, 1.442695
        %v1332 = vpow.pop %v1331
        %v1333 = vmul.f32 %v1309, 1.442695
        %v1334 = vpow.pop %v1333
        %v1335 = vmul.f32 %v1310, 1.442695
        %v1336 = vpow.pop %v1335
        %v1337 = vmul.f32 %v1311, 1.442695
        %v1338 = vpow.pop %v1337
        %v1339 = vmul.f32 %v1312, 1.442695
        %v1340 = vpow.pop %v1339
        %v1341 = vmul.f32 %v1313, 1.442695
        %v1342 = vpow.pop %v1341
        %v1343 = vmul.f32 %v1314, 1.442695
        %v1344 = vpow.pop %v1343
        %v1345 = vmul.f32 %v1315, 1.442695
        %v1346 = vpow.pop %v1345
        %v1347 = vmul.f32 %v1316, 1.442695
        %v1348 = vpow.pop %v1347
        %1349 = vadd.xlane.f32.xlu0 %v1318
        %v1350 = vpop.xlane.xlu0 %1349
        %1351 = vadd.xlane.f32.xlu0 %v1320
        %v1352 = vpop.xlane.xlu0 %1351
        %1353 = vadd.xlane.f32.xlu0 %v1322
        %v1354 = vpop.xlane.xlu0 %1353
        %1355 = vadd.xlane.f32.xlu0 %v1324
        %v1356 = vpop.xlane.xlu0 %1355
        %1357 = vadd.xlane.f32.xlu0 %v1326
        %v1358 = vpop.xlane.xlu0 %1357
        %1359 = vadd.xlane.f32.xlu0 %v1328
        %v1360 = vpop.xlane.xlu0 %1359
        %1361 = vadd.xlane.f32.xlu0 %v1330
        %v1362 = vpop.xlane.xlu0 %1361
        %1363 = vadd.xlane.f32.xlu0 %v1332
        %v1364 = vpop.xlane.xlu0 %1363
        %1365 = vadd.xlane.f32.xlu0 %v1334
        %v1366 = vpop.xlane.xlu0 %1365
        %1367 = vadd.xlane.f32.xlu0 %v1336
        %v1368 = vpop.xlane.xlu0 %1367
        %1369 = vadd.xlane.f32.xlu0 %v1338
        %v1370 = vpop.xlane.xlu0 %1369
        %1371 = vadd.xlane.f32.xlu0 %v1340
        %v1372 = vpop.xlane.xlu0 %1371
        %1373 = vadd.xlane.f32.xlu0 %v1342
        %v1374 = vpop.xlane.xlu0 %1373
        %1375 = vadd.xlane.f32.xlu0 %v1344
        %v1376 = vpop.xlane.xlu0 %1375
        %1377 = vadd.xlane.f32.xlu0 %v1346
        %v1378 = vpop.xlane.xlu0 %1377
        %1379 = vadd.xlane.f32.xlu0 %v1348
        %v1380 = vpop.xlane.xlu0 %1379
        %v1381 = vrcp.pop %v1350
        %v1382 = vrcp.pop %v1352
        %v1383 = vrcp.pop %v1354
        %v1384 = vrcp.pop %v1356
        %v1385 = vrcp.pop %v1358
        %v1386 = vrcp.pop %v1360
        %v1387 = vrcp.pop %v1362
        %v1388 = vrcp.pop %v1364
        %v1389 = vrcp.pop %v1366
        %v1390 = vrcp.pop %v1368
        %v1391 = vrcp.pop %v1370
        %v1392 = vrcp.pop %v1372
        %v1393 = vrcp.pop %v1374
        %v1394 = vrcp.pop %v1376
        %v1395 = vrcp.pop %v1378
        %v1396 = vrcp.pop %v1380
        %v1397 = vmul.f32 %v1318, %v1381
        %v1398 = vmul.f32 %v1320, %v1382
        %v1399 = vmul.f32 %v1322, %v1383
        %v1400 = vmul.f32 %v1324, %v1384
        %v1401 = vmul.f32 %v1326, %v1385
        %v1402 = vmul.f32 %v1328, %v1386
        %v1403 = vmul.f32 %v1330, %v1387
        %v1404 = vmul.f32 %v1332, %v1388
        %v1405 = vmul.f32 %v1334, %v1389
        %v1406 = vmul.f32 %v1336, %v1390
        %v1407 = vmul.f32 %v1338, %v1391
        %v1408 = vmul.f32 %v1340, %v1392
        %v1409 = vmul.f32 %v1342, %v1393
        %v1410 = vmul.f32 %v1344, %v1394
        %v1411 = vmul.f32 %v1346, %v1395
        %v1412 = vmul.f32 %v1348, %v1396
        %v1413 = vpack.c.bf16 %v1398, %v1397
        %v1414 = vpack.c.bf16 %v1400, %v1399
        %v1415 = vpack.c.bf16 %v1402, %v1401
        %v1416 = vpack.c.bf16 %v1404, %v1403
        %v1417 = vpack.c.bf16 %v1406, %v1405
        %v1418 = vpack.c.bf16 %v1408, %v1407
        %v1419 = vpack.c.bf16 %v1410, %v1409
        %v1420 = vpack.c.bf16 %v1412, %v1411
        %1421 = vmatprep.subr.bf16.mxu0 0
        %1422 = vmatpush1.bf16.msra.mxu0 %v1164
        %1423 = vmatprep.subr.bf16.mxu0 0
        %1424 = vmatpush1.bf16.msra.mxu0 %v1165
        %1425 = vmatprep.subr.bf16.mxu0 0
        %1426 = vmatpush1.bf16.msra.mxu0 %v1166
        %1427 = vmatprep.subr.bf16.mxu0 0
        %1428 = vmatpush1.bf16.msra.mxu0 %v1167
        %1429 = vmatprep.subr.bf16.mxu0 0
        %1430 = vmatpush1.bf16.msra.mxu0 %v1168
        %1431 = vmatprep.subr.bf16.mxu0 0
        %1432 = vmatpush1.bf16.msra.mxu0 %v1169
        %1433 = vmatprep.subr.bf16.mxu0 0
        %1434 = vmatpush1.bf16.msra.mxu0 %v1170
        %1435 = vmatprep.subr.bf16.mxu0 0
        %1436 = vmatpush1.bf16.msra.mxu0 %v1171
        %1437 = vmatprep.subr.bf16.mxu0 0
        %1438 = vmatpush1.bf16.msra.mxu0 0
        %1439 = vmatprep.subr.bf16.mxu0 0
        %1440 = vmatpush1.bf16.msra.mxu0 0
        %1441 = vmatprep.subr.bf16.mxu0 0
        %1442 = vmatpush1.bf16.msra.mxu0 0
        %1443 = vmatprep.subr.bf16.mxu0 0
        %1444 = vmatpush1.bf16.msra.mxu0 0
        %1445 = vmatprep.subr.bf16.mxu0 0
        %1446 = vmatpush1.bf16.msra.mxu0 0
        %1447 = vmatprep.subr.bf16.mxu0 0
        %1448 = vmatpush1.bf16.msra.mxu0 0
        %1449 = vmatprep.subr.bf16.mxu0 0
        %1450 = vmatpush1.bf16.msra.mxu0 0
        %1451 = vmatprep.subr.bf16.mxu0 0
        %1452 = vmatpush1.bf16.msra.mxu0 0
        %1453 = vmatprep.mubr.bf16.mxu0 0
        %1454 = vmatmul.mubr.bf16.gmra.mrb[0].mxu0 %v1413
        %v1455 = vpop.f32.mrb[0].mxu0
        %v1456 = vadd.f32 0.0, %v1455
        %v1457 = vpop.f32.mrb[0].mxu0
        %v1458 = vpop.f32.mrb[0].mxu0
        %v1459 = vadd.f32 0.0, %v1458
        %v1460 = vpop.f32.mrb[0].mxu0
        %1461 = vmatprep.mubr.bf16.mxu0 0
        %1462 = vmatmul.mubr.bf16.gmra.mrb[0].mxu0 %v1414
        %v1463 = vpop.f32.mrb[0].mxu0
        %v1464 = vadd.f32 0.0, %v1463
        %v1465 = vpop.f32.mrb[0].mxu0
        %v1466 = vpop.f32.mrb[0].mxu0
        %v1467 = vadd.f32 0.0, %v1466
        %v1468 = vpop.f32.mrb[0].mxu0
        %1469 = vmatprep.mubr.bf16.mxu0 0
        %1470 = vmatmul.mubr.bf16.gmra.mrb[0].mxu0 %v1415
        %v1471 = vpop.f32.mrb[0].mxu0
        %v1472 = vadd.f32 0.0, %v1471
        %v1473 = vpop.f32.mrb[0].mxu0
        %v1474 = vpop.f32.mrb[0].mxu0
        %v1475 = vadd.f32 0.0, %v1474
        %v1476 = vpop.f32.mrb[0].mxu0
        %1477 = vmatprep.mubr.bf16.mxu0 0
        %1478 = vmatmul.mubr.bf16.gmra.mrb[0].mxu0 %v1416
        %v1479 = vpop.f32.mrb[0].mxu0
        %v1480 = vadd.f32 0.0, %v1479
        %v1481 = vpop.f32.mrb[0].mxu0
        %v1482 = vpop.f32.mrb[0].mxu0
        %v1483 = vadd.f32 0.0, %v1482
        %v1484 = vpop.f32.mrb[0].mxu0
        %1485 = vmatprep.mubr.bf16.mxu0 0
        %1486 = vmatmul.mubr.bf16.gmra.mrb[0].mxu0 %v1417
        %v1487 = vpop.f32.mrb[0].mxu0
        %v1488 = vadd.f32 0.0, %v1487
        %v1489 = vpop.f32.mrb[0].mxu0
        %v1490 = vpop.f32.mrb[0].mxu0
        %v1491 = vadd.f32 0.0, %v1490
        %v1492 = vpop.f32.mrb[0].mxu0
        %1493 = vmatprep.mubr.bf16.mxu0 0
        %1494 = vmatmul.mubr.bf16.gmra.mrb[0].mxu0 %v1418
        %v1495 = vpop.f32.mrb[0].mxu0
        %v1496 = vadd.f32 0.0, %v1495
        %v1497 = vpop.f32.mrb[0].mxu0
        %v1498 = vpop.f32.mrb[0].mxu0
        %v1499 = vadd.f32 0.0, %v1498
        %v1500 = vpop.f32.mrb[0].mxu0
        %1501 = vmatprep.mubr.bf16.mxu0 0
        %1502 = vmatmul.mubr.bf16.gmra.mrb[0].mxu0 %v1419
        %v1503 = vpop.f32.mrb[0].mxu0
        %v1504 = vadd.f32 0.0, %v1503
        %v1505 = vpop.f32.mrb[0].mxu0
        %v1506 = vpop.f32.mrb[0].mxu0
        %v1507 = vadd.f32 0.0, %v1506
        %v1508 = vpop.f32.mrb[0].mxu0
        %1509 = vmatprep.mubr.bf16.mxu0 0
        %1510 = vmatmul.mubr.bf16.gmra.mrb[0].mxu0 %v1420
        %v1511 = vpop.f32.mrb[0].mxu0
        %v1512 = vadd.f32 0.0, %v1511
        %v1513 = vpop.f32.mrb[0].mxu0
        %v1514 = vpop.f32.mrb[0].mxu0
        %v1515 = vadd.f32 0.0, %v1514
        %v1516 = vpop.f32.mrb[0].mxu0
        %1517 = vdwg.mxu0
        %v1518 = vpack.c.bf16 %v1459, %v1456
        %v1519 = vpack.c.bf16 %v1467, %v1464
        %v1520 = vpack.c.bf16 %v1475, %v1472
        %v1521 = vpack.c.bf16 %v1483, %v1480
        %v1522 = vpack.c.bf16 %v1491, %v1488
        %v1523 = vpack.c.bf16 %v1499, %v1496
        %v1524 = vpack.c.bf16 %v1507, %v1504
        %v1525 = vpack.c.bf16 %v1515, %v1512
        %1526 = vst [vmem:[#allocation3] sm:$0xff] %v1518
        %1527 = vst [vmem:[#allocation3 + $0x10] sm:$0xff] %v1519
        %1528 = vst [vmem:[#allocation3 + $0x20] sm:$0xff] %v1520
        %1529 = vst [vmem:[#allocation3 + $0x30] sm:$0xff] %v1521
        %1530 = vst [vmem:[#allocation3 + $0x40] sm:$0xff] %v1522
        %1531 = vst [vmem:[#allocation3 + $0x50] sm:$0xff] %v1523
        %1532 = vst [vmem:[#allocation3 + $0x60] sm:$0xff] %v1524
        %1533 = vst [vmem:[#allocation3 + $0x70] sm:$0xff] %v1525
        %v1534 = vld [vmem:[#allocation2 + $0x18] sm:$0xff]
        %v1535 = vld [vmem:[#allocation2 + $0x48] sm:$0xff]
        %v1536 = vld [vmem:[#allocation2 + $0x78] sm:$0xff]
        %v1537 = vld [vmem:[#allocation2 + $0xa8] sm:$0xff]
        %v1538 = vld [vmem:[#allocation2 + $0xd8] sm:$0xff]
        %v1539 = vld [vmem:[#allocation2 + $0x108] sm:$0xff]
        %v1540 = vld [vmem:[#allocation2 + $0x138] sm:$0xff]
        %v1541 = vld [vmem:[#allocation2 + $0x168] sm:$0xff]
        %v1542 = vld [vmem:[#allocation2 + $0x20] sm:$0xff]
        %v1543 = vld [vmem:[#allocation2 + $0x50] sm:$0xff]
        %v1544 = vld [vmem:[#allocation2 + $0x80] sm:$0xff]
        %v1545 = vld [vmem:[#allocation2 + $0xb0] sm:$0xff]
        %v1546 = vld [vmem:[#allocation2 + $0xe0] sm:$0xff]
        %v1547 = vld [vmem:[#allocation2 + $0x110] sm:$0xff]
        %v1548 = vld [vmem:[#allocation2 + $0x140] sm:$0xff]
        %v1549 = vld [vmem:[#allocation2 + $0x170] sm:$0xff]
        %v1550 = vld [vmem:[#allocation2 + $0x28] sm:$0xff]
        %v1551 = vld [vmem:[#allocation2 + $0x58] sm:$0xff]
        %v1552 = vld [vmem:[#allocation2 + $0x88] sm:$0xff]
        %v1553 = vld [vmem:[#allocation2 + $0xb8] sm:$0xff]
        %v1554 = vld [vmem:[#allocation2 + $0xe8] sm:$0xff]
        %v1555 = vld [vmem:[#allocation2 + $0x118] sm:$0xff]
        %v1556 = vld [vmem:[#allocation2 + $0x148] sm:$0xff]
        %v1557 = vld [vmem:[#allocation2 + $0x178] sm:$0xff]
        %1558 = vmatprep.subr.bf16.mxu0 0
        %1559 = vmatpush1.bf16.xpose.msra.mxu0 %v1542
        %1560 = vmatprep.subr.bf16.mxu0 0
        %1561 = vmatpush1.bf16.xpose.msra.mxu0 %v1543
        %1562 = vmatprep.subr.bf16.mxu0 0
        %1563 = vmatpush1.bf16.xpose.msra.mxu0 %v1544
        %1564 = vmatprep.subr.bf16.mxu0 0
        %1565 = vmatpush1.bf16.xpose.msra.mxu0 %v1545
        %1566 = vmatprep.subr.bf16.mxu0 0
        %1567 = vmatpush1.bf16.xpose.msra.mxu0 %v1546
        %1568 = vmatprep.subr.bf16.mxu0 0
        %1569 = vmatpush1.bf16.xpose.msra.mxu0 %v1547
        %1570 = vmatprep.subr.bf16.mxu0 0
        %1571 = vmatpush1.bf16.xpose.msra.mxu0 %v1548
        %1572 = vmatprep.subr.bf16.mxu0 0
        %1573 = vmatpush1.bf16.xpose.msra.mxu0 %v1549
        %1574 = vmatprep.subr.bf16.mxu0 0
        %1575 = vmatpush1.bf16.xpose.msra.mxu0 0
        %1576 = vmatprep.subr.bf16.mxu0 0
        %1577 = vmatpush1.bf16.xpose.msra.mxu0 0
        %1578 = vmatprep.subr.bf16.mxu0 0
        %1579 = vmatpush1.bf16.xpose.msra.mxu0 0
        %1580 = vmatprep.subr.bf16.mxu0 0
        %1581 = vmatpush1.bf16.xpose.msra.mxu0 0
        %1582 = vmatprep.subr.bf16.mxu0 0
        %1583 = vmatpush1.bf16.xpose.msra.mxu0 0
        %1584 = vmatprep.subr.bf16.mxu0 0
        %1585 = vmatpush1.bf16.xpose.msra.mxu0 0
        %1586 = vmatprep.subr.bf16.mxu0 0
        %1587 = vmatpush1.bf16.xpose.msra.mxu0 0
        %1588 = vmatprep.subr.bf16.mxu0 0
        %1589 = vmatpush1.bf16.xpose.msra.mxu0 0
        %1590 = vmatprep.mubr.bf16.mxu0 0
        %1591 = vmatmul.mubr.bf16.gmra.mrb[0].mxu0 %v1534
        %v1592 = vpop.f32.mrb[0].mxu0
        %v1593 = vadd.f32 %v1132, %v1592
        %v1594 = vpop.f32.mrb[0].mxu0
        %v1595 = vpop.f32.mrb[0].mxu0
        %v1596 = vadd.f32 %v1133, %v1595
        %v1597 = vpop.f32.mrb[0].mxu0
        %1598 = vmatprep.mubr.bf16.mxu0 0
        %1599 = vmatmul.mubr.bf16.gmra.mrb[0].mxu0 %v1535
        %v1600 = vpop.f32.mrb[0].mxu0
        %v1601 = vadd.f32 %v1134, %v1600
        %v1602 = vpop.f32.mrb[0].mxu0
        %v1603 = vpop.f32.mrb[0].mxu0
        %v1604 = vadd.f32 %v1135, %v1603
        %v1605 = vpop.f32.mrb[0].mxu0
        %1606 = vmatprep.mubr.bf16.mxu0 0
        %1607 = vmatmul.mubr.bf16.gmra.mrb[0].mxu0 %v1536
        %v1608 = vpop.f32.mrb[0].mxu0
        %v1609 = vadd.f32 %v1136, %v1608
        %v1610 = vpop.f32.mrb[0].mxu0
        %v1611 = vpop.f32.mrb[0].mxu0
        %v1612 = vadd.f32 %v1137, %v1611
        %v1613 = vpop.f32.mrb[0].mxu0
        %1614 = vmatprep.mubr.bf16.mxu0 0
        %1615 = vmatmul.mubr.bf16.gmra.mrb[0].mxu0 %v1537
        %v1616 = vpop.f32.mrb[0].mxu0
        %v1617 = vadd.f32 %v1138, %v1616
        %v1618 = vpop.f32.mrb[0].mxu0
        %v1619 = vpop.f32.mrb[0].mxu0
        %v1620 = vadd.f32 %v1139, %v1619
        %v1621 = vpop.f32.mrb[0].mxu0
        %1622 = vmatprep.mubr.bf16.mxu0 0
        %1623 = vmatmul.mubr.bf16.gmra.mrb[0].mxu0 %v1538
        %v1624 = vpop.f32.mrb[0].mxu0
        %v1625 = vadd.f32 %v1140, %v1624
        %v1626 = vpop.f32.mrb[0].mxu0
        %v1627 = vpop.f32.mrb[0].mxu0
        %v1628 = vadd.f32 %v1141, %v1627
        %v1629 = vpop.f32.mrb[0].mxu0
        %1630 = vmatprep.mubr.bf16.mxu0 0
        %1631 = vmatmul.mubr.bf16.gmra.mrb[0].mxu0 %v1539
        %v1632 = vpop.f32.mrb[0].mxu0
        %v1633 = vadd.f32 %v1142, %v1632
        %v1634 = vpop.f32.mrb[0].mxu0
        %v1635 = vpop.f32.mrb[0].mxu0
        %v1636 = vadd.f32 %v1143, %v1635
        %v1637 = vpop.f32.mrb[0].mxu0
        %1638 = vmatprep.mubr.bf16.mxu0 0
        %1639 = vmatmul.mubr.bf16.gmra.mrb[0].mxu0 %v1540
        %v1640 = vpop.f32.mrb[0].mxu0
        %v1641 = vadd.f32 %v1144, %v1640
        %v1642 = vpop.f32.mrb[0].mxu0
        %v1643 = vpop.f32.mrb[0].mxu0
        %v1644 = vadd.f32 %v1145, %v1643
        %v1645 = vpop.f32.mrb[0].mxu0
        %1646 = vmatprep.mubr.bf16.mxu0 0
        %1647 = vmatmul.mubr.bf16.gmra.mrb[0].mxu0 %v1541
        %v1648 = vpop.f32.mrb[0].mxu0
        %v1649 = vadd.f32 %v1146, %v1648
        %v1650 = vpop.f32.mrb[0].mxu0
        %v1651 = vpop.f32.mrb[0].mxu0
        %v1652 = vadd.f32 %v1147, %v1651
        %v1653 = vpop.f32.mrb[0].mxu0
        %1654 = vdwg.mxu0
        %1655 = vmax.xlane.f32.xlu0 %v1593
        %v1656 = vpop.xlane.xlu0 %1655
        %1657 = vmax.xlane.f32.xlu0 %v1596
        %v1658 = vpop.xlane.xlu0 %1657
        %1659 = vmax.xlane.f32.xlu0 %v1601
        %v1660 = vpop.xlane.xlu0 %1659
        %1661 = vmax.xlane.f32.xlu0 %v1604
        %v1662 = vpop.xlane.xlu0 %1661
        %1663 = vmax.xlane.f32.xlu0 %v1609
        %v1664 = vpop.xlane.xlu0 %1663
        %1665 = vmax.xlane.f32.xlu0 %v1612
        %v1666 = vpop.xlane.xlu0 %1665
        %1667 = vmax.xlane.f32.xlu0 %v1617
        %v1668 = vpop.xlane.xlu0 %1667
        %1669 = vmax.xlane.f32.xlu0 %v1620
        %v1670 = vpop.xlane.xlu0 %1669
        %1671 = vmax.xlane.f32.xlu0 %v1625
        %v1672 = vpop.xlane.xlu0 %1671
        %1673 = vmax.xlane.f32.xlu0 %v1628
        %v1674 = vpop.xlane.xlu0 %1673
        %1675 = vmax.xlane.f32.xlu0 %v1633
        %v1676 = vpop.xlane.xlu0 %1675
        %1677 = vmax.xlane.f32.xlu0 %v1636
        %v1678 = vpop.xlane.xlu0 %1677
        %1679 = vmax.xlane.f32.xlu0 %v1641
        %v1680 = vpop.xlane.xlu0 %1679
        %1681 = vmax.xlane.f32.xlu0 %v1644
        %v1682 = vpop.xlane.xlu0 %1681
        %1683 = vmax.xlane.f32.xlu0 %v1649
        %v1684 = vpop.xlane.xlu0 %1683
        %1685 = vmax.xlane.f32.xlu0 %v1652
        %v1686 = vpop.xlane.xlu0 %1685
        %v1687 = vsub.f32 %v1593, %v1656
        %v1688 = vsub.f32 %v1596, %v1658
        %v1689 = vsub.f32 %v1601, %v1660
        %v1690 = vsub.f32 %v1604, %v1662
        %v1691 = vsub.f32 %v1609, %v1664
        %v1692 = vsub.f32 %v1612, %v1666
        %v1693 = vsub.f32 %v1617, %v1668
        %v1694 = vsub.f32 %v1620, %v1670
        %v1695 = vsub.f32 %v1625, %v1672
        %v1696 = vsub.f32 %v1628, %v1674
        %v1697 = vsub.f32 %v1633, %v1676
        %v1698 = vsub.f32 %v1636, %v1678
        %v1699 = vsub.f32 %v1641, %v1680
        %v1700 = vsub.f32 %v1644, %v1682
        %v1701 = vsub.f32 %v1649, %v1684
        %v1702 = vsub.f32 %v1652, %v1686
        %v1703 = vmul.f32 %v1687, 1.442695
        %v1704 = vpow.pop %v1703
        %v1705 = vmul.f32 %v1688, 1.442695
        %v1706 = vpow.pop %v1705
        %v1707 = vmul.f32 %v1689, 1.442695
        %v1708 = vpow.pop %v1707
        %v1709 = vmul.f32 %v1690, 1.442695
        %v1710 = vpow.pop %v1709
        %v1711 = vmul.f32 %v1691, 1.442695
        %v1712 = vpow.pop %v1711
        %v1713 = vmul.f32 %v1692, 1.442695
        %v1714 = vpow.pop %v1713
        %v1715 = vmul.f32 %v1693, 1.442695
        %v1716 = vpow.pop %v1715
        %v1717 = vmul.f32 %v1694, 1.442695
        %v1718 = vpow.pop %v1717
        %v1719 = vmul.f32 %v1695, 1.442695
        %v1720 = vpow.pop %v1719
        %v1721 = vmul.f32 %v1696, 1.442695
        %v1722 = vpow.pop %v1721
        %v1723 = vmul.f32 %v1697, 1.442695
        %v1724 = vpow.pop %v1723
        %v1725 = vmul.f32 %v1698, 1.442695
        %v1726 = vpow.pop %v1725
        %v1727 = vmul.f32 %v1699, 1.442695
        %v1728 = vpow.pop %v1727
        %v1729 = vmul.f32 %v1700, 1.442695
        %v1730 = vpow.pop %v1729
        %v1731 = vmul.f32 %v1701, 1.442695
        %v1732 = vpow.pop %v1731
        %v1733 = vmul.f32 %v1702, 1.442695
        %v1734 = vpow.pop %v1733
        %1735 = vadd.xlane.f32.xlu0 %v1704
        %v1736 = vpop.xlane.xlu0 %1735
        %1737 = vadd.xlane.f32.xlu0 %v1706
        %v1738 = vpop.xlane.xlu0 %1737
        %1739 = vadd.xlane.f32.xlu0 %v1708
        %v1740 = vpop.xlane.xlu0 %1739
        %1741 = vadd.xlane.f32.xlu0 %v1710
        %v1742 = vpop.xlane.xlu0 %1741
        %1743 = vadd.xlane.f32.xlu0 %v1712
        %v1744 = vpop.xlane.xlu0 %1743
        %1745 = vadd.xlane.f32.xlu0 %v1714
        %v1746 = vpop.xlane.xlu0 %1745
        %1747 = vadd.xlane.f32.xlu0 %v1716
        %v1748 = vpop.xlane.xlu0 %1747
        %1749 = vadd.xlane.f32.xlu0 %v1718
        %v1750 = vpop.xlane.xlu0 %1749
        %1751 = vadd.xlane.f32.xlu0 %v1720
        %v1752 = vpop.xlane.xlu0 %1751
        %1753 = vadd.xlane.f32.xlu0 %v1722
        %v1754 = vpop.xlane.xlu0 %1753
        %1755 = vadd.xlane.f32.xlu0 %v1724
        %v1756 = vpop.xlane.xlu0 %1755
        %1757 = vadd.xlane.f32.xlu0 %v1726
        %v1758 = vpop.xlane.xlu0 %1757
        %1759 = vadd.xlane.f32.xlu0 %v1728
        %v1760 = vpop.xlane.xlu0 %1759
        %1761 = vadd.xlane.f32.xlu0 %v1730
        %v1762 = vpop.xlane.xlu0 %1761
        %1763 = vadd.xlane.f32.xlu0 %v1732
        %v1764 = vpop.xlane.xlu0 %1763
        %1765 = vadd.xlane.f32.xlu0 %v1734
        %v1766 = vpop.xlane.xlu0 %1765
        %v1767 = vrcp.pop %v1736
        %v1768 = vrcp.pop %v1738
        %v1769 = vrcp.pop %v1740
        %v1770 = vrcp.pop %v1742
        %v1771 = vrcp.pop %v1744
        %v1772 = vrcp.pop %v1746
        %v1773 = vrcp.pop %v1748
        %v1774 = vrcp.pop %v1750
        %v1775 = vrcp.pop %v1752
        %v1776 = vrcp.pop %v1754
        %v1777 = vrcp.pop %v1756
        %v1778 = vrcp.pop %v1758
        %v1779 = vrcp.pop %v1760
        %v1780 = vrcp.pop %v1762
        %v1781 = vrcp.pop %v1764
        %v1782 = vrcp.pop %v1766
        %v1783 = vmul.f32 %v1704, %v1767
        %v1784 = vmul.f32 %v1706, %v1768
        %v1785 = vmul.f32 %v1708, %v1769
        %v1786 = vmul.f32 %v1710, %v1770
        %v1787 = vmul.f32 %v1712, %v1771
        %v1788 = vmul.f32 %v1714, %v1772
        %v1789 = vmul.f32 %v1716, %v1773
        %v1790 = vmul.f32 %v1718, %v1774
        %v1791 = vmul.f32 %v1720, %v1775
        %v1792 = vmul.f32 %v1722, %v1776
        %v1793 = vmul.f32 %v1724, %v1777
        %v1794 = vmul.f32 %v1726, %v1778
        %v1795 = vmul.f32 %v1728, %v1779
        %v1796 = vmul.f32 %v1730, %v1780
        %v1797 = vmul.f32 %v1732, %v1781
        %v1798 = vmul.f32 %v1734, %v1782
        %v1799 = vpack.c.bf16 %v1784, %v1783
        %v1800 = vpack.c.bf16 %v1786, %v1785
        %v1801 = vpack.c.bf16 %v1788, %v1787
        %v1802 = vpack.c.bf16 %v1790, %v1789
        %v1803 = vpack.c.bf16 %v1792, %v1791
        %v1804 = vpack.c.bf16 %v1794, %v1793
        %v1805 = vpack.c.bf16 %v1796, %v1795
        %v1806 = vpack.c.bf16 %v1798, %v1797
        %1807 = vmatprep.subr.bf16.mxu0 0
        %1808 = vmatpush1.bf16.msra.mxu0 %v1550
        %1809 = vmatprep.subr.bf16.mxu0 0
        %1810 = vmatpush1.bf16.msra.mxu0 %v1551
        %1811 = vmatprep.subr.bf16.mxu0 0
        %1812 = vmatpush1.bf16.msra.mxu0 %v1552
        %1813 = vmatprep.subr.bf16.mxu0 0
        %1814 = vmatpush1.bf16.msra.mxu0 %v1553
        %1815 = vmatprep.subr.bf16.mxu0 0
        %1816 = vmatpush1.bf16.msra.mxu0 %v1554
        %1817 = vmatprep.subr.bf16.mxu0 0
        %1818 = vmatpush1.bf16.msra.mxu0 %v1555
        %1819 = vmatprep.subr.bf16.mxu0 0
        %1820 = vmatpush1.bf16.msra.mxu0 %v1556
        %1821 = vmatprep.subr.bf16.mxu0 0
        %1822 = vmatpush1.bf16.msra.mxu0 %v1557
        %1823 = vmatprep.subr.bf16.mxu0 0
        %1824 = vmatpush1.bf16.msra.mxu0 0
        %1825 = vmatprep.subr.bf16.mxu0 0
        %1826 = vmatpush1.bf16.msra.mxu0 0
        %1827 = vmatprep.subr.bf16.mxu0 0
        %1828 = vmatpush1.bf16.msra.mxu0 0
        %1829 = vmatprep.subr.bf16.mxu0 0
        %1830 = vmatpush1.bf16.msra.mxu0 0
        %1831 = vmatprep.subr.bf16.mxu0 0
        %1832 = vmatpush1.bf16.msra.mxu0 0
        %1833 = vmatprep.subr.bf16.mxu0 0
        %1834 = vmatpush1.bf16.msra.mxu0 0
        %1835 = vmatprep.subr.bf16.mxu0 0
        %1836 = vmatpush1.bf16.msra.mxu0 0
        %1837 = vmatprep.subr.bf16.mxu0 0
        %1838 = vmatpush1.bf16.msra.mxu0 0
        %1839 = vmatprep.mubr.bf16.mxu0 0
        %1840 = vmatmul.mubr.bf16.gmra.mrb[0].mxu0 %v1799
        %v1841 = vpop.f32.mrb[0].mxu0
        %v1842 = vadd.f32 0.0, %v1841
        %v1843 = vpop.f32.mrb[0].mxu0
        %v1844 = vpop.f32.mrb[0].mxu0
        %v1845 = vadd.f32 0.0, %v1844
        %v1846 = vpop.f32.mrb[0].mxu0
        %1847 = vmatprep.mubr.bf16.mxu0 0
        %1848 = vmatmul.mubr.bf16.gmra.mrb[0].mxu0 %v1800
        %v1849 = vpop.f32.mrb[0].mxu0
        %v1850 = vadd.f32 0.0, %v1849
        %v1851 = vpop.f32.mrb[0].mxu0
        %v1852 = vpop.f32.mrb[0].mxu0
        %v1853 = vadd.f32 0.0, %v1852
        %v1854 = vpop.f32.mrb[0].mxu0
        %1855 = vmatprep.mubr.bf16.mxu0 0
        %1856 = vmatmul.mubr.bf16.gmra.mrb[0].mxu0 %v1801
        %v1857 = vpop.f32.mrb[0].mxu0
        %v1858 = vadd.f32 0.0, %v1857
        %v1859 = vpop.f32.mrb[0].mxu0
        %v1860 = vpop.f32.mrb[0].mxu0
        %v1861 = vadd.f32 0.0, %v1860
        %v1862 = vpop.f32.mrb[0].mxu0
        %1863 = vmatprep.mubr.bf16.mxu0 0
        %1864 = vmatmul.mubr.bf16.gmra.mrb[0].mxu0 %v1802
        %v1865 = vpop.f32.mrb[0].mxu0
        %v1866 = vadd.f32 0.0, %v1865
        %v1867 = vpop.f32.mrb[0].mxu0
        %v1868 = vpop.f32.mrb[0].mxu0
        %v1869 = vadd.f32 0.0, %v1868
        %v1870 = vpop.f32.mrb[0].mxu0
        %1871 = vmatprep.mubr.bf16.mxu0 0
        %1872 = vmatmul.mubr.bf16.gmra.mrb[0].mxu0 %v1803
        %v1873 = vpop.f32.mrb[0].mxu0
        %v1874 = vadd.f32 0.0, %v1873
        %v1875 = vpop.f32.mrb[0].mxu0
        %v1876 = vpop.f32.mrb[0].mxu0
        %v1877 = vadd.f32 0.0, %v1876
        %v1878 = vpop.f32.mrb[0].mxu0
        %1879 = vmatprep.mubr.bf16.mxu0 0
        %1880 = vmatmul.mubr.bf16.gmra.mrb[0].mxu0 %v1804
        %v1881 = vpop.f32.mrb[0].mxu0
        %v1882 = vadd.f32 0.0, %v1881
        %v1883 = vpop.f32.mrb[0].mxu0
        %v1884 = vpop.f32.mrb[0].mxu0
        %v1885 = vadd.f32 0.0, %v1884
        %v1886 = vpop.f32.mrb[0].mxu0
        %1887 = vmatprep.mubr.bf16.mxu0 0
        %1888 = vmatmul.mubr.bf16.gmra.mrb[0].mxu0 %v1805
        %v1889 = vpop.f32.mrb[0].mxu0
        %v1890 = vadd.f32 0.0, %v1889
        %v1891 = vpop.f32.mrb[0].mxu0
        %v1892 = vpop.f32.mrb[0].mxu0
        %v1893 = vadd.f32 0.0, %v1892
        %v1894 = vpop.f32.mrb[0].mxu0
        %1895 = vmatprep.mubr.bf16.mxu0 0
        %1896 = vmatmul.mubr.bf16.gmra.mrb[0].mxu0 %v1806
        %v1897 = vpop.f32.mrb[0].mxu0
        %v1898 = vadd.f32 0.0, %v1897
        %v1899 = vpop.f32.mrb[0].mxu0
        %v1900 = vpop.f32.mrb[0].mxu0
        %v1901 = vadd.f32 0.0, %v1900
        %v1902 = vpop.f32.mrb[0].mxu0
        %1903 = vdwg.mxu0
        %v1904 = vpack.c.bf16 %v1845, %v1842
        %v1905 = vpack.c.bf16 %v1853, %v1850
        %v1906 = vpack.c.bf16 %v1861, %v1858
        %v1907 = vpack.c.bf16 %v1869, %v1866
        %v1908 = vpack.c.bf16 %v1877, %v1874
        %v1909 = vpack.c.bf16 %v1885, %v1882
        %v1910 = vpack.c.bf16 %v1893, %v1890
        %v1911 = vpack.c.bf16 %v1901, %v1898
        %1912 = vst [vmem:[#allocation3 + $0x8] sm:$0xff] %v1904
        %1913 = vst [vmem:[#allocation3 + $0x18] sm:$0xff] %v1905
        %1914 = vst [vmem:[#allocation3 + $0x28] sm:$0xff] %v1906
        %1915 = vst [vmem:[#allocation3 + $0x38] sm:$0xff] %v1907
        %1916 = vst [vmem:[#allocation3 + $0x48] sm:$0xff] %v1908
        %1917 = vst [vmem:[#allocation3 + $0x58] sm:$0xff] %v1909
        %1918 = vst [vmem:[#allocation3 + $0x68] sm:$0xff] %v1910
        %1919 = vst [vmem:[#allocation3 + $0x78] sm:$0xff] %v1911
        %v1920 = vld [vmem:[#allocation3] sm:$0xff]
        %v1921 = vld [vmem:[#allocation3 + $0x8] sm:$0xff]
        %v1922 = vld [vmem:[#allocation3 + $0x10] sm:$0xff]
        %v1923 = vld [vmem:[#allocation3 + $0x18] sm:$0xff]
        %v1924 = vld [vmem:[#allocation3 + $0x20] sm:$0xff]
        %v1925 = vld [vmem:[#allocation3 + $0x28] sm:$0xff]
        %v1926 = vld [vmem:[#allocation3 + $0x30] sm:$0xff]
        %v1927 = vld [vmem:[#allocation3 + $0x38] sm:$0xff]
        %v1928 = vld [vmem:[#allocation3 + $0x40] sm:$0xff]
        %v1929 = vld [vmem:[#allocation3 + $0x48] sm:$0xff]
        %v1930 = vld [vmem:[#allocation3 + $0x50] sm:$0xff]
        %v1931 = vld [vmem:[#allocation3 + $0x58] sm:$0xff]
        %v1932 = vld [vmem:[#allocation3 + $0x60] sm:$0xff]
        %v1933 = vld [vmem:[#allocation3 + $0x68] sm:$0xff]
        %v1934 = vld [vmem:[#allocation3 + $0x70] sm:$0xff]
        %v1935 = vld [vmem:[#allocation3 + $0x78] sm:$0xff]
        %v1936 = vld [vmem:[%s5] sm:$0xf]
        %v1937 = vld [vmem:[%s5 + $0x4] sm:$0xf]
        %v1938 = vld [vmem:[%s5 + $0x8] sm:$0xf]
        %v1939 = vld [vmem:[%s5 + $0xc] sm:$0xf]
        %v1940 = vld [vmem:[%s5 + $0x10] sm:$0xf]
        %v1941 = vld [vmem:[%s5 + $0x14] sm:$0xf]
        %v1942 = vld [vmem:[%s5 + $0x18] sm:$0xf]
        %v1943 = vld [vmem:[%s5 + $0x1c] sm:$0xf]
        %v1944 = vld [vmem:[%s5 + $0x20] sm:$0xf]
        %v1945 = vld [vmem:[%s5 + $0x24] sm:$0xf]
        %v1946 = vld [vmem:[%s5 + $0x28] sm:$0xf]
        %v1947 = vld [vmem:[%s5 + $0x2c] sm:$0xf]
        %v1948 = vld [vmem:[%s5 + $0x30] sm:$0xf]
        %v1949 = vld [vmem:[%s5 + $0x34] sm:$0xf]
        %v1950 = vld [vmem:[%s5 + $0x38] sm:$0xf]
        %v1951 = vld [vmem:[%s5 + $0x3c] sm:$0xf]
        %v1952 = vld [vmem:[%s5 + $0x40] sm:$0xf]
        %v1953 = vld [vmem:[%s5 + $0x44] sm:$0xf]
        %v1954 = vld [vmem:[%s5 + $0x48] sm:$0xf]
        %v1955 = vld [vmem:[%s5 + $0x4c] sm:$0xf]
        %v1956 = vld [vmem:[%s5 + $0x50] sm:$0xf]
        %v1957 = vld [vmem:[%s5 + $0x54] sm:$0xf]
        %v1958 = vld [vmem:[%s5 + $0x58] sm:$0xf]
        %v1959 = vld [vmem:[%s5 + $0x5c] sm:$0xf]
        %v1960 = vld [vmem:[%s5 + $0x60] sm:$0xf]
        %v1961 = vld [vmem:[%s5 + $0x64] sm:$0xf]
        %v1962 = vld [vmem:[%s5 + $0x68] sm:$0xf]
        %v1963 = vld [vmem:[%s5 + $0x6c] sm:$0xf]
        %v1964 = vld [vmem:[%s5 + $0x70] sm:$0xf]
        %v1965 = vld [vmem:[%s5 + $0x74] sm:$0xf]
        %v1966 = vld [vmem:[%s5 + $0x78] sm:$0xf]
        %v1967 = vld [vmem:[%s5 + $0x7c] sm:$0xf]
        %v1968 = vld [vmem:[%s6] sm:$0x1]
        %v1970 = vlaneseq
        %v1971 = vshrl.u32 %v1970, 7
        %v1972 = vsub.s32 0, %v1971
        %v1973 = vrot.slane %v1968, %v1972
        %v2007 = vunpack.c.l.b16 %v1936
        %v2008 = vunpack.c.l.b16 %v1937
        %v2009 = vunpack.c.l.b16 %v1938
        %v2010 = vunpack.c.l.b16 %v1939
        %v2011 = vunpack.c.l.b16 %v1940
        %v2012 = vunpack.c.l.b16 %v1941
        %v2013 = vunpack.c.l.b16 %v1942
        %v2014 = vunpack.c.l.b16 %v1943
        %v2015 = vunpack.c.l.b16 %v1944
        %v2016 = vunpack.c.l.b16 %v1945
        %v2017 = vunpack.c.l.b16 %v1946
        %v2018 = vunpack.c.l.b16 %v1947
        %v2019 = vunpack.c.l.b16 %v1948
        %v2020 = vunpack.c.l.b16 %v1949
        %v2021 = vunpack.c.l.b16 %v1950
        %v2022 = vunpack.c.l.b16 %v1951
        %v2023 = vunpack.c.l.b16 %v1952
        %v2024 = vunpack.c.l.b16 %v1953
        %v2025 = vunpack.c.l.b16 %v1954
        %v2026 = vunpack.c.l.b16 %v1955
        %v2027 = vunpack.c.l.b16 %v1956
        %v2028 = vunpack.c.l.b16 %v1957
        %v2029 = vunpack.c.l.b16 %v1958
        %v2030 = vunpack.c.l.b16 %v1959
        %v2031 = vunpack.c.l.b16 %v1960
        %v2032 = vunpack.c.l.b16 %v1961
        %v2033 = vunpack.c.l.b16 %v1962
        %v2034 = vunpack.c.l.b16 %v1963
        %v2035 = vunpack.c.l.b16 %v1964
        %v2036 = vunpack.c.l.b16 %v1965
        %v2037 = vunpack.c.l.b16 %v1966
        %v2038 = vunpack.c.l.b16 %v1967
        %v2039 = vpack.c.b16 %v2008, %v2007
        %v2040 = vpack.c.b16 %v2010, %v2009
        %v2041 = vpack.c.b16 %v2012, %v2011
        %v2042 = vpack.c.b16 %v2014, %v2013
        %v2043 = vpack.c.b16 %v2016, %v2015
        %v2044 = vpack.c.b16 %v2018, %v2017
        %v2045 = vpack.c.b16 %v2020, %v2019
        %v2046 = vpack.c.b16 %v2022, %v2021
        %v2047 = vpack.c.b16 %v2024, %v2023
        %v2048 = vpack.c.b16 %v2026, %v2025
        %v2049 = vpack.c.b16 %v2028, %v2027
        %v2050 = vpack.c.b16 %v2030, %v2029
        %v2051 = vpack.c.b16 %v2032, %v2031
        %v2052 = vpack.c.b16 %v2034, %v2033
        %v2053 = vpack.c.b16 %v2036, %v2035
        %v2054 = vpack.c.b16 %v2038, %v2037
        %2071 = vmatprep.subr.bf16.mxu0 0
        %2072 = vmatpush1.bf16.msra.mxu0 %v2039
        %2073 = vmatprep.subr.bf16.mxu0 0
        %2074 = vmatpush1.bf16.msra.mxu0 %v2040
        %2075 = vmatprep.subr.bf16.mxu0 0
        %2076 = vmatpush1.bf16.msra.mxu0 %v2041
        %2077 = vmatprep.subr.bf16.mxu0 0
        %2078 = vmatpush1.bf16.msra.mxu0 %v2042
        %2079 = vmatprep.subr.bf16.mxu0 0
        %2080 = vmatpush1.bf16.msra.mxu0 %v2043
        %2081 = vmatprep.subr.bf16.mxu0 0
        %2082 = vmatpush1.bf16.msra.mxu0 %v2044
        %2083 = vmatprep.subr.bf16.mxu0 0
        %2084 = vmatpush1.bf16.msra.mxu0 %v2045
        %2085 = vmatprep.subr.bf16.mxu0 0
        %2086 = vmatpush1.bf16.msra.mxu0 %v2046
        %2087 = vmatprep.subr.bf16.mxu0 0
        %2088 = vmatpush1.bf16.msra.mxu0 %v2047
        %2089 = vmatprep.subr.bf16.mxu0 0
        %2090 = vmatpush1.bf16.msra.mxu0 %v2048
        %2091 = vmatprep.subr.bf16.mxu0 0
        %2092 = vmatpush1.bf16.msra.mxu0 %v2049
        %2093 = vmatprep.subr.bf16.mxu0 0
        %2094 = vmatpush1.bf16.msra.mxu0 %v2050
        %2095 = vmatprep.subr.bf16.mxu0 0
        %2096 = vmatpush1.bf16.msra.mxu0 %v2051
        %2097 = vmatprep.subr.bf16.mxu0 0
        %2098 = vmatpush1.bf16.msra.mxu0 %v2052
        %2099 = vmatprep.subr.bf16.mxu0 0
        %2100 = vmatpush1.bf16.msra.mxu0 %v2053
        %2101 = vmatprep.subr.bf16.mxu0 0
        %2102 = vmatpush1.bf16.msra.mxu0 %v2054
        %2103 = vmatprep.mubr.bf16.mxu0 %v1921
        %2104 = vmatmul.mubr.bf16.gmra.mrb[0].mxu0 %v1920
        %v2105 = vpop.f32.mrb[0].mxu0
        %v2106 = vadd.f32 %v1973, %v2105
        %v2107 = vpop.f32.mrb[0].mxu0
        %v2108 = vpop.f32.mrb[0].mxu0
        %v2109 = vadd.f32 %v1973, %v2108
        %v2110 = vpop.f32.mrb[0].mxu0
        %2111 = vmatprep.mubr.bf16.mxu0 %v1923
        %2112 = vmatmul.mubr.bf16.gmra.mrb[0].mxu0 %v1922
        %v2113 = vpop.f32.mrb[0].mxu0
        %v2114 = vadd.f32 %v1973, %v2113
        %v2115 = vpop.f32.mrb[0].mxu0
        %v2116 = vpop.f32.mrb[0].mxu0
        %v2117 = vadd.f32 %v1973, %v2116
        %v2118 = vpop.f32.mrb[0].mxu0
        %2119 = vmatprep.mubr.bf16.mxu0 %v1925
        %2120 = vmatmul.mubr.bf16.gmra.mrb[0].mxu0 %v1924
        %v2121 = vpop.f32.mrb[0].mxu0
        %v2122 = vadd.f32 %v1973, %v2121
        %v2123 = vpop.f32.mrb[0].mxu0
        %v2124 = vpop.f32.mrb[0].mxu0
        %v2125 = vadd.f32 %v1973, %v2124
        %v2126 = vpop.f32.mrb[0].mxu0
        %2127 = vmatprep.mubr.bf16.mxu0 %v1927
        %2128 = vmatmul.mubr.bf16.gmra.mrb[0].mxu0 %v1926
        %v2129 = vpop.f32.mrb[0].mxu0
        %v2130 = vadd.f32 %v1973, %v2129
        %v2131 = vpop.f32.mrb[0].mxu0
        %v2132 = vpop.f32.mrb[0].mxu0
        %v2133 = vadd.f32 %v1973, %v2132
        %v2134 = vpop.f32.mrb[0].mxu0
        %2135 = vmatprep.mubr.bf16.mxu0 %v1929
        %2136 = vmatmul.mubr.bf16.gmra.mrb[0].mxu0 %v1928
        %v2137 = vpop.f32.mrb[0].mxu0
        %v2138 = vadd.f32 %v1973, %v2137
        %v2139 = vpop.f32.mrb[0].mxu0
        %v2140 = vpop.f32.mrb[0].mxu0
        %v2141 = vadd.f32 %v1973, %v2140
        %v2142 = vpop.f32.mrb[0].mxu0
        %2143 = vmatprep.mubr.bf16.mxu0 %v1931
        %2144 = vmatmul.mubr.bf16.gmra.mrb[0].mxu0 %v1930
        %v2145 = vpop.f32.mrb[0].mxu0
        %v2146 = vadd.f32 %v1973, %v2145
        %v2147 = vpop.f32.mrb[0].mxu0
        %v2148 = vpop.f32.mrb[0].mxu0
        %v2149 = vadd.f32 %v1973, %v2148
        %v2150 = vpop.f32.mrb[0].mxu0
        %2151 = vmatprep.mubr.bf16.mxu0 %v1933
        %2152 = vmatmul.mubr.bf16.gmra.mrb[0].mxu0 %v1932
        %v2153 = vpop.f32.mrb[0].mxu0
        %v2154 = vadd.f32 %v1973, %v2153
        %v2155 = vpop.f32.mrb[0].mxu0
        %v2156 = vpop.f32.mrb[0].mxu0
        %v2157 = vadd.f32 %v1973, %v2156
        %v2158 = vpop.f32.mrb[0].mxu0
        %2159 = vmatprep.mubr.bf16.mxu0 %v1935
        %2160 = vmatmul.mubr.bf16.gmra.mrb[0].mxu0 %v1934
        %v2161 = vpop.f32.mrb[0].mxu0
        %v2162 = vadd.f32 %v1973, %v2161
        %v2163 = vpop.f32.mrb[0].mxu0
        %v2164 = vpop.f32.mrb[0].mxu0
        %v2165 = vadd.f32 %v1973, %v2164
        %v2166 = vpop.f32.mrb[0].mxu0
        %2167 = vdwg.mxu0
        %v2168 = vsel %vm617, %v2106, 0.0
        %2169 = vadd.xlane.f32.xlu0 %v2168
        %v2170 = vpop.xlane.xlu0 %2169
        %v2171 = vsel %vm617, %v2109, 0.0
        %2172 = vadd.xlane.f32.xlu0 %v2171
        %v2173 = vpop.xlane.xlu0 %2172
        %v2174 = vsel %vm617, %v2114, 0.0
        %2175 = vadd.xlane.f32.xlu0 %v2174
        %v2176 = vpop.xlane.xlu0 %2175
        %v2177 = vsel %vm617, %v2117, 0.0
        %2178 = vadd.xlane.f32.xlu0 %v2177
        %v2179 = vpop.xlane.xlu0 %2178
        %v2180 = vsel %vm617, %v2122, 0.0
        %2181 = vadd.xlane.f32.xlu0 %v2180
        %v2182 = vpop.xlane.xlu0 %2181
        %v2183 = vsel %vm617, %v2125, 0.0
        %2184 = vadd.xlane.f32.xlu0 %v2183
        %v2185 = vpop.xlane.xlu0 %2184
        %v2186 = vsel %vm617, %v2130, 0.0
        %2187 = vadd.xlane.f32.xlu0 %v2186
        %v2188 = vpop.xlane.xlu0 %2187
        %v2189 = vsel %vm617, %v2133, 0.0
        %2190 = vadd.xlane.f32.xlu0 %v2189
        %v2191 = vpop.xlane.xlu0 %2190
        %v2192 = vsel %vm617, %v2138, 0.0
        %2193 = vadd.xlane.f32.xlu0 %v2192
        %v2194 = vpop.xlane.xlu0 %2193
        %v2195 = vsel %vm617, %v2141, 0.0
        %2196 = vadd.xlane.f32.xlu0 %v2195
        %v2197 = vpop.xlane.xlu0 %2196
        %v2198 = vsel %vm617, %v2146, 0.0
        %2199 = vadd.xlane.f32.xlu0 %v2198
        %v2200 = vpop.xlane.xlu0 %2199
        %v2201 = vsel %vm617, %v2149, 0.0
        %2202 = vadd.xlane.f32.xlu0 %v2201
        %v2203 = vpop.xlane.xlu0 %2202
        %v2204 = vsel %vm617, %v2154, 0.0
        %2205 = vadd.xlane.f32.xlu0 %v2204
        %v2206 = vpop.xlane.xlu0 %2205
        %v2207 = vsel %vm617, %v2157, 0.0
        %2208 = vadd.xlane.f32.xlu0 %v2207
        %v2209 = vpop.xlane.xlu0 %2208
        %v2210 = vsel %vm617, %v2162, 0.0
        %2211 = vadd.xlane.f32.xlu0 %v2210
        %v2212 = vpop.xlane.xlu0 %2211
        %v2213 = vsel %vm617, %v2165, 0.0
        %2214 = vadd.xlane.f32.xlu0 %v2213
        %v2215 = vpop.xlane.xlu0 %2214
        %v2216 = vrcp.pop 32.0
        %v2217 = vmul.f32 %v2170, %v2216
        %v2218 = vmul.f32 %v2173, %v2216
        %v2219 = vmul.f32 %v2176, %v2216
        %v2220 = vmul.f32 %v2179, %v2216
        %v2221 = vmul.f32 %v2182, %v2216
        %v2222 = vmul.f32 %v2185, %v2216
        %v2223 = vmul.f32 %v2188, %v2216
        %v2224 = vmul.f32 %v2191, %v2216
        %v2225 = vmul.f32 %v2194, %v2216
        %v2226 = vmul.f32 %v2197, %v2216
        %v2227 = vmul.f32 %v2200, %v2216
        %v2228 = vmul.f32 %v2203, %v2216
        %v2229 = vmul.f32 %v2206, %v2216
        %v2230 = vmul.f32 %v2209, %v2216
        %v2231 = vmul.f32 %v2212, %v2216
        %v2232 = vmul.f32 %v2215, %v2216
        %v2233 = vsub.f32 %v2106, %v2217
        %v2234 = vsub.f32 %v2109, %v2218
        %v2235 = vsub.f32 %v2114, %v2219
        %v2236 = vsub.f32 %v2117, %v2220
        %v2237 = vsub.f32 %v2122, %v2221
        %v2238 = vsub.f32 %v2125, %v2222
        %v2239 = vsub.f32 %v2130, %v2223
        %v2240 = vsub.f32 %v2133, %v2224
        %v2241 = vsub.f32 %v2138, %v2225
        %v2242 = vsub.f32 %v2141, %v2226
        %v2243 = vsub.f32 %v2146, %v2227
        %v2244 = vsub.f32 %v2149, %v2228
        %v2245 = vsub.f32 %v2154, %v2229
        %v2246 = vsub.f32 %v2157, %v2230
        %v2247 = vsub.f32 %v2162, %v2231
        %v2248 = vsub.f32 %v2165, %v2232
        %v2249 = vmul.f32 %v2233, %v2233
        %v2250 = vmul.f32 %v2234, %v2234
        %v2251 = vmul.f32 %v2235, %v2235
        %v2252 = vmul.f32 %v2236, %v2236
        %v2253 = vmul.f32 %v2237, %v2237
        %v2254 = vmul.f32 %v2238, %v2238
        %v2255 = vmul.f32 %v2239, %v2239
        %v2256 = vmul.f32 %v2240, %v2240
        %v2257 = vmul.f32 %v2241, %v2241
        %v2258 = vmul.f32 %v2242, %v2242
        %v2259 = vmul.f32 %v2243, %v2243
        %v2260 = vmul.f32 %v2244, %v2244
        %v2261 = vmul.f32 %v2245, %v2245
        %v2262 = vmul.f32 %v2246, %v2246
        %v2263 = vmul.f32 %v2247, %v2247
        %v2264 = vmul.f32 %v2248, %v2248
        %v2265 = vsel %vm617, %v2249, 0.0
        %2266 = vadd.xlane.f32.xlu0 %v2265
        %v2267 = vpop.xlane.xlu0 %2266
        %v2268 = vsel %vm617, %v2250, 0.0
        %2269 = vadd.xlane.f32.xlu0 %v2268
        %v2270 = vpop.xlane.xlu0 %2269
        %v2271 = vsel %vm617, %v2251, 0.0
        %2272 = vadd.xlane.f32.xlu0 %v2271
        %v2273 = vpop.xlane.xlu0 %2272
        %v2274 = vsel %vm617, %v2252, 0.0
        %2275 = vadd.xlane.f32.xlu0 %v2274
        %v2276 = vpop.xlane.xlu0 %2275
        %v2277 = vsel %vm617, %v2253, 0.0
        %2278 = vadd.xlane.f32.xlu0 %v2277
        %v2279 = vpop.xlane.xlu0 %2278
        %v2280 = vsel %vm617, %v2254, 0.0
        %2281 = vadd.xlane.f32.xlu0 %v2280
        %v2282 = vpop.xlane.xlu0 %2281
        %v2283 = vsel %vm617, %v2255, 0.0
        %2284 = vadd.xlane.f32.xlu0 %v2283
        %v2285 = vpop.xlane.xlu0 %2284
        %v2286 = vsel %vm617, %v2256, 0.0
        %2287 = vadd.xlane.f32.xlu0 %v2286
        %v2288 = vpop.xlane.xlu0 %2287
        %v2289 = vsel %vm617, %v2257, 0.0
        %2290 = vadd.xlane.f32.xlu0 %v2289
        %v2291 = vpop.xlane.xlu0 %2290
        %v2292 = vsel %vm617, %v2258, 0.0
        %2293 = vadd.xlane.f32.xlu0 %v2292
        %v2294 = vpop.xlane.xlu0 %2293
        %v2295 = vsel %vm617, %v2259, 0.0
        %2296 = vadd.xlane.f32.xlu0 %v2295
        %v2297 = vpop.xlane.xlu0 %2296
        %v2298 = vsel %vm617, %v2260, 0.0
        %2299 = vadd.xlane.f32.xlu0 %v2298
        %v2300 = vpop.xlane.xlu0 %2299
        %v2301 = vsel %vm617, %v2261, 0.0
        %2302 = vadd.xlane.f32.xlu0 %v2301
        %v2303 = vpop.xlane.xlu0 %2302
        %v2304 = vsel %vm617, %v2262, 0.0
        %2305 = vadd.xlane.f32.xlu0 %v2304
        %v2306 = vpop.xlane.xlu0 %2305
        %v2307 = vsel %vm617, %v2263, 0.0
        %2308 = vadd.xlane.f32.xlu0 %v2307
        %v2309 = vpop.xlane.xlu0 %2308
        %v2310 = vsel %vm617, %v2264, 0.0
        %2311 = vadd.xlane.f32.xlu0 %v2310
        %v2312 = vpop.xlane.xlu0 %2311
        %v2313 = vmul.f32 %v2267, %v2216
        %v2314 = vmul.f32 %v2270, %v2216
        %v2315 = vmul.f32 %v2273, %v2216
        %v2316 = vmul.f32 %v2276, %v2216
        %v2317 = vmul.f32 %v2279, %v2216
        %v2318 = vmul.f32 %v2282, %v2216
        %v2319 = vmul.f32 %v2285, %v2216
        %v2320 = vmul.f32 %v2288, %v2216
        %v2321 = vmul.f32 %v2291, %v2216
        %v2322 = vmul.f32 %v2294, %v2216
        %v2323 = vmul.f32 %v2297, %v2216
        %v2324 = vmul.f32 %v2300, %v2216
        %v2325 = vmul.f32 %v2303, %v2216
        %v2326 = vmul.f32 %v2306, %v2216
        %v2327 = vmul.f32 %v2309, %v2216
        %v2328 = vmul.f32 %v2312, %v2216
        %v2329 = vadd.f32 %v2313, 1e-05
        %v2330 = vadd.f32 %v2314, 1e-05
        %v2331 = vadd.f32 %v2315, 1e-05
        %v2332 = vadd.f32 %v2316, 1e-05
        %v2333 = vadd.f32 %v2317, 1e-05
        %v2334 = vadd.f32 %v2318, 1e-05
        %v2335 = vadd.f32 %v2319, 1e-05
        %v2336 = vadd.f32 %v2320, 1e-05
        %v2337 = vadd.f32 %v2321, 1e-05
        %v2338 = vadd.f32 %v2322, 1e-05
        %v2339 = vadd.f32 %v2323, 1e-05
        %v2340 = vadd.f32 %v2324, 1e-05
        %v2341 = vadd.f32 %v2325, 1e-05
        %v2342 = vadd.f32 %v2326, 1e-05
        %v2343 = vadd.f32 %v2327, 1e-05
        %v2344 = vadd.f32 %v2328, 1e-05
        %v2345 = vrsqrt.pop %v2329
        %v2346 = vrsqrt.pop %v2330
        %v2347 = vrsqrt.pop %v2331
        %v2348 = vrsqrt.pop %v2332
        %v2349 = vrsqrt.pop %v2333
        %v2350 = vrsqrt.pop %v2334
        %v2351 = vrsqrt.pop %v2335
        %v2352 = vrsqrt.pop %v2336
        %v2353 = vrsqrt.pop %v2337
        %v2354 = vrsqrt.pop %v2338
        %v2355 = vrsqrt.pop %v2339
        %v2356 = vrsqrt.pop %v2340
        %v2357 = vrsqrt.pop %v2341
        %v2358 = vrsqrt.pop %v2342
        %v2359 = vrsqrt.pop %v2343
        %v2360 = vrsqrt.pop %v2344
        %v2361 = vmul.f32 %v2233, %v2345
        %v2362 = vmul.f32 %v2234, %v2346
        %v2363 = vmul.f32 %v2235, %v2347
        %v2364 = vmul.f32 %v2236, %v2348
        %v2365 = vmul.f32 %v2237, %v2349
        %v2366 = vmul.f32 %v2238, %v2350
        %v2367 = vmul.f32 %v2239, %v2351
        %v2368 = vmul.f32 %v2240, %v2352
        %v2369 = vmul.f32 %v2241, %v2353
        %v2370 = vmul.f32 %v2242, %v2354
        %v2371 = vmul.f32 %v2243, %v2355
        %v2372 = vmul.f32 %v2244, %v2356
        %v2373 = vmul.f32 %v2245, %v2357
        %v2374 = vmul.f32 %v2246, %v2358
        %v2375 = vmul.f32 %v2247, %v2359
        %v2376 = vmul.f32 %v2248, %v2360
        %v2377 = vld [vmem:[%s7] sm:$0x1]
        %v2379 = vlaneseq
        %v2380 = vshrl.u32 %v2379, 7
        %v2381 = vsub.s32 0, %v2380
        %v2382 = vrot.slane %v2377, %v2381
        %v2384 = vmul.f32 %v2361, %v2382
        %v2385 = vmul.f32 %v2362, %v2382
        %v2386 = vmul.f32 %v2363, %v2382
        %v2387 = vmul.f32 %v2364, %v2382
        %v2388 = vmul.f32 %v2365, %v2382
        %v2389 = vmul.f32 %v2366, %v2382
        %v2390 = vmul.f32 %v2367, %v2382
        %v2391 = vmul.f32 %v2368, %v2382
        %v2392 = vmul.f32 %v2369, %v2382
        %v2393 = vmul.f32 %v2370, %v2382
        %v2394 = vmul.f32 %v2371, %v2382
        %v2395 = vmul.f32 %v2372, %v2382
        %v2396 = vmul.f32 %v2373, %v2382
        %v2397 = vmul.f32 %v2374, %v2382
        %v2398 = vmul.f32 %v2375, %v2382
        %v2399 = vmul.f32 %v2376, %v2382
        %v2400 = vld [vmem:[%s8] sm:$0x1]
        %v2402 = vlaneseq
        %v2403 = vshrl.u32 %v2402, 7
        %v2404 = vsub.s32 0, %v2403
        %v2405 = vrot.slane %v2400, %v2404
        %v2407 = vadd.f32 %v2384, %v2405
        %v2408 = vadd.f32 %v2385, %v2405
        %v2409 = vadd.f32 %v2386, %v2405
        %v2410 = vadd.f32 %v2387, %v2405
        %v2411 = vadd.f32 %v2388, %v2405
        %v2412 = vadd.f32 %v2389, %v2405
        %v2413 = vadd.f32 %v2390, %v2405
        %v2414 = vadd.f32 %v2391, %v2405
        %v2415 = vadd.f32 %v2392, %v2405
        %v2416 = vadd.f32 %v2393, %v2405
        %v2417 = vadd.f32 %v2394, %v2405
        %v2418 = vadd.f32 %v2395, %v2405
        %v2419 = vadd.f32 %v2396, %v2405
        %v2420 = vadd.f32 %v2397, %v2405
        %v2421 = vadd.f32 %v2398, %v2405
        %v2422 = vadd.f32 %v2399, %v2405
        %v2423 = vpack.c.bf16 %v2408, %v2407
        %v2424 = vpack.c.bf16 %v2410, %v2409
        %v2425 = vpack.c.bf16 %v2412, %v2411
        %v2426 = vpack.c.bf16 %v2414, %v2413
        %v2427 = vpack.c.bf16 %v2416, %v2415
        %v2428 = vpack.c.bf16 %v2418, %v2417
        %v2429 = vpack.c.bf16 %v2420, %v2419
        %v2430 = vpack.c.bf16 %v2422, %v2421
        %v2431 = vld [vmem:[%s9] sm:$0xf]
        %v2432 = vld [vmem:[%s9 + $0x4] sm:$0xf]
        %v2433 = vld [vmem:[%s9 + $0x8] sm:$0xf]
        %v2434 = vld [vmem:[%s9 + $0xc] sm:$0xf]
        %v2435 = vld [vmem:[%s10] sm:$0x1]
        %v2437 = vlaneseq
        %v2438 = vshrl.u32 %v2437, 7
        %v2439 = vsub.s32 0, %v2438
        %v2440 = vrot.slane %v2435, %v2439
        %v2446 = vunpack.c.l.b16 %v2431
        %v2447 = vunpack.c.l.b16 %v2432
        %v2448 = vunpack.c.l.b16 %v2433
        %v2449 = vunpack.c.l.b16 %v2434
        %v2450 = vpack.c.b16 %v2447, %v2446
        %v2451 = vpack.c.b16 %v2449, %v2448
        %v2455 = vsel %vm617, %v2423, 0
        %v2458 = vsel %vm617, %v2424, 0
        %v2461 = vsel %vm617, %v2425, 0
        %v2464 = vsel %vm617, %v2426, 0
        %v2467 = vsel %vm617, %v2427, 0
        %v2470 = vsel %vm617, %v2428, 0
        %v2473 = vsel %vm617, %v2429, 0
        %v2476 = vsel %vm617, %v2430, 0
        %2478 = vmatprep.subr.bf16.mxu0 0
        %2479 = vmatpush1.bf16.msra.mxu0 %v2450
        %2480 = vmatprep.subr.bf16.mxu0 0
        %2481 = vmatpush1.bf16.msra.mxu0 %v2451
        %2482 = vmatprep.subr.bf16.mxu0 0
        %2483 = vmatpush1.bf16.msra.mxu0 0
        %2484 = vmatprep.subr.bf16.mxu0 0
        %2485 = vmatpush1.bf16.msra.mxu0 0
        %2486 = vmatprep.subr.bf16.mxu0 0
        %2487 = vmatpush1.bf16.msra.mxu0 0
        %2488 = vmatprep.subr.bf16.mxu0 0
        %2489 = vmatpush1.bf16.msra.mxu0 0
        %2490 = vmatprep.subr.bf16.mxu0 0
        %2491 = vmatpush1.bf16.msra.mxu0 0
        %2492 = vmatprep.subr.bf16.mxu0 0
        %2493 = vmatpush1.bf16.msra.mxu0 0
        %2494 = vmatprep.subr.bf16.mxu0 0
        %2495 = vmatpush1.bf16.msra.mxu0 0
        %2496 = vmatprep.subr.bf16.mxu0 0
        %2497 = vmatpush1.bf16.msra.mxu0 0
        %2498 = vmatprep.subr.bf16.mxu0 0
        %2499 = vmatpush1.bf16.msra.mxu0 0
        %2500 = vmatprep.subr.bf16.mxu0 0
        %2501 = vmatpush1.bf16.msra.mxu0 0
        %2502 = vmatprep.subr.bf16.mxu0 0
        %2503 = vmatpush1.bf16.msra.mxu0 0
        %2504 = vmatprep.subr.bf16.mxu0 0
        %2505 = vmatpush1.bf16.msra.mxu0 0
        %2506 = vmatprep.subr.bf16.mxu0 0
        %2507 = vmatpush1.bf16.msra.mxu0 0
        %2508 = vmatprep.subr.bf16.mxu0 0
        %2509 = vmatpush1.bf16.msra.mxu0 0
        %2510 = vmatprep.mubr.bf16.mxu0 0
        %2511 = vmatmul.mubr.bf16.gmra.mrb[0].mxu0 %v2455
        %v2512 = vpop.f32.mrb[0].mxu0
        %v2513 = vadd.f32 %v2440, %v2512
        %v2514 = vpop.f32.mrb[0].mxu0
        %v2515 = vpop.f32.mrb[0].mxu0
        %v2516 = vadd.f32 %v2440, %v2515
        %v2517 = vpop.f32.mrb[0].mxu0
        %2518 = vmatprep.mubr.bf16.mxu0 0
        %2519 = vmatmul.mubr.bf16.gmra.mrb[0].mxu0 %v2458
        %v2520 = vpop.f32.mrb[0].mxu0
        %v2521 = vadd.f32 %v2440, %v2520
        %v2522 = vpop.f32.mrb[0].mxu0
        %v2523 = vpop.f32.mrb[0].mxu0
        %v2524 = vadd.f32 %v2440, %v2523
        %v2525 = vpop.f32.mrb[0].mxu0
        %2526 = vmatprep.mubr.bf16.mxu0 0
        %2527 = vmatmul.mubr.bf16.gmra.mrb[0].mxu0 %v2461
        %v2528 = vpop.f32.mrb[0].mxu0
        %v2529 = vadd.f32 %v2440, %v2528
        %v2530 = vpop.f32.mrb[0].mxu0
        %v2531 = vpop.f32.mrb[0].mxu0
        %v2532 = vadd.f32 %v2440, %v2531
        %v2533 = vpop.f32.mrb[0].mxu0
        %2534 = vmatprep.mubr.bf16.mxu0 0
        %2535 = vmatmul.mubr.bf16.gmra.mrb[0].mxu0 %v2464
        %v2536 = vpop.f32.mrb[0].mxu0
        %v2537 = vadd.f32 %v2440, %v2536
        %v2538 = vpop.f32.mrb[0].mxu0
        %v2539 = vpop.f32.mrb[0].mxu0
        %v2540 = vadd.f32 %v2440, %v2539
        %v2541 = vpop.f32.mrb[0].mxu0
        %2542 = vmatprep.mubr.bf16.mxu0 0
        %2543 = vmatmul.mubr.bf16.gmra.mrb[0].mxu0 %v2467
        %v2544 = vpop.f32.mrb[0].mxu0
        %v2545 = vadd.f32 %v2440, %v2544
        %v2546 = vpop.f32.mrb[0].mxu0
        %v2547 = vpop.f32.mrb[0].mxu0
        %v2548 = vadd.f32 %v2440, %v2547
        %v2549 = vpop.f32.mrb[0].mxu0
        %2550 = vmatprep.mubr.bf16.mxu0 0
        %2551 = vmatmul.mubr.bf16.gmra.mrb[0].mxu0 %v2470
        %v2552 = vpop.f32.mrb[0].mxu0
        %v2553 = vadd.f32 %v2440, %v2552
        %v2554 = vpop.f32.mrb[0].mxu0
        %v2555 = vpop.f32.mrb[0].mxu0
        %v2556 = vadd.f32 %v2440, %v2555
        %v2557 = vpop.f32.mrb[0].mxu0
        %2558 = vmatprep.mubr.bf16.mxu0 0
        %2559 = vmatmul.mubr.bf16.gmra.mrb[0].mxu0 %v2473
        %v2560 = vpop.f32.mrb[0].mxu0
        %v2561 = vadd.f32 %v2440, %v2560
        %v2562 = vpop.f32.mrb[0].mxu0
        %v2563 = vpop.f32.mrb[0].mxu0
        %v2564 = vadd.f32 %v2440, %v2563
        %v2565 = vpop.f32.mrb[0].mxu0
        %2566 = vmatprep.mubr.bf16.mxu0 0
        %2567 = vmatmul.mubr.bf16.gmra.mrb[0].mxu0 %v2476
        %v2568 = vpop.f32.mrb[0].mxu0
        %v2569 = vadd.f32 %v2440, %v2568
        %v2570 = vpop.f32.mrb[0].mxu0
        %v2571 = vpop.f32.mrb[0].mxu0
        %v2572 = vadd.f32 %v2440, %v2571
        %v2573 = vpop.f32.mrb[0].mxu0
        %2574 = vdwg.mxu0
        %v2575 = vmul.f32 %v2513, 0.5
        %v2576 = vmul.f32 %v2516, 0.5
        %v2577 = vmul.f32 %v2521, 0.5
        %v2578 = vmul.f32 %v2524, 0.5
        %v2579 = vmul.f32 %v2529, 0.5
        %v2580 = vmul.f32 %v2532, 0.5
        %v2581 = vmul.f32 %v2537, 0.5
        %v2582 = vmul.f32 %v2540, 0.5
        %v2583 = vmul.f32 %v2545, 0.5
        %v2584 = vmul.f32 %v2548, 0.5
        %v2585 = vmul.f32 %v2553, 0.5
        %v2586 = vmul.f32 %v2556, 0.5
        %v2587 = vmul.f32 %v2561, 0.5
        %v2588 = vmul.f32 %v2564, 0.5
        %v2589 = vmul.f32 %v2569, 0.5
        %v2590 = vmul.f32 %v2572, 0.5
        %v2591 = vmul.f32 %v2513, 0.044715
        %v2592 = vmul.f32 %v2516, 0.044715
        %v2593 = vmul.f32 %v2521, 0.044715
        %v2594 = vmul.f32 %v2524, 0.044715
        %v2595 = vmul.f32 %v2529, 0.044715
        %v2596 = vmul.f32 %v2532, 0.044715
        %v2597 = vmul.f32 %v2537, 0.044715
        %v2598 = vmul.f32 %v2540, 0.044715
        %v2599 = vmul.f32 %v2545, 0.044715
        %v2600 = vmul.f32 %v2548, 0.044715
        %v2601 = vmul.f32 %v2553, 0.044715
        %v2602 = vmul.f32 %v2556, 0.044715
        %v2603 = vmul.f32 %v2561, 0.044715
        %v2604 = vmul.f32 %v2564, 0.044715
        %v2605 = vmul.f32 %v2569, 0.044715
        %v2606 = vmul.f32 %v2572, 0.044715
        %v2607 = vmul.f32 %v2591, %v2513
        %v2608 = vmul.f32 %v2592, %v2516
        %v2609 = vmul.f32 %v2593, %v2521
        %v2610 = vmul.f32 %v2594, %v2524
        %v2611 = vmul.f32 %v2595, %v2529
        %v2612 = vmul.f32 %v2596, %v2532
        %v2613 = vmul.f32 %v2597, %v2537
        %v2614 = vmul.f32 %v2598, %v2540
        %v2615 = vmul.f32 %v2599, %v2545
        %v2616 = vmul.f32 %v2600, %v2548
        %v2617 = vmul.f32 %v2601, %v2553
        %v2618 = vmul.f32 %v2602, %v2556
        %v2619 = vmul.f32 %v2603, %v2561
        %v2620 = vmul.f32 %v2604, %v2564
        %v2621 = vmul.f32 %v2605, %v2569
        %v2622 = vmul.f32 %v2606, %v2572
        %v2623 = vmul.f32 %v2607, %v2513
        %v2624 = vmul.f32 %v2608, %v2516
        %v2625 = vmul.f32 %v2609, %v2521
        %v2626 = vmul.f32 %v2610, %v2524
        %v2627 = vmul.f32 %v2611, %v2529
        %v2628 = vmul.f32 %v2612, %v2532
        %v2629 = vmul.f32 %v2613, %v2537
        %v2630 = vmul.f32 %v2614, %v2540
        %v2631 = vmul.f32 %v2615, %v2545
        %v2632 = vmul.f32 %v2616, %v2548
        %v2633 = vmul.f32 %v2617, %v2553
        %v2634 = vmul.f32 %v2618, %v2556
        %v2635 = vmul.f32 %v2619, %v2561
        %v2636 = vmul.f32 %v2620, %v2564
        %v2637 = vmul.f32 %v2621, %v2569
        %v2638 = vmul.f32 %v2622, %v2572
        %v2639 = vadd.f32 %v2513, %v2623
        %v2640 = vadd.f32 %v2516, %v2624
        %v2641 = vadd.f32 %v2521, %v2625
        %v2642 = vadd.f32 %v2524, %v2626
        %v2643 = vadd.f32 %v2529, %v2627
        %v2644 = vadd.f32 %v2532, %v2628
        %v2645 = vadd.f32 %v2537, %v2629
        %v2646 = vadd.f32 %v2540, %v2630
        %v2647 = vadd.f32 %v2545, %v2631
        %v2648 = vadd.f32 %v2548, %v2632
        %v2649 = vadd.f32 %v2553, %v2633
        %v2650 = vadd.f32 %v2556, %v2634
        %v2651 = vadd.f32 %v2561, %v2635
        %v2652 = vadd.f32 %v2564, %v2636
        %v2653 = vadd.f32 %v2569, %v2637
        %v2654 = vadd.f32 %v2572, %v2638
        %v2655 = vmul.f32 %v2639, 0.7978846
        %v2656 = vmul.f32 %v2640, 0.7978846
        %v2657 = vmul.f32 %v2641, 0.7978846
        %v2658 = vmul.f32 %v2642, 0.7978846
        %v2659 = vmul.f32 %v2643, 0.7978846
        %v2660 = vmul.f32 %v2644, 0.7978846
        %v2661 = vmul.f32 %v2645, 0.7978846
        %v2662 = vmul.f32 %v2646, 0.7978846
        %v2663 = vmul.f32 %v2647, 0.7978846
        %v2664 = vmul.f32 %v2648, 0.7978846
        %v2665 = vmul.f32 %v2649, 0.7978846
        %v2666 = vmul.f32 %v2650, 0.7978846
        %v2667 = vmul.f32 %v2651, 0.7978846
        %v2668 = vmul.f32 %v2652, 0.7978846
        %v2669 = vmul.f32 %v2653, 0.7978846
        %v2670 = vmul.f32 %v2654, 0.7978846
        %v2671 = vtanh.pop %v2655
        %v2672 = vtanh.pop %v2656
        %v2673 = vtanh.pop %v2657
        %v2674 = vtanh.pop %v2658
        %v2675 = vtanh.pop %v2659
        %v2676 = vtanh.pop %v2660
        %v2677 = vtanh.pop %v2661
        %v2678 = vtanh.pop %v2662
        %v2679 = vtanh.pop %v2663
        %v2680 = vtanh.pop %v2664
        %v2681 = vtanh.pop %v2665
        %v2682 = vtanh.pop %v2666
        %v2683 = vtanh.pop %v2667
        %v2684 = vtanh.pop %v2668
        %v2685 = vtanh.pop %v2669
        %v2686 = vtanh.pop %v2670
        %v2687 = vadd.f32 %v2671, 1.0
        %v2688 = vadd.f32 %v2672, 1.0
        %v2689 = vadd.f32 %v2673, 1.0
        %v2690 = vadd.f32 %v2674, 1.0
        %v2691 = vadd.f32 %v2675, 1.0
        %v2692 = vadd.f32 %v2676, 1.0
        %v2693 = vadd.f32 %v2677, 1.0
        %v2694 = vadd.f32 %v2678, 1.0
        %v2695 = vadd.f32 %v2679, 1.0
        %v2696 = vadd.f32 %v2680, 1.0
        %v2697 = vadd.f32 %v2681, 1.0
        %v2698 = vadd.f32 %v2682, 1.0
        %v2699 = vadd.f32 %v2683, 1.0
        %v2700 = vadd.f32 %v2684, 1.0
        %v2701 = vadd.f32 %v2685, 1.0
        %v2702 = vadd.f32 %v2686, 1.0
        %v2703 = vmul.f32 %v2575, %v2687
        %v2704 = vmul.f32 %v2576, %v2688
        %v2705 = vmul.f32 %v2577, %v2689
        %v2706 = vmul.f32 %v2578, %v2690
        %v2707 = vmul.f32 %v2579, %v2691
        %v2708 = vmul.f32 %v2580, %v2692
        %v2709 = vmul.f32 %v2581, %v2693
        %v2710 = vmul.f32 %v2582, %v2694
        %v2711 = vmul.f32 %v2583, %v2695
        %v2712 = vmul.f32 %v2584, %v2696
        %v2713 = vmul.f32 %v2585, %v2697
        %v2714 = vmul.f32 %v2586, %v2698
        %v2715 = vmul.f32 %v2587, %v2699
        %v2716 = vmul.f32 %v2588, %v2700
        %v2717 = vmul.f32 %v2589, %v2701
        %v2718 = vmul.f32 %v2590, %v2702
        %v2719 = vld [vmem:[%s11] sm:$0x1]
        %v2720 = vpack.c.bf16 %v2704, %v2703
        %v2721 = vpack.c.bf16 %v2706, %v2705
        %v2722 = vpack.c.bf16 %v2708, %v2707
        %v2723 = vpack.c.bf16 %v2710, %v2709
        %v2724 = vpack.c.bf16 %v2712, %v2711
        %v2725 = vpack.c.bf16 %v2714, %v2713
        %v2726 = vpack.c.bf16 %v2716, %v2715
        %v2727 = vpack.c.bf16 %v2718, %v2717
        %v2728 = vld [vmem:[#allocation4] sm:$0x1]
        %2730 = vset.pattern.permute.xlu0 0
        %2731 = vperm.xlu0 %2730, %v2728
        %v2732 = vpop.permute.xlu0 %2731
        %v2734 = vlaneseq
        %v2735 = vshrl.u32 %v2734, 7
        %v2736 = vsub.s32 0, %v2735
        %v2737 = vrot.slane %v2732, %v2736
        %v2739 = vsel %vm617, %v2719, 0
        %v2742 = vsel %vm617, %v2720, 0
        %v2745 = vsel %vm617, %v2721, 0
        %v2748 = vsel %vm617, %v2722, 0
        %v2751 = vsel %vm617, %v2723, 0
        %v2754 = vsel %vm617, %v2724, 0
        %v2757 = vsel %vm617, %v2725, 0
        %v2760 = vsel %vm617, %v2726, 0
        %v2763 = vsel %vm617, %v2727, 0
        %2765 = vmatprep.subr.bf16.mxu0 0
        %2766 = vmatpush1.bf16.xpose.msra.mxu0 %v2742
        %2767 = vmatprep.subr.bf16.mxu0 0
        %2768 = vmatpush1.bf16.xpose.msra.mxu0 %v2745
        %2769 = vmatprep.subr.bf16.mxu0 0
        %2770 = vmatpush1.bf16.xpose.msra.mxu0 %v2748
        %2771 = vmatprep.subr.bf16.mxu0 0
        %2772 = vmatpush1.bf16.xpose.msra.mxu0 %v2751
        %2773 = vmatprep.subr.bf16.mxu0 0
        %2774 = vmatpush1.bf16.xpose.msra.mxu0 %v2754
        %2775 = vmatprep.subr.bf16.mxu0 0
        %2776 = vmatpush1.bf16.xpose.msra.mxu0 %v2757
        %2777 = vmatprep.subr.bf16.mxu0 0
        %2778 = vmatpush1.bf16.xpose.msra.mxu0 %v2760
        %2779 = vmatprep.subr.bf16.mxu0 0
        %2780 = vmatpush1.bf16.xpose.msra.mxu0 %v2763
        %2781 = vmatprep.subr.bf16.mxu0 0
        %2782 = vmatpush1.bf16.xpose.msra.mxu0 0
        %2783 = vmatprep.subr.bf16.mxu0 0
        %2784 = vmatpush1.bf16.xpose.msra.mxu0 0
        %2785 = vmatprep.subr.bf16.mxu0 0
        %2786 = vmatpush1.bf16.xpose.msra.mxu0 0
        %2787 = vmatprep.subr.bf16.mxu0 0
        %2788 = vmatpush1.bf16.xpose.msra.mxu0 0
        %2789 = vmatprep.subr.bf16.mxu0 0
        %2790 = vmatpush1.bf16.xpose.msra.mxu0 0
        %2791 = vmatprep.subr.bf16.mxu0 0
        %2792 = vmatpush1.bf16.xpose.msra.mxu0 0
        %2793 = vmatprep.subr.bf16.mxu0 0
        %2794 = vmatpush1.bf16.xpose.msra.mxu0 0
        %2795 = vmatprep.subr.bf16.mxu0 0
        %2796 = vmatpush1.bf16.xpose.msra.mxu0 0
        %2797 = vmatprep.mubr.bf16.mxu0 0
        %2798 = vmatmul.mubr.bf16.gmra.mrb[0].mxu0 %v2739
        %v2799 = vpop.f32.mrb[0].mxu0
        %v2800 = vadd.f32 %v2737, %v2799
        %v2801 = vpop.f32.mrb[0].mxu0
        %v2802 = vpop.f32.mrb[0].mxu0
        %v2803 = vpop.f32.mrb[0].mxu0
        %2804 = vdwg.mxu0
        %2805 = vst [vmem:[%s446] sm:$0x1] %v2800
        %s2806 = sand.u32 %s320, 1
        %s2807 = scalar_lea.sflag [#allocation6], %s2806
        %s2808 = sand.u32 %s320, 1
        %s2809 = scalar_lea.vmem [#allocation5], %s2808
        // Predicated region
        $region73: #{tpu_custom_call.1} parent=71 // pred_check
          %p2810 = pneg %p330
        $region74: #{tpu_custom_call.1} parent=71 // pred_check_branch
          %2812 = sbr.rel (%p2810) target = $region76
        $region75: #{tpu_custom_call.1} parent=71 // pred_region
          %s2814 = ssub.s32 16, 16
          %2815 = vsyncadd %s2807, %s2814
          %s2816 = smul.addr %s29, 16
          %s2817 = scalar_lea.hbm %s13, %s2816
          %s2819 = sshll.u32 %s2809, 4
          %s2820 = int_to_ptr.vmem [resolvable:$true] %s2819
          %2822 = dma.vmem_to_hbm [thread:$0]  %s2820, 16, %s2817, %s2807
        $region76: #{tpu_custom_call.1} parent=71 // pred_fallthru
          _
      $region72: #{tpu_custom_call.1} parent=5 // pred_fallthru
        _
      %p2823 = scmp.le.s32.totalorder 2, %s24
      // Predicated region
      $region77: #{tpu_custom_call.1} parent=5 // pred_check
        %p2824 = pneg %p2823
      $region78: #{tpu_custom_call.1} parent=5 // pred_check_branch
        %2826 = sbr.rel (%p2824) target = $region80
      $region79: #{tpu_custom_call.1} parent=5 // pred_region
        %s2827 = ssub.s32 %s24, 2
        // Predicated region
        $region81: #{tpu_custom_call.1} parent=79 // pred_check
          %p2828 = pneg %p336
        $region82: #{tpu_custom_call.1} parent=79 // pred_check_branch
          %2830 = sbr.rel (%p2828) target = $region84
        $region83: #{tpu_custom_call.1} parent=79 // pred_region
          %s2831 = sand.u32 %s321, 1
          %s2832 = scalar_lea.sflag [#allocation6], %s2831
          %s2833 = sand.u32 %s321, 1
          %s2834 = scalar_lea.vmem [#allocation5], %s2833
          %2835 = dma.done %s2832, 16
        $region84: #{tpu_custom_call.1} parent=79 // pred_fallthru
          _
      $region80: #{tpu_custom_call.1} parent=5 // pred_fallthru
        _
    $region6: #{tpu_custom_call.1} parent=1 // loop_footer
      %s28 = sadd.s32 1, %s24
    $region7: #{tpu_custom_call.1} parent=1 // loop_footer_branch
      %23 = sbr.rel target = $region3
    $region8: #{tpu_custom_call.1} parent=1 // loop_exit
      _
    %2836 = vsyncpa [#allocation6], 1
    %s2837 = scalar_lea.sflag [#allocation6], 1
    %2838 = vsyncpa %s2837, 1

</llo_original>
